<compile_context>
chip_gen: v7x
topology: tpu7x:2x2x1
jax: 0.10.0
libtpu: 0.0.40
codegen_flags: <defaults>
</compile_context>

<pallas_src>
import math

import numpy as np
import jax
import jax.numpy as jnp
from jax.experimental import pallas as pl
from jax.experimental.pallas import tpu as pltpu


# --------------------- bilinear x2 interpolation weights --------------------

def _interp_matrix(in_size, out_size, align_corners):
    """PyTorch nn.Upsample(mode='bilinear') 1-D interpolation matrix (out, in)."""
    m = np.zeros((out_size, in_size), dtype=np.float32)
    for j in range(out_size):
        if align_corners:
            src = 0.0 if out_size == 1 else j * (in_size - 1) / (out_size - 1)
        else:
            src = max((j + 0.5) * in_size / out_size - 0.5, 0.0)
        i0 = min(int(np.floor(src)), in_size - 1)
        i1 = min(i0 + 1, in_size - 1)
        frac = src - i0
        m[j, i0] += 1.0 - frac
        m[j, i1] += frac
    return m


# ------------------------------ fused kernel --------------------------------

def _fpn_fused_kernel(c2_ref, c3_ref, c4_ref, c5_ref,
                      topw_ref, topb_ref, l1w_ref, l1b_ref, l2w_ref, l2b_ref,
                      u54_ref, u43_ref, u32_ref,
                      p2_ref, p3_ref, p4_ref, p5_ref):
    f32 = jnp.float32
    bf16 = jnp.bfloat16

    def conv1x1(x_ref, w_ref, b_ref):
        # bf16 operands, f32 MXU accumulation, f32 bias.
        return (jnp.dot(x_ref[...], w_ref[...], preferred_element_type=f32)
                + b_ref[...])

    def up2x(u_ref, prev_ref):
        # Full bilinear x2 as one (4hw, hw) @ (hw, C) MXU matmul; bf16 operands,
        # f32 accumulation. `prev_ref` is the previous level's output ref (VMEM).
        return jnp.dot(u_ref[...], prev_ref[...].astype(bf16),
                       preferred_element_type=f32)

    # p5 = toplayer(c5)
    p5_ref[...] = conv1x1(c5_ref, topw_ref, topb_ref).astype(p5_ref.dtype)
    # p4 = upLayer(p5)   [bilinear x2, align_corners=True]  + latlayer1(c4)
    p4_ref[...] = (conv1x1(c4_ref, l1w_ref, l1b_ref)
                   + up2x(u54_ref, p5_ref)).astype(p4_ref.dtype)
    # p3 = upLayer2(p4)  [bilinear x2, align_corners=False] + latlayer2(c3)
    p3_ref[...] = (conv1x1(c3_ref, l2w_ref, l2b_ref)
                   + up2x(u43_ref, p4_ref)).astype(p3_ref.dtype)
    # p2 = upLayer3(p3)  [bilinear x2, align_corners=True]  + latlayer2(c2)
    #      (latlayer2 on c2, exactly as written in the reference forward)
    p2_ref[...] = (conv1x1(c2_ref, l2w_ref, l2b_ref)
                   + up2x(u32_ref, p3_ref)).astype(p2_ref.dtype)


# -------------------------------- wrapper -----------------------------------

def fpn_forward_nhwc(params, c2, c3, c4, c5):
    """NHWC inputs -> (p2, p3, p4, p5) NHWC, all with 256 channels."""
    N, H5, W5, C5 = c5.shape
    _, H4, W4, C4 = c4.shape
    _, H3, W3, C3 = c3.shape
    _, H2, W2, C2 = c2.shape
    assert (H4, W4) == (2 * H5, 2 * W5)
    assert (H3, W3) == (2 * H4, 2 * W4)
    assert (H2, W2) == (2 * H3, 2 * W3)
    Co = params["top_w"].shape[1]

    bf16 = jnp.bfloat16
    flat = lambda t: t.reshape(t.shape[0], -1, t.shape[-1]).astype(bf16)
    c2f, c3f, c4f, c5f = map(flat, (c2, c3, c4, c5))
    wcast = lambda w: w.astype(bf16)
    b2d = lambda b: b.reshape(1, -1).astype(jnp.float32)

    # Full bilinear x2 operators U = kron(Uh, Uw) (PyTorch nn.Upsample semantics),
    # built in f32 at trace time and cast once to bf16.
    def up_op(hin, win, hout, wout, align):
        u = np.kron(_interp_matrix(hin, hout, align),
                    _interp_matrix(win, wout, align))
        return jnp.asarray(u, dtype=bf16)

    u54 = up_op(H5, W5, H4, W4, True)    # (H4*W4, H5*W5)
    u43 = up_op(H4, W4, H3, W3, False)   # (H3*W3, H4*W4)
    u32 = up_op(H3, W3, H2, W2, True)    # (H2*W2, H3*W3)

    batched = lambda hw, c: pl.BlockSpec((None, hw, c), lambda n: (n, 0, 0))
    full = lambda r, c: pl.BlockSpec((r, c), lambda n: (0, 0))

    out_shapes = (
        jax.ShapeDtypeStruct((N, H2 * W2, Co), jnp.float32),
        jax.ShapeDtypeStruct((N, H3 * W3, Co), jnp.float32),
        jax.ShapeDtypeStruct((N, H4 * W4, Co), jnp.float32),
        jax.ShapeDtypeStruct((N, H5 * W5, Co), jnp.float32),
    )

    p2, p3, p4, p5 = pl.pallas_call(
        _fpn_fused_kernel,
        out_shape=out_shapes,
        grid_spec=pltpu.PrefetchScalarGridSpec(
            num_scalar_prefetch=0,
            grid=(N,),
            in_specs=[batched(H2 * W2, C2), batched(H3 * W3, C3),
                      batched(H4 * W4, C4), batched(H5 * W5, C5),
                      full(C5, Co), full(1, Co),
                      full(C4, Co), full(1, Co),
                      full(C3, Co), full(1, Co),
                      full(H4 * W4, H5 * W5),
                      full(H3 * W3, H4 * W4),
                      full(H2 * W2, H3 * W3)],
            out_specs=[batched(H2 * W2, Co), batched(H3 * W3, Co),
                       batched(H4 * W4, Co), batched(H5 * W5, Co)]),
        compiler_params=pltpu.CompilerParams(
            dimension_semantics=("parallel",),
            vmem_limit_bytes=32 * 1024 * 1024),
    )(c2f, c3f, c4f, c5f,
      wcast(params["top_w"]), b2d(params["top_b"]),
      wcast(params["lat1_w"]), b2d(params["lat1_b"]),
      wcast(params["lat2_w"]), b2d(params["lat2_b"]),
      u54, u43, u32)

    unflat = lambda t, h, w: t.reshape(N, h, w, Co)
    return (unflat(p2, H2, W2), unflat(p3, H3, W3),
            unflat(p4, H4, W4), unflat(p5, H5, W5))


def fpn_forward(params, c2, c3, c4, c5):
    """NCHW inputs (PyTorch convention) -> [p2, p3, p4, p5] in NCHW."""
    to_nhwc = lambda t: jnp.transpose(t, (0, 2, 3, 1))
    to_nchw = lambda t: jnp.transpose(t, (0, 3, 1, 2))
    p2, p3, p4, p5 = fpn_forward_nhwc(
        params, to_nhwc(c2), to_nhwc(c3), to_nhwc(c4), to_nhwc(c5))
    return [to_nchw(p2), to_nchw(p3), to_nchw(p4), to_nchw(p5)]


# ------------------------------- parameters ---------------------------------

def make_fpn_params(key):
    def conv_w(k, cin, cout, ksz=1):
        std = math.sqrt(2.0 / (ksz * ksz * cout))            # FPN._weight_init
        return std * jax.random.normal(k, (cin, cout), jnp.float32)

    def conv_b(k, cin, cout, ksz=1):
        bound = 1.0 / math.sqrt(cin * ksz * ksz)              # PyTorch default bias init
        return jax.random.uniform(k, (cout,), jnp.float32, -bound, bound)

    ks = jax.random.split(key, 6)
    return {
        "top_w": conv_w(ks[0], 2048, 256), "top_b": conv_b(ks[1], 2048, 256),
        "lat1_w": conv_w(ks[2], 1024, 256), "lat1_b": conv_b(ks[3], 1024, 256),
        "lat2_w": conv_w(ks[4], 512, 256), "lat2_b": conv_b(ks[5], 512, 256),
    }


# --------------------------- pure-JAX reference ------------------------------

def _upsample2x_ref(x, h, w, uh, uw):
    N, _, C = x.shape
    x4 = x.reshape(N, h, w, C)
    x4 = jnp.einsum('Yh,nhwc->nYwc', jnp.asarray(uh), x4)
    x4 = jnp.einsum('Xw,nYwc->nYXc', jnp.asarray(uw), x4)
    return x4.reshape(N, (2 * h) * (2 * w), C)


def fpn_reference(params, c2, c3, c4, c5):
    """Plain-JAX reference with bf16-operand / f32-accumulate conv math."""
    bf16 = jnp.bfloat16
    to_flat = lambda t: jnp.transpose(t, (0, 2, 3, 1)).reshape(
        t.shape[0], t.shape[2] * t.shape[3], t.shape[1]).astype(bf16)
    c2f, c3f, c4f, c5f = map(to_flat, (c2, c3, c4, c5))
    conv = lambda x, w, b: (jnp.einsum('nsc,cd->nsd', x, w.astype(bf16),
                                       preferred_element_type=jnp.float32)
                            + b.reshape(1, 1, -1))
    H5, W5 = c5.shape[2], c5.shape[3]
    H4, W4 = c4.shape[2], c4.shape[3]
    H3, W3 = c3.shape[2], c3.shape[3]
    H2, W2 = c2.shape[2], c2.shape[3]

    p5 = conv(c5f, params["top_w"], params["top_b"])
    p4 = _upsample2x_ref(p5, H5, W5, _interp_matrix(H5, H4, True),
                         _interp_matrix(W5, W4, True)) \
        + conv(c4f, params["lat1_w"], params["lat1_b"])
    p3 = _upsample2x_ref(p4, H4, W4, _interp_matrix(H4, H3, False),
                         _interp_matrix(W4, W3, False)) \
        + conv(c3f, params["lat2_w"], params["lat2_b"])
    p2 = _upsample2x_ref(p3, H3, W3, _interp_matrix(H3, H2, True),
                         _interp_matrix(W3, W2, True)) \
        + conv(c2f, params["lat2_w"], params["lat2_b"])

    unflat = lambda t, h, w: jnp.transpose(
        t.reshape(t.shape[0], h, w, -1), (0, 3, 1, 2))
    return [unflat(p2, H2, W2), unflat(p3, H3, W3),
            unflat(p4, H4, W4), unflat(p5, H5, W5)]


# ----------------------------------- main ------------------------------------

if __name__ == "__main__":
    key = jax.random.PRNGKey(0)
    kp, k2, k3, k4, k5 = jax.random.split(key, 5)
    params = make_fpn_params(kp)

    N = 2
    c5 = jax.random.normal(k5, (N, 2048, 4, 4), jnp.float32)
    c4 = jax.random.normal(k4, (N, 1024, 8, 8), jnp.float32)
    c3 = jax.random.normal(k3, (N, 512, 16, 16), jnp.float32)
    # TODO(synk): reference forward applies latlayer2 (512->256) to c2 as well,
    # so c2 is generated with 512 channels here.
    c2 = jax.random.normal(k2, (N, 512, 32, 32), jnp.float32)

    outs = jax.block_until_ready(jax.jit(fpn_forward)(params, c2, c3, c4, c5))

    expected = [(N, 256, 32, 32), (N, 256, 16, 16), (N, 256, 8, 8), (N, 256, 4, 4)]
    got = [tuple(int(d) for d in o.shape) for o in outs]
    assert got == expected, (got, expected)
    assert all(bool(jnp.all(jnp.isfinite(o))) for o in outs)

    refs = jax.block_until_ready(jax.jit(fpn_reference)(params, c2, c3, c4, c5))
    for o, r in zip(outs, refs):
        err = float(jnp.max(jnp.abs(o - r)))
        scale = float(jnp.max(jnp.abs(r))) + 1.0
        assert err <= 5e-2 * scale, ("mismatch vs reference", err, scale)

    print("KERNEL_OK")
</pallas_src>

<mosaic_0001>
module attributes {stable_mosaic.version = 11 : i64} {
  func.func @_fpn_fused_kernel(%arg0: i32, %arg1: memref<1x1024x512xbf16, #tpu.memory_space<vmem>>, %arg2: memref<1x256x512xbf16, #tpu.memory_space<vmem>>, %arg3: memref<1x64x1024xbf16, #tpu.memory_space<vmem>>, %arg4: memref<1x16x2048xbf16, #tpu.memory_space<vmem>>, %arg5: memref<2048x256xbf16, #tpu.memory_space<vmem>>, %arg6: memref<1x256xf32, #tpu.memory_space<vmem>>, %arg7: memref<1024x256xbf16, #tpu.memory_space<vmem>>, %arg8: memref<1x256xf32, #tpu.memory_space<vmem>>, %arg9: memref<512x256xbf16, #tpu.memory_space<vmem>>, %arg10: memref<1x256xf32, #tpu.memory_space<vmem>>, %arg11: memref<64x16xbf16, #tpu.memory_space<vmem>>, %arg12: memref<256x64xbf16, #tpu.memory_space<vmem>>, %arg13: memref<1024x256xbf16, #tpu.memory_space<vmem>>, %arg14: memref<1x1024x256xf32, #tpu.memory_space<vmem>>, %arg15: memref<1x256x256xf32, #tpu.memory_space<vmem>>, %arg16: memref<1x64x256xf32, #tpu.memory_space<vmem>>, %arg17: memref<1x16x256xf32, #tpu.memory_space<vmem>>) attributes {dimension_semantics = [#tpu.dimension_semantics<parallel>], iteration_bounds = array<i64: 2>, scalar_prefetch = 0 : i64, scratch_operands = 0 : i64, tpu.core_type = #tpu.core_type<tc>, window_params = [{transform_indices = @transform_0, window_bounds = array<i64: 1, 1024, 512>}, {transform_indices = @transform_1, window_bounds = array<i64: 1, 256, 512>}, {transform_indices = @transform_2, window_bounds = array<i64: 1, 64, 1024>}, {transform_indices = @transform_3, window_bounds = array<i64: 1, 16, 2048>}, {pipeline_mode = #tpu.pipeline_mode<synchronous>, transform_indices = @transform_4, window_bounds = array<i64: 2048, 256>}, {pipeline_mode = #tpu.pipeline_mode<synchronous>, transform_indices = @transform_5, window_bounds = array<i64: 1, 256>}, {pipeline_mode = #tpu.pipeline_mode<synchronous>, transform_indices = @transform_6, window_bounds = array<i64: 1024, 256>}, {pipeline_mode = #tpu.pipeline_mode<synchronous>, transform_indices = @transform_7, window_bounds = array<i64: 1, 256>}, {pipeline_mode = #tpu.pipeline_mode<synchronous>, transform_indices = @transform_8, window_bounds = array<i64: 512, 256>}, {pipeline_mode = #tpu.pipeline_mode<synchronous>, transform_indices = @transform_9, window_bounds = array<i64: 1, 256>}, {pipeline_mode = #tpu.pipeline_mode<synchronous>, transform_indices = @transform_10, window_bounds = array<i64: 64, 16>}, {pipeline_mode = #tpu.pipeline_mode<synchronous>, transform_indices = @transform_11, window_bounds = array<i64: 256, 64>}, {pipeline_mode = #tpu.pipeline_mode<synchronous>, transform_indices = @transform_12, window_bounds = array<i64: 1024, 256>}, {transform_indices = @transform_13, window_bounds = array<i64: 1, 1024, 256>}, {transform_indices = @transform_14, window_bounds = array<i64: 1, 256, 256>}, {transform_indices = @transform_15, window_bounds = array<i64: 1, 64, 256>}, {transform_indices = @transform_16, window_bounds = array<i64: 1, 16, 256>}]} {
    %c0 = arith.constant 0 : index
    %c0_0 = arith.constant 0 : index
    %c0_1 = arith.constant 0 : index
    %0 = vector.load %arg4[%c0, %c0_0, %c0_1] : memref<1x16x2048xbf16, #tpu.memory_space<vmem>>, vector<1x16x2048xbf16>
    %1 = vector.shape_cast %0 : vector<1x16x2048xbf16> to vector<16x2048xbf16>
    %c0_2 = arith.constant 0 : index
    %c0_3 = arith.constant 0 : index
    %2 = vector.load %arg5[%c0_2, %c0_3] : memref<2048x256xbf16, #tpu.memory_space<vmem>>, vector<2048x256xbf16>
    %cst = arith.constant dense<0.000000e+00> : vector<16x256xf32>
    %3 = tpu.matmul %1, %2, %cst {dimension_numbers = #tpu.dot_dimension_numbers<[1], [0], [0], [1], [0, 0, 1, 1], [], []>} : vector<16x2048xbf16>, vector<2048x256xbf16>, vector<16x256xf32> -> vector<16x256xf32>
    %c0_4 = arith.constant 0 : index
    %c0_5 = arith.constant 0 : index
    %4 = vector.load %arg6[%c0_4, %c0_5] : memref<1x256xf32, #tpu.memory_space<vmem>>, vector<1x256xf32>
    %5 = vector.broadcast %4 : vector<1x256xf32> to vector<16x256xf32>
    %6 = arith.addf %3, %5 : vector<16x256xf32>
    %c0_6 = arith.constant 0 : index
    %c0_7 = arith.constant 0 : index
    %c0_8 = arith.constant 0 : index
    %7 = vector.load %arg17[%c0_6, %c0_7, %c0_8] : memref<1x16x256xf32, #tpu.memory_space<vmem>>, vector<1x16x256xf32>
    %8 = vector.shape_cast %7 : vector<1x16x256xf32> to vector<16x256xf32>
    %9 = vector.shape_cast %6 : vector<16x256xf32> to vector<1x16x256xf32>
    tpu.vector_store %arg17[%c0_6, %c0_7, %c0_8], %9 {strides = array<i32>} : memref<1x16x256xf32, #tpu.memory_space<vmem>>, vector<1x16x256xf32>,
    %c0_9 = arith.constant 0 : index
    %c0_10 = arith.constant 0 : index
    %c0_11 = arith.constant 0 : index
    %10 = vector.load %arg3[%c0_9, %c0_10, %c0_11] : memref<1x64x1024xbf16, #tpu.memory_space<vmem>>, vector<1x64x1024xbf16>
    %11 = vector.shape_cast %10 : vector<1x64x1024xbf16> to vector<64x1024xbf16>
    %c0_12 = arith.constant 0 : index
    %c0_13 = arith.constant 0 : index
    %12 = vector.load %arg7[%c0_12, %c0_13] : memref<1024x256xbf16, #tpu.memory_space<vmem>>, vector<1024x256xbf16>
    %cst_14 = arith.constant dense<0.000000e+00> : vector<64x256xf32>
    %13 = tpu.matmul %11, %12, %cst_14 {dimension_numbers = #tpu.dot_dimension_numbers<[1], [0], [0], [1], [0, 0, 1, 1], [], []>} : vector<64x1024xbf16>, vector<1024x256xbf16>, vector<64x256xf32> -> vector<64x256xf32>
    %c0_15 = arith.constant 0 : index
    %c0_16 = arith.constant 0 : index
    %14 = vector.load %arg8[%c0_15, %c0_16] : memref<1x256xf32, #tpu.memory_space<vmem>>, vector<1x256xf32>
    %15 = vector.broadcast %14 : vector<1x256xf32> to vector<64x256xf32>
    %16 = arith.addf %13, %15 : vector<64x256xf32>
    %c0_17 = arith.constant 0 : index
    %c0_18 = arith.constant 0 : index
    %17 = vector.load %arg11[%c0_17, %c0_18] : memref<64x16xbf16, #tpu.memory_space<vmem>>, vector<64x16xbf16>
    %c0_19 = arith.constant 0 : index
    %c0_20 = arith.constant 0 : index
    %c0_21 = arith.constant 0 : index
    %18 = vector.load %arg17[%c0_19, %c0_20, %c0_21] : memref<1x16x256xf32, #tpu.memory_space<vmem>>, vector<1x16x256xf32>
    %19 = vector.shape_cast %18 : vector<1x16x256xf32> to vector<16x256xf32>
    %20 = arith.truncf %19 : vector<16x256xf32> to vector<16x256xbf16>
    %cst_22 = arith.constant dense<0.000000e+00> : vector<64x256xf32>
    %21 = tpu.matmul %17, %20, %cst_22 {dimension_numbers = #tpu.dot_dimension_numbers<[1], [0], [0], [1], [0, 0, 1, 1], [], []>} : vector<64x16xbf16>, vector<16x256xbf16>, vector<64x256xf32> -> vector<64x256xf32>
    %22 = arith.addf %16, %21 : vector<64x256xf32>
    %c0_23 = arith.constant 0 : index
    %c0_24 = arith.constant 0 : index
    %c0_25 = arith.constant 0 : index
    %23 = vector.load %arg16[%c0_23, %c0_24, %c0_25] : memref<1x64x256xf32, #tpu.memory_space<vmem>>, vector<1x64x256xf32>
    %24 = vector.shape_cast %23 : vector<1x64x256xf32> to vector<64x256xf32>
    %25 = vector.shape_cast %22 : vector<64x256xf32> to vector<1x64x256xf32>
    tpu.vector_store %arg16[%c0_23, %c0_24, %c0_25], %25 {strides = array<i32>} : memref<1x64x256xf32, #tpu.memory_space<vmem>>, vector<1x64x256xf32>,
    %c0_26 = arith.constant 0 : index
    %c0_27 = arith.constant 0 : index
    %c0_28 = arith.constant 0 : index
    %26 = vector.load %arg2[%c0_26, %c0_27, %c0_28] : memref<1x256x512xbf16, #tpu.memory_space<vmem>>, vector<1x256x512xbf16>
    %27 = vector.shape_cast %26 : vector<1x256x512xbf16> to vector<256x512xbf16>
    %c0_29 = arith.constant 0 : index
    %c0_30 = arith.constant 0 : index
    %28 = vector.load %arg9[%c0_29, %c0_30] : memref<512x256xbf16, #tpu.memory_space<vmem>>, vector<512x256xbf16>
    %cst_31 = arith.constant dense<0.000000e+00> : vector<256x256xf32>
    %29 = tpu.matmul %27, %28, %cst_31 {dimension_numbers = #tpu.dot_dimension_numbers<[1], [0], [0], [1], [0, 0, 1, 1], [], []>} : vector<256x512xbf16>, vector<512x256xbf16>, vector<256x256xf32> -> vector<256x256xf32>
    %c0_32 = arith.constant 0 : index
    %c0_33 = arith.constant 0 : index
    %30 = vector.load %arg10[%c0_32, %c0_33] : memref<1x256xf32, #tpu.memory_space<vmem>>, vector<1x256xf32>
    %31 = vector.broadcast %30 : vector<1x256xf32> to vector<256x256xf32>
    %32 = arith.addf %29, %31 : vector<256x256xf32>
    %c0_34 = arith.constant 0 : index
    %c0_35 = arith.constant 0 : index
    %33 = vector.load %arg12[%c0_34, %c0_35] : memref<256x64xbf16, #tpu.memory_space<vmem>>, vector<256x64xbf16>
    %c0_36 = arith.constant 0 : index
    %c0_37 = arith.constant 0 : index
    %c0_38 = arith.constant 0 : index
    %34 = vector.load %arg16[%c0_36, %c0_37, %c0_38] : memref<1x64x256xf32, #tpu.memory_space<vmem>>, vector<1x64x256xf32>
    %35 = vector.shape_cast %34 : vector<1x64x256xf32> to vector<64x256xf32>
    %36 = arith.truncf %35 : vector<64x256xf32> to vector<64x256xbf16>
    %cst_39 = arith.constant dense<0.000000e+00> : vector<256x256xf32>
    %37 = tpu.matmul %33, %36, %cst_39 {dimension_numbers = #tpu.dot_dimension_numbers<[1], [0], [0], [1], [0, 0, 1, 1], [], []>} : vector<256x64xbf16>, vector<64x256xbf16>, vector<256x256xf32> -> vector<256x256xf32>
    %38 = arith.addf %32, %37 : vector<256x256xf32>
    %c0_40 = arith.constant 0 : index
    %c0_41 = arith.constant 0 : index
    %c0_42 = arith.constant 0 : index
    %39 = vector.load %arg15[%c0_40, %c0_41, %c0_42] : memref<1x256x256xf32, #tpu.memory_space<vmem>>, vector<1x256x256xf32>
    %40 = vector.shape_cast %39 : vector<1x256x256xf32> to vector<256x256xf32>
    %41 = vector.shape_cast %38 : vector<256x256xf32> to vector<1x256x256xf32>
    tpu.vector_store %arg15[%c0_40, %c0_41, %c0_42], %41 {strides = array<i32>} : memref<1x256x256xf32, #tpu.memory_space<vmem>>, vector<1x256x256xf32>,
    %c0_43 = arith.constant 0 : index
    %c0_44 = arith.constant 0 : index
    %c0_45 = arith.constant 0 : index
    %42 = vector.load %arg1[%c0_43, %c0_44, %c0_45] : memref<1x1024x512xbf16, #tpu.memory_space<vmem>>, vector<1x1024x512xbf16>
    %43 = vector.shape_cast %42 : vector<1x1024x512xbf16> to vector<1024x512xbf16>
    %c0_46 = arith.constant 0 : index
    %c0_47 = arith.constant 0 : index
    %44 = vector.load %arg9[%c0_46, %c0_47] : memref<512x256xbf16, #tpu.memory_space<vmem>>, vector<512x256xbf16>
    %cst_48 = arith.constant dense<0.000000e+00> : vector<1024x256xf32>
    %45 = tpu.matmul %43, %44, %cst_48 {dimension_numbers = #tpu.dot_dimension_numbers<[1], [0], [0], [1], [0, 0, 1, 1], [], []>} : vector<1024x512xbf16>, vector<512x256xbf16>, vector<1024x256xf32> -> vector<1024x256xf32>
    %c0_49 = arith.constant 0 : index
    %c0_50 = arith.constant 0 : index
    %46 = vector.load %arg10[%c0_49, %c0_50] : memref<1x256xf32, #tpu.memory_space<vmem>>, vector<1x256xf32>
    %47 = vector.broadcast %46 : vector<1x256xf32> to vector<1024x256xf32>
    %48 = arith.addf %45, %47 : vector<1024x256xf32>
    %c0_51 = arith.constant 0 : index
    %c0_52 = arith.constant 0 : index
    %49 = vector.load %arg13[%c0_51, %c0_52] : memref<1024x256xbf16, #tpu.memory_space<vmem>>, vector<1024x256xbf16>
    %c0_53 = arith.constant 0 : index
    %c0_54 = arith.constant 0 : index
    %c0_55 = arith.constant 0 : index
    %50 = vector.load %arg15[%c0_53, %c0_54, %c0_55] : memref<1x256x256xf32, #tpu.memory_space<vmem>>, vector<1x256x256xf32>
    %51 = vector.shape_cast %50 : vector<1x256x256xf32> to vector<256x256xf32>
    %52 = arith.truncf %51 : vector<256x256xf32> to vector<256x256xbf16>
    %cst_56 = arith.constant dense<0.000000e+00> : vector<1024x256xf32>
    %53 = tpu.matmul %49, %52, %cst_56 {dimension_numbers = #tpu.dot_dimension_numbers<[1], [0], [0], [1], [0, 0, 1, 1], [], []>} : vector<1024x256xbf16>, vector<256x256xbf16>, vector<1024x256xf32> -> vector<1024x256xf32>
    %54 = arith.addf %48, %53 : vector<1024x256xf32>
    %c0_57 = arith.constant 0 : index
    %c0_58 = arith.constant 0 : index
    %c0_59 = arith.constant 0 : index
    %55 = vector.load %arg14[%c0_57, %c0_58, %c0_59] : memref<1x1024x256xf32, #tpu.memory_space<vmem>>, vector<1x1024x256xf32>
    %56 = vector.shape_cast %55 : vector<1x1024x256xf32> to vector<1024x256xf32>
    %57 = vector.shape_cast %54 : vector<1024x256xf32> to vector<1x1024x256xf32>
    tpu.vector_store %arg14[%c0_57, %c0_58, %c0_59], %57 {strides = array<i32>} : memref<1x1024x256xf32, #tpu.memory_space<vmem>>, vector<1x1024x256xf32>,
    return
  }
  func.func @transform_0(%arg0: i32) -> (i32, i32, i32) {
    %c0_i32 = arith.constant 0 : i32
    %c0_i32_0 = arith.constant 0 : i32
    %c0_i32_1 = arith.constant 0 : i32
    return %arg0, %c0_i32, %c0_i32_0 : i32, i32, i32
  }
  func.func @transform_1(%arg0: i32) -> (i32, i32, i32) {
    %c0_i32 = arith.constant 0 : i32
    %c0_i32_0 = arith.constant 0 : i32
    %c0_i32_1 = arith.constant 0 : i32
    return %arg0, %c0_i32, %c0_i32_0 : i32, i32, i32
  }
  func.func @transform_2(%arg0: i32) -> (i32, i32, i32) {
    %c0_i32 = arith.constant 0 : i32
    %c0_i32_0 = arith.constant 0 : i32
    %c0_i32_1 = arith.constant 0 : i32
    return %arg0, %c0_i32, %c0_i32_0 : i32, i32, i32
  }
  func.func @transform_3(%arg0: i32) -> (i32, i32, i32) {
    %c0_i32 = arith.constant 0 : i32
    %c0_i32_0 = arith.constant 0 : i32
    %c0_i32_1 = arith.constant 0 : i32
    return %arg0, %c0_i32, %c0_i32_0 : i32, i32, i32
  }
  func.func @transform_4(%arg0: i32) -> (i32, i32) {
    %c0_i32 = arith.constant 0 : i32
    %c0_i32_0 = arith.constant 0 : i32
    %c0_i32_1 = arith.constant 0 : i32
    return %c0_i32, %c0_i32_0 : i32, i32
  }
  func.func @transform_5(%arg0: i32) -> (i32, i32) {
    %c0_i32 = arith.constant 0 : i32
    %c0_i32_0 = arith.constant 0 : i32
    %c0_i32_1 = arith.constant 0 : i32
    return %c0_i32, %c0_i32_0 : i32, i32
  }
  func.func @transform_6(%arg0: i32) -> (i32, i32) {
    %c0_i32 = arith.constant 0 : i32
    %c0_i32_0 = arith.constant 0 : i32
    %c0_i32_1 = arith.constant 0 : i32
    return %c0_i32, %c0_i32_0 : i32, i32
  }
  func.func @transform_7(%arg0: i32) -> (i32, i32) {
    %c0_i32 = arith.constant 0 : i32
    %c0_i32_0 = arith.constant 0 : i32
    %c0_i32_1 = arith.constant 0 : i32
    return %c0_i32, %c0_i32_0 : i32, i32
  }
  func.func @transform_8(%arg0: i32) -> (i32, i32) {
    %c0_i32 = arith.constant 0 : i32
    %c0_i32_0 = arith.constant 0 : i32
    %c0_i32_1 = arith.constant 0 : i32
    return %c0_i32, %c0_i32_0 : i32, i32
  }
  func.func @transform_9(%arg0: i32) -> (i32, i32) {
    %c0_i32 = arith.constant 0 : i32
    %c0_i32_0 = arith.constant 0 : i32
    %c0_i32_1 = arith.constant 0 : i32
    return %c0_i32, %c0_i32_0 : i32, i32
  }
  func.func @transform_10(%arg0: i32) -> (i32, i32) {
    %c0_i32 = arith.constant 0 : i32
    %c0_i32_0 = arith.constant 0 : i32
    %c0_i32_1 = arith.constant 0 : i32
    return %c0_i32, %c0_i32_0 : i32, i32
  }
  func.func @transform_11(%arg0: i32) -> (i32, i32) {
    %c0_i32 = arith.constant 0 : i32
    %c0_i32_0 = arith.constant 0 : i32
    %c0_i32_1 = arith.constant 0 : i32
    return %c0_i32, %c0_i32_0 : i32, i32
  }
  func.func @transform_12(%arg0: i32) -> (i32, i32) {
    %c0_i32 = arith.constant 0 : i32
    %c0_i32_0 = arith.constant 0 : i32
    %c0_i32_1 = arith.constant 0 : i32
    return %c0_i32, %c0_i32_0 : i32, i32
  }
  func.func @transform_13(%arg0: i32) -> (i32, i32, i32) {
    %c0_i32 = arith.constant 0 : i32
    %c0_i32_0 = arith.constant 0 : i32
    %c0_i32_1 = arith.constant 0 : i32
    return %arg0, %c0_i32, %c0_i32_0 : i32, i32, i32
  }
  func.func @transform_14(%arg0: i32) -> (i32, i32, i32) {
    %c0_i32 = arith.constant 0 : i32
    %c0_i32_0 = arith.constant 0 : i32
    %c0_i32_1 = arith.constant 0 : i32
    return %arg0, %c0_i32, %c0_i32_0 : i32, i32, i32
  }
  func.func @transform_15(%arg0: i32) -> (i32, i32, i32) {
    %c0_i32 = arith.constant 0 : i32
    %c0_i32_0 = arith.constant 0 : i32
    %c0_i32_1 = arith.constant 0 : i32
    return %arg0, %c0_i32, %c0_i32_0 : i32, i32, i32
  }
  func.func @transform_16(%arg0: i32) -> (i32, i32, i32) {
    %c0_i32 = arith.constant 0 : i32
    %c0_i32_0 = arith.constant 0 : i32
    %c0_i32_1 = arith.constant 0 : i32
    return %arg0, %c0_i32, %c0_i32_0 : i32, i32, i32
  }
}

</mosaic_0001>

<llo_original>
// kernel: fpn_forward.1
$region0: #{fpn_forward.1}
  #allocation0 [shape = 'u32[]', space=smem, size = 0x4, offset = 0x4, fixed_abs, tag = 'smem constant byte address 0x4 - core index']
  #allocation1 [shape = 'u32[144,128]{1,0:T(1,128)}', space=vmem, size = 0x12000, scoped, tag = 'internal scratch']
  %s0 = inlined_call_operand.vmem [shape: bf16[2,1024,512], index: 0, kind: input, shape index: {}]
  %s1 = inlined_call_operand.vmem [shape: bf16[2,256,512], index: 1, kind: input, shape index: {}]
  %s2 = inlined_call_operand.vmem [shape: bf16[2,64,1024], index: 2, kind: input, shape index: {}]
  %s3 = inlined_call_operand.vmem [shape: bf16[2,16,2048], index: 3, kind: input, shape index: {}]
  %s4 = inlined_call_operand.vmem [shape: bf16[2048,256], index: 4, kind: input, shape index: {}]
  %s5 = inlined_call_operand.vmem [shape: f32[1,256], index: 5, kind: input, shape index: {}]
  %s6 = inlined_call_operand.vmem [shape: bf16[1024,256], index: 6, kind: input, shape index: {}]
  %s7 = inlined_call_operand.vmem [shape: f32[1,256], index: 7, kind: input, shape index: {}]
  %s8 = inlined_call_operand.vmem [shape: bf16[512,256], index: 8, kind: input, shape index: {}]
  %s9 = inlined_call_operand.vmem [shape: f32[1,256], index: 9, kind: input, shape index: {}]
  %s10 = inlined_call_operand.vmem [shape: bf16[64,16], index: 10, kind: input, shape index: {}]
  %s11 = inlined_call_operand.vmem [shape: bf16[256,64], index: 11, kind: input, shape index: {}]
  %s12 = inlined_call_operand.vmem [shape: bf16[1024,256], index: 12, kind: input, shape index: {}]
  %s13 = inlined_call_operand.hbm [shape: f32[2,1024,256], index: 13, kind: output, shape index: {0}]
  %s14 = inlined_call_operand.hbm [shape: f32[2,256,256], index: 14, kind: output, shape index: {1}]
  %s15 = inlined_call_operand.hbm [shape: f32[2,64,256], index: 15, kind: output, shape index: {2}]
  %s16 = inlined_call_operand.vmem [shape: f32[2,16,256], index: 16, kind: output, shape index: {3}]
  %17 = xla_tuple %s13, %s14, %s15, %s16
  %s18 = sld [smem:[#allocation0]]
  $region109: #{fpn_forward.1} parent=0
    _
  %s20 = ssub.s32 1, %s18
  %s21 = scalar_select 0, %s20, %s18
  $region1: #{fpn_forward.1} parent=0
    #allocation2 [shape = 'u8[2097152]{0}', space=vmem, size = 0x200000, scoped, tag = 'output window, operand 0']
    #allocation3 [shape = 's32[2]{0}', space=sflag, size = 0x8, scoped, tag = 'scoped memory for fpn_forward.1']
    #allocation4 [shape = 'u8[524288]{0}', space=vmem, size = 0x80000, scoped, tag = 'output window, operand 1']
    #allocation5 [shape = 's32[2]{0}', space=sflag, size = 0x8, scoped, tag = 'scoped memory for fpn_forward.1']
    #allocation6 [shape = 'u8[131072]{0}', space=vmem, size = 0x20000, scoped, tag = 'output window, operand 2']
    %22 = vsyncpa [#allocation3], 0
    %s23 = scalar_lea.sflag [#allocation3], 1
    %24 = vsyncpa %s23, 0
    %25 = vsyncpa [#allocation5], 0
    %s26 = scalar_lea.sflag [#allocation5], 1
    %27 = vsyncpa %s26, 0
    loop: start=0, step=1, limit=4
    $region2: #{fpn_forward.1} parent=1 // loop_pre_header
      _
    $region3: #{fpn_forward.1} parent=1 // loop_header
      %s29 = sphi 0, %s33
      %p30 = scmp.ge.s32.totalorder %s29, 4
      %s39 = sphi 0, %s41
      %s42 = sphi 0, %s39
      %s43 = sphi 0, %s42
      %s59 = sphi 0, %s43
      %s65 = sphi 0, %s67
      %s68 = sphi 0, %s65
      %s69 = sphi 0, %s68
      %s85 = sphi 0, %s69
      %s91 = sphi 0, %s93
      %s94 = sphi 0, %s91
      %s95 = sphi 0, %s94
      %s111 = sphi 0, %s95
      %s117 = sphi 0, %s119
      %s120 = sphi 0, %s117
      %s121 = sphi 0, %s120
      %s137 = sphi 0, %s121
      %s141 = sphi 0, %s141
      %s143 = sphi 0, %s141
      %s144 = sphi 0, %s143
      %s158 = sphi 0, %s144
      %s162 = sphi 0, %s162
      %s164 = sphi 0, %s162
      %s165 = sphi 0, %s164
      %s179 = sphi 0, %s165
      %s183 = sphi 0, %s183
      %s185 = sphi 0, %s183
      %s186 = sphi 0, %s185
      %s200 = sphi 0, %s186
      %s204 = sphi 0, %s204
      %s206 = sphi 0, %s204
      %s207 = sphi 0, %s206
      %s221 = sphi 0, %s207
      %s225 = sphi 0, %s225
      %s227 = sphi 0, %s225
      %s228 = sphi 0, %s227
      %s242 = sphi 0, %s228
      %s246 = sphi 0, %s246
      %s248 = sphi 0, %s246
      %s249 = sphi 0, %s248
      %s263 = sphi 0, %s249
      %s267 = sphi 0, %s267
      %s269 = sphi 0, %s267
      %s270 = sphi 0, %s269
      %s284 = sphi 0, %s270
      %s288 = sphi 0, %s288
      %s290 = sphi 0, %s288
      %s291 = sphi 0, %s290
      %s305 = sphi 0, %s291
      %s309 = sphi 0, %s309
      %s311 = sphi 0, %s309
      %s312 = sphi 0, %s311
      %s326 = sphi 0, %s312
      %s332 = sphi 0, %s334
      %s335 = sphi 0, %s332
      %s336 = sphi 0, %s335
      %s352 = sphi 0, %s336
      %s358 = sphi 0, %s360
      %s361 = sphi 0, %s358
      %s362 = sphi 0, %s361
      %s378 = sphi 0, %s362
      %s384 = sphi 0, %s386
      %s387 = sphi 0, %s384
      %s388 = sphi 0, %s387
      %s404 = sphi 0, %s388
      %s410 = sphi 0, %s412
      %s413 = sphi 0, %s410
      %s414 = sphi 0, %s413
      %s430 = sphi 0, %s414
    $region4: #{fpn_forward.1} parent=1 // loop_header_branch
      %32 = sbr.rel (%p30) target = $region8
    $region5: #{fpn_forward.1} parent=1 // loop_body
      %s34 = ssub.s32 %s29, 1
      %s35 = ssub.s32 %s29, 2
      %s36 = sadd.s32 %s29, 1
      %s37 = ssub.s32 %s29, %s36
      %p38 = scmp.eq.s32.totalorder %s37, 0
      %s40 = sadd.s32 %s39, 1
      %s41 = scalar_select %p38, %s39, %s40
      %p44 = pneg %p38
      %p45 = scmp.eq.s32.totalorder %s29, 1
      %p46 = por %p44, %p45
      %p47 = scmp.ne.s32.totalorder %s39, %s42
      %p48 = scmp.eq.s32.totalorder %s29, 0
      %p49 = por %p47, %p48
      %p50 = scmp.ne.s32.totalorder %s39, %s42
      %p51 = scmp.eq.s32.totalorder %s34, 1
      %p52 = por %p50, %p51
      %p53 = scmp.ne.s32.totalorder %s42, %s43
      %p54 = scmp.eq.s32.totalorder %s34, 0
      %p55 = por %p53, %p54
      %p56 = scmp.ne.s32.totalorder %s42, %s43
      %p57 = scmp.eq.s32.totalorder %s35, 1
      %p58 = por %p56, %p57
      %p60 = scmp.ne.s32.totalorder %s43, %s59
      %p61 = scmp.eq.s32.totalorder %s35, 0
      %p62 = por %p60, %p61
      %s63 = ssub.s32 %s29, %s36
      %p64 = scmp.eq.s32.totalorder %s63, 0
      %s66 = sadd.s32 %s65, 1
      %s67 = scalar_select %p64, %s65, %s66
      %p70 = pneg %p64
      %p71 = scmp.eq.s32.totalorder %s29, 1
      %p72 = por %p70, %p71
      %p73 = scmp.ne.s32.totalorder %s65, %s68
      %p74 = scmp.eq.s32.totalorder %s29, 0
      %p75 = por %p73, %p74
      %p76 = scmp.ne.s32.totalorder %s65, %s68
      %p77 = scmp.eq.s32.totalorder %s34, 1
      %p78 = por %p76, %p77
      %p79 = scmp.ne.s32.totalorder %s68, %s69
      %p80 = scmp.eq.s32.totalorder %s34, 0
      %p81 = por %p79, %p80
      %p82 = scmp.ne.s32.totalorder %s68, %s69
      %p83 = scmp.eq.s32.totalorder %s35, 1
      %p84 = por %p82, %p83
      %p86 = scmp.ne.s32.totalorder %s69, %s85
      %p87 = scmp.eq.s32.totalorder %s35, 0
      %p88 = por %p86, %p87
      %s89 = ssub.s32 %s29, %s36
      %p90 = scmp.eq.s32.totalorder %s89, 0
      %s92 = sadd.s32 %s91, 1
      %s93 = scalar_select %p90, %s91, %s92
      %p96 = pneg %p90
      %p97 = scmp.eq.s32.totalorder %s29, 1
      %p98 = por %p96, %p97
      %p99 = scmp.ne.s32.totalorder %s91, %s94
      %p100 = scmp.eq.s32.totalorder %s29, 0
      %p101 = por %p99, %p100
      %p102 = scmp.ne.s32.totalorder %s91, %s94
      %p103 = scmp.eq.s32.totalorder %s34, 1
      %p104 = por %p102, %p103
      %p105 = scmp.ne.s32.totalorder %s94, %s95
      %p106 = scmp.eq.s32.totalorder %s34, 0
      %p107 = por %p105, %p106
      %p108 = scmp.ne.s32.totalorder %s94, %s95
      %p109 = scmp.eq.s32.totalorder %s35, 1
      %p110 = por %p108, %p109
      %p112 = scmp.ne.s32.totalorder %s95, %s111
      %p113 = scmp.eq.s32.totalorder %s35, 0
      %p114 = por %p112, %p113
      %s115 = ssub.s32 %s29, %s36
      %p116 = scmp.eq.s32.totalorder %s115, 0
      %s118 = sadd.s32 %s117, 1
      %s119 = scalar_select %p116, %s117, %s118
      %p122 = pneg %p116
      %p123 = scmp.eq.s32.totalorder %s29, 1
      %p124 = por %p122, %p123
      %p125 = scmp.ne.s32.totalorder %s117, %s120
      %p126 = scmp.eq.s32.totalorder %s29, 0
      %p127 = por %p125, %p126
      %p128 = scmp.ne.s32.totalorder %s117, %s120
      %p129 = scmp.eq.s32.totalorder %s34, 1
      %p130 = por %p128, %p129
      %p131 = scmp.ne.s32.totalorder %s120, %s121
      %p132 = scmp.eq.s32.totalorder %s34, 0
      %p133 = por %p131, %p132
      %p134 = scmp.ne.s32.totalorder %s120, %s121
      %p135 = scmp.eq.s32.totalorder %s35, 1
      %p136 = por %p134, %p135
      %p138 = scmp.ne.s32.totalorder %s121, %s137
      %p139 = scmp.eq.s32.totalorder %s35, 0
      %p140 = por %p138, %p139
      %s142 = sadd.s32 %s141, 1
      %p145 = scmp.eq.s32.totalorder %s29, 1
      %p146 = scmp.ne.s32.totalorder %s141, %s143
      %p147 = scmp.eq.s32.totalorder %s29, 0
      %p148 = por %p146, %p147
      %p149 = scmp.ne.s32.totalorder %s141, %s143
      %p150 = scmp.eq.s32.totalorder %s34, 1
      %p151 = por %p149, %p150
      %p152 = scmp.ne.s32.totalorder %s143, %s144
      %p153 = scmp.eq.s32.totalorder %s34, 0
      %p154 = por %p152, %p153
      %p155 = scmp.ne.s32.totalorder %s143, %s144
      %p156 = scmp.eq.s32.totalorder %s35, 1
      %p157 = por %p155, %p156
      %p159 = scmp.ne.s32.totalorder %s144, %s158
      %p160 = scmp.eq.s32.totalorder %s35, 0
      %p161 = por %p159, %p160
      %s163 = sadd.s32 %s162, 1
      %p166 = scmp.eq.s32.totalorder %s29, 1
      %p167 = scmp.ne.s32.totalorder %s162, %s164
      %p168 = scmp.eq.s32.totalorder %s29, 0
      %p169 = por %p167, %p168
      %p170 = scmp.ne.s32.totalorder %s162, %s164
      %p171 = scmp.eq.s32.totalorder %s34, 1
      %p172 = por %p170, %p171
      %p173 = scmp.ne.s32.totalorder %s164, %s165
      %p174 = scmp.eq.s32.totalorder %s34, 0
      %p175 = por %p173, %p174
      %p176 = scmp.ne.s32.totalorder %s164, %s165
      %p177 = scmp.eq.s32.totalorder %s35, 1
      %p178 = por %p176, %p177
      %p180 = scmp.ne.s32.totalorder %s165, %s179
      %p181 = scmp.eq.s32.totalorder %s35, 0
      %p182 = por %p180, %p181
      %s184 = sadd.s32 %s183, 1
      %p187 = scmp.eq.s32.totalorder %s29, 1
      %p188 = scmp.ne.s32.totalorder %s183, %s185
      %p189 = scmp.eq.s32.totalorder %s29, 0
      %p190 = por %p188, %p189
      %p191 = scmp.ne.s32.totalorder %s183, %s185
      %p192 = scmp.eq.s32.totalorder %s34, 1
      %p193 = por %p191, %p192
      %p194 = scmp.ne.s32.totalorder %s185, %s186
      %p195 = scmp.eq.s32.totalorder %s34, 0
      %p196 = por %p194, %p195
      %p197 = scmp.ne.s32.totalorder %s185, %s186
      %p198 = scmp.eq.s32.totalorder %s35, 1
      %p199 = por %p197, %p198
      %p201 = scmp.ne.s32.totalorder %s186, %s200
      %p202 = scmp.eq.s32.totalorder %s35, 0
      %p203 = por %p201, %p202
      %s205 = sadd.s32 %s204, 1
      %p208 = scmp.eq.s32.totalorder %s29, 1
      %p209 = scmp.ne.s32.totalorder %s204, %s206
      %p210 = scmp.eq.s32.totalorder %s29, 0
      %p211 = por %p209, %p210
      %p212 = scmp.ne.s32.totalorder %s204, %s206
      %p213 = scmp.eq.s32.totalorder %s34, 1
      %p214 = por %p212, %p213
      %p215 = scmp.ne.s32.totalorder %s206, %s207
      %p216 = scmp.eq.s32.totalorder %s34, 0
      %p217 = por %p215, %p216
      %p218 = scmp.ne.s32.totalorder %s206, %s207
      %p219 = scmp.eq.s32.totalorder %s35, 1
      %p220 = por %p218, %p219
      %p222 = scmp.ne.s32.totalorder %s207, %s221
      %p223 = scmp.eq.s32.totalorder %s35, 0
      %p224 = por %p222, %p223
      %s226 = sadd.s32 %s225, 1
      %p229 = scmp.eq.s32.totalorder %s29, 1
      %p230 = scmp.ne.s32.totalorder %s225, %s227
      %p231 = scmp.eq.s32.totalorder %s29, 0
      %p232 = por %p230, %p231
      %p233 = scmp.ne.s32.totalorder %s225, %s227
      %p234 = scmp.eq.s32.totalorder %s34, 1
      %p235 = por %p233, %p234
      %p236 = scmp.ne.s32.totalorder %s227, %s228
      %p237 = scmp.eq.s32.totalorder %s34, 0
      %p238 = por %p236, %p237
      %p239 = scmp.ne.s32.totalorder %s227, %s228
      %p240 = scmp.eq.s32.totalorder %s35, 1
      %p241 = por %p239, %p240
      %p243 = scmp.ne.s32.totalorder %s228, %s242
      %p244 = scmp.eq.s32.totalorder %s35, 0
      %p245 = por %p243, %p244
      %s247 = sadd.s32 %s246, 1
      %p250 = scmp.eq.s32.totalorder %s29, 1
      %p251 = scmp.ne.s32.totalorder %s246, %s248
      %p252 = scmp.eq.s32.totalorder %s29, 0
      %p253 = por %p251, %p252
      %p254 = scmp.ne.s32.totalorder %s246, %s248
      %p255 = scmp.eq.s32.totalorder %s34, 1
      %p256 = por %p254, %p255
      %p257 = scmp.ne.s32.totalorder %s248, %s249
      %p258 = scmp.eq.s32.totalorder %s34, 0
      %p259 = por %p257, %p258
      %p260 = scmp.ne.s32.totalorder %s248, %s249
      %p261 = scmp.eq.s32.totalorder %s35, 1
      %p262 = por %p260, %p261
      %p264 = scmp.ne.s32.totalorder %s249, %s263
      %p265 = scmp.eq.s32.totalorder %s35, 0
      %p266 = por %p264, %p265
      %s268 = sadd.s32 %s267, 1
      %p271 = scmp.eq.s32.totalorder %s29, 1
      %p272 = scmp.ne.s32.totalorder %s267, %s269
      %p273 = scmp.eq.s32.totalorder %s29, 0
      %p274 = por %p272, %p273
      %p275 = scmp.ne.s32.totalorder %s267, %s269
      %p276 = scmp.eq.s32.totalorder %s34, 1
      %p277 = por %p275, %p276
      %p278 = scmp.ne.s32.totalorder %s269, %s270
      %p279 = scmp.eq.s32.totalorder %s34, 0
      %p280 = por %p278, %p279
      %p281 = scmp.ne.s32.totalorder %s269, %s270
      %p282 = scmp.eq.s32.totalorder %s35, 1
      %p283 = por %p281, %p282
      %p285 = scmp.ne.s32.totalorder %s270, %s284
      %p286 = scmp.eq.s32.totalorder %s35, 0
      %p287 = por %p285, %p286
      %s289 = sadd.s32 %s288, 1
      %p292 = scmp.eq.s32.totalorder %s29, 1
      %p293 = scmp.ne.s32.totalorder %s288, %s290
      %p294 = scmp.eq.s32.totalorder %s29, 0
      %p295 = por %p293, %p294
      %p296 = scmp.ne.s32.totalorder %s288, %s290
      %p297 = scmp.eq.s32.totalorder %s34, 1
      %p298 = por %p296, %p297
      %p299 = scmp.ne.s32.totalorder %s290, %s291
      %p300 = scmp.eq.s32.totalorder %s34, 0
      %p301 = por %p299, %p300
      %p302 = scmp.ne.s32.totalorder %s290, %s291
      %p303 = scmp.eq.s32.totalorder %s35, 1
      %p304 = por %p302, %p303
      %p306 = scmp.ne.s32.totalorder %s291, %s305
      %p307 = scmp.eq.s32.totalorder %s35, 0
      %p308 = por %p306, %p307
      %s310 = sadd.s32 %s309, 1
      %p313 = scmp.eq.s32.totalorder %s29, 1
      %p314 = scmp.ne.s32.totalorder %s309, %s311
      %p315 = scmp.eq.s32.totalorder %s29, 0
      %p316 = por %p314, %p315
      %p317 = scmp.ne.s32.totalorder %s309, %s311
      %p318 = scmp.eq.s32.totalorder %s34, 1
      %p319 = por %p317, %p318
      %p320 = scmp.ne.s32.totalorder %s311, %s312
      %p321 = scmp.eq.s32.totalorder %s34, 0
      %p322 = por %p320, %p321
      %p323 = scmp.ne.s32.totalorder %s311, %s312
      %p324 = scmp.eq.s32.totalorder %s35, 1
      %p325 = por %p323, %p324
      %p327 = scmp.ne.s32.totalorder %s312, %s326
      %p328 = scmp.eq.s32.totalorder %s35, 0
      %p329 = por %p327, %p328
      %s330 = ssub.s32 %s29, %s36
      %p331 = scmp.eq.s32.totalorder %s330, 0
      %s333 = sadd.s32 %s332, 1
      %s334 = scalar_select %p331, %s332, %s333
      %p337 = pneg %p331
      %p338 = scmp.eq.s32.totalorder %s29, 1
      %p339 = por %p337, %p338
      %p340 = scmp.ne.s32.totalorder %s332, %s335
      %p341 = scmp.eq.s32.totalorder %s29, 0
      %p342 = por %p340, %p341
      %p343 = scmp.ne.s32.totalorder %s332, %s335
      %p344 = scmp.eq.s32.totalorder %s34, 1
      %p345 = por %p343, %p344
      %p346 = scmp.ne.s32.totalorder %s335, %s336
      %p347 = scmp.eq.s32.totalorder %s34, 0
      %p348 = por %p346, %p347
      %p349 = scmp.ne.s32.totalorder %s335, %s336
      %p350 = scmp.eq.s32.totalorder %s35, 1
      %p351 = por %p349, %p350
      %p353 = scmp.ne.s32.totalorder %s336, %s352
      %p354 = scmp.eq.s32.totalorder %s35, 0
      %p355 = por %p353, %p354
      %s356 = ssub.s32 %s29, %s36
      %p357 = scmp.eq.s32.totalorder %s356, 0
      %s359 = sadd.s32 %s358, 1
      %s360 = scalar_select %p357, %s358, %s359
      %p363 = pneg %p357
      %p364 = scmp.eq.s32.totalorder %s29, 1
      %p365 = por %p363, %p364
      %p366 = scmp.ne.s32.totalorder %s358, %s361
      %p367 = scmp.eq.s32.totalorder %s29, 0
      %p368 = por %p366, %p367
      %p369 = scmp.ne.s32.totalorder %s358, %s361
      %p370 = scmp.eq.s32.totalorder %s34, 1
      %p371 = por %p369, %p370
      %p372 = scmp.ne.s32.totalorder %s361, %s362
      %p373 = scmp.eq.s32.totalorder %s34, 0
      %p374 = por %p372, %p373
      %p375 = scmp.ne.s32.totalorder %s361, %s362
      %p376 = scmp.eq.s32.totalorder %s35, 1
      %p377 = por %p375, %p376
      %p379 = scmp.ne.s32.totalorder %s362, %s378
      %p380 = scmp.eq.s32.totalorder %s35, 0
      %p381 = por %p379, %p380
      %s382 = ssub.s32 %s29, %s36
      %p383 = scmp.eq.s32.totalorder %s382, 0
      %s385 = sadd.s32 %s384, 1
      %s386 = scalar_select %p383, %s384, %s385
      %p389 = pneg %p383
      %p390 = scmp.eq.s32.totalorder %s29, 1
      %p391 = por %p389, %p390
      %p392 = scmp.ne.s32.totalorder %s384, %s387
      %p393 = scmp.eq.s32.totalorder %s29, 0
      %p394 = por %p392, %p393
      %p395 = scmp.ne.s32.totalorder %s384, %s387
      %p396 = scmp.eq.s32.totalorder %s34, 1
      %p397 = por %p395, %p396
      %p398 = scmp.ne.s32.totalorder %s387, %s388
      %p399 = scmp.eq.s32.totalorder %s34, 0
      %p400 = por %p398, %p399
      %p401 = scmp.ne.s32.totalorder %s387, %s388
      %p402 = scmp.eq.s32.totalorder %s35, 1
      %p403 = por %p401, %p402
      %p405 = scmp.ne.s32.totalorder %s388, %s404
      %p406 = scmp.eq.s32.totalorder %s35, 0
      %p407 = por %p405, %p406
      %s408 = ssub.s32 %s29, %s36
      %p409 = scmp.eq.s32.totalorder %s408, 0
      %s411 = sadd.s32 %s410, 1
      %s412 = scalar_select %p409, %s410, %s411
      %p415 = pneg %p409
      %p416 = scmp.eq.s32.totalorder %s29, 1
      %p417 = por %p415, %p416
      %p418 = scmp.ne.s32.totalorder %s410, %s413
      %p419 = scmp.eq.s32.totalorder %s29, 0
      %p420 = por %p418, %p419
      %p421 = scmp.ne.s32.totalorder %s410, %s413
      %p422 = scmp.eq.s32.totalorder %s34, 1
      %p423 = por %p421, %p422
      %p424 = scmp.ne.s32.totalorder %s413, %s414
      %p425 = scmp.eq.s32.totalorder %s34, 0
      %p426 = por %p424, %p425
      %p427 = scmp.ne.s32.totalorder %s413, %s414
      %p428 = scmp.eq.s32.totalorder %s35, 1
      %p429 = por %p427, %p428
      %p431 = scmp.ne.s32.totalorder %s414, %s430
      %p432 = scmp.eq.s32.totalorder %s35, 0
      %p433 = por %p431, %p432
      %p434 = scmp.le.s32.totalorder 1, %s29
      %p435 = scmp.lt.s32.totalorder %s29, 3
      %p436 = pnand %p434, %p435
      %p437 = pneg %p436
      // Predicated region
      $region9: #{fpn_forward.1} parent=5 // pred_check
        _
      $region10: #{fpn_forward.1} parent=5 // pred_check_branch
        %439 = sbr.rel (%p436) target = $region12
      $region11: #{fpn_forward.1} parent=5 // pred_region
        %s440 = ssub.s32 %s29, 1
        // Predicated region
        $region13: #{fpn_forward.1} parent=11 // pred_check
          %p441 = pneg %p154
        $region14: #{fpn_forward.1} parent=11 // pred_check_branch
          %443 = sbr.rel (%p441) target = $region16
        $region15: #{fpn_forward.1} parent=11 // pred_region
          _
        $region16: #{fpn_forward.1} parent=11 // pred_fallthru
          _
        // Predicated region
        $region17: #{fpn_forward.1} parent=11 // pred_check
          %p444 = pneg %p175
        $region18: #{fpn_forward.1} parent=11 // pred_check_branch
          %446 = sbr.rel (%p444) target = $region20
        $region19: #{fpn_forward.1} parent=11 // pred_region
          _
        $region20: #{fpn_forward.1} parent=11 // pred_fallthru
          _
        // Predicated region
        $region21: #{fpn_forward.1} parent=11 // pred_check
          %p447 = pneg %p196
        $region22: #{fpn_forward.1} parent=11 // pred_check_branch
          %449 = sbr.rel (%p447) target = $region24
        $region23: #{fpn_forward.1} parent=11 // pred_region
          _
        $region24: #{fpn_forward.1} parent=11 // pred_fallthru
          _
        // Predicated region
        $region25: #{fpn_forward.1} parent=11 // pred_check
          %p450 = pneg %p217
        $region26: #{fpn_forward.1} parent=11 // pred_check_branch
          %452 = sbr.rel (%p450) target = $region28
        $region27: #{fpn_forward.1} parent=11 // pred_region
          _
        $region28: #{fpn_forward.1} parent=11 // pred_fallthru
          _
        // Predicated region
        $region29: #{fpn_forward.1} parent=11 // pred_check
          %p453 = pneg %p238
        $region30: #{fpn_forward.1} parent=11 // pred_check_branch
          %455 = sbr.rel (%p453) target = $region32
        $region31: #{fpn_forward.1} parent=11 // pred_region
          _
        $region32: #{fpn_forward.1} parent=11 // pred_fallthru
          _
        // Predicated region
        $region33: #{fpn_forward.1} parent=11 // pred_check
          %p456 = pneg %p259
        $region34: #{fpn_forward.1} parent=11 // pred_check_branch
          %458 = sbr.rel (%p456) target = $region36
        $region35: #{fpn_forward.1} parent=11 // pred_region
          _
        $region36: #{fpn_forward.1} parent=11 // pred_fallthru
          _
        // Predicated region
        $region37: #{fpn_forward.1} parent=11 // pred_check
          %p459 = pneg %p280
        $region38: #{fpn_forward.1} parent=11 // pred_check_branch
          %461 = sbr.rel (%p459) target = $region40
        $region39: #{fpn_forward.1} parent=11 // pred_region
          _
        $region40: #{fpn_forward.1} parent=11 // pred_fallthru
          _
        // Predicated region
        $region41: #{fpn_forward.1} parent=11 // pred_check
          %p462 = pneg %p301
        $region42: #{fpn_forward.1} parent=11 // pred_check_branch
          %464 = sbr.rel (%p462) target = $region44
        $region43: #{fpn_forward.1} parent=11 // pred_region
          _
        $region44: #{fpn_forward.1} parent=11 // pred_fallthru
          _
        // Predicated region
        $region45: #{fpn_forward.1} parent=11 // pred_check
          %p465 = pneg %p322
        $region46: #{fpn_forward.1} parent=11 // pred_check_branch
          %467 = sbr.rel (%p465) target = $region48
        $region47: #{fpn_forward.1} parent=11 // pred_region
          _
        $region48: #{fpn_forward.1} parent=11 // pred_fallthru
          _
      $region12: #{fpn_forward.1} parent=5 // pred_fallthru
        _
      %p468 = scmp.lt.s32.totalorder %s29, 2
      // Predicated region
      $region49: #{fpn_forward.1} parent=5 // pred_check
        %p469 = pneg %p468
      $region50: #{fpn_forward.1} parent=5 // pred_check_branch
        %471 = sbr.rel (%p469) target = $region52
      $region51: #{fpn_forward.1} parent=5 // pred_region
        // Predicated region
        $region53: #{fpn_forward.1} parent=51 // pred_check
          %p472 = pneg %p49
        $region54: #{fpn_forward.1} parent=51 // pred_check_branch
          %474 = sbr.rel (%p472) target = $region56
        $region55: #{fpn_forward.1} parent=51 // pred_region
          %p475 = scmp.lt.s32.totalorder %s29, 1
          %s476 = scalar_select %p475, %s29, 1
          %s477 = smul.addr %s476, 512
          %s478 = smul.addr %s477, 4
          %s479 = scalar_lea.vmem %s0, %s478
        $region56: #{fpn_forward.1} parent=51 // pred_fallthru
          _
        // Predicated region
        $region57: #{fpn_forward.1} parent=51 // pred_check
          %p480 = pneg %p75
        $region58: #{fpn_forward.1} parent=51 // pred_check_branch
          %482 = sbr.rel (%p480) target = $region60
        $region59: #{fpn_forward.1} parent=51 // pred_region
          %p483 = scmp.lt.s32.totalorder %s29, 1
          %s484 = scalar_select %p483, %s29, 1
          %s485 = smul.addr %s484, 128
          %s486 = smul.addr %s485, 4
          %s487 = scalar_lea.vmem %s1, %s486
        $region60: #{fpn_forward.1} parent=51 // pred_fallthru
          _
        // Predicated region
        $region61: #{fpn_forward.1} parent=51 // pred_check
          %p488 = pneg %p101
        $region62: #{fpn_forward.1} parent=51 // pred_check_branch
          %490 = sbr.rel (%p488) target = $region64
        $region63: #{fpn_forward.1} parent=51 // pred_region
          %p491 = scmp.lt.s32.totalorder %s29, 1
          %s492 = scalar_select %p491, %s29, 1
          %s493 = smul.addr %s492, 64
          %s494 = smul.addr %s493, 4
          %s495 = scalar_lea.vmem %s2, %s494
        $region64: #{fpn_forward.1} parent=51 // pred_fallthru
          _
        // Predicated region
        $region65: #{fpn_forward.1} parent=51 // pred_check
          %p496 = pneg %p127
        $region66: #{fpn_forward.1} parent=51 // pred_check_branch
          %498 = sbr.rel (%p496) target = $region68
        $region67: #{fpn_forward.1} parent=51 // pred_region
          %p499 = scmp.lt.s32.totalorder %s29, 1
          %s500 = scalar_select %p499, %s29, 1
          %s501 = smul.addr %s500, 32
          %s502 = smul.addr %s501, 4
          %s503 = scalar_lea.vmem %s3, %s502
        $region68: #{fpn_forward.1} parent=51 // pred_fallthru
          _
      $region52: #{fpn_forward.1} parent=5 // pred_fallthru
        _
      %p504 = scmp.le.s32.totalorder 1, %s29
      %p505 = scmp.lt.s32.totalorder %s29, 3
      %p506 = pnand %p504, %p505
      %p507 = pneg %p506
      // Predicated region
      $region69: #{fpn_forward.1} parent=5 // pred_check
        _
      $region70: #{fpn_forward.1} parent=5 // pred_check_branch
        %509 = sbr.rel (%p506) target = $region72
      $region71: #{fpn_forward.1} parent=5 // pred_region
        %s510 = ssub.s32 %s29, 1
        %p511 = scmp.lt.s32.totalorder %s34, 1
        %s512 = scalar_select %p511, %s34, 1
        %s513 = smul.addr %s512, 512
        %s514 = smul.addr %s513, 4
        %s515 = scalar_lea.vmem %s0, %s514
        %p516 = pneg %p55
        %p517 = pneg %p52
        %p518 = scmp.lt.s32.totalorder %s34, 1
        %s519 = scalar_select %p518, %s34, 1
        %s520 = smul.addr %s519, 128
        %s521 = smul.addr %s520, 4
        %s522 = scalar_lea.vmem %s1, %s521
        %p523 = pneg %p81
        %p524 = pneg %p78
        %p525 = scmp.lt.s32.totalorder %s34, 1
        %s526 = scalar_select %p525, %s34, 1
        %s527 = smul.addr %s526, 64
        %s528 = smul.addr %s527, 4
        %s529 = scalar_lea.vmem %s2, %s528
        %p530 = pneg %p107
        %p531 = pneg %p104
        %p532 = scmp.lt.s32.totalorder %s34, 1
        %s533 = scalar_select %p532, %s34, 1
        %s534 = smul.addr %s533, 32
        %s535 = smul.addr %s534, 4
        %s536 = scalar_lea.vmem %s3, %s535
        %p537 = pneg %p133
        %p538 = pneg %p130
        %p539 = pneg %p154
        %p540 = pneg %p151
        %p541 = pneg %p175
        %p542 = pneg %p172
        %p543 = pneg %p196
        %p544 = pneg %p193
        %p545 = pneg %p217
        %p546 = pneg %p214
        %p547 = pneg %p238
        %p548 = pneg %p235
        %p549 = pneg %p259
        %p550 = pneg %p256
        %p551 = pneg %p280
        %p552 = pneg %p277
        %p553 = pneg %p301
        %p554 = pneg %p298
        %p555 = pneg %p322
        %p556 = pneg %p319
        %p557 = pneg %p348
        %p558 = pneg %p345
        %s559 = sand.u32 %s335, 1
        %s560 = scalar_lea.sflag [#allocation3], %s559
        %s561 = sand.u32 %s335, 1
        %s562 = smul.addr %s561, 2048
        %s563 = scalar_lea.vmem [#allocation2], %s562
        %p564 = pneg %p374
        %p565 = pneg %p371
        %s566 = sand.u32 %s34, 1
        %s567 = scalar_lea.sflag [#allocation5], %s566
        %s568 = sand.u32 %s361, 1
        %s569 = smul.addr %s568, 512
        %s570 = scalar_lea.vmem [#allocation4], %s569
        %p571 = pneg %p400
        %p572 = pneg %p397
        %s573 = sand.u32 %s34, 1
        %s574 = scalar_lea.sflag [#allocation5], %s573
        %s575 = sand.u32 %s387, 1
        %s576 = smul.addr %s575, 128
        %s577 = scalar_lea.vmem [#allocation6], %s576
        %p578 = pneg %p426
        %p579 = pneg %p423
        %p580 = scmp.lt.s32.totalorder %s34, 1
        %s581 = scalar_select %p580, %s34, 1
        %s582 = smul.addr %s581, 4
        %s583 = smul.addr %s582, 8
        %s584 = scalar_lea.vmem %s16, %s583
        %p585 = scmp.lt.s32.totalorder %s34, 1
        %s586 = scalar_select %p585, %s34, 1
        %s587 = smul.addr %s586, 512
        %s588 = smul.addr %s587, 4
        %s589 = scalar_lea.vmem %s0, %s588
        %p590 = scmp.lt.s32.totalorder %s34, 1
        %s591 = scalar_select %p590, %s34, 1
        %s592 = smul.addr %s591, 128
        %s593 = smul.addr %s592, 4
        %s594 = scalar_lea.vmem %s1, %s593
        %p595 = scmp.lt.s32.totalorder %s34, 1
        %s596 = scalar_select %p595, %s34, 1
        %s597 = smul.addr %s596, 64
        %s598 = smul.addr %s597, 4
        %s599 = scalar_lea.vmem %s2, %s598
        %p600 = scmp.lt.s32.totalorder %s34, 1
        %s601 = scalar_select %p600, %s34, 1
        %s602 = smul.addr %s601, 32
        %s603 = smul.addr %s602, 4
        %s604 = scalar_lea.vmem %s3, %s603
        %p605 = scmp.lt.s32.totalorder %s34, 1
        %s606 = scalar_select %p605, %s34, 1
        %s607 = smul.addr %s606, 4
        %s608 = smul.addr %s607, 8
        %s609 = scalar_lea.vmem %s16, %s608
        %v611 = vld [vmem:[%s604] sm:$0xff]
        %v612 = vld [vmem:[%s604 + $0x8] sm:$0xff]
        %v613 = vld [vmem:[%s604 + $0x10] sm:$0xff]
        %v614 = vld [vmem:[%s604 + $0x18] sm:$0xff]
        %v615 = vld [vmem:[%s604 + $0x20] sm:$0xff]
        %v616 = vld [vmem:[%s604 + $0x28] sm:$0xff]
        %v617 = vld [vmem:[%s604 + $0x30] sm:$0xff]
        %v618 = vld [vmem:[%s604 + $0x38] sm:$0xff]
        %v619 = vld [vmem:[%s604 + $0x40] sm:$0xff]
        %v620 = vld [vmem:[%s604 + $0x48] sm:$0xff]
        %v621 = vld [vmem:[%s604 + $0x50] sm:$0xff]
        %v622 = vld [vmem:[%s604 + $0x58] sm:$0xff]
        %v623 = vld [vmem:[%s604 + $0x60] sm:$0xff]
        %v624 = vld [vmem:[%s604 + $0x68] sm:$0xff]
        %v625 = vld [vmem:[%s604 + $0x70] sm:$0xff]
        %v626 = vld [vmem:[%s604 + $0x78] sm:$0xff]
        %v627 = vld [vmem:[%s4] sm:$0xff]
        %v628 = vld [vmem:[%s4 + $0x8] sm:$0xff]
        %v629 = vld [vmem:[%s4 + $0x10] sm:$0xff]
        %v630 = vld [vmem:[%s4 + $0x18] sm:$0xff]
        %v631 = vld [vmem:[%s4 + $0x20] sm:$0xff]
        %v632 = vld [vmem:[%s4 + $0x28] sm:$0xff]
        %v633 = vld [vmem:[%s4 + $0x30] sm:$0xff]
        %v634 = vld [vmem:[%s4 + $0x38] sm:$0xff]
        %v635 = vld [vmem:[%s4 + $0x40] sm:$0xff]
        %v636 = vld [vmem:[%s4 + $0x48] sm:$0xff]
        %v637 = vld [vmem:[%s4 + $0x50] sm:$0xff]
        %v638 = vld [vmem:[%s4 + $0x58] sm:$0xff]
        %v639 = vld [vmem:[%s4 + $0x60] sm:$0xff]
        %v640 = vld [vmem:[%s4 + $0x68] sm:$0xff]
        %v641 = vld [vmem:[%s4 + $0x70] sm:$0xff]
        %v642 = vld [vmem:[%s4 + $0x78] sm:$0xff]
        %v643 = vld [vmem:[%s4 + $0x80] sm:$0xff]
        %v644 = vld [vmem:[%s4 + $0x88] sm:$0xff]
        %v645 = vld [vmem:[%s4 + $0x90] sm:$0xff]
        %v646 = vld [vmem:[%s4 + $0x98] sm:$0xff]
        %v647 = vld [vmem:[%s4 + $0xa0] sm:$0xff]
        %v648 = vld [vmem:[%s4 + $0xa8] sm:$0xff]
        %v649 = vld [vmem:[%s4 + $0xb0] sm:$0xff]
        %v650 = vld [vmem:[%s4 + $0xb8] sm:$0xff]
        %v651 = vld [vmem:[%s4 + $0xc0] sm:$0xff]
        %v652 = vld [vmem:[%s4 + $0xc8] sm:$0xff]
        %v653 = vld [vmem:[%s4 + $0xd0] sm:$0xff]
        %v654 = vld [vmem:[%s4 + $0xd8] sm:$0xff]
        %v655 = vld [vmem:[%s4 + $0xe0] sm:$0xff]
        %v656 = vld [vmem:[%s4 + $0xe8] sm:$0xff]
        %v657 = vld [vmem:[%s4 + $0xf0] sm:$0xff]
        %v658 = vld [vmem:[%s4 + $0xf8] sm:$0xff]
        %v659 = vld [vmem:[%s4 + $0x100] sm:$0xff]
        %v660 = vld [vmem:[%s4 + $0x108] sm:$0xff]
        %v661 = vld [vmem:[%s4 + $0x110] sm:$0xff]
        %v662 = vld [vmem:[%s4 + $0x118] sm:$0xff]
        %v663 = vld [vmem:[%s4 + $0x120] sm:$0xff]
        %v664 = vld [vmem:[%s4 + $0x128] sm:$0xff]
        %v665 = vld [vmem:[%s4 + $0x130] sm:$0xff]
        %v666 = vld [vmem:[%s4 + $0x138] sm:$0xff]
        %v667 = vld [vmem:[%s4 + $0x140] sm:$0xff]
        %v668 = vld [vmem:[%s4 + $0x148] sm:$0xff]
        %v669 = vld [vmem:[%s4 + $0x150] sm:$0xff]
        %v670 = vld [vmem:[%s4 + $0x158] sm:$0xff]
        %v671 = vld [vmem:[%s4 + $0x160] sm:$0xff]
        %v672 = vld [vmem:[%s4 + $0x168] sm:$0xff]
        %v673 = vld [vmem:[%s4 + $0x170] sm:$0xff]
        %v674 = vld [vmem:[%s4 + $0x178] sm:$0xff]
        %v675 = vld [vmem:[%s4 + $0x180] sm:$0xff]
        %v676 = vld [vmem:[%s4 + $0x188] sm:$0xff]
        %v677 = vld [vmem:[%s4 + $0x190] sm:$0xff]
        %v678 = vld [vmem:[%s4 + $0x198] sm:$0xff]
        %v679 = vld [vmem:[%s4 + $0x1a0] sm:$0xff]
        %v680 = vld [vmem:[%s4 + $0x1a8] sm:$0xff]
        %v681 = vld [vmem:[%s4 + $0x1b0] sm:$0xff]
        %v682 = vld [vmem:[%s4 + $0x1b8] sm:$0xff]
        %v683 = vld [vmem:[%s4 + $0x1c0] sm:$0xff]
        %v684 = vld [vmem:[%s4 + $0x1c8] sm:$0xff]
        %v685 = vld [vmem:[%s4 + $0x1d0] sm:$0xff]
        %v686 = vld [vmem:[%s4 + $0x1d8] sm:$0xff]
        %v687 = vld [vmem:[%s4 + $0x1e0] sm:$0xff]
        %v688 = vld [vmem:[%s4 + $0x1e8] sm:$0xff]
        %v689 = vld [vmem:[%s4 + $0x1f0] sm:$0xff]
        %v690 = vld [vmem:[%s4 + $0x1f8] sm:$0xff]
        %v691 = vld [vmem:[%s4 + $0x200] sm:$0xff]
        %v692 = vld [vmem:[%s4 + $0x208] sm:$0xff]
        %v693 = vld [vmem:[%s4 + $0x210] sm:$0xff]
        %v694 = vld [vmem:[%s4 + $0x218] sm:$0xff]
        %v695 = vld [vmem:[%s4 + $0x220] sm:$0xff]
        %v696 = vld [vmem:[%s4 + $0x228] sm:$0xff]
        %v697 = vld [vmem:[%s4 + $0x230] sm:$0xff]
        %v698 = vld [vmem:[%s4 + $0x238] sm:$0xff]
        %v699 = vld [vmem:[%s4 + $0x240] sm:$0xff]
        %v700 = vld [vmem:[%s4 + $0x248] sm:$0xff]
        %v701 = vld [vmem:[%s4 + $0x250] sm:$0xff]
        %v702 = vld [vmem:[%s4 + $0x258] sm:$0xff]
        %v703 = vld [vmem:[%s4 + $0x260] sm:$0xff]
        %v704 = vld [vmem:[%s4 + $0x268] sm:$0xff]
        %v705 = vld [vmem:[%s4 + $0x270] sm:$0xff]
        %v706 = vld [vmem:[%s4 + $0x278] sm:$0xff]
        %v707 = vld [vmem:[%s4 + $0x280] sm:$0xff]
        %v708 = vld [vmem:[%s4 + $0x288] sm:$0xff]
        %v709 = vld [vmem:[%s4 + $0x290] sm:$0xff]
        %v710 = vld [vmem:[%s4 + $0x298] sm:$0xff]
        %v711 = vld [vmem:[%s4 + $0x2a0] sm:$0xff]
        %v712 = vld [vmem:[%s4 + $0x2a8] sm:$0xff]
        %v713 = vld [vmem:[%s4 + $0x2b0] sm:$0xff]
        %v714 = vld [vmem:[%s4 + $0x2b8] sm:$0xff]
        %v715 = vld [vmem:[%s4 + $0x2c0] sm:$0xff]
        %v716 = vld [vmem:[%s4 + $0x2c8] sm:$0xff]
        %v717 = vld [vmem:[%s4 + $0x2d0] sm:$0xff]
        %v718 = vld [vmem:[%s4 + $0x2d8] sm:$0xff]
        %v719 = vld [vmem:[%s4 + $0x2e0] sm:$0xff]
        %v720 = vld [vmem:[%s4 + $0x2e8] sm:$0xff]
        %v721 = vld [vmem:[%s4 + $0x2f0] sm:$0xff]
        %v722 = vld [vmem:[%s4 + $0x2f8] sm:$0xff]
        %v723 = vld [vmem:[%s4 + $0x300] sm:$0xff]
        %v724 = vld [vmem:[%s4 + $0x308] sm:$0xff]
        %v725 = vld [vmem:[%s4 + $0x310] sm:$0xff]
        %v726 = vld [vmem:[%s4 + $0x318] sm:$0xff]
        %v727 = vld [vmem:[%s4 + $0x320] sm:$0xff]
        %v728 = vld [vmem:[%s4 + $0x328] sm:$0xff]
        %v729 = vld [vmem:[%s4 + $0x330] sm:$0xff]
        %v730 = vld [vmem:[%s4 + $0x338] sm:$0xff]
        %v731 = vld [vmem:[%s4 + $0x340] sm:$0xff]
        %v732 = vld [vmem:[%s4 + $0x348] sm:$0xff]
        %v733 = vld [vmem:[%s4 + $0x350] sm:$0xff]
        %v734 = vld [vmem:[%s4 + $0x358] sm:$0xff]
        %v735 = vld [vmem:[%s4 + $0x360] sm:$0xff]
        %v736 = vld [vmem:[%s4 + $0x368] sm:$0xff]
        %v737 = vld [vmem:[%s4 + $0x370] sm:$0xff]
        %v738 = vld [vmem:[%s4 + $0x378] sm:$0xff]
        %v739 = vld [vmem:[%s4 + $0x380] sm:$0xff]
        %v740 = vld [vmem:[%s4 + $0x388] sm:$0xff]
        %v741 = vld [vmem:[%s4 + $0x390] sm:$0xff]
        %v742 = vld [vmem:[%s4 + $0x398] sm:$0xff]
        %v743 = vld [vmem:[%s4 + $0x3a0] sm:$0xff]
        %v744 = vld [vmem:[%s4 + $0x3a8] sm:$0xff]
        %v745 = vld [vmem:[%s4 + $0x3b0] sm:$0xff]
        %v746 = vld [vmem:[%s4 + $0x3b8] sm:$0xff]
        %v747 = vld [vmem:[%s4 + $0x3c0] sm:$0xff]
        %v748 = vld [vmem:[%s4 + $0x3c8] sm:$0xff]
        %v749 = vld [vmem:[%s4 + $0x3d0] sm:$0xff]
        %v750 = vld [vmem:[%s4 + $0x3d8] sm:$0xff]
        %v751 = vld [vmem:[%s4 + $0x3e0] sm:$0xff]
        %v752 = vld [vmem:[%s4 + $0x3e8] sm:$0xff]
        %v753 = vld [vmem:[%s4 + $0x3f0] sm:$0xff]
        %v754 = vld [vmem:[%s4 + $0x3f8] sm:$0xff]
        %v755 = vld [vmem:[%s4 + $0x400] sm:$0xff]
        %v756 = vld [vmem:[%s4 + $0x408] sm:$0xff]
        %v757 = vld [vmem:[%s4 + $0x410] sm:$0xff]
        %v758 = vld [vmem:[%s4 + $0x418] sm:$0xff]
        %v759 = vld [vmem:[%s4 + $0x420] sm:$0xff]
        %v760 = vld [vmem:[%s4 + $0x428] sm:$0xff]
        %v761 = vld [vmem:[%s4 + $0x430] sm:$0xff]
        %v762 = vld [vmem:[%s4 + $0x438] sm:$0xff]
        %v763 = vld [vmem:[%s4 + $0x440] sm:$0xff]
        %v764 = vld [vmem:[%s4 + $0x448] sm:$0xff]
        %v765 = vld [vmem:[%s4 + $0x450] sm:$0xff]
        %v766 = vld [vmem:[%s4 + $0x458] sm:$0xff]
        %v767 = vld [vmem:[%s4 + $0x460] sm:$0xff]
        %v768 = vld [vmem:[%s4 + $0x468] sm:$0xff]
        %v769 = vld [vmem:[%s4 + $0x470] sm:$0xff]
        %v770 = vld [vmem:[%s4 + $0x478] sm:$0xff]
        %v771 = vld [vmem:[%s4 + $0x480] sm:$0xff]
        %v772 = vld [vmem:[%s4 + $0x488] sm:$0xff]
        %v773 = vld [vmem:[%s4 + $0x490] sm:$0xff]
        %v774 = vld [vmem:[%s4 + $0x498] sm:$0xff]
        %v775 = vld [vmem:[%s4 + $0x4a0] sm:$0xff]
        %v776 = vld [vmem:[%s4 + $0x4a8] sm:$0xff]
        %v777 = vld [vmem:[%s4 + $0x4b0] sm:$0xff]
        %v778 = vld [vmem:[%s4 + $0x4b8] sm:$0xff]
        %v779 = vld [vmem:[%s4 + $0x4c0] sm:$0xff]
        %v780 = vld [vmem:[%s4 + $0x4c8] sm:$0xff]
        %v781 = vld [vmem:[%s4 + $0x4d0] sm:$0xff]
        %v782 = vld [vmem:[%s4 + $0x4d8] sm:$0xff]
        %v783 = vld [vmem:[%s4 + $0x4e0] sm:$0xff]
        %v784 = vld [vmem:[%s4 + $0x4e8] sm:$0xff]
        %v785 = vld [vmem:[%s4 + $0x4f0] sm:$0xff]
        %v786 = vld [vmem:[%s4 + $0x4f8] sm:$0xff]
        %v787 = vld [vmem:[%s4 + $0x500] sm:$0xff]
        %v788 = vld [vmem:[%s4 + $0x508] sm:$0xff]
        %v789 = vld [vmem:[%s4 + $0x510] sm:$0xff]
        %v790 = vld [vmem:[%s4 + $0x518] sm:$0xff]
        %v791 = vld [vmem:[%s4 + $0x520] sm:$0xff]
        %v792 = vld [vmem:[%s4 + $0x528] sm:$0xff]
        %v793 = vld [vmem:[%s4 + $0x530] sm:$0xff]
        %v794 = vld [vmem:[%s4 + $0x538] sm:$0xff]
        %v795 = vld [vmem:[%s4 + $0x540] sm:$0xff]
        %v796 = vld [vmem:[%s4 + $0x548] sm:$0xff]
        %v797 = vld [vmem:[%s4 + $0x550] sm:$0xff]
        %v798 = vld [vmem:[%s4 + $0x558] sm:$0xff]
        %v799 = vld [vmem:[%s4 + $0x560] sm:$0xff]
        %v800 = vld [vmem:[%s4 + $0x568] sm:$0xff]
        %v801 = vld [vmem:[%s4 + $0x570] sm:$0xff]
        %v802 = vld [vmem:[%s4 + $0x578] sm:$0xff]
        %v803 = vld [vmem:[%s4 + $0x580] sm:$0xff]
        %v804 = vld [vmem:[%s4 + $0x588] sm:$0xff]
        %v805 = vld [vmem:[%s4 + $0x590] sm:$0xff]
        %v806 = vld [vmem:[%s4 + $0x598] sm:$0xff]
        %v807 = vld [vmem:[%s4 + $0x5a0] sm:$0xff]
        %v808 = vld [vmem:[%s4 + $0x5a8] sm:$0xff]
        %v809 = vld [vmem:[%s4 + $0x5b0] sm:$0xff]
        %v810 = vld [vmem:[%s4 + $0x5b8] sm:$0xff]
        %v811 = vld [vmem:[%s4 + $0x5c0] sm:$0xff]
        %v812 = vld [vmem:[%s4 + $0x5c8] sm:$0xff]
        %v813 = vld [vmem:[%s4 + $0x5d0] sm:$0xff]
        %v814 = vld [vmem:[%s4 + $0x5d8] sm:$0xff]
        %v815 = vld [vmem:[%s4 + $0x5e0] sm:$0xff]
        %v816 = vld [vmem:[%s4 + $0x5e8] sm:$0xff]
        %v817 = vld [vmem:[%s4 + $0x5f0] sm:$0xff]
        %v818 = vld [vmem:[%s4 + $0x5f8] sm:$0xff]
        %v819 = vld [vmem:[%s4 + $0x600] sm:$0xff]
        %v820 = vld [vmem:[%s4 + $0x608] sm:$0xff]
        %v821 = vld [vmem:[%s4 + $0x610] sm:$0xff]
        %v822 = vld [vmem:[%s4 + $0x618] sm:$0xff]
        %v823 = vld [vmem:[%s4 + $0x620] sm:$0xff]
        %v824 = vld [vmem:[%s4 + $0x628] sm:$0xff]
        %v825 = vld [vmem:[%s4 + $0x630] sm:$0xff]
        %v826 = vld [vmem:[%s4 + $0x638] sm:$0xff]
        %v827 = vld [vmem:[%s4 + $0x640] sm:$0xff]
        %v828 = vld [vmem:[%s4 + $0x648] sm:$0xff]
        %v829 = vld [vmem:[%s4 + $0x650] sm:$0xff]
        %v830 = vld [vmem:[%s4 + $0x658] sm:$0xff]
        %v831 = vld [vmem:[%s4 + $0x660] sm:$0xff]
        %v832 = vld [vmem:[%s4 + $0x668] sm:$0xff]
        %v833 = vld [vmem:[%s4 + $0x670] sm:$0xff]
        %v834 = vld [vmem:[%s4 + $0x678] sm:$0xff]
        %v835 = vld [vmem:[%s4 + $0x680] sm:$0xff]
        %v836 = vld [vmem:[%s4 + $0x688] sm:$0xff]
        %v837 = vld [vmem:[%s4 + $0x690] sm:$0xff]
        %v838 = vld [vmem:[%s4 + $0x698] sm:$0xff]
        %v839 = vld [vmem:[%s4 + $0x6a0] sm:$0xff]
        %v840 = vld [vmem:[%s4 + $0x6a8] sm:$0xff]
        %v841 = vld [vmem:[%s4 + $0x6b0] sm:$0xff]
        %v842 = vld [vmem:[%s4 + $0x6b8] sm:$0xff]
        %v843 = vld [vmem:[%s4 + $0x6c0] sm:$0xff]
        %v844 = vld [vmem:[%s4 + $0x6c8] sm:$0xff]
        %v845 = vld [vmem:[%s4 + $0x6d0] sm:$0xff]
        %v846 = vld [vmem:[%s4 + $0x6d8] sm:$0xff]
        %v847 = vld [vmem:[%s4 + $0x6e0] sm:$0xff]
        %v848 = vld [vmem:[%s4 + $0x6e8] sm:$0xff]
        %v849 = vld [vmem:[%s4 + $0x6f0] sm:$0xff]
        %v850 = vld [vmem:[%s4 + $0x6f8] sm:$0xff]
        %v851 = vld [vmem:[%s4 + $0x700] sm:$0xff]
        %v852 = vld [vmem:[%s4 + $0x708] sm:$0xff]
        %v853 = vld [vmem:[%s4 + $0x710] sm:$0xff]
        %v854 = vld [vmem:[%s4 + $0x718] sm:$0xff]
        %v855 = vld [vmem:[%s4 + $0x720] sm:$0xff]
        %v856 = vld [vmem:[%s4 + $0x728] sm:$0xff]
        %v857 = vld [vmem:[%s4 + $0x730] sm:$0xff]
        %v858 = vld [vmem:[%s4 + $0x738] sm:$0xff]
        %v859 = vld [vmem:[%s4 + $0x740] sm:$0xff]
        %v860 = vld [vmem:[%s4 + $0x748] sm:$0xff]
        %v861 = vld [vmem:[%s4 + $0x750] sm:$0xff]
        %v862 = vld [vmem:[%s4 + $0x758] sm:$0xff]
        %v863 = vld [vmem:[%s4 + $0x760] sm:$0xff]
        %v864 = vld [vmem:[%s4 + $0x768] sm:$0xff]
        %v865 = vld [vmem:[%s4 + $0x770] sm:$0xff]
        %v866 = vld [vmem:[%s4 + $0x778] sm:$0xff]
        %v867 = vld [vmem:[%s4 + $0x780] sm:$0xff]
        %v868 = vld [vmem:[%s4 + $0x788] sm:$0xff]
        %v869 = vld [vmem:[%s4 + $0x790] sm:$0xff]
        %v870 = vld [vmem:[%s4 + $0x798] sm:$0xff]
        %v871 = vld [vmem:[%s4 + $0x7a0] sm:$0xff]
        %v872 = vld [vmem:[%s4 + $0x7a8] sm:$0xff]
        %v873 = vld [vmem:[%s4 + $0x7b0] sm:$0xff]
        %v874 = vld [vmem:[%s4 + $0x7b8] sm:$0xff]
        %v875 = vld [vmem:[%s4 + $0x7c0] sm:$0xff]
        %v876 = vld [vmem:[%s4 + $0x7c8] sm:$0xff]
        %v877 = vld [vmem:[%s4 + $0x7d0] sm:$0xff]
        %v878 = vld [vmem:[%s4 + $0x7d8] sm:$0xff]
        %v879 = vld [vmem:[%s4 + $0x7e0] sm:$0xff]
        %v880 = vld [vmem:[%s4 + $0x7e8] sm:$0xff]
        %v881 = vld [vmem:[%s4 + $0x7f0] sm:$0xff]
        %v882 = vld [vmem:[%s4 + $0x7f8] sm:$0xff]
        %v883 = vld [vmem:[%s5] sm:$0x3]
        %v885 = vlaneseq
        %v886 = vshrl.u32 %v885, 7
        %v887 = vsub.s32 0, %v886
        %v888 = vrot.slane %v883, %v887
        %v889 = vlaneseq
        %v890 = vshrl.u32 %v889, 7
        %v891 = vsub.s32 1, %v890
        %v892 = vrot.slane %v883, %v891
        %v911 = vunpack.c.l.b16 %v611
        %v912 = vunpack.c.h.b16 %v611
        %v913 = vunpack.c.l.b16 %v612
        %v914 = vunpack.c.h.b16 %v612
        %v915 = vunpack.c.l.b16 %v613
        %v916 = vunpack.c.h.b16 %v613
        %v917 = vunpack.c.l.b16 %v614
        %v918 = vunpack.c.h.b16 %v614
        %v919 = vunpack.c.l.b16 %v615
        %v920 = vunpack.c.h.b16 %v615
        %v921 = vunpack.c.l.b16 %v616
        %v922 = vunpack.c.h.b16 %v616
        %v923 = vunpack.c.l.b16 %v617
        %v924 = vunpack.c.h.b16 %v617
        %v925 = vunpack.c.l.b16 %v618
        %v926 = vunpack.c.h.b16 %v618
        %v927 = vunpack.c.l.b16 %v619
        %v928 = vunpack.c.h.b16 %v619
        %v929 = vunpack.c.l.b16 %v620
        %v930 = vunpack.c.h.b16 %v620
        %v931 = vunpack.c.l.b16 %v621
        %v932 = vunpack.c.h.b16 %v621
        %v933 = vunpack.c.l.b16 %v622
        %v934 = vunpack.c.h.b16 %v622
        %v935 = vunpack.c.l.b16 %v623
        %v936 = vunpack.c.h.b16 %v623
        %v937 = vunpack.c.l.b16 %v624
        %v938 = vunpack.c.h.b16 %v624
        %v939 = vunpack.c.l.b16 %v625
        %v940 = vunpack.c.h.b16 %v625
        %v941 = vunpack.c.l.b16 %v626
        %v942 = vunpack.c.h.b16 %v626
        %v943 = vpack.c.b16 %v927, %v911
        %v944 = vpack.c.b16 %v928, %v912
        %v945 = vpack.c.b16 %v929, %v913
        %v946 = vpack.c.b16 %v930, %v914
        %v947 = vpack.c.b16 %v931, %v915
        %v948 = vpack.c.b16 %v932, %v916
        %v949 = vpack.c.b16 %v933, %v917
        %v950 = vpack.c.b16 %v934, %v918
        %v951 = vpack.c.b16 %v935, %v919
        %v952 = vpack.c.b16 %v936, %v920
        %v953 = vpack.c.b16 %v937, %v921
        %v954 = vpack.c.b16 %v938, %v922
        %v955 = vpack.c.b16 %v939, %v923
        %v956 = vpack.c.b16 %v940, %v924
        %v957 = vpack.c.b16 %v941, %v925
        %v958 = vpack.c.b16 %v942, %v926
        %v1231 = vunpack.c.l.b16 %v627
        %v1232 = vunpack.c.h.b16 %v627
        %v1233 = vunpack.c.l.b16 %v628
        %v1234 = vunpack.c.h.b16 %v628
        %v1235 = vunpack.c.l.b16 %v629
        %v1236 = vunpack.c.h.b16 %v629
        %v1237 = vunpack.c.l.b16 %v630
        %v1238 = vunpack.c.h.b16 %v630
        %v1239 = vunpack.c.l.b16 %v631
        %v1240 = vunpack.c.h.b16 %v631
        %v1241 = vunpack.c.l.b16 %v632
        %v1242 = vunpack.c.h.b16 %v632
        %v1243 = vunpack.c.l.b16 %v633
        %v1244 = vunpack.c.h.b16 %v633
        %v1245 = vunpack.c.l.b16 %v634
        %v1246 = vunpack.c.h.b16 %v634
        %v1247 = vunpack.c.l.b16 %v635
        %v1248 = vunpack.c.h.b16 %v635
        %v1249 = vunpack.c.l.b16 %v636
        %v1250 = vunpack.c.h.b16 %v636
        %v1251 = vunpack.c.l.b16 %v637
        %v1252 = vunpack.c.h.b16 %v637
        %v1253 = vunpack.c.l.b16 %v638
        %v1254 = vunpack.c.h.b16 %v638
        %v1255 = vunpack.c.l.b16 %v639
        %v1256 = vunpack.c.h.b16 %v639
        %v1257 = vunpack.c.l.b16 %v640
        %v1258 = vunpack.c.h.b16 %v640
        %v1259 = vunpack.c.l.b16 %v641
        %v1260 = vunpack.c.h.b16 %v641
        %v1261 = vunpack.c.l.b16 %v642
        %v1262 = vunpack.c.h.b16 %v642
        %v1263 = vunpack.c.l.b16 %v643
        %v1264 = vunpack.c.h.b16 %v643
        %v1265 = vunpack.c.l.b16 %v644
        %v1266 = vunpack.c.h.b16 %v644
        %v1267 = vunpack.c.l.b16 %v645
        %v1268 = vunpack.c.h.b16 %v645
        %v1269 = vunpack.c.l.b16 %v646
        %v1270 = vunpack.c.h.b16 %v646
        %v1271 = vunpack.c.l.b16 %v647
        %v1272 = vunpack.c.h.b16 %v647
        %v1273 = vunpack.c.l.b16 %v648
        %v1274 = vunpack.c.h.b16 %v648
        %v1275 = vunpack.c.l.b16 %v649
        %v1276 = vunpack.c.h.b16 %v649
        %v1277 = vunpack.c.l.b16 %v650
        %v1278 = vunpack.c.h.b16 %v650
        %v1279 = vunpack.c.l.b16 %v651
        %v1280 = vunpack.c.h.b16 %v651
        %v1281 = vunpack.c.l.b16 %v652
        %v1282 = vunpack.c.h.b16 %v652
        %v1283 = vunpack.c.l.b16 %v653
        %v1284 = vunpack.c.h.b16 %v653
        %v1285 = vunpack.c.l.b16 %v654
        %v1286 = vunpack.c.h.b16 %v654
        %v1287 = vunpack.c.l.b16 %v655
        %v1288 = vunpack.c.h.b16 %v655
        %v1289 = vunpack.c.l.b16 %v656
        %v1290 = vunpack.c.h.b16 %v656
        %v1291 = vunpack.c.l.b16 %v657
        %v1292 = vunpack.c.h.b16 %v657
        %v1293 = vunpack.c.l.b16 %v658
        %v1294 = vunpack.c.h.b16 %v658
        %v1295 = vunpack.c.l.b16 %v659
        %v1296 = vunpack.c.h.b16 %v659
        %v1297 = vunpack.c.l.b16 %v660
        %v1298 = vunpack.c.h.b16 %v660
        %v1299 = vunpack.c.l.b16 %v661
        %v1300 = vunpack.c.h.b16 %v661
        %v1301 = vunpack.c.l.b16 %v662
        %v1302 = vunpack.c.h.b16 %v662
        %v1303 = vunpack.c.l.b16 %v663
        %v1304 = vunpack.c.h.b16 %v663
        %v1305 = vunpack.c.l.b16 %v664
        %v1306 = vunpack.c.h.b16 %v664
        %v1307 = vunpack.c.l.b16 %v665
        %v1308 = vunpack.c.h.b16 %v665
        %v1309 = vunpack.c.l.b16 %v666
        %v1310 = vunpack.c.h.b16 %v666
        %v1311 = vunpack.c.l.b16 %v667
        %v1312 = vunpack.c.h.b16 %v667
        %v1313 = vunpack.c.l.b16 %v668
        %v1314 = vunpack.c.h.b16 %v668
        %v1315 = vunpack.c.l.b16 %v669
        %v1316 = vunpack.c.h.b16 %v669
        %v1317 = vunpack.c.l.b16 %v670
        %v1318 = vunpack.c.h.b16 %v670
        %v1319 = vunpack.c.l.b16 %v671
        %v1320 = vunpack.c.h.b16 %v671
        %v1321 = vunpack.c.l.b16 %v672
        %v1322 = vunpack.c.h.b16 %v672
        %v1323 = vunpack.c.l.b16 %v673
        %v1324 = vunpack.c.h.b16 %v673
        %v1325 = vunpack.c.l.b16 %v674
        %v1326 = vunpack.c.h.b16 %v674
        %v1327 = vunpack.c.l.b16 %v675
        %v1328 = vunpack.c.h.b16 %v675
        %v1329 = vunpack.c.l.b16 %v676
        %v1330 = vunpack.c.h.b16 %v676
        %v1331 = vunpack.c.l.b16 %v677
        %v1332 = vunpack.c.h.b16 %v677
        %v1333 = vunpack.c.l.b16 %v678
        %v1334 = vunpack.c.h.b16 %v678
        %v1335 = vunpack.c.l.b16 %v679
        %v1336 = vunpack.c.h.b16 %v679
        %v1337 = vunpack.c.l.b16 %v680
        %v1338 = vunpack.c.h.b16 %v680
        %v1339 = vunpack.c.l.b16 %v681
        %v1340 = vunpack.c.h.b16 %v681
        %v1341 = vunpack.c.l.b16 %v682
        %v1342 = vunpack.c.h.b16 %v682
        %v1343 = vunpack.c.l.b16 %v683
        %v1344 = vunpack.c.h.b16 %v683
        %v1345 = vunpack.c.l.b16 %v684
        %v1346 = vunpack.c.h.b16 %v684
        %v1347 = vunpack.c.l.b16 %v685
        %v1348 = vunpack.c.h.b16 %v685
        %v1349 = vunpack.c.l.b16 %v686
        %v1350 = vunpack.c.h.b16 %v686
        %v1351 = vunpack.c.l.b16 %v687
        %v1352 = vunpack.c.h.b16 %v687
        %v1353 = vunpack.c.l.b16 %v688
        %v1354 = vunpack.c.h.b16 %v688
        %v1355 = vunpack.c.l.b16 %v689
        %v1356 = vunpack.c.h.b16 %v689
        %v1357 = vunpack.c.l.b16 %v690
        %v1358 = vunpack.c.h.b16 %v690
        %v1359 = vunpack.c.l.b16 %v691
        %v1360 = vunpack.c.h.b16 %v691
        %v1361 = vunpack.c.l.b16 %v692
        %v1362 = vunpack.c.h.b16 %v692
        %v1363 = vunpack.c.l.b16 %v693
        %v1364 = vunpack.c.h.b16 %v693
        %v1365 = vunpack.c.l.b16 %v694
        %v1366 = vunpack.c.h.b16 %v694
        %v1367 = vunpack.c.l.b16 %v695
        %v1368 = vunpack.c.h.b16 %v695
        %v1369 = vunpack.c.l.b16 %v696
        %v1370 = vunpack.c.h.b16 %v696
        %v1371 = vunpack.c.l.b16 %v697
        %v1372 = vunpack.c.h.b16 %v697
        %v1373 = vunpack.c.l.b16 %v698
        %v1374 = vunpack.c.h.b16 %v698
        %v1375 = vunpack.c.l.b16 %v699
        %v1376 = vunpack.c.h.b16 %v699
        %v1377 = vunpack.c.l.b16 %v700
        %v1378 = vunpack.c.h.b16 %v700
        %v1379 = vunpack.c.l.b16 %v701
        %v1380 = vunpack.c.h.b16 %v701
        %v1381 = vunpack.c.l.b16 %v702
        %v1382 = vunpack.c.h.b16 %v702
        %v1383 = vunpack.c.l.b16 %v703
        %v1384 = vunpack.c.h.b16 %v703
        %v1385 = vunpack.c.l.b16 %v704
        %v1386 = vunpack.c.h.b16 %v704
        %v1387 = vunpack.c.l.b16 %v705
        %v1388 = vunpack.c.h.b16 %v705
        %v1389 = vunpack.c.l.b16 %v706
        %v1390 = vunpack.c.h.b16 %v706
        %v1391 = vunpack.c.l.b16 %v707
        %v1392 = vunpack.c.h.b16 %v707
        %v1393 = vunpack.c.l.b16 %v708
        %v1394 = vunpack.c.h.b16 %v708
        %v1395 = vunpack.c.l.b16 %v709
        %v1396 = vunpack.c.h.b16 %v709
        %v1397 = vunpack.c.l.b16 %v710
        %v1398 = vunpack.c.h.b16 %v710
        %v1399 = vunpack.c.l.b16 %v711
        %v1400 = vunpack.c.h.b16 %v711
        %v1401 = vunpack.c.l.b16 %v712
        %v1402 = vunpack.c.h.b16 %v712
        %v1403 = vunpack.c.l.b16 %v713
        %v1404 = vunpack.c.h.b16 %v713
        %v1405 = vunpack.c.l.b16 %v714
        %v1406 = vunpack.c.h.b16 %v714
        %v1407 = vunpack.c.l.b16 %v715
        %v1408 = vunpack.c.h.b16 %v715
        %v1409 = vunpack.c.l.b16 %v716
        %v1410 = vunpack.c.h.b16 %v716
        %v1411 = vunpack.c.l.b16 %v717
        %v1412 = vunpack.c.h.b16 %v717
        %v1413 = vunpack.c.l.b16 %v718
        %v1414 = vunpack.c.h.b16 %v718
        %v1415 = vunpack.c.l.b16 %v719
        %v1416 = vunpack.c.h.b16 %v719
        %v1417 = vunpack.c.l.b16 %v720
        %v1418 = vunpack.c.h.b16 %v720
        %v1419 = vunpack.c.l.b16 %v721
        %v1420 = vunpack.c.h.b16 %v721
        %v1421 = vunpack.c.l.b16 %v722
        %v1422 = vunpack.c.h.b16 %v722
        %v1423 = vunpack.c.l.b16 %v723
        %v1424 = vunpack.c.h.b16 %v723
        %v1425 = vunpack.c.l.b16 %v724
        %v1426 = vunpack.c.h.b16 %v724
        %v1427 = vunpack.c.l.b16 %v725
        %v1428 = vunpack.c.h.b16 %v725
        %v1429 = vunpack.c.l.b16 %v726
        %v1430 = vunpack.c.h.b16 %v726
        %v1431 = vunpack.c.l.b16 %v727
        %v1432 = vunpack.c.h.b16 %v727
        %v1433 = vunpack.c.l.b16 %v728
        %v1434 = vunpack.c.h.b16 %v728
        %v1435 = vunpack.c.l.b16 %v729
        %v1436 = vunpack.c.h.b16 %v729
        %v1437 = vunpack.c.l.b16 %v730
        %v1438 = vunpack.c.h.b16 %v730
        %v1439 = vunpack.c.l.b16 %v731
        %v1440 = vunpack.c.h.b16 %v731
        %v1441 = vunpack.c.l.b16 %v732
        %v1442 = vunpack.c.h.b16 %v732
        %v1443 = vunpack.c.l.b16 %v733
        %v1444 = vunpack.c.h.b16 %v733
        %v1445 = vunpack.c.l.b16 %v734
        %v1446 = vunpack.c.h.b16 %v734
        %v1447 = vunpack.c.l.b16 %v735
        %v1448 = vunpack.c.h.b16 %v735
        %v1449 = vunpack.c.l.b16 %v736
        %v1450 = vunpack.c.h.b16 %v736
        %v1451 = vunpack.c.l.b16 %v737
        %v1452 = vunpack.c.h.b16 %v737
        %v1453 = vunpack.c.l.b16 %v738
        %v1454 = vunpack.c.h.b16 %v738
        %v1455 = vunpack.c.l.b16 %v739
        %v1456 = vunpack.c.h.b16 %v739
        %v1457 = vunpack.c.l.b16 %v740
        %v1458 = vunpack.c.h.b16 %v740
        %v1459 = vunpack.c.l.b16 %v741
        %v1460 = vunpack.c.h.b16 %v741
        %v1461 = vunpack.c.l.b16 %v742
        %v1462 = vunpack.c.h.b16 %v742
        %v1463 = vunpack.c.l.b16 %v743
        %v1464 = vunpack.c.h.b16 %v743
        %v1465 = vunpack.c.l.b16 %v744
        %v1466 = vunpack.c.h.b16 %v744
        %v1467 = vunpack.c.l.b16 %v745
        %v1468 = vunpack.c.h.b16 %v745
        %v1469 = vunpack.c.l.b16 %v746
        %v1470 = vunpack.c.h.b16 %v746
        %v1471 = vunpack.c.l.b16 %v747
        %v1472 = vunpack.c.h.b16 %v747
        %v1473 = vunpack.c.l.b16 %v748
        %v1474 = vunpack.c.h.b16 %v748
        %v1475 = vunpack.c.l.b16 %v749
        %v1476 = vunpack.c.h.b16 %v749
        %v1477 = vunpack.c.l.b16 %v750
        %v1478 = vunpack.c.h.b16 %v750
        %v1479 = vunpack.c.l.b16 %v751
        %v1480 = vunpack.c.h.b16 %v751
        %v1481 = vunpack.c.l.b16 %v752
        %v1482 = vunpack.c.h.b16 %v752
        %v1483 = vunpack.c.l.b16 %v753
        %v1484 = vunpack.c.h.b16 %v753
        %v1485 = vunpack.c.l.b16 %v754
        %v1486 = vunpack.c.h.b16 %v754
        %v1487 = vunpack.c.l.b16 %v755
        %v1488 = vunpack.c.h.b16 %v755
        %v1489 = vunpack.c.l.b16 %v756
        %v1490 = vunpack.c.h.b16 %v756
        %v1491 = vunpack.c.l.b16 %v757
        %v1492 = vunpack.c.h.b16 %v757
        %v1493 = vunpack.c.l.b16 %v758
        %v1494 = vunpack.c.h.b16 %v758
        %v1495 = vunpack.c.l.b16 %v759
        %v1496 = vunpack.c.h.b16 %v759
        %v1497 = vunpack.c.l.b16 %v760
        %v1498 = vunpack.c.h.b16 %v760
        %v1499 = vunpack.c.l.b16 %v761
        %v1500 = vunpack.c.h.b16 %v761
        %v1501 = vunpack.c.l.b16 %v762
        %v1502 = vunpack.c.h.b16 %v762
        %v1503 = vunpack.c.l.b16 %v763
        %v1504 = vunpack.c.h.b16 %v763
        %v1505 = vunpack.c.l.b16 %v764
        %v1506 = vunpack.c.h.b16 %v764
        %v1507 = vunpack.c.l.b16 %v765
        %v1508 = vunpack.c.h.b16 %v765
        %v1509 = vunpack.c.l.b16 %v766
        %v1510 = vunpack.c.h.b16 %v766
        %v1511 = vunpack.c.l.b16 %v767
        %v1512 = vunpack.c.h.b16 %v767
        %v1513 = vunpack.c.l.b16 %v768
        %v1514 = vunpack.c.h.b16 %v768
        %v1515 = vunpack.c.l.b16 %v769
        %v1516 = vunpack.c.h.b16 %v769
        %v1517 = vunpack.c.l.b16 %v770
        %v1518 = vunpack.c.h.b16 %v770
        %v1519 = vunpack.c.l.b16 %v771
        %v1520 = vunpack.c.h.b16 %v771
        %v1521 = vunpack.c.l.b16 %v772
        %v1522 = vunpack.c.h.b16 %v772
        %v1523 = vunpack.c.l.b16 %v773
        %v1524 = vunpack.c.h.b16 %v773
        %v1525 = vunpack.c.l.b16 %v774
        %v1526 = vunpack.c.h.b16 %v774
        %v1527 = vunpack.c.l.b16 %v775
        %v1528 = vunpack.c.h.b16 %v775
        %v1529 = vunpack.c.l.b16 %v776
        %v1530 = vunpack.c.h.b16 %v776
        %v1531 = vunpack.c.l.b16 %v777
        %v1532 = vunpack.c.h.b16 %v777
        %v1533 = vunpack.c.l.b16 %v778
        %v1534 = vunpack.c.h.b16 %v778
        %v1535 = vunpack.c.l.b16 %v779
        %v1536 = vunpack.c.h.b16 %v779
        %v1537 = vunpack.c.l.b16 %v780
        %v1538 = vunpack.c.h.b16 %v780
        %v1539 = vunpack.c.l.b16 %v781
        %v1540 = vunpack.c.h.b16 %v781
        %v1541 = vunpack.c.l.b16 %v782
        %v1542 = vunpack.c.h.b16 %v782
        %v1543 = vunpack.c.l.b16 %v783
        %v1544 = vunpack.c.h.b16 %v783
        %v1545 = vunpack.c.l.b16 %v784
        %v1546 = vunpack.c.h.b16 %v784
        %v1547 = vunpack.c.l.b16 %v785
        %v1548 = vunpack.c.h.b16 %v785
        %v1549 = vunpack.c.l.b16 %v786
        %v1550 = vunpack.c.h.b16 %v786
        %v1551 = vunpack.c.l.b16 %v787
        %v1552 = vunpack.c.h.b16 %v787
        %v1553 = vunpack.c.l.b16 %v788
        %v1554 = vunpack.c.h.b16 %v788
        %v1555 = vunpack.c.l.b16 %v789
        %v1556 = vunpack.c.h.b16 %v789
        %v1557 = vunpack.c.l.b16 %v790
        %v1558 = vunpack.c.h.b16 %v790
        %v1559 = vunpack.c.l.b16 %v791
        %v1560 = vunpack.c.h.b16 %v791
        %v1561 = vunpack.c.l.b16 %v792
        %v1562 = vunpack.c.h.b16 %v792
        %v1563 = vunpack.c.l.b16 %v793
        %v1564 = vunpack.c.h.b16 %v793
        %v1565 = vunpack.c.l.b16 %v794
        %v1566 = vunpack.c.h.b16 %v794
        %v1567 = vunpack.c.l.b16 %v795
        %v1568 = vunpack.c.h.b16 %v795
        %v1569 = vunpack.c.l.b16 %v796
        %v1570 = vunpack.c.h.b16 %v796
        %v1571 = vunpack.c.l.b16 %v797
        %v1572 = vunpack.c.h.b16 %v797
        %v1573 = vunpack.c.l.b16 %v798
        %v1574 = vunpack.c.h.b16 %v798
        %v1575 = vunpack.c.l.b16 %v799
        %v1576 = vunpack.c.h.b16 %v799
        %v1577 = vunpack.c.l.b16 %v800
        %v1578 = vunpack.c.h.b16 %v800
        %v1579 = vunpack.c.l.b16 %v801
        %v1580 = vunpack.c.h.b16 %v801
        %v1581 = vunpack.c.l.b16 %v802
        %v1582 = vunpack.c.h.b16 %v802
        %v1583 = vunpack.c.l.b16 %v803
        %v1584 = vunpack.c.h.b16 %v803
        %v1585 = vunpack.c.l.b16 %v804
        %v1586 = vunpack.c.h.b16 %v804
        %v1587 = vunpack.c.l.b16 %v805
        %v1588 = vunpack.c.h.b16 %v805
        %v1589 = vunpack.c.l.b16 %v806
        %v1590 = vunpack.c.h.b16 %v806
        %v1591 = vunpack.c.l.b16 %v807
        %v1592 = vunpack.c.h.b16 %v807
        %v1593 = vunpack.c.l.b16 %v808
        %v1594 = vunpack.c.h.b16 %v808
        %v1595 = vunpack.c.l.b16 %v809
        %v1596 = vunpack.c.h.b16 %v809
        %v1597 = vunpack.c.l.b16 %v810
        %v1598 = vunpack.c.h.b16 %v810
        %v1599 = vunpack.c.l.b16 %v811
        %v1600 = vunpack.c.h.b16 %v811
        %v1601 = vunpack.c.l.b16 %v812
        %v1602 = vunpack.c.h.b16 %v812
        %v1603 = vunpack.c.l.b16 %v813
        %v1604 = vunpack.c.h.b16 %v813
        %v1605 = vunpack.c.l.b16 %v814
        %v1606 = vunpack.c.h.b16 %v814
        %v1607 = vunpack.c.l.b16 %v815
        %v1608 = vunpack.c.h.b16 %v815
        %v1609 = vunpack.c.l.b16 %v816
        %v1610 = vunpack.c.h.b16 %v816
        %v1611 = vunpack.c.l.b16 %v817
        %v1612 = vunpack.c.h.b16 %v817
        %v1613 = vunpack.c.l.b16 %v818
        %v1614 = vunpack.c.h.b16 %v818
        %v1615 = vunpack.c.l.b16 %v819
        %v1616 = vunpack.c.h.b16 %v819
        %v1617 = vunpack.c.l.b16 %v820
        %v1618 = vunpack.c.h.b16 %v820
        %v1619 = vunpack.c.l.b16 %v821
        %v1620 = vunpack.c.h.b16 %v821
        %v1621 = vunpack.c.l.b16 %v822
        %v1622 = vunpack.c.h.b16 %v822
        %v1623 = vunpack.c.l.b16 %v823
        %v1624 = vunpack.c.h.b16 %v823
        %v1625 = vunpack.c.l.b16 %v824
        %v1626 = vunpack.c.h.b16 %v824
        %v1627 = vunpack.c.l.b16 %v825
        %v1628 = vunpack.c.h.b16 %v825
        %v1629 = vunpack.c.l.b16 %v826
        %v1630 = vunpack.c.h.b16 %v826
        %v1631 = vunpack.c.l.b16 %v827
        %v1632 = vunpack.c.h.b16 %v827
        %v1633 = vunpack.c.l.b16 %v828
        %v1634 = vunpack.c.h.b16 %v828
        %v1635 = vunpack.c.l.b16 %v829
        %v1636 = vunpack.c.h.b16 %v829
        %v1637 = vunpack.c.l.b16 %v830
        %v1638 = vunpack.c.h.b16 %v830
        %v1639 = vunpack.c.l.b16 %v831
        %v1640 = vunpack.c.h.b16 %v831
        %v1641 = vunpack.c.l.b16 %v832
        %v1642 = vunpack.c.h.b16 %v832
        %v1643 = vunpack.c.l.b16 %v833
        %v1644 = vunpack.c.h.b16 %v833
        %v1645 = vunpack.c.l.b16 %v834
        %v1646 = vunpack.c.h.b16 %v834
        %v1647 = vunpack.c.l.b16 %v835
        %v1648 = vunpack.c.h.b16 %v835
        %v1649 = vunpack.c.l.b16 %v836
        %v1650 = vunpack.c.h.b16 %v836
        %v1651 = vunpack.c.l.b16 %v837
        %v1652 = vunpack.c.h.b16 %v837
        %v1653 = vunpack.c.l.b16 %v838
        %v1654 = vunpack.c.h.b16 %v838
        %v1655 = vunpack.c.l.b16 %v839
        %v1656 = vunpack.c.h.b16 %v839
        %v1657 = vunpack.c.l.b16 %v840
        %v1658 = vunpack.c.h.b16 %v840
        %v1659 = vunpack.c.l.b16 %v841
        %v1660 = vunpack.c.h.b16 %v841
        %v1661 = vunpack.c.l.b16 %v842
        %v1662 = vunpack.c.h.b16 %v842
        %v1663 = vunpack.c.l.b16 %v843
        %v1664 = vunpack.c.h.b16 %v843
        %v1665 = vunpack.c.l.b16 %v844
        %v1666 = vunpack.c.h.b16 %v844
        %v1667 = vunpack.c.l.b16 %v845
        %v1668 = vunpack.c.h.b16 %v845
        %v1669 = vunpack.c.l.b16 %v846
        %v1670 = vunpack.c.h.b16 %v846
        %v1671 = vunpack.c.l.b16 %v847
        %v1672 = vunpack.c.h.b16 %v847
        %v1673 = vunpack.c.l.b16 %v848
        %v1674 = vunpack.c.h.b16 %v848
        %v1675 = vunpack.c.l.b16 %v849
        %v1676 = vunpack.c.h.b16 %v849
        %v1677 = vunpack.c.l.b16 %v850
        %v1678 = vunpack.c.h.b16 %v850
        %v1679 = vunpack.c.l.b16 %v851
        %v1680 = vunpack.c.h.b16 %v851
        %v1681 = vunpack.c.l.b16 %v852
        %v1682 = vunpack.c.h.b16 %v852
        %v1683 = vunpack.c.l.b16 %v853
        %v1684 = vunpack.c.h.b16 %v853
        %v1685 = vunpack.c.l.b16 %v854
        %v1686 = vunpack.c.h.b16 %v854
        %v1687 = vunpack.c.l.b16 %v855
        %v1688 = vunpack.c.h.b16 %v855
        %v1689 = vunpack.c.l.b16 %v856
        %v1690 = vunpack.c.h.b16 %v856
        %v1691 = vunpack.c.l.b16 %v857
        %v1692 = vunpack.c.h.b16 %v857
        %v1693 = vunpack.c.l.b16 %v858
        %v1694 = vunpack.c.h.b16 %v858
        %v1695 = vunpack.c.l.b16 %v859
        %v1696 = vunpack.c.h.b16 %v859
        %v1697 = vunpack.c.l.b16 %v860
        %v1698 = vunpack.c.h.b16 %v860
        %v1699 = vunpack.c.l.b16 %v861
        %v1700 = vunpack.c.h.b16 %v861
        %v1701 = vunpack.c.l.b16 %v862
        %v1702 = vunpack.c.h.b16 %v862
        %v1703 = vunpack.c.l.b16 %v863
        %v1704 = vunpack.c.h.b16 %v863
        %v1705 = vunpack.c.l.b16 %v864
        %v1706 = vunpack.c.h.b16 %v864
        %v1707 = vunpack.c.l.b16 %v865
        %v1708 = vunpack.c.h.b16 %v865
        %v1709 = vunpack.c.l.b16 %v866
        %v1710 = vunpack.c.h.b16 %v866
        %v1711 = vunpack.c.l.b16 %v867
        %v1712 = vunpack.c.h.b16 %v867
        %v1713 = vunpack.c.l.b16 %v868
        %v1714 = vunpack.c.h.b16 %v868
        %v1715 = vunpack.c.l.b16 %v869
        %v1716 = vunpack.c.h.b16 %v869
        %v1717 = vunpack.c.l.b16 %v870
        %v1718 = vunpack.c.h.b16 %v870
        %v1719 = vunpack.c.l.b16 %v871
        %v1720 = vunpack.c.h.b16 %v871
        %v1721 = vunpack.c.l.b16 %v872
        %v1722 = vunpack.c.h.b16 %v872
        %v1723 = vunpack.c.l.b16 %v873
        %v1724 = vunpack.c.h.b16 %v873
        %v1725 = vunpack.c.l.b16 %v874
        %v1726 = vunpack.c.h.b16 %v874
        %v1727 = vunpack.c.l.b16 %v875
        %v1728 = vunpack.c.h.b16 %v875
        %v1729 = vunpack.c.l.b16 %v876
        %v1730 = vunpack.c.h.b16 %v876
        %v1731 = vunpack.c.l.b16 %v877
        %v1732 = vunpack.c.h.b16 %v877
        %v1733 = vunpack.c.l.b16 %v878
        %v1734 = vunpack.c.h.b16 %v878
        %v1735 = vunpack.c.l.b16 %v879
        %v1736 = vunpack.c.h.b16 %v879
        %v1737 = vunpack.c.l.b16 %v880
        %v1738 = vunpack.c.h.b16 %v880
        %v1739 = vunpack.c.l.b16 %v881
        %v1740 = vunpack.c.h.b16 %v881
        %v1741 = vunpack.c.l.b16 %v882
        %v1742 = vunpack.c.h.b16 %v882
        %v1743 = vpack.c.b16 %v1233, %v1231
        %v1744 = vpack.c.b16 %v1234, %v1232
        %v1745 = vpack.c.b16 %v1237, %v1235
        %v1746 = vpack.c.b16 %v1238, %v1236
        %v1747 = vpack.c.b16 %v1241, %v1239
        %v1748 = vpack.c.b16 %v1242, %v1240
        %v1749 = vpack.c.b16 %v1245, %v1243
        %v1750 = vpack.c.b16 %v1246, %v1244
        %v1751 = vpack.c.b16 %v1249, %v1247
        %v1752 = vpack.c.b16 %v1250, %v1248
        %v1753 = vpack.c.b16 %v1253, %v1251
        %v1754 = vpack.c.b16 %v1254, %v1252
        %v1755 = vpack.c.b16 %v1257, %v1255
        %v1756 = vpack.c.b16 %v1258, %v1256
        %v1757 = vpack.c.b16 %v1261, %v1259
        %v1758 = vpack.c.b16 %v1262, %v1260
        %v1759 = vpack.c.b16 %v1265, %v1263
        %v1760 = vpack.c.b16 %v1266, %v1264
        %v1761 = vpack.c.b16 %v1269, %v1267
        %v1762 = vpack.c.b16 %v1270, %v1268
        %v1763 = vpack.c.b16 %v1273, %v1271
        %v1764 = vpack.c.b16 %v1274, %v1272
        %v1765 = vpack.c.b16 %v1277, %v1275
        %v1766 = vpack.c.b16 %v1278, %v1276
        %v1767 = vpack.c.b16 %v1281, %v1279
        %v1768 = vpack.c.b16 %v1282, %v1280
        %v1769 = vpack.c.b16 %v1285, %v1283
        %v1770 = vpack.c.b16 %v1286, %v1284
        %v1771 = vpack.c.b16 %v1289, %v1287
        %v1772 = vpack.c.b16 %v1290, %v1288
        %v1773 = vpack.c.b16 %v1293, %v1291
        %v1774 = vpack.c.b16 %v1294, %v1292
        %v1775 = vpack.c.b16 %v1297, %v1295
        %v1776 = vpack.c.b16 %v1298, %v1296
        %v1777 = vpack.c.b16 %v1301, %v1299
        %v1778 = vpack.c.b16 %v1302, %v1300
        %v1779 = vpack.c.b16 %v1305, %v1303
        %v1780 = vpack.c.b16 %v1306, %v1304
        %v1781 = vpack.c.b16 %v1309, %v1307
        %v1782 = vpack.c.b16 %v1310, %v1308
        %v1783 = vpack.c.b16 %v1313, %v1311
        %v1784 = vpack.c.b16 %v1314, %v1312
        %v1785 = vpack.c.b16 %v1317, %v1315
        %v1786 = vpack.c.b16 %v1318, %v1316
        %v1787 = vpack.c.b16 %v1321, %v1319
        %v1788 = vpack.c.b16 %v1322, %v1320
        %v1789 = vpack.c.b16 %v1325, %v1323
        %v1790 = vpack.c.b16 %v1326, %v1324
        %v1791 = vpack.c.b16 %v1329, %v1327
        %v1792 = vpack.c.b16 %v1330, %v1328
        %v1793 = vpack.c.b16 %v1333, %v1331
        %v1794 = vpack.c.b16 %v1334, %v1332
        %v1795 = vpack.c.b16 %v1337, %v1335
        %v1796 = vpack.c.b16 %v1338, %v1336
        %v1797 = vpack.c.b16 %v1341, %v1339
        %v1798 = vpack.c.b16 %v1342, %v1340
        %v1799 = vpack.c.b16 %v1345, %v1343
        %v1800 = vpack.c.b16 %v1346, %v1344
        %v1801 = vpack.c.b16 %v1349, %v1347
        %v1802 = vpack.c.b16 %v1350, %v1348
        %v1803 = vpack.c.b16 %v1353, %v1351
        %v1804 = vpack.c.b16 %v1354, %v1352
        %v1805 = vpack.c.b16 %v1357, %v1355
        %v1806 = vpack.c.b16 %v1358, %v1356
        %v1807 = vpack.c.b16 %v1361, %v1359
        %v1808 = vpack.c.b16 %v1362, %v1360
        %v1809 = vpack.c.b16 %v1365, %v1363
        %v1810 = vpack.c.b16 %v1366, %v1364
        %v1811 = vpack.c.b16 %v1369, %v1367
        %v1812 = vpack.c.b16 %v1370, %v1368
        %v1813 = vpack.c.b16 %v1373, %v1371
        %v1814 = vpack.c.b16 %v1374, %v1372
        %v1815 = vpack.c.b16 %v1377, %v1375
        %v1816 = vpack.c.b16 %v1378, %v1376
        %v1817 = vpack.c.b16 %v1381, %v1379
        %v1818 = vpack.c.b16 %v1382, %v1380
        %v1819 = vpack.c.b16 %v1385, %v1383
        %v1820 = vpack.c.b16 %v1386, %v1384
        %v1821 = vpack.c.b16 %v1389, %v1387
        %v1822 = vpack.c.b16 %v1390, %v1388
        %v1823 = vpack.c.b16 %v1393, %v1391
        %v1824 = vpack.c.b16 %v1394, %v1392
        %v1825 = vpack.c.b16 %v1397, %v1395
        %v1826 = vpack.c.b16 %v1398, %v1396
        %v1827 = vpack.c.b16 %v1401, %v1399
        %v1828 = vpack.c.b16 %v1402, %v1400
        %v1829 = vpack.c.b16 %v1405, %v1403
        %v1830 = vpack.c.b16 %v1406, %v1404
        %v1831 = vpack.c.b16 %v1409, %v1407
        %v1832 = vpack.c.b16 %v1410, %v1408
        %v1833 = vpack.c.b16 %v1413, %v1411
        %v1834 = vpack.c.b16 %v1414, %v1412
        %v1835 = vpack.c.b16 %v1417, %v1415
        %v1836 = vpack.c.b16 %v1418, %v1416
        %v1837 = vpack.c.b16 %v1421, %v1419
        %v1838 = vpack.c.b16 %v1422, %v1420
        %v1839 = vpack.c.b16 %v1425, %v1423
        %v1840 = vpack.c.b16 %v1426, %v1424
        %v1841 = vpack.c.b16 %v1429, %v1427
        %v1842 = vpack.c.b16 %v1430, %v1428
        %v1843 = vpack.c.b16 %v1433, %v1431
        %v1844 = vpack.c.b16 %v1434, %v1432
        %v1845 = vpack.c.b16 %v1437, %v1435
        %v1846 = vpack.c.b16 %v1438, %v1436
        %v1847 = vpack.c.b16 %v1441, %v1439
        %v1848 = vpack.c.b16 %v1442, %v1440
        %v1849 = vpack.c.b16 %v1445, %v1443
        %v1850 = vpack.c.b16 %v1446, %v1444
        %v1851 = vpack.c.b16 %v1449, %v1447
        %v1852 = vpack.c.b16 %v1450, %v1448
        %v1853 = vpack.c.b16 %v1453, %v1451
        %v1854 = vpack.c.b16 %v1454, %v1452
        %v1855 = vpack.c.b16 %v1457, %v1455
        %v1856 = vpack.c.b16 %v1458, %v1456
        %v1857 = vpack.c.b16 %v1461, %v1459
        %v1858 = vpack.c.b16 %v1462, %v1460
        %v1859 = vpack.c.b16 %v1465, %v1463
        %v1860 = vpack.c.b16 %v1466, %v1464
        %v1861 = vpack.c.b16 %v1469, %v1467
        %v1862 = vpack.c.b16 %v1470, %v1468
        %v1863 = vpack.c.b16 %v1473, %v1471
        %v1864 = vpack.c.b16 %v1474, %v1472
        %v1865 = vpack.c.b16 %v1477, %v1475
        %v1866 = vpack.c.b16 %v1478, %v1476
        %v1867 = vpack.c.b16 %v1481, %v1479
        %v1868 = vpack.c.b16 %v1482, %v1480
        %v1869 = vpack.c.b16 %v1485, %v1483
        %v1870 = vpack.c.b16 %v1486, %v1484
        %v1871 = vpack.c.b16 %v1489, %v1487
        %v1872 = vpack.c.b16 %v1490, %v1488
        %v1873 = vpack.c.b16 %v1493, %v1491
        %v1874 = vpack.c.b16 %v1494, %v1492
        %v1875 = vpack.c.b16 %v1497, %v1495
        %v1876 = vpack.c.b16 %v1498, %v1496
        %v1877 = vpack.c.b16 %v1501, %v1499
        %v1878 = vpack.c.b16 %v1502, %v1500
        %v1879 = vpack.c.b16 %v1505, %v1503
        %v1880 = vpack.c.b16 %v1506, %v1504
        %v1881 = vpack.c.b16 %v1509, %v1507
        %v1882 = vpack.c.b16 %v1510, %v1508
        %v1883 = vpack.c.b16 %v1513, %v1511
        %v1884 = vpack.c.b16 %v1514, %v1512
        %v1885 = vpack.c.b16 %v1517, %v1515
        %v1886 = vpack.c.b16 %v1518, %v1516
        %v1887 = vpack.c.b16 %v1521, %v1519
        %v1888 = vpack.c.b16 %v1522, %v1520
        %v1889 = vpack.c.b16 %v1525, %v1523
        %v1890 = vpack.c.b16 %v1526, %v1524
        %v1891 = vpack.c.b16 %v1529, %v1527
        %v1892 = vpack.c.b16 %v1530, %v1528
        %v1893 = vpack.c.b16 %v1533, %v1531
        %v1894 = vpack.c.b16 %v1534, %v1532
        %v1895 = vpack.c.b16 %v1537, %v1535
        %v1896 = vpack.c.b16 %v1538, %v1536
        %v1897 = vpack.c.b16 %v1541, %v1539
        %v1898 = vpack.c.b16 %v1542, %v1540
        %v1899 = vpack.c.b16 %v1545, %v1543
        %v1900 = vpack.c.b16 %v1546, %v1544
        %v1901 = vpack.c.b16 %v1549, %v1547
        %v1902 = vpack.c.b16 %v1550, %v1548
        %v1903 = vpack.c.b16 %v1553, %v1551
        %v1904 = vpack.c.b16 %v1554, %v1552
        %v1905 = vpack.c.b16 %v1557, %v1555
        %v1906 = vpack.c.b16 %v1558, %v1556
        %v1907 = vpack.c.b16 %v1561, %v1559
        %v1908 = vpack.c.b16 %v1562, %v1560
        %v1909 = vpack.c.b16 %v1565, %v1563
        %v1910 = vpack.c.b16 %v1566, %v1564
        %v1911 = vpack.c.b16 %v1569, %v1567
        %v1912 = vpack.c.b16 %v1570, %v1568
        %v1913 = vpack.c.b16 %v1573, %v1571
        %v1914 = vpack.c.b16 %v1574, %v1572
        %v1915 = vpack.c.b16 %v1577, %v1575
        %v1916 = vpack.c.b16 %v1578, %v1576
        %v1917 = vpack.c.b16 %v1581, %v1579
        %v1918 = vpack.c.b16 %v1582, %v1580
        %v1919 = vpack.c.b16 %v1585, %v1583
        %v1920 = vpack.c.b16 %v1586, %v1584
        %v1921 = vpack.c.b16 %v1589, %v1587
        %v1922 = vpack.c.b16 %v1590, %v1588
        %v1923 = vpack.c.b16 %v1593, %v1591
        %v1924 = vpack.c.b16 %v1594, %v1592
        %v1925 = vpack.c.b16 %v1597, %v1595
        %v1926 = vpack.c.b16 %v1598, %v1596
        %v1927 = vpack.c.b16 %v1601, %v1599
        %v1928 = vpack.c.b16 %v1602, %v1600
        %v1929 = vpack.c.b16 %v1605, %v1603
        %v1930 = vpack.c.b16 %v1606, %v1604
        %v1931 = vpack.c.b16 %v1609, %v1607
        %v1932 = vpack.c.b16 %v1610, %v1608
        %v1933 = vpack.c.b16 %v1613, %v1611
        %v1934 = vpack.c.b16 %v1614, %v1612
        %v1935 = vpack.c.b16 %v1617, %v1615
        %v1936 = vpack.c.b16 %v1618, %v1616
        %v1937 = vpack.c.b16 %v1621, %v1619
        %v1938 = vpack.c.b16 %v1622, %v1620
        %v1939 = vpack.c.b16 %v1625, %v1623
        %v1940 = vpack.c.b16 %v1626, %v1624
        %v1941 = vpack.c.b16 %v1629, %v1627
        %v1942 = vpack.c.b16 %v1630, %v1628
        %v1943 = vpack.c.b16 %v1633, %v1631
        %v1944 = vpack.c.b16 %v1634, %v1632
        %v1945 = vpack.c.b16 %v1637, %v1635
        %v1946 = vpack.c.b16 %v1638, %v1636
        %v1947 = vpack.c.b16 %v1641, %v1639
        %v1948 = vpack.c.b16 %v1642, %v1640
        %v1949 = vpack.c.b16 %v1645, %v1643
        %v1950 = vpack.c.b16 %v1646, %v1644
        %v1951 = vpack.c.b16 %v1649, %v1647
        %v1952 = vpack.c.b16 %v1650, %v1648
        %v1953 = vpack.c.b16 %v1653, %v1651
        %v1954 = vpack.c.b16 %v1654, %v1652
        %v1955 = vpack.c.b16 %v1657, %v1655
        %v1956 = vpack.c.b16 %v1658, %v1656
        %v1957 = vpack.c.b16 %v1661, %v1659
        %v1958 = vpack.c.b16 %v1662, %v1660
        %v1959 = vpack.c.b16 %v1665, %v1663
        %v1960 = vpack.c.b16 %v1666, %v1664
        %v1961 = vpack.c.b16 %v1669, %v1667
        %v1962 = vpack.c.b16 %v1670, %v1668
        %v1963 = vpack.c.b16 %v1673, %v1671
        %v1964 = vpack.c.b16 %v1674, %v1672
        %v1965 = vpack.c.b16 %v1677, %v1675
        %v1966 = vpack.c.b16 %v1678, %v1676
        %v1967 = vpack.c.b16 %v1681, %v1679
        %v1968 = vpack.c.b16 %v1682, %v1680
        %v1969 = vpack.c.b16 %v1685, %v1683
        %v1970 = vpack.c.b16 %v1686, %v1684
        %v1971 = vpack.c.b16 %v1689, %v1687
        %v1972 = vpack.c.b16 %v1690, %v1688
        %v1973 = vpack.c.b16 %v1693, %v1691
        %v1974 = vpack.c.b16 %v1694, %v1692
        %v1975 = vpack.c.b16 %v1697, %v1695
        %v1976 = vpack.c.b16 %v1698, %v1696
        %v1977 = vpack.c.b16 %v1701, %v1699
        %v1978 = vpack.c.b16 %v1702, %v1700
        %v1979 = vpack.c.b16 %v1705, %v1703
        %v1980 = vpack.c.b16 %v1706, %v1704
        %v1981 = vpack.c.b16 %v1709, %v1707
        %v1982 = vpack.c.b16 %v1710, %v1708
        %v1983 = vpack.c.b16 %v1713, %v1711
        %v1984 = vpack.c.b16 %v1714, %v1712
        %v1985 = vpack.c.b16 %v1717, %v1715
        %v1986 = vpack.c.b16 %v1718, %v1716
        %v1987 = vpack.c.b16 %v1721, %v1719
        %v1988 = vpack.c.b16 %v1722, %v1720
        %v1989 = vpack.c.b16 %v1725, %v1723
        %v1990 = vpack.c.b16 %v1726, %v1724
        %v1991 = vpack.c.b16 %v1729, %v1727
        %v1992 = vpack.c.b16 %v1730, %v1728
        %v1993 = vpack.c.b16 %v1733, %v1731
        %v1994 = vpack.c.b16 %v1734, %v1732
        %v1995 = vpack.c.b16 %v1737, %v1735
        %v1996 = vpack.c.b16 %v1738, %v1736
        %v1997 = vpack.c.b16 %v1741, %v1739
        %v1998 = vpack.c.b16 %v1742, %v1740
        %2255 = vmatprep.subr.bf16.mxu0 %v1744
        %2256 = vmatpush1.bf16.msra.mxu0 %v1743
        %2257 = vmatprep.subr.bf16.mxu0 %v1746
        %2258 = vmatpush1.bf16.msra.mxu0 %v1745
        %2259 = vmatprep.subr.bf16.mxu0 %v1748
        %2260 = vmatpush1.bf16.msra.mxu0 %v1747
        %2261 = vmatprep.subr.bf16.mxu0 %v1750
        %2262 = vmatpush1.bf16.msra.mxu0 %v1749
        %2263 = vmatprep.subr.bf16.mxu0 %v1752
        %2264 = vmatpush1.bf16.msra.mxu0 %v1751
        %2265 = vmatprep.subr.bf16.mxu0 %v1754
        %2266 = vmatpush1.bf16.msra.mxu0 %v1753
        %2267 = vmatprep.subr.bf16.mxu0 %v1756
        %2268 = vmatpush1.bf16.msra.mxu0 %v1755
        %2269 = vmatprep.subr.bf16.mxu0 %v1758
        %2270 = vmatpush1.bf16.msra.mxu0 %v1757
        %2271 = vmatprep.subr.bf16.mxu0 %v1760
        %2272 = vmatpush1.bf16.msra.mxu0 %v1759
        %2273 = vmatprep.subr.bf16.mxu0 %v1762
        %2274 = vmatpush1.bf16.msra.mxu0 %v1761
        %2275 = vmatprep.subr.bf16.mxu0 %v1764
        %2276 = vmatpush1.bf16.msra.mxu0 %v1763
        %2277 = vmatprep.subr.bf16.mxu0 %v1766
        %2278 = vmatpush1.bf16.msra.mxu0 %v1765
        %2279 = vmatprep.subr.bf16.mxu0 %v1768
        %2280 = vmatpush1.bf16.msra.mxu0 %v1767
        %2281 = vmatprep.subr.bf16.mxu0 %v1770
        %2282 = vmatpush1.bf16.msra.mxu0 %v1769
        %2283 = vmatprep.subr.bf16.mxu0 %v1772
        %2284 = vmatpush1.bf16.msra.mxu0 %v1771
        %2285 = vmatprep.subr.bf16.mxu0 %v1774
        %2286 = vmatpush1.bf16.msra.mxu0 %v1773
        %2287 = vmatprep.mubr.bf16.mxu0 %v944
        %2288 = vmatmul.mubr.bf16.gmra.mrb[0].mxu0 %v943
        %v2289 = vpop.f32.mrb[0].mxu0
        %v2290 = vadd.f32 %v888, %v2289
        %v2291 = vpop.f32.mrb[0].mxu0
        %v2292 = vadd.f32 %v892, %v2291
        %v2293 = vpop.f32.mrb[0].mxu0
        %v2294 = vadd.f32 %v888, %v2293
        %v2295 = vpop.f32.mrb[0].mxu0
        %v2296 = vadd.f32 %v892, %v2295
        %2297 = vdwg.mxu0
        %2298 = vmatprep.subr.bf16.mxu0 %v1776
        %2299 = vmatpush1.bf16.msra.mxu0 %v1775
        %2300 = vmatprep.subr.bf16.mxu0 %v1778
        %2301 = vmatpush1.bf16.msra.mxu0 %v1777
        %2302 = vmatprep.subr.bf16.mxu0 %v1780
        %2303 = vmatpush1.bf16.msra.mxu0 %v1779
        %2304 = vmatprep.subr.bf16.mxu0 %v1782
        %2305 = vmatpush1.bf16.msra.mxu0 %v1781
        %2306 = vmatprep.subr.bf16.mxu0 %v1784
        %2307 = vmatpush1.bf16.msra.mxu0 %v1783
        %2308 = vmatprep.subr.bf16.mxu0 %v1786
        %2309 = vmatpush1.bf16.msra.mxu0 %v1785
        %2310 = vmatprep.subr.bf16.mxu0 %v1788
        %2311 = vmatpush1.bf16.msra.mxu0 %v1787
        %2312 = vmatprep.subr.bf16.mxu0 %v1790
        %2313 = vmatpush1.bf16.msra.mxu0 %v1789
        %2314 = vmatprep.subr.bf16.mxu0 %v1792
        %2315 = vmatpush1.bf16.msra.mxu0 %v1791
        %2316 = vmatprep.subr.bf16.mxu0 %v1794
        %2317 = vmatpush1.bf16.msra.mxu0 %v1793
        %2318 = vmatprep.subr.bf16.mxu0 %v1796
        %2319 = vmatpush1.bf16.msra.mxu0 %v1795
        %2320 = vmatprep.subr.bf16.mxu0 %v1798
        %2321 = vmatpush1.bf16.msra.mxu0 %v1797
        %2322 = vmatprep.subr.bf16.mxu0 %v1800
        %2323 = vmatpush1.bf16.msra.mxu0 %v1799
        %2324 = vmatprep.subr.bf16.mxu0 %v1802
        %2325 = vmatpush1.bf16.msra.mxu0 %v1801
        %2326 = vmatprep.subr.bf16.mxu0 %v1804
        %2327 = vmatpush1.bf16.msra.mxu0 %v1803
        %2328 = vmatprep.subr.bf16.mxu0 %v1806
        %2329 = vmatpush1.bf16.msra.mxu0 %v1805
        %2330 = vmatprep.mubr.bf16.mxu0 %v946
        %2331 = vmatmul.mubr.bf16.gmra.mrb[0].mxu0 %v945
        %v2332 = vpop.f32.mrb[0].mxu0
        %v2333 = vadd.f32 %v2290, %v2332
        %v2334 = vpop.f32.mrb[0].mxu0
        %v2335 = vadd.f32 %v2292, %v2334
        %v2336 = vpop.f32.mrb[0].mxu0
        %v2337 = vadd.f32 %v2294, %v2336
        %v2338 = vpop.f32.mrb[0].mxu0
        %v2339 = vadd.f32 %v2296, %v2338
        %2340 = vdwg.mxu0
        %2341 = vmatprep.subr.bf16.mxu0 %v1808
        %2342 = vmatpush1.bf16.msra.mxu0 %v1807
        %2343 = vmatprep.subr.bf16.mxu0 %v1810
        %2344 = vmatpush1.bf16.msra.mxu0 %v1809
        %2345 = vmatprep.subr.bf16.mxu0 %v1812
        %2346 = vmatpush1.bf16.msra.mxu0 %v1811
        %2347 = vmatprep.subr.bf16.mxu0 %v1814
        %2348 = vmatpush1.bf16.msra.mxu0 %v1813
        %2349 = vmatprep.subr.bf16.mxu0 %v1816
        %2350 = vmatpush1.bf16.msra.mxu0 %v1815
        %2351 = vmatprep.subr.bf16.mxu0 %v1818
        %2352 = vmatpush1.bf16.msra.mxu0 %v1817
        %2353 = vmatprep.subr.bf16.mxu0 %v1820
        %2354 = vmatpush1.bf16.msra.mxu0 %v1819
        %2355 = vmatprep.subr.bf16.mxu0 %v1822
        %2356 = vmatpush1.bf16.msra.mxu0 %v1821
        %2357 = vmatprep.subr.bf16.mxu0 %v1824
        %2358 = vmatpush1.bf16.msra.mxu0 %v1823
        %2359 = vmatprep.subr.bf16.mxu0 %v1826
        %2360 = vmatpush1.bf16.msra.mxu0 %v1825
        %2361 = vmatprep.subr.bf16.mxu0 %v1828
        %2362 = vmatpush1.bf16.msra.mxu0 %v1827
        %2363 = vmatprep.subr.bf16.mxu0 %v1830
        %2364 = vmatpush1.bf16.msra.mxu0 %v1829
        %2365 = vmatprep.subr.bf16.mxu0 %v1832
        %2366 = vmatpush1.bf16.msra.mxu0 %v1831
        %2367 = vmatprep.subr.bf16.mxu0 %v1834
        %2368 = vmatpush1.bf16.msra.mxu0 %v1833
        %2369 = vmatprep.subr.bf16.mxu0 %v1836
        %2370 = vmatpush1.bf16.msra.mxu0 %v1835
        %2371 = vmatprep.subr.bf16.mxu0 %v1838
        %2372 = vmatpush1.bf16.msra.mxu0 %v1837
        %2373 = vmatprep.mubr.bf16.mxu0 %v948
        %2374 = vmatmul.mubr.bf16.gmra.mrb[0].mxu0 %v947
        %v2375 = vpop.f32.mrb[0].mxu0
        %v2376 = vadd.f32 %v2333, %v2375
        %v2377 = vpop.f32.mrb[0].mxu0
        %v2378 = vadd.f32 %v2335, %v2377
        %v2379 = vpop.f32.mrb[0].mxu0
        %v2380 = vadd.f32 %v2337, %v2379
        %v2381 = vpop.f32.mrb[0].mxu0
        %v2382 = vadd.f32 %v2339, %v2381
        %2383 = vdwg.mxu0
        %2384 = vmatprep.subr.bf16.mxu0 %v1840
        %2385 = vmatpush1.bf16.msra.mxu0 %v1839
        %2386 = vmatprep.subr.bf16.mxu0 %v1842
        %2387 = vmatpush1.bf16.msra.mxu0 %v1841
        %2388 = vmatprep.subr.bf16.mxu0 %v1844
        %2389 = vmatpush1.bf16.msra.mxu0 %v1843
        %2390 = vmatprep.subr.bf16.mxu0 %v1846
        %2391 = vmatpush1.bf16.msra.mxu0 %v1845
        %2392 = vmatprep.subr.bf16.mxu0 %v1848
        %2393 = vmatpush1.bf16.msra.mxu0 %v1847
        %2394 = vmatprep.subr.bf16.mxu0 %v1850
        %2395 = vmatpush1.bf16.msra.mxu0 %v1849
        %2396 = vmatprep.subr.bf16.mxu0 %v1852
        %2397 = vmatpush1.bf16.msra.mxu0 %v1851
        %2398 = vmatprep.subr.bf16.mxu0 %v1854
        %2399 = vmatpush1.bf16.msra.mxu0 %v1853
        %2400 = vmatprep.subr.bf16.mxu0 %v1856
        %2401 = vmatpush1.bf16.msra.mxu0 %v1855
        %2402 = vmatprep.subr.bf16.mxu0 %v1858
        %2403 = vmatpush1.bf16.msra.mxu0 %v1857
        %2404 = vmatprep.subr.bf16.mxu0 %v1860
        %2405 = vmatpush1.bf16.msra.mxu0 %v1859
        %2406 = vmatprep.subr.bf16.mxu0 %v1862
        %2407 = vmatpush1.bf16.msra.mxu0 %v1861
        %2408 = vmatprep.subr.bf16.mxu0 %v1864
        %2409 = vmatpush1.bf16.msra.mxu0 %v1863
        %2410 = vmatprep.subr.bf16.mxu0 %v1866
        %2411 = vmatpush1.bf16.msra.mxu0 %v1865
        %2412 = vmatprep.subr.bf16.mxu0 %v1868
        %2413 = vmatpush1.bf16.msra.mxu0 %v1867
        %2414 = vmatprep.subr.bf16.mxu0 %v1870
        %2415 = vmatpush1.bf16.msra.mxu0 %v1869
        %2416 = vmatprep.mubr.bf16.mxu0 %v950
        %2417 = vmatmul.mubr.bf16.gmra.mrb[0].mxu0 %v949
        %v2418 = vpop.f32.mrb[0].mxu0
        %v2419 = vadd.f32 %v2376, %v2418
        %v2420 = vpop.f32.mrb[0].mxu0
        %v2421 = vadd.f32 %v2378, %v2420
        %v2422 = vpop.f32.mrb[0].mxu0
        %v2423 = vadd.f32 %v2380, %v2422
        %v2424 = vpop.f32.mrb[0].mxu0
        %v2425 = vadd.f32 %v2382, %v2424
        %2426 = vdwg.mxu0
        %2427 = vmatprep.subr.bf16.mxu0 %v1872
        %2428 = vmatpush1.bf16.msra.mxu0 %v1871
        %2429 = vmatprep.subr.bf16.mxu0 %v1874
        %2430 = vmatpush1.bf16.msra.mxu0 %v1873
        %2431 = vmatprep.subr.bf16.mxu0 %v1876
        %2432 = vmatpush1.bf16.msra.mxu0 %v1875
        %2433 = vmatprep.subr.bf16.mxu0 %v1878
        %2434 = vmatpush1.bf16.msra.mxu0 %v1877
        %2435 = vmatprep.subr.bf16.mxu0 %v1880
        %2436 = vmatpush1.bf16.msra.mxu0 %v1879
        %2437 = vmatprep.subr.bf16.mxu0 %v1882
        %2438 = vmatpush1.bf16.msra.mxu0 %v1881
        %2439 = vmatprep.subr.bf16.mxu0 %v1884
        %2440 = vmatpush1.bf16.msra.mxu0 %v1883
        %2441 = vmatprep.subr.bf16.mxu0 %v1886
        %2442 = vmatpush1.bf16.msra.mxu0 %v1885
        %2443 = vmatprep.subr.bf16.mxu0 %v1888
        %2444 = vmatpush1.bf16.msra.mxu0 %v1887
        %2445 = vmatprep.subr.bf16.mxu0 %v1890
        %2446 = vmatpush1.bf16.msra.mxu0 %v1889
        %2447 = vmatprep.subr.bf16.mxu0 %v1892
        %2448 = vmatpush1.bf16.msra.mxu0 %v1891
        %2449 = vmatprep.subr.bf16.mxu0 %v1894
        %2450 = vmatpush1.bf16.msra.mxu0 %v1893
        %2451 = vmatprep.subr.bf16.mxu0 %v1896
        %2452 = vmatpush1.bf16.msra.mxu0 %v1895
        %2453 = vmatprep.subr.bf16.mxu0 %v1898
        %2454 = vmatpush1.bf16.msra.mxu0 %v1897
        %2455 = vmatprep.subr.bf16.mxu0 %v1900
        %2456 = vmatpush1.bf16.msra.mxu0 %v1899
        %2457 = vmatprep.subr.bf16.mxu0 %v1902
        %2458 = vmatpush1.bf16.msra.mxu0 %v1901
        %2459 = vmatprep.mubr.bf16.mxu0 %v952
        %2460 = vmatmul.mubr.bf16.gmra.mrb[0].mxu0 %v951
        %v2461 = vpop.f32.mrb[0].mxu0
        %v2462 = vadd.f32 %v2419, %v2461
        %v2463 = vpop.f32.mrb[0].mxu0
        %v2464 = vadd.f32 %v2421, %v2463
        %v2465 = vpop.f32.mrb[0].mxu0
        %v2466 = vadd.f32 %v2423, %v2465
        %v2467 = vpop.f32.mrb[0].mxu0
        %v2468 = vadd.f32 %v2425, %v2467
        %2469 = vdwg.mxu0
        %2470 = vmatprep.subr.bf16.mxu0 %v1904
        %2471 = vmatpush1.bf16.msra.mxu0 %v1903
        %2472 = vmatprep.subr.bf16.mxu0 %v1906
        %2473 = vmatpush1.bf16.msra.mxu0 %v1905
        %2474 = vmatprep.subr.bf16.mxu0 %v1908
        %2475 = vmatpush1.bf16.msra.mxu0 %v1907
        %2476 = vmatprep.subr.bf16.mxu0 %v1910
        %2477 = vmatpush1.bf16.msra.mxu0 %v1909
        %2478 = vmatprep.subr.bf16.mxu0 %v1912
        %2479 = vmatpush1.bf16.msra.mxu0 %v1911
        %2480 = vmatprep.subr.bf16.mxu0 %v1914
        %2481 = vmatpush1.bf16.msra.mxu0 %v1913
        %2482 = vmatprep.subr.bf16.mxu0 %v1916
        %2483 = vmatpush1.bf16.msra.mxu0 %v1915
        %2484 = vmatprep.subr.bf16.mxu0 %v1918
        %2485 = vmatpush1.bf16.msra.mxu0 %v1917
        %2486 = vmatprep.subr.bf16.mxu0 %v1920
        %2487 = vmatpush1.bf16.msra.mxu0 %v1919
        %2488 = vmatprep.subr.bf16.mxu0 %v1922
        %2489 = vmatpush1.bf16.msra.mxu0 %v1921
        %2490 = vmatprep.subr.bf16.mxu0 %v1924
        %2491 = vmatpush1.bf16.msra.mxu0 %v1923
        %2492 = vmatprep.subr.bf16.mxu0 %v1926
        %2493 = vmatpush1.bf16.msra.mxu0 %v1925
        %2494 = vmatprep.subr.bf16.mxu0 %v1928
        %2495 = vmatpush1.bf16.msra.mxu0 %v1927
        %2496 = vmatprep.subr.bf16.mxu0 %v1930
        %2497 = vmatpush1.bf16.msra.mxu0 %v1929
        %2498 = vmatprep.subr.bf16.mxu0 %v1932
        %2499 = vmatpush1.bf16.msra.mxu0 %v1931
        %2500 = vmatprep.subr.bf16.mxu0 %v1934
        %2501 = vmatpush1.bf16.msra.mxu0 %v1933
        %2502 = vmatprep.mubr.bf16.mxu0 %v954
        %2503 = vmatmul.mubr.bf16.gmra.mrb[0].mxu0 %v953
        %v2504 = vpop.f32.mrb[0].mxu0
        %v2505 = vadd.f32 %v2462, %v2504
        %v2506 = vpop.f32.mrb[0].mxu0
        %v2507 = vadd.f32 %v2464, %v2506
        %v2508 = vpop.f32.mrb[0].mxu0
        %v2509 = vadd.f32 %v2466, %v2508
        %v2510 = vpop.f32.mrb[0].mxu0
        %v2511 = vadd.f32 %v2468, %v2510
        %2512 = vdwg.mxu0
        %2513 = vmatprep.subr.bf16.mxu0 %v1936
        %2514 = vmatpush1.bf16.msra.mxu0 %v1935
        %2515 = vmatprep.subr.bf16.mxu0 %v1938
        %2516 = vmatpush1.bf16.msra.mxu0 %v1937
        %2517 = vmatprep.subr.bf16.mxu0 %v1940
        %2518 = vmatpush1.bf16.msra.mxu0 %v1939
        %2519 = vmatprep.subr.bf16.mxu0 %v1942
        %2520 = vmatpush1.bf16.msra.mxu0 %v1941
        %2521 = vmatprep.subr.bf16.mxu0 %v1944
        %2522 = vmatpush1.bf16.msra.mxu0 %v1943
        %2523 = vmatprep.subr.bf16.mxu0 %v1946
        %2524 = vmatpush1.bf16.msra.mxu0 %v1945
        %2525 = vmatprep.subr.bf16.mxu0 %v1948
        %2526 = vmatpush1.bf16.msra.mxu0 %v1947
        %2527 = vmatprep.subr.bf16.mxu0 %v1950
        %2528 = vmatpush1.bf16.msra.mxu0 %v1949
        %2529 = vmatprep.subr.bf16.mxu0 %v1952
        %2530 = vmatpush1.bf16.msra.mxu0 %v1951
        %2531 = vmatprep.subr.bf16.mxu0 %v1954
        %2532 = vmatpush1.bf16.msra.mxu0 %v1953
        %2533 = vmatprep.subr.bf16.mxu0 %v1956
        %2534 = vmatpush1.bf16.msra.mxu0 %v1955
        %2535 = vmatprep.subr.bf16.mxu0 %v1958
        %2536 = vmatpush1.bf16.msra.mxu0 %v1957
        %2537 = vmatprep.subr.bf16.mxu0 %v1960
        %2538 = vmatpush1.bf16.msra.mxu0 %v1959
        %2539 = vmatprep.subr.bf16.mxu0 %v1962
        %2540 = vmatpush1.bf16.msra.mxu0 %v1961
        %2541 = vmatprep.subr.bf16.mxu0 %v1964
        %2542 = vmatpush1.bf16.msra.mxu0 %v1963
        %2543 = vmatprep.subr.bf16.mxu0 %v1966
        %2544 = vmatpush1.bf16.msra.mxu0 %v1965
        %2545 = vmatprep.mubr.bf16.mxu0 %v956
        %2546 = vmatmul.mubr.bf16.gmra.mrb[0].mxu0 %v955
        %v2547 = vpop.f32.mrb[0].mxu0
        %v2548 = vadd.f32 %v2505, %v2547
        %v2549 = vpop.f32.mrb[0].mxu0
        %v2550 = vadd.f32 %v2507, %v2549
        %v2551 = vpop.f32.mrb[0].mxu0
        %v2552 = vadd.f32 %v2509, %v2551
        %v2553 = vpop.f32.mrb[0].mxu0
        %v2554 = vadd.f32 %v2511, %v2553
        %2555 = vdwg.mxu0
        %2556 = vmatprep.subr.bf16.mxu0 %v1968
        %2557 = vmatpush1.bf16.msra.mxu0 %v1967
        %2558 = vmatprep.subr.bf16.mxu0 %v1970
        %2559 = vmatpush1.bf16.msra.mxu0 %v1969
        %2560 = vmatprep.subr.bf16.mxu0 %v1972
        %2561 = vmatpush1.bf16.msra.mxu0 %v1971
        %2562 = vmatprep.subr.bf16.mxu0 %v1974
        %2563 = vmatpush1.bf16.msra.mxu0 %v1973
        %2564 = vmatprep.subr.bf16.mxu0 %v1976
        %2565 = vmatpush1.bf16.msra.mxu0 %v1975
        %2566 = vmatprep.subr.bf16.mxu0 %v1978
        %2567 = vmatpush1.bf16.msra.mxu0 %v1977
        %2568 = vmatprep.subr.bf16.mxu0 %v1980
        %2569 = vmatpush1.bf16.msra.mxu0 %v1979
        %2570 = vmatprep.subr.bf16.mxu0 %v1982
        %2571 = vmatpush1.bf16.msra.mxu0 %v1981
        %2572 = vmatprep.subr.bf16.mxu0 %v1984
        %2573 = vmatpush1.bf16.msra.mxu0 %v1983
        %2574 = vmatprep.subr.bf16.mxu0 %v1986
        %2575 = vmatpush1.bf16.msra.mxu0 %v1985
        %2576 = vmatprep.subr.bf16.mxu0 %v1988
        %2577 = vmatpush1.bf16.msra.mxu0 %v1987
        %2578 = vmatprep.subr.bf16.mxu0 %v1990
        %2579 = vmatpush1.bf16.msra.mxu0 %v1989
        %2580 = vmatprep.subr.bf16.mxu0 %v1992
        %2581 = vmatpush1.bf16.msra.mxu0 %v1991
        %2582 = vmatprep.subr.bf16.mxu0 %v1994
        %2583 = vmatpush1.bf16.msra.mxu0 %v1993
        %2584 = vmatprep.subr.bf16.mxu0 %v1996
        %2585 = vmatpush1.bf16.msra.mxu0 %v1995
        %2586 = vmatprep.subr.bf16.mxu0 %v1998
        %2587 = vmatpush1.bf16.msra.mxu0 %v1997
        %2588 = vmatprep.mubr.bf16.mxu0 %v958
        %2589 = vmatmul.mubr.bf16.gmra.mrb[0].mxu0 %v957
        %v2590 = vpop.f32.mrb[0].mxu0
        %v2591 = vadd.f32 %v2548, %v2590
        %v2592 = vpop.f32.mrb[0].mxu0
        %v2593 = vadd.f32 %v2550, %v2592
        %v2594 = vpop.f32.mrb[0].mxu0
        %v2595 = vadd.f32 %v2552, %v2594
        %v2596 = vpop.f32.mrb[0].mxu0
        %v2597 = vadd.f32 %v2554, %v2596
        %2598 = vdwg.mxu0
        %2599 = vst [vmem:[%s609] sm:$0xff] %v2591
        %2600 = vst [vmem:[%s609 + $0x8] sm:$0xff] %v2593
        %2601 = vst [vmem:[%s609 + $0x10] sm:$0xff] %v2595
        %2602 = vst [vmem:[%s609 + $0x18] sm:$0xff] %v2597
        %v2603 = vld [vmem:[%s599] sm:$0xff]
        %v2604 = vld [vmem:[%s599 + $0x8] sm:$0xff]
        %v2605 = vld [vmem:[%s599 + $0x10] sm:$0xff]
        %v2606 = vld [vmem:[%s599 + $0x18] sm:$0xff]
        %v2607 = vld [vmem:[%s599 + $0x20] sm:$0xff]
        %v2608 = vld [vmem:[%s599 + $0x28] sm:$0xff]
        %v2609 = vld [vmem:[%s599 + $0x30] sm:$0xff]
        %v2610 = vld [vmem:[%s599 + $0x38] sm:$0xff]
        %v2611 = vld [vmem:[%s599 + $0x40] sm:$0xff]
        %v2612 = vld [vmem:[%s599 + $0x48] sm:$0xff]
        %v2613 = vld [vmem:[%s599 + $0x50] sm:$0xff]
        %v2614 = vld [vmem:[%s599 + $0x58] sm:$0xff]
        %v2615 = vld [vmem:[%s599 + $0x60] sm:$0xff]
        %v2616 = vld [vmem:[%s599 + $0x68] sm:$0xff]
        %v2617 = vld [vmem:[%s599 + $0x70] sm:$0xff]
        %v2618 = vld [vmem:[%s599 + $0x78] sm:$0xff]
        %v2619 = vld [vmem:[%s599 + $0x80] sm:$0xff]
        %v2620 = vld [vmem:[%s599 + $0x88] sm:$0xff]
        %v2621 = vld [vmem:[%s599 + $0x90] sm:$0xff]
        %v2622 = vld [vmem:[%s599 + $0x98] sm:$0xff]
        %v2623 = vld [vmem:[%s599 + $0xa0] sm:$0xff]
        %v2624 = vld [vmem:[%s599 + $0xa8] sm:$0xff]
        %v2625 = vld [vmem:[%s599 + $0xb0] sm:$0xff]
        %v2626 = vld [vmem:[%s599 + $0xb8] sm:$0xff]
        %v2627 = vld [vmem:[%s599 + $0xc0] sm:$0xff]
        %v2628 = vld [vmem:[%s599 + $0xc8] sm:$0xff]
        %v2629 = vld [vmem:[%s599 + $0xd0] sm:$0xff]
        %v2630 = vld [vmem:[%s599 + $0xd8] sm:$0xff]
        %v2631 = vld [vmem:[%s599 + $0xe0] sm:$0xff]
        %v2632 = vld [vmem:[%s599 + $0xe8] sm:$0xff]
        %v2633 = vld [vmem:[%s599 + $0xf0] sm:$0xff]
        %v2634 = vld [vmem:[%s599 + $0xf8] sm:$0xff]
        %v2635 = vld [vmem:[%s6] sm:$0xff]
        %v2636 = vld [vmem:[%s6 + $0x8] sm:$0xff]
        %v2637 = vld [vmem:[%s6 + $0x10] sm:$0xff]
        %v2638 = vld [vmem:[%s6 + $0x18] sm:$0xff]
        %v2639 = vld [vmem:[%s6 + $0x20] sm:$0xff]
        %v2640 = vld [vmem:[%s6 + $0x28] sm:$0xff]
        %v2641 = vld [vmem:[%s6 + $0x30] sm:$0xff]
        %v2642 = vld [vmem:[%s6 + $0x38] sm:$0xff]
        %v2643 = vld [vmem:[%s6 + $0x40] sm:$0xff]
        %v2644 = vld [vmem:[%s6 + $0x48] sm:$0xff]
        %v2645 = vld [vmem:[%s6 + $0x50] sm:$0xff]
        %v2646 = vld [vmem:[%s6 + $0x58] sm:$0xff]
        %v2647 = vld [vmem:[%s6 + $0x60] sm:$0xff]
        %v2648 = vld [vmem:[%s6 + $0x68] sm:$0xff]
        %v2649 = vld [vmem:[%s6 + $0x70] sm:$0xff]
        %v2650 = vld [vmem:[%s6 + $0x78] sm:$0xff]
        %v2651 = vld [vmem:[%s6 + $0x80] sm:$0xff]
        %v2652 = vld [vmem:[%s6 + $0x88] sm:$0xff]
        %v2653 = vld [vmem:[%s6 + $0x90] sm:$0xff]
        %v2654 = vld [vmem:[%s6 + $0x98] sm:$0xff]
        %v2655 = vld [vmem:[%s6 + $0xa0] sm:$0xff]
        %v2656 = vld [vmem:[%s6 + $0xa8] sm:$0xff]
        %v2657 = vld [vmem:[%s6 + $0xb0] sm:$0xff]
        %v2658 = vld [vmem:[%s6 + $0xb8] sm:$0xff]
        %v2659 = vld [vmem:[%s6 + $0xc0] sm:$0xff]
        %v2660 = vld [vmem:[%s6 + $0xc8] sm:$0xff]
        %v2661 = vld [vmem:[%s6 + $0xd0] sm:$0xff]
        %v2662 = vld [vmem:[%s6 + $0xd8] sm:$0xff]
        %v2663 = vld [vmem:[%s6 + $0xe0] sm:$0xff]
        %v2664 = vld [vmem:[%s6 + $0xe8] sm:$0xff]
        %v2665 = vld [vmem:[%s6 + $0xf0] sm:$0xff]
        %v2666 = vld [vmem:[%s6 + $0xf8] sm:$0xff]
        %v2667 = vld [vmem:[%s6 + $0x100] sm:$0xff]
        %v2668 = vld [vmem:[%s6 + $0x108] sm:$0xff]
        %v2669 = vld [vmem:[%s6 + $0x110] sm:$0xff]
        %v2670 = vld [vmem:[%s6 + $0x118] sm:$0xff]
        %v2671 = vld [vmem:[%s6 + $0x120] sm:$0xff]
        %v2672 = vld [vmem:[%s6 + $0x128] sm:$0xff]
        %v2673 = vld [vmem:[%s6 + $0x130] sm:$0xff]
        %v2674 = vld [vmem:[%s6 + $0x138] sm:$0xff]
        %v2675 = vld [vmem:[%s6 + $0x140] sm:$0xff]
        %v2676 = vld [vmem:[%s6 + $0x148] sm:$0xff]
        %v2677 = vld [vmem:[%s6 + $0x150] sm:$0xff]
        %v2678 = vld [vmem:[%s6 + $0x158] sm:$0xff]
        %v2679 = vld [vmem:[%s6 + $0x160] sm:$0xff]
        %v2680 = vld [vmem:[%s6 + $0x168] sm:$0xff]
        %v2681 = vld [vmem:[%s6 + $0x170] sm:$0xff]
        %v2682 = vld [vmem:[%s6 + $0x178] sm:$0xff]
        %v2683 = vld [vmem:[%s6 + $0x180] sm:$0xff]
        %v2684 = vld [vmem:[%s6 + $0x188] sm:$0xff]
        %v2685 = vld [vmem:[%s6 + $0x190] sm:$0xff]
        %v2686 = vld [vmem:[%s6 + $0x198] sm:$0xff]
        %v2687 = vld [vmem:[%s6 + $0x1a0] sm:$0xff]
        %v2688 = vld [vmem:[%s6 + $0x1a8] sm:$0xff]
        %v2689 = vld [vmem:[%s6 + $0x1b0] sm:$0xff]
        %v2690 = vld [vmem:[%s6 + $0x1b8] sm:$0xff]
        %v2691 = vld [vmem:[%s6 + $0x1c0] sm:$0xff]
        %v2692 = vld [vmem:[%s6 + $0x1c8] sm:$0xff]
        %v2693 = vld [vmem:[%s6 + $0x1d0] sm:$0xff]
        %v2694 = vld [vmem:[%s6 + $0x1d8] sm:$0xff]
        %v2695 = vld [vmem:[%s6 + $0x1e0] sm:$0xff]
        %v2696 = vld [vmem:[%s6 + $0x1e8] sm:$0xff]
        %v2697 = vld [vmem:[%s6 + $0x1f0] sm:$0xff]
        %v2698 = vld [vmem:[%s6 + $0x1f8] sm:$0xff]
        %v2699 = vld [vmem:[%s6 + $0x200] sm:$0xff]
        %v2700 = vld [vmem:[%s6 + $0x208] sm:$0xff]
        %v2701 = vld [vmem:[%s6 + $0x210] sm:$0xff]
        %v2702 = vld [vmem:[%s6 + $0x218] sm:$0xff]
        %v2703 = vld [vmem:[%s6 + $0x220] sm:$0xff]
        %v2704 = vld [vmem:[%s6 + $0x228] sm:$0xff]
        %v2705 = vld [vmem:[%s6 + $0x230] sm:$0xff]
        %v2706 = vld [vmem:[%s6 + $0x238] sm:$0xff]
        %v2707 = vld [vmem:[%s6 + $0x240] sm:$0xff]
        %v2708 = vld [vmem:[%s6 + $0x248] sm:$0xff]
        %v2709 = vld [vmem:[%s6 + $0x250] sm:$0xff]
        %v2710 = vld [vmem:[%s6 + $0x258] sm:$0xff]
        %v2711 = vld [vmem:[%s6 + $0x260] sm:$0xff]
        %v2712 = vld [vmem:[%s6 + $0x268] sm:$0xff]
        %v2713 = vld [vmem:[%s6 + $0x270] sm:$0xff]
        %v2714 = vld [vmem:[%s6 + $0x278] sm:$0xff]
        %v2715 = vld [vmem:[%s6 + $0x280] sm:$0xff]
        %v2716 = vld [vmem:[%s6 + $0x288] sm:$0xff]
        %v2717 = vld [vmem:[%s6 + $0x290] sm:$0xff]
        %v2718 = vld [vmem:[%s6 + $0x298] sm:$0xff]
        %v2719 = vld [vmem:[%s6 + $0x2a0] sm:$0xff]
        %v2720 = vld [vmem:[%s6 + $0x2a8] sm:$0xff]
        %v2721 = vld [vmem:[%s6 + $0x2b0] sm:$0xff]
        %v2722 = vld [vmem:[%s6 + $0x2b8] sm:$0xff]
        %v2723 = vld [vmem:[%s6 + $0x2c0] sm:$0xff]
        %v2724 = vld [vmem:[%s6 + $0x2c8] sm:$0xff]
        %v2725 = vld [vmem:[%s6 + $0x2d0] sm:$0xff]
        %v2726 = vld [vmem:[%s6 + $0x2d8] sm:$0xff]
        %v2727 = vld [vmem:[%s6 + $0x2e0] sm:$0xff]
        %v2728 = vld [vmem:[%s6 + $0x2e8] sm:$0xff]
        %v2729 = vld [vmem:[%s6 + $0x2f0] sm:$0xff]
        %v2730 = vld [vmem:[%s6 + $0x2f8] sm:$0xff]
        %v2731 = vld [vmem:[%s6 + $0x300] sm:$0xff]
        %v2732 = vld [vmem:[%s6 + $0x308] sm:$0xff]
        %v2733 = vld [vmem:[%s6 + $0x310] sm:$0xff]
        %v2734 = vld [vmem:[%s6 + $0x318] sm:$0xff]
        %v2735 = vld [vmem:[%s6 + $0x320] sm:$0xff]
        %v2736 = vld [vmem:[%s6 + $0x328] sm:$0xff]
        %v2737 = vld [vmem:[%s6 + $0x330] sm:$0xff]
        %v2738 = vld [vmem:[%s6 + $0x338] sm:$0xff]
        %v2739 = vld [vmem:[%s6 + $0x340] sm:$0xff]
        %v2740 = vld [vmem:[%s6 + $0x348] sm:$0xff]
        %v2741 = vld [vmem:[%s6 + $0x350] sm:$0xff]
        %v2742 = vld [vmem:[%s6 + $0x358] sm:$0xff]
        %v2743 = vld [vmem:[%s6 + $0x360] sm:$0xff]
        %v2744 = vld [vmem:[%s6 + $0x368] sm:$0xff]
        %v2745 = vld [vmem:[%s6 + $0x370] sm:$0xff]
        %v2746 = vld [vmem:[%s6 + $0x378] sm:$0xff]
        %v2747 = vld [vmem:[%s6 + $0x380] sm:$0xff]
        %v2748 = vld [vmem:[%s6 + $0x388] sm:$0xff]
        %v2749 = vld [vmem:[%s6 + $0x390] sm:$0xff]
        %v2750 = vld [vmem:[%s6 + $0x398] sm:$0xff]
        %v2751 = vld [vmem:[%s6 + $0x3a0] sm:$0xff]
        %v2752 = vld [vmem:[%s6 + $0x3a8] sm:$0xff]
        %v2753 = vld [vmem:[%s6 + $0x3b0] sm:$0xff]
        %v2754 = vld [vmem:[%s6 + $0x3b8] sm:$0xff]
        %v2755 = vld [vmem:[%s6 + $0x3c0] sm:$0xff]
        %v2756 = vld [vmem:[%s6 + $0x3c8] sm:$0xff]
        %v2757 = vld [vmem:[%s6 + $0x3d0] sm:$0xff]
        %v2758 = vld [vmem:[%s6 + $0x3d8] sm:$0xff]
        %v2759 = vld [vmem:[%s6 + $0x3e0] sm:$0xff]
        %v2760 = vld [vmem:[%s6 + $0x3e8] sm:$0xff]
        %v2761 = vld [vmem:[%s6 + $0x3f0] sm:$0xff]
        %v2762 = vld [vmem:[%s6 + $0x3f8] sm:$0xff]
        %v2763 = vld [vmem:[%s7] sm:$0x3]
        %v2765 = vlaneseq
        %v2766 = vshrl.u32 %v2765, 7
        %v2767 = vsub.s32 0, %v2766
        %v2768 = vrot.slane %v2763, %v2767
        %v2769 = vlaneseq
        %v2770 = vshrl.u32 %v2769, 7
        %v2771 = vsub.s32 1, %v2770
        %v2772 = vrot.slane %v2763, %v2771
        %v2807 = vunpack.c.l.b16 %v2603
        %v2808 = vunpack.c.h.b16 %v2603
        %v2809 = vunpack.c.l.b16 %v2604
        %v2810 = vunpack.c.h.b16 %v2604
        %v2811 = vunpack.c.l.b16 %v2605
        %v2812 = vunpack.c.h.b16 %v2605
        %v2813 = vunpack.c.l.b16 %v2606
        %v2814 = vunpack.c.h.b16 %v2606
        %v2815 = vunpack.c.l.b16 %v2607
        %v2816 = vunpack.c.h.b16 %v2607
        %v2817 = vunpack.c.l.b16 %v2608
        %v2818 = vunpack.c.h.b16 %v2608
        %v2819 = vunpack.c.l.b16 %v2609
        %v2820 = vunpack.c.h.b16 %v2609
        %v2821 = vunpack.c.l.b16 %v2610
        %v2822 = vunpack.c.h.b16 %v2610
        %v2823 = vunpack.c.l.b16 %v2611
        %v2824 = vunpack.c.h.b16 %v2611
        %v2825 = vunpack.c.l.b16 %v2612
        %v2826 = vunpack.c.h.b16 %v2612
        %v2827 = vunpack.c.l.b16 %v2613
        %v2828 = vunpack.c.h.b16 %v2613
        %v2829 = vunpack.c.l.b16 %v2614
        %v2830 = vunpack.c.h.b16 %v2614
        %v2831 = vunpack.c.l.b16 %v2615
        %v2832 = vunpack.c.h.b16 %v2615
        %v2833 = vunpack.c.l.b16 %v2616
        %v2834 = vunpack.c.h.b16 %v2616
        %v2835 = vunpack.c.l.b16 %v2617
        %v2836 = vunpack.c.h.b16 %v2617
        %v2837 = vunpack.c.l.b16 %v2618
        %v2838 = vunpack.c.h.b16 %v2618
        %v2839 = vunpack.c.l.b16 %v2619
        %v2840 = vunpack.c.h.b16 %v2619
        %v2841 = vunpack.c.l.b16 %v2620
        %v2842 = vunpack.c.h.b16 %v2620
        %v2843 = vunpack.c.l.b16 %v2621
        %v2844 = vunpack.c.h.b16 %v2621
        %v2845 = vunpack.c.l.b16 %v2622
        %v2846 = vunpack.c.h.b16 %v2622
        %v2847 = vunpack.c.l.b16 %v2623
        %v2848 = vunpack.c.h.b16 %v2623
        %v2849 = vunpack.c.l.b16 %v2624
        %v2850 = vunpack.c.h.b16 %v2624
        %v2851 = vunpack.c.l.b16 %v2625
        %v2852 = vunpack.c.h.b16 %v2625
        %v2853 = vunpack.c.l.b16 %v2626
        %v2854 = vunpack.c.h.b16 %v2626
        %v2855 = vunpack.c.l.b16 %v2627
        %v2856 = vunpack.c.h.b16 %v2627
        %v2857 = vunpack.c.l.b16 %v2628
        %v2858 = vunpack.c.h.b16 %v2628
        %v2859 = vunpack.c.l.b16 %v2629
        %v2860 = vunpack.c.h.b16 %v2629
        %v2861 = vunpack.c.l.b16 %v2630
        %v2862 = vunpack.c.h.b16 %v2630
        %v2863 = vunpack.c.l.b16 %v2631
        %v2864 = vunpack.c.h.b16 %v2631
        %v2865 = vunpack.c.l.b16 %v2632
        %v2866 = vunpack.c.h.b16 %v2632
        %v2867 = vunpack.c.l.b16 %v2633
        %v2868 = vunpack.c.h.b16 %v2633
        %v2869 = vunpack.c.l.b16 %v2634
        %v2870 = vunpack.c.h.b16 %v2634
        %v2871 = vpack.c.b16 %v2815, %v2807
        %v2872 = vpack.c.b16 %v2816, %v2808
        %v2873 = vpack.c.b16 %v2817, %v2809
        %v2874 = vpack.c.b16 %v2818, %v2810
        %v2875 = vpack.c.b16 %v2819, %v2811
        %v2876 = vpack.c.b16 %v2820, %v2812
        %v2877 = vpack.c.b16 %v2821, %v2813
        %v2878 = vpack.c.b16 %v2822, %v2814
        %v2879 = vpack.c.b16 %v2831, %v2823
        %v2880 = vpack.c.b16 %v2832, %v2824
        %v2881 = vpack.c.b16 %v2833, %v2825
        %v2882 = vpack.c.b16 %v2834, %v2826
        %v2883 = vpack.c.b16 %v2835, %v2827
        %v2884 = vpack.c.b16 %v2836, %v2828
        %v2885 = vpack.c.b16 %v2837, %v2829
        %v2886 = vpack.c.b16 %v2838, %v2830
        %v2887 = vpack.c.b16 %v2847, %v2839
        %v2888 = vpack.c.b16 %v2848, %v2840
        %v2889 = vpack.c.b16 %v2849, %v2841
        %v2890 = vpack.c.b16 %v2850, %v2842
        %v2891 = vpack.c.b16 %v2851, %v2843
        %v2892 = vpack.c.b16 %v2852, %v2844
        %v2893 = vpack.c.b16 %v2853, %v2845
        %v2894 = vpack.c.b16 %v2854, %v2846
        %v2895 = vpack.c.b16 %v2863, %v2855
        %v2896 = vpack.c.b16 %v2864, %v2856
        %v2897 = vpack.c.b16 %v2865, %v2857
        %v2898 = vpack.c.b16 %v2866, %v2858
        %v2899 = vpack.c.b16 %v2867, %v2859
        %v2900 = vpack.c.b16 %v2868, %v2860
        %v2901 = vpack.c.b16 %v2869, %v2861
        %v2902 = vpack.c.b16 %v2870, %v2862
        %v3063 = vunpack.c.l.b16 %v2635
        %v3064 = vunpack.c.h.b16 %v2635
        %v3065 = vunpack.c.l.b16 %v2636
        %v3066 = vunpack.c.h.b16 %v2636
        %v3067 = vunpack.c.l.b16 %v2637
        %v3068 = vunpack.c.h.b16 %v2637
        %v3069 = vunpack.c.l.b16 %v2638
        %v3070 = vunpack.c.h.b16 %v2638
        %v3071 = vunpack.c.l.b16 %v2639
        %v3072 = vunpack.c.h.b16 %v2639
        %v3073 = vunpack.c.l.b16 %v2640
        %v3074 = vunpack.c.h.b16 %v2640
        %v3075 = vunpack.c.l.b16 %v2641
        %v3076 = vunpack.c.h.b16 %v2641
        %v3077 = vunpack.c.l.b16 %v2642
        %v3078 = vunpack.c.h.b16 %v2642
        %v3079 = vunpack.c.l.b16 %v2643
        %v3080 = vunpack.c.h.b16 %v2643
        %v3081 = vunpack.c.l.b16 %v2644
        %v3082 = vunpack.c.h.b16 %v2644
        %v3083 = vunpack.c.l.b16 %v2645
        %v3084 = vunpack.c.h.b16 %v2645
        %v3085 = vunpack.c.l.b16 %v2646
        %v3086 = vunpack.c.h.b16 %v2646
        %v3087 = vunpack.c.l.b16 %v2647
        %v3088 = vunpack.c.h.b16 %v2647
        %v3089 = vunpack.c.l.b16 %v2648
        %v3090 = vunpack.c.h.b16 %v2648
        %v3091 = vunpack.c.l.b16 %v2649
        %v3092 = vunpack.c.h.b16 %v2649
        %v3093 = vunpack.c.l.b16 %v2650
        %v3094 = vunpack.c.h.b16 %v2650
        %v3095 = vunpack.c.l.b16 %v2651
        %v3096 = vunpack.c.h.b16 %v2651
        %v3097 = vunpack.c.l.b16 %v2652
        %v3098 = vunpack.c.h.b16 %v2652
        %v3099 = vunpack.c.l.b16 %v2653
        %v3100 = vunpack.c.h.b16 %v2653
        %v3101 = vunpack.c.l.b16 %v2654
        %v3102 = vunpack.c.h.b16 %v2654
        %v3103 = vunpack.c.l.b16 %v2655
        %v3104 = vunpack.c.h.b16 %v2655
        %v3105 = vunpack.c.l.b16 %v2656
        %v3106 = vunpack.c.h.b16 %v2656
        %v3107 = vunpack.c.l.b16 %v2657
        %v3108 = vunpack.c.h.b16 %v2657
        %v3109 = vunpack.c.l.b16 %v2658
        %v3110 = vunpack.c.h.b16 %v2658
        %v3111 = vunpack.c.l.b16 %v2659
        %v3112 = vunpack.c.h.b16 %v2659
        %v3113 = vunpack.c.l.b16 %v2660
        %v3114 = vunpack.c.h.b16 %v2660
        %v3115 = vunpack.c.l.b16 %v2661
        %v3116 = vunpack.c.h.b16 %v2661
        %v3117 = vunpack.c.l.b16 %v2662
        %v3118 = vunpack.c.h.b16 %v2662
        %v3119 = vunpack.c.l.b16 %v2663
        %v3120 = vunpack.c.h.b16 %v2663
        %v3121 = vunpack.c.l.b16 %v2664
        %v3122 = vunpack.c.h.b16 %v2664
        %v3123 = vunpack.c.l.b16 %v2665
        %v3124 = vunpack.c.h.b16 %v2665
        %v3125 = vunpack.c.l.b16 %v2666
        %v3126 = vunpack.c.h.b16 %v2666
        %v3127 = vunpack.c.l.b16 %v2667
        %v3128 = vunpack.c.h.b16 %v2667
        %v3129 = vunpack.c.l.b16 %v2668
        %v3130 = vunpack.c.h.b16 %v2668
        %v3131 = vunpack.c.l.b16 %v2669
        %v3132 = vunpack.c.h.b16 %v2669
        %v3133 = vunpack.c.l.b16 %v2670
        %v3134 = vunpack.c.h.b16 %v2670
        %v3135 = vunpack.c.l.b16 %v2671
        %v3136 = vunpack.c.h.b16 %v2671
        %v3137 = vunpack.c.l.b16 %v2672
        %v3138 = vunpack.c.h.b16 %v2672
        %v3139 = vunpack.c.l.b16 %v2673
        %v3140 = vunpack.c.h.b16 %v2673
        %v3141 = vunpack.c.l.b16 %v2674
        %v3142 = vunpack.c.h.b16 %v2674
        %v3143 = vunpack.c.l.b16 %v2675
        %v3144 = vunpack.c.h.b16 %v2675
        %v3145 = vunpack.c.l.b16 %v2676
        %v3146 = vunpack.c.h.b16 %v2676
        %v3147 = vunpack.c.l.b16 %v2677
        %v3148 = vunpack.c.h.b16 %v2677
        %v3149 = vunpack.c.l.b16 %v2678
        %v3150 = vunpack.c.h.b16 %v2678
        %v3151 = vunpack.c.l.b16 %v2679
        %v3152 = vunpack.c.h.b16 %v2679
        %v3153 = vunpack.c.l.b16 %v2680
        %v3154 = vunpack.c.h.b16 %v2680
        %v3155 = vunpack.c.l.b16 %v2681
        %v3156 = vunpack.c.h.b16 %v2681
        %v3157 = vunpack.c.l.b16 %v2682
        %v3158 = vunpack.c.h.b16 %v2682
        %v3159 = vunpack.c.l.b16 %v2683
        %v3160 = vunpack.c.h.b16 %v2683
        %v3161 = vunpack.c.l.b16 %v2684
        %v3162 = vunpack.c.h.b16 %v2684
        %v3163 = vunpack.c.l.b16 %v2685
        %v3164 = vunpack.c.h.b16 %v2685
        %v3165 = vunpack.c.l.b16 %v2686
        %v3166 = vunpack.c.h.b16 %v2686
        %v3167 = vunpack.c.l.b16 %v2687
        %v3168 = vunpack.c.h.b16 %v2687
        %v3169 = vunpack.c.l.b16 %v2688
        %v3170 = vunpack.c.h.b16 %v2688
        %v3171 = vunpack.c.l.b16 %v2689
        %v3172 = vunpack.c.h.b16 %v2689
        %v3173 = vunpack.c.l.b16 %v2690
        %v3174 = vunpack.c.h.b16 %v2690
        %v3175 = vunpack.c.l.b16 %v2691
        %v3176 = vunpack.c.h.b16 %v2691
        %v3177 = vunpack.c.l.b16 %v2692
        %v3178 = vunpack.c.h.b16 %v2692
        %v3179 = vunpack.c.l.b16 %v2693
        %v3180 = vunpack.c.h.b16 %v2693
        %v3181 = vunpack.c.l.b16 %v2694
        %v3182 = vunpack.c.h.b16 %v2694
        %v3183 = vunpack.c.l.b16 %v2695
        %v3184 = vunpack.c.h.b16 %v2695
        %v3185 = vunpack.c.l.b16 %v2696
        %v3186 = vunpack.c.h.b16 %v2696
        %v3187 = vunpack.c.l.b16 %v2697
        %v3188 = vunpack.c.h.b16 %v2697
        %v3189 = vunpack.c.l.b16 %v2698
        %v3190 = vunpack.c.h.b16 %v2698
        %v3191 = vunpack.c.l.b16 %v2699
        %v3192 = vunpack.c.h.b16 %v2699
        %v3193 = vunpack.c.l.b16 %v2700
        %v3194 = vunpack.c.h.b16 %v2700
        %v3195 = vunpack.c.l.b16 %v2701
        %v3196 = vunpack.c.h.b16 %v2701
        %v3197 = vunpack.c.l.b16 %v2702
        %v3198 = vunpack.c.h.b16 %v2702
        %v3199 = vunpack.c.l.b16 %v2703
        %v3200 = vunpack.c.h.b16 %v2703
        %v3201 = vunpack.c.l.b16 %v2704
        %v3202 = vunpack.c.h.b16 %v2704
        %v3203 = vunpack.c.l.b16 %v2705
        %v3204 = vunpack.c.h.b16 %v2705
        %v3205 = vunpack.c.l.b16 %v2706
        %v3206 = vunpack.c.h.b16 %v2706
        %v3207 = vunpack.c.l.b16 %v2707
        %v3208 = vunpack.c.h.b16 %v2707
        %v3209 = vunpack.c.l.b16 %v2708
        %v3210 = vunpack.c.h.b16 %v2708
        %v3211 = vunpack.c.l.b16 %v2709
        %v3212 = vunpack.c.h.b16 %v2709
        %v3213 = vunpack.c.l.b16 %v2710
        %v3214 = vunpack.c.h.b16 %v2710
        %v3215 = vunpack.c.l.b16 %v2711
        %v3216 = vunpack.c.h.b16 %v2711
        %v3217 = vunpack.c.l.b16 %v2712
        %v3218 = vunpack.c.h.b16 %v2712
        %v3219 = vunpack.c.l.b16 %v2713
        %v3220 = vunpack.c.h.b16 %v2713
        %v3221 = vunpack.c.l.b16 %v2714
        %v3222 = vunpack.c.h.b16 %v2714
        %v3223 = vunpack.c.l.b16 %v2715
        %v3224 = vunpack.c.h.b16 %v2715
        %v3225 = vunpack.c.l.b16 %v2716
        %v3226 = vunpack.c.h.b16 %v2716
        %v3227 = vunpack.c.l.b16 %v2717
        %v3228 = vunpack.c.h.b16 %v2717
        %v3229 = vunpack.c.l.b16 %v2718
        %v3230 = vunpack.c.h.b16 %v2718
        %v3231 = vunpack.c.l.b16 %v2719
        %v3232 = vunpack.c.h.b16 %v2719
        %v3233 = vunpack.c.l.b16 %v2720
        %v3234 = vunpack.c.h.b16 %v2720
        %v3235 = vunpack.c.l.b16 %v2721
        %v3236 = vunpack.c.h.b16 %v2721
        %v3237 = vunpack.c.l.b16 %v2722
        %v3238 = vunpack.c.h.b16 %v2722
        %v3239 = vunpack.c.l.b16 %v2723
        %v3240 = vunpack.c.h.b16 %v2723
        %v3241 = vunpack.c.l.b16 %v2724
        %v3242 = vunpack.c.h.b16 %v2724
        %v3243 = vunpack.c.l.b16 %v2725
        %v3244 = vunpack.c.h.b16 %v2725
        %v3245 = vunpack.c.l.b16 %v2726
        %v3246 = vunpack.c.h.b16 %v2726
        %v3247 = vunpack.c.l.b16 %v2727
        %v3248 = vunpack.c.h.b16 %v2727
        %v3249 = vunpack.c.l.b16 %v2728
        %v3250 = vunpack.c.h.b16 %v2728
        %v3251 = vunpack.c.l.b16 %v2729
        %v3252 = vunpack.c.h.b16 %v2729
        %v3253 = vunpack.c.l.b16 %v2730
        %v3254 = vunpack.c.h.b16 %v2730
        %v3255 = vunpack.c.l.b16 %v2731
        %v3256 = vunpack.c.h.b16 %v2731
        %v3257 = vunpack.c.l.b16 %v2732
        %v3258 = vunpack.c.h.b16 %v2732
        %v3259 = vunpack.c.l.b16 %v2733
        %v3260 = vunpack.c.h.b16 %v2733
        %v3261 = vunpack.c.l.b16 %v2734
        %v3262 = vunpack.c.h.b16 %v2734
        %v3263 = vunpack.c.l.b16 %v2735
        %v3264 = vunpack.c.h.b16 %v2735
        %v3265 = vunpack.c.l.b16 %v2736
        %v3266 = vunpack.c.h.b16 %v2736
        %v3267 = vunpack.c.l.b16 %v2737
        %v3268 = vunpack.c.h.b16 %v2737
        %v3269 = vunpack.c.l.b16 %v2738
        %v3270 = vunpack.c.h.b16 %v2738
        %v3271 = vunpack.c.l.b16 %v2739
        %v3272 = vunpack.c.h.b16 %v2739
        %v3273 = vunpack.c.l.b16 %v2740
        %v3274 = vunpack.c.h.b16 %v2740
        %v3275 = vunpack.c.l.b16 %v2741
        %v3276 = vunpack.c.h.b16 %v2741
        %v3277 = vunpack.c.l.b16 %v2742
        %v3278 = vunpack.c.h.b16 %v2742
        %v3279 = vunpack.c.l.b16 %v2743
        %v3280 = vunpack.c.h.b16 %v2743
        %v3281 = vunpack.c.l.b16 %v2744
        %v3282 = vunpack.c.h.b16 %v2744
        %v3283 = vunpack.c.l.b16 %v2745
        %v3284 = vunpack.c.h.b16 %v2745
        %v3285 = vunpack.c.l.b16 %v2746
        %v3286 = vunpack.c.h.b16 %v2746
        %v3287 = vunpack.c.l.b16 %v2747
        %v3288 = vunpack.c.h.b16 %v2747
        %v3289 = vunpack.c.l.b16 %v2748
        %v3290 = vunpack.c.h.b16 %v2748
        %v3291 = vunpack.c.l.b16 %v2749
        %v3292 = vunpack.c.h.b16 %v2749
        %v3293 = vunpack.c.l.b16 %v2750
        %v3294 = vunpack.c.h.b16 %v2750
        %v3295 = vunpack.c.l.b16 %v2751
        %v3296 = vunpack.c.h.b16 %v2751
        %v3297 = vunpack.c.l.b16 %v2752
        %v3298 = vunpack.c.h.b16 %v2752
        %v3299 = vunpack.c.l.b16 %v2753
        %v3300 = vunpack.c.h.b16 %v2753
        %v3301 = vunpack.c.l.b16 %v2754
        %v3302 = vunpack.c.h.b16 %v2754
        %v3303 = vunpack.c.l.b16 %v2755
        %v3304 = vunpack.c.h.b16 %v2755
        %v3305 = vunpack.c.l.b16 %v2756
        %v3306 = vunpack.c.h.b16 %v2756
        %v3307 = vunpack.c.l.b16 %v2757
        %v3308 = vunpack.c.h.b16 %v2757
        %v3309 = vunpack.c.l.b16 %v2758
        %v3310 = vunpack.c.h.b16 %v2758
        %v3311 = vunpack.c.l.b16 %v2759
        %v3312 = vunpack.c.h.b16 %v2759
        %v3313 = vunpack.c.l.b16 %v2760
        %v3314 = vunpack.c.h.b16 %v2760
        %v3315 = vunpack.c.l.b16 %v2761
        %v3316 = vunpack.c.h.b16 %v2761
        %v3317 = vunpack.c.l.b16 %v2762
        %v3318 = vunpack.c.h.b16 %v2762
        %v3319 = vpack.c.b16 %v3065, %v3063
        %v3320 = vpack.c.b16 %v3066, %v3064
        %v3321 = vpack.c.b16 %v3069, %v3067
        %v3322 = vpack.c.b16 %v3070, %v3068
        %v3323 = vpack.c.b16 %v3073, %v3071
        %v3324 = vpack.c.b16 %v3074, %v3072
        %v3325 = vpack.c.b16 %v3077, %v3075
        %v3326 = vpack.c.b16 %v3078, %v3076
        %v3327 = vpack.c.b16 %v3081, %v3079
        %v3328 = vpack.c.b16 %v3082, %v3080
        %v3329 = vpack.c.b16 %v3085, %v3083
        %v3330 = vpack.c.b16 %v3086, %v3084
        %v3331 = vpack.c.b16 %v3089, %v3087
        %v3332 = vpack.c.b16 %v3090, %v3088
        %v3333 = vpack.c.b16 %v3093, %v3091
        %v3334 = vpack.c.b16 %v3094, %v3092
        %v3335 = vpack.c.b16 %v3097, %v3095
        %v3336 = vpack.c.b16 %v3098, %v3096
        %v3337 = vpack.c.b16 %v3101, %v3099
        %v3338 = vpack.c.b16 %v3102, %v3100
        %v3339 = vpack.c.b16 %v3105, %v3103
        %v3340 = vpack.c.b16 %v3106, %v3104
        %v3341 = vpack.c.b16 %v3109, %v3107
        %v3342 = vpack.c.b16 %v3110, %v3108
        %v3343 = vpack.c.b16 %v3113, %v3111
        %v3344 = vpack.c.b16 %v3114, %v3112
        %v3345 = vpack.c.b16 %v3117, %v3115
        %v3346 = vpack.c.b16 %v3118, %v3116
        %v3347 = vpack.c.b16 %v3121, %v3119
        %v3348 = vpack.c.b16 %v3122, %v3120
        %v3349 = vpack.c.b16 %v3125, %v3123
        %v3350 = vpack.c.b16 %v3126, %v3124
        %v3351 = vpack.c.b16 %v3129, %v3127
        %v3352 = vpack.c.b16 %v3130, %v3128
        %v3353 = vpack.c.b16 %v3133, %v3131
        %v3354 = vpack.c.b16 %v3134, %v3132
        %v3355 = vpack.c.b16 %v3137, %v3135
        %v3356 = vpack.c.b16 %v3138, %v3136
        %v3357 = vpack.c.b16 %v3141, %v3139
        %v3358 = vpack.c.b16 %v3142, %v3140
        %v3359 = vpack.c.b16 %v3145, %v3143
        %v3360 = vpack.c.b16 %v3146, %v3144
        %v3361 = vpack.c.b16 %v3149, %v3147
        %v3362 = vpack.c.b16 %v3150, %v3148
        %v3363 = vpack.c.b16 %v3153, %v3151
        %v3364 = vpack.c.b16 %v3154, %v3152
        %v3365 = vpack.c.b16 %v3157, %v3155
        %v3366 = vpack.c.b16 %v3158, %v3156
        %v3367 = vpack.c.b16 %v3161, %v3159
        %v3368 = vpack.c.b16 %v3162, %v3160
        %v3369 = vpack.c.b16 %v3165, %v3163
        %v3370 = vpack.c.b16 %v3166, %v3164
        %v3371 = vpack.c.b16 %v3169, %v3167
        %v3372 = vpack.c.b16 %v3170, %v3168
        %v3373 = vpack.c.b16 %v3173, %v3171
        %v3374 = vpack.c.b16 %v3174, %v3172
        %v3375 = vpack.c.b16 %v3177, %v3175
        %v3376 = vpack.c.b16 %v3178, %v3176
        %v3377 = vpack.c.b16 %v3181, %v3179
        %v3378 = vpack.c.b16 %v3182, %v3180
        %v3379 = vpack.c.b16 %v3185, %v3183
        %v3380 = vpack.c.b16 %v3186, %v3184
        %v3381 = vpack.c.b16 %v3189, %v3187
        %v3382 = vpack.c.b16 %v3190, %v3188
        %v3383 = vpack.c.b16 %v3193, %v3191
        %v3384 = vpack.c.b16 %v3194, %v3192
        %v3385 = vpack.c.b16 %v3197, %v3195
        %v3386 = vpack.c.b16 %v3198, %v3196
        %v3387 = vpack.c.b16 %v3201, %v3199
        %v3388 = vpack.c.b16 %v3202, %v3200
        %v3389 = vpack.c.b16 %v3205, %v3203
        %v3390 = vpack.c.b16 %v3206, %v3204
        %v3391 = vpack.c.b16 %v3209, %v3207
        %v3392 = vpack.c.b16 %v3210, %v3208
        %v3393 = vpack.c.b16 %v3213, %v3211
        %v3394 = vpack.c.b16 %v3214, %v3212
        %v3395 = vpack.c.b16 %v3217, %v3215
        %v3396 = vpack.c.b16 %v3218, %v3216
        %v3397 = vpack.c.b16 %v3221, %v3219
        %v3398 = vpack.c.b16 %v3222, %v3220
        %v3399 = vpack.c.b16 %v3225, %v3223
        %v3400 = vpack.c.b16 %v3226, %v3224
        %v3401 = vpack.c.b16 %v3229, %v3227
        %v3402 = vpack.c.b16 %v3230, %v3228
        %v3403 = vpack.c.b16 %v3233, %v3231
        %v3404 = vpack.c.b16 %v3234, %v3232
        %v3405 = vpack.c.b16 %v3237, %v3235
        %v3406 = vpack.c.b16 %v3238, %v3236
        %v3407 = vpack.c.b16 %v3241, %v3239
        %v3408 = vpack.c.b16 %v3242, %v3240
        %v3409 = vpack.c.b16 %v3245, %v3243
        %v3410 = vpack.c.b16 %v3246, %v3244
        %v3411 = vpack.c.b16 %v3249, %v3247
        %v3412 = vpack.c.b16 %v3250, %v3248
        %v3413 = vpack.c.b16 %v3253, %v3251
        %v3414 = vpack.c.b16 %v3254, %v3252
        %v3415 = vpack.c.b16 %v3257, %v3255
        %v3416 = vpack.c.b16 %v3258, %v3256
        %v3417 = vpack.c.b16 %v3261, %v3259
        %v3418 = vpack.c.b16 %v3262, %v3260
        %v3419 = vpack.c.b16 %v3265, %v3263
        %v3420 = vpack.c.b16 %v3266, %v3264
        %v3421 = vpack.c.b16 %v3269, %v3267
        %v3422 = vpack.c.b16 %v3270, %v3268
        %v3423 = vpack.c.b16 %v3273, %v3271
        %v3424 = vpack.c.b16 %v3274, %v3272
        %v3425 = vpack.c.b16 %v3277, %v3275
        %v3426 = vpack.c.b16 %v3278, %v3276
        %v3427 = vpack.c.b16 %v3281, %v3279
        %v3428 = vpack.c.b16 %v3282, %v3280
        %v3429 = vpack.c.b16 %v3285, %v3283
        %v3430 = vpack.c.b16 %v3286, %v3284
        %v3431 = vpack.c.b16 %v3289, %v3287
        %v3432 = vpack.c.b16 %v3290, %v3288
        %v3433 = vpack.c.b16 %v3293, %v3291
        %v3434 = vpack.c.b16 %v3294, %v3292
        %v3435 = vpack.c.b16 %v3297, %v3295
        %v3436 = vpack.c.b16 %v3298, %v3296
        %v3437 = vpack.c.b16 %v3301, %v3299
        %v3438 = vpack.c.b16 %v3302, %v3300
        %v3439 = vpack.c.b16 %v3305, %v3303
        %v3440 = vpack.c.b16 %v3306, %v3304
        %v3441 = vpack.c.b16 %v3309, %v3307
        %v3442 = vpack.c.b16 %v3310, %v3308
        %v3443 = vpack.c.b16 %v3313, %v3311
        %v3444 = vpack.c.b16 %v3314, %v3312
        %v3445 = vpack.c.b16 %v3317, %v3315
        %v3446 = vpack.c.b16 %v3318, %v3316
        %3575 = vmatprep.subr.bf16.mxu0 %v3320
        %3576 = vmatpush1.bf16.msra.mxu0 %v3319
        %3577 = vmatprep.subr.bf16.mxu0 %v3322
        %3578 = vmatpush1.bf16.msra.mxu0 %v3321
        %3579 = vmatprep.subr.bf16.mxu0 %v3324
        %3580 = vmatpush1.bf16.msra.mxu0 %v3323
        %3581 = vmatprep.subr.bf16.mxu0 %v3326
        %3582 = vmatpush1.bf16.msra.mxu0 %v3325
        %3583 = vmatprep.subr.bf16.mxu0 %v3328
        %3584 = vmatpush1.bf16.msra.mxu0 %v3327
        %3585 = vmatprep.subr.bf16.mxu0 %v3330
        %3586 = vmatpush1.bf16.msra.mxu0 %v3329
        %3587 = vmatprep.subr.bf16.mxu0 %v3332
        %3588 = vmatpush1.bf16.msra.mxu0 %v3331
        %3589 = vmatprep.subr.bf16.mxu0 %v3334
        %3590 = vmatpush1.bf16.msra.mxu0 %v3333
        %3591 = vmatprep.subr.bf16.mxu0 %v3336
        %3592 = vmatpush1.bf16.msra.mxu0 %v3335
        %3593 = vmatprep.subr.bf16.mxu0 %v3338
        %3594 = vmatpush1.bf16.msra.mxu0 %v3337
        %3595 = vmatprep.subr.bf16.mxu0 %v3340
        %3596 = vmatpush1.bf16.msra.mxu0 %v3339
        %3597 = vmatprep.subr.bf16.mxu0 %v3342
        %3598 = vmatpush1.bf16.msra.mxu0 %v3341
        %3599 = vmatprep.subr.bf16.mxu0 %v3344
        %3600 = vmatpush1.bf16.msra.mxu0 %v3343
        %3601 = vmatprep.subr.bf16.mxu0 %v3346
        %3602 = vmatpush1.bf16.msra.mxu0 %v3345
        %3603 = vmatprep.subr.bf16.mxu0 %v3348
        %3604 = vmatpush1.bf16.msra.mxu0 %v3347
        %3605 = vmatprep.subr.bf16.mxu0 %v3350
        %3606 = vmatpush1.bf16.msra.mxu0 %v3349
        %3607 = vmatprep.mubr.bf16.mxu0 %v2872
        %3608 = vmatmul.mubr.bf16.gmra.mrb[0].mxu0 %v2871
        %v3609 = vpop.f32.mrb[0].mxu0
        %v3610 = vadd.f32 %v2768, %v3609
        %v3611 = vpop.f32.mrb[0].mxu0
        %v3612 = vadd.f32 %v2772, %v3611
        %v3613 = vpop.f32.mrb[0].mxu0
        %v3614 = vadd.f32 %v2768, %v3613
        %v3615 = vpop.f32.mrb[0].mxu0
        %v3616 = vadd.f32 %v2772, %v3615
        %3617 = vmatprep.mubr.bf16.mxu0 %v2880
        %3618 = vmatmul.mubr.bf16.gmra.mrb[0].mxu0 %v2879
        %v3619 = vpop.f32.mrb[0].mxu0
        %v3620 = vadd.f32 %v2768, %v3619
        %v3621 = vpop.f32.mrb[0].mxu0
        %v3622 = vadd.f32 %v2772, %v3621
        %v3623 = vpop.f32.mrb[0].mxu0
        %v3624 = vadd.f32 %v2768, %v3623
        %v3625 = vpop.f32.mrb[0].mxu0
        %v3626 = vadd.f32 %v2772, %v3625
        %3627 = vmatprep.mubr.bf16.mxu0 %v2888
        %3628 = vmatmul.mubr.bf16.gmra.mrb[0].mxu0 %v2887
        %v3629 = vpop.f32.mrb[0].mxu0
        %v3630 = vadd.f32 %v2768, %v3629
        %v3631 = vpop.f32.mrb[0].mxu0
        %v3632 = vadd.f32 %v2772, %v3631
        %v3633 = vpop.f32.mrb[0].mxu0
        %v3634 = vadd.f32 %v2768, %v3633
        %v3635 = vpop.f32.mrb[0].mxu0
        %v3636 = vadd.f32 %v2772, %v3635
        %3637 = vmatprep.mubr.bf16.mxu0 %v2896
        %3638 = vmatmul.mubr.bf16.gmra.mrb[0].mxu0 %v2895
        %v3639 = vpop.f32.mrb[0].mxu0
        %v3640 = vadd.f32 %v2768, %v3639
        %v3641 = vpop.f32.mrb[0].mxu0
        %v3642 = vadd.f32 %v2772, %v3641
        %v3643 = vpop.f32.mrb[0].mxu0
        %v3644 = vadd.f32 %v2768, %v3643
        %v3645 = vpop.f32.mrb[0].mxu0
        %v3646 = vadd.f32 %v2772, %v3645
        %3647 = vdwg.mxu0
        %3648 = vmatprep.subr.bf16.mxu0 %v3352
        %3649 = vmatpush1.bf16.msra.mxu0 %v3351
        %3650 = vmatprep.subr.bf16.mxu0 %v3354
        %3651 = vmatpush1.bf16.msra.mxu0 %v3353
        %3652 = vmatprep.subr.bf16.mxu0 %v3356
        %3653 = vmatpush1.bf16.msra.mxu0 %v3355
        %3654 = vmatprep.subr.bf16.mxu0 %v3358
        %3655 = vmatpush1.bf16.msra.mxu0 %v3357
        %3656 = vmatprep.subr.bf16.mxu0 %v3360
        %3657 = vmatpush1.bf16.msra.mxu0 %v3359
        %3658 = vmatprep.subr.bf16.mxu0 %v3362
        %3659 = vmatpush1.bf16.msra.mxu0 %v3361
        %3660 = vmatprep.subr.bf16.mxu0 %v3364
        %3661 = vmatpush1.bf16.msra.mxu0 %v3363
        %3662 = vmatprep.subr.bf16.mxu0 %v3366
        %3663 = vmatpush1.bf16.msra.mxu0 %v3365
        %3664 = vmatprep.subr.bf16.mxu0 %v3368
        %3665 = vmatpush1.bf16.msra.mxu0 %v3367
        %3666 = vmatprep.subr.bf16.mxu0 %v3370
        %3667 = vmatpush1.bf16.msra.mxu0 %v3369
        %3668 = vmatprep.subr.bf16.mxu0 %v3372
        %3669 = vmatpush1.bf16.msra.mxu0 %v3371
        %3670 = vmatprep.subr.bf16.mxu0 %v3374
        %3671 = vmatpush1.bf16.msra.mxu0 %v3373
        %3672 = vmatprep.subr.bf16.mxu0 %v3376
        %3673 = vmatpush1.bf16.msra.mxu0 %v3375
        %3674 = vmatprep.subr.bf16.mxu0 %v3378
        %3675 = vmatpush1.bf16.msra.mxu0 %v3377
        %3676 = vmatprep.subr.bf16.mxu0 %v3380
        %3677 = vmatpush1.bf16.msra.mxu0 %v3379
        %3678 = vmatprep.subr.bf16.mxu0 %v3382
        %3679 = vmatpush1.bf16.msra.mxu0 %v3381
        %3680 = vmatprep.mubr.bf16.mxu0 %v2874
        %3681 = vmatmul.mubr.bf16.gmra.mrb[0].mxu0 %v2873
        %v3682 = vpop.f32.mrb[0].mxu0
        %v3683 = vadd.f32 %v3610, %v3682
        %v3684 = vpop.f32.mrb[0].mxu0
        %v3685 = vadd.f32 %v3612, %v3684
        %v3686 = vpop.f32.mrb[0].mxu0
        %v3687 = vadd.f32 %v3614, %v3686
        %v3688 = vpop.f32.mrb[0].mxu0
        %v3689 = vadd.f32 %v3616, %v3688
        %3690 = vmatprep.mubr.bf16.mxu0 %v2882
        %3691 = vmatmul.mubr.bf16.gmra.mrb[0].mxu0 %v2881
        %v3692 = vpop.f32.mrb[0].mxu0
        %v3693 = vadd.f32 %v3620, %v3692
        %v3694 = vpop.f32.mrb[0].mxu0
        %v3695 = vadd.f32 %v3622, %v3694
        %v3696 = vpop.f32.mrb[0].mxu0
        %v3697 = vadd.f32 %v3624, %v3696
        %v3698 = vpop.f32.mrb[0].mxu0
        %v3699 = vadd.f32 %v3626, %v3698
        %3700 = vmatprep.mubr.bf16.mxu0 %v2890
        %3701 = vmatmul.mubr.bf16.gmra.mrb[0].mxu0 %v2889
        %v3702 = vpop.f32.mrb[0].mxu0
        %v3703 = vadd.f32 %v3630, %v3702
        %v3704 = vpop.f32.mrb[0].mxu0
        %v3705 = vadd.f32 %v3632, %v3704
        %v3706 = vpop.f32.mrb[0].mxu0
        %v3707 = vadd.f32 %v3634, %v3706
        %v3708 = vpop.f32.mrb[0].mxu0
        %v3709 = vadd.f32 %v3636, %v3708
        %3710 = vmatprep.mubr.bf16.mxu0 %v2898
        %3711 = vmatmul.mubr.bf16.gmra.mrb[0].mxu0 %v2897
        %v3712 = vpop.f32.mrb[0].mxu0
        %v3713 = vadd.f32 %v3640, %v3712
        %v3714 = vpop.f32.mrb[0].mxu0
        %v3715 = vadd.f32 %v3642, %v3714
        %v3716 = vpop.f32.mrb[0].mxu0
        %v3717 = vadd.f32 %v3644, %v3716
        %v3718 = vpop.f32.mrb[0].mxu0
        %v3719 = vadd.f32 %v3646, %v3718
        %3720 = vdwg.mxu0
        %3721 = vmatprep.subr.bf16.mxu0 %v3384
        %3722 = vmatpush1.bf16.msra.mxu0 %v3383
        %3723 = vmatprep.subr.bf16.mxu0 %v3386
        %3724 = vmatpush1.bf16.msra.mxu0 %v3385
        %3725 = vmatprep.subr.bf16.mxu0 %v3388
        %3726 = vmatpush1.bf16.msra.mxu0 %v3387
        %3727 = vmatprep.subr.bf16.mxu0 %v3390
        %3728 = vmatpush1.bf16.msra.mxu0 %v3389
        %3729 = vmatprep.subr.bf16.mxu0 %v3392
        %3730 = vmatpush1.bf16.msra.mxu0 %v3391
        %3731 = vmatprep.subr.bf16.mxu0 %v3394
        %3732 = vmatpush1.bf16.msra.mxu0 %v3393
        %3733 = vmatprep.subr.bf16.mxu0 %v3396
        %3734 = vmatpush1.bf16.msra.mxu0 %v3395
        %3735 = vmatprep.subr.bf16.mxu0 %v3398
        %3736 = vmatpush1.bf16.msra.mxu0 %v3397
        %3737 = vmatprep.subr.bf16.mxu0 %v3400
        %3738 = vmatpush1.bf16.msra.mxu0 %v3399
        %3739 = vmatprep.subr.bf16.mxu0 %v3402
        %3740 = vmatpush1.bf16.msra.mxu0 %v3401
        %3741 = vmatprep.subr.bf16.mxu0 %v3404
        %3742 = vmatpush1.bf16.msra.mxu0 %v3403
        %3743 = vmatprep.subr.bf16.mxu0 %v3406
        %3744 = vmatpush1.bf16.msra.mxu0 %v3405
        %3745 = vmatprep.subr.bf16.mxu0 %v3408
        %3746 = vmatpush1.bf16.msra.mxu0 %v3407
        %3747 = vmatprep.subr.bf16.mxu0 %v3410
        %3748 = vmatpush1.bf16.msra.mxu0 %v3409
        %3749 = vmatprep.subr.bf16.mxu0 %v3412
        %3750 = vmatpush1.bf16.msra.mxu0 %v3411
        %3751 = vmatprep.subr.bf16.mxu0 %v3414
        %3752 = vmatpush1.bf16.msra.mxu0 %v3413
        %3753 = vmatprep.mubr.bf16.mxu0 %v2876
        %3754 = vmatmul.mubr.bf16.gmra.mrb[0].mxu0 %v2875
        %v3755 = vpop.f32.mrb[0].mxu0
        %v3756 = vadd.f32 %v3683, %v3755
        %v3757 = vpop.f32.mrb[0].mxu0
        %v3758 = vadd.f32 %v3685, %v3757
        %v3759 = vpop.f32.mrb[0].mxu0
        %v3760 = vadd.f32 %v3687, %v3759
        %v3761 = vpop.f32.mrb[0].mxu0
        %v3762 = vadd.f32 %v3689, %v3761
        %3763 = vmatprep.mubr.bf16.mxu0 %v2884
        %3764 = vmatmul.mubr.bf16.gmra.mrb[0].mxu0 %v2883
        %v3765 = vpop.f32.mrb[0].mxu0
        %v3766 = vadd.f32 %v3693, %v3765
        %v3767 = vpop.f32.mrb[0].mxu0
        %v3768 = vadd.f32 %v3695, %v3767
        %v3769 = vpop.f32.mrb[0].mxu0
        %v3770 = vadd.f32 %v3697, %v3769
        %v3771 = vpop.f32.mrb[0].mxu0
        %v3772 = vadd.f32 %v3699, %v3771
        %3773 = vmatprep.mubr.bf16.mxu0 %v2892
        %3774 = vmatmul.mubr.bf16.gmra.mrb[0].mxu0 %v2891
        %v3775 = vpop.f32.mrb[0].mxu0
        %v3776 = vadd.f32 %v3703, %v3775
        %v3777 = vpop.f32.mrb[0].mxu0
        %v3778 = vadd.f32 %v3705, %v3777
        %v3779 = vpop.f32.mrb[0].mxu0
        %v3780 = vadd.f32 %v3707, %v3779
        %v3781 = vpop.f32.mrb[0].mxu0
        %v3782 = vadd.f32 %v3709, %v3781
        %3783 = vmatprep.mubr.bf16.mxu0 %v2900
        %3784 = vmatmul.mubr.bf16.gmra.mrb[0].mxu0 %v2899
        %v3785 = vpop.f32.mrb[0].mxu0
        %v3786 = vadd.f32 %v3713, %v3785
        %v3787 = vpop.f32.mrb[0].mxu0
        %v3788 = vadd.f32 %v3715, %v3787
        %v3789 = vpop.f32.mrb[0].mxu0
        %v3790 = vadd.f32 %v3717, %v3789
        %v3791 = vpop.f32.mrb[0].mxu0
        %v3792 = vadd.f32 %v3719, %v3791
        %3793 = vdwg.mxu0
        %3794 = vmatprep.subr.bf16.mxu0 %v3416
        %3795 = vmatpush1.bf16.msra.mxu0 %v3415
        %3796 = vmatprep.subr.bf16.mxu0 %v3418
        %3797 = vmatpush1.bf16.msra.mxu0 %v3417
        %3798 = vmatprep.subr.bf16.mxu0 %v3420
        %3799 = vmatpush1.bf16.msra.mxu0 %v3419
        %3800 = vmatprep.subr.bf16.mxu0 %v3422
        %3801 = vmatpush1.bf16.msra.mxu0 %v3421
        %3802 = vmatprep.subr.bf16.mxu0 %v3424
        %3803 = vmatpush1.bf16.msra.mxu0 %v3423
        %3804 = vmatprep.subr.bf16.mxu0 %v3426
        %3805 = vmatpush1.bf16.msra.mxu0 %v3425
        %3806 = vmatprep.subr.bf16.mxu0 %v3428
        %3807 = vmatpush1.bf16.msra.mxu0 %v3427
        %3808 = vmatprep.subr.bf16.mxu0 %v3430
        %3809 = vmatpush1.bf16.msra.mxu0 %v3429
        %3810 = vmatprep.subr.bf16.mxu0 %v3432
        %3811 = vmatpush1.bf16.msra.mxu0 %v3431
        %3812 = vmatprep.subr.bf16.mxu0 %v3434
        %3813 = vmatpush1.bf16.msra.mxu0 %v3433
        %3814 = vmatprep.subr.bf16.mxu0 %v3436
        %3815 = vmatpush1.bf16.msra.mxu0 %v3435
        %3816 = vmatprep.subr.bf16.mxu0 %v3438
        %3817 = vmatpush1.bf16.msra.mxu0 %v3437
        %3818 = vmatprep.subr.bf16.mxu0 %v3440
        %3819 = vmatpush1.bf16.msra.mxu0 %v3439
        %3820 = vmatprep.subr.bf16.mxu0 %v3442
        %3821 = vmatpush1.bf16.msra.mxu0 %v3441
        %3822 = vmatprep.subr.bf16.mxu0 %v3444
        %3823 = vmatpush1.bf16.msra.mxu0 %v3443
        %3824 = vmatprep.subr.bf16.mxu0 %v3446
        %3825 = vmatpush1.bf16.msra.mxu0 %v3445
        %3826 = vmatprep.mubr.bf16.mxu0 %v2878
        %3827 = vmatmul.mubr.bf16.gmra.mrb[0].mxu0 %v2877
        %v3828 = vpop.f32.mrb[0].mxu0
        %v3829 = vadd.f32 %v3756, %v3828
        %v3830 = vpop.f32.mrb[0].mxu0
        %v3831 = vadd.f32 %v3758, %v3830
        %v3832 = vpop.f32.mrb[0].mxu0
        %v3833 = vadd.f32 %v3760, %v3832
        %v3834 = vpop.f32.mrb[0].mxu0
        %v3835 = vadd.f32 %v3762, %v3834
        %3836 = vmatprep.mubr.bf16.mxu0 %v2886
        %3837 = vmatmul.mubr.bf16.gmra.mrb[0].mxu0 %v2885
        %v3838 = vpop.f32.mrb[0].mxu0
        %v3839 = vadd.f32 %v3766, %v3838
        %v3840 = vpop.f32.mrb[0].mxu0
        %v3841 = vadd.f32 %v3768, %v3840
        %v3842 = vpop.f32.mrb[0].mxu0
        %v3843 = vadd.f32 %v3770, %v3842
        %v3844 = vpop.f32.mrb[0].mxu0
        %v3845 = vadd.f32 %v3772, %v3844
        %3846 = vmatprep.mubr.bf16.mxu0 %v2894
        %3847 = vmatmul.mubr.bf16.gmra.mrb[0].mxu0 %v2893
        %v3848 = vpop.f32.mrb[0].mxu0
        %v3849 = vadd.f32 %v3776, %v3848
        %v3850 = vpop.f32.mrb[0].mxu0
        %v3851 = vadd.f32 %v3778, %v3850
        %v3852 = vpop.f32.mrb[0].mxu0
        %v3853 = vadd.f32 %v3780, %v3852
        %v3854 = vpop.f32.mrb[0].mxu0
        %v3855 = vadd.f32 %v3782, %v3854
        %3856 = vmatprep.mubr.bf16.mxu0 %v2902
        %3857 = vmatmul.mubr.bf16.gmra.mrb[0].mxu0 %v2901
        %v3858 = vpop.f32.mrb[0].mxu0
        %v3859 = vadd.f32 %v3786, %v3858
        %v3860 = vpop.f32.mrb[0].mxu0
        %v3861 = vadd.f32 %v3788, %v3860
        %v3862 = vpop.f32.mrb[0].mxu0
        %v3863 = vadd.f32 %v3790, %v3862
        %v3864 = vpop.f32.mrb[0].mxu0
        %v3865 = vadd.f32 %v3792, %v3864
        %3866 = vdwg.mxu0
        %v3867 = vld [vmem:[%s10] sm:$0xf]
        %v3868 = vld [vmem:[%s10 + $0x4] sm:$0xf]
        %v3869 = vld [vmem:[%s10 + $0x8] sm:$0xf]
        %v3870 = vld [vmem:[%s10 + $0xc] sm:$0xf]
        %v3871 = vld [vmem:[%s10 + $0x10] sm:$0xf]
        %v3872 = vld [vmem:[%s10 + $0x14] sm:$0xf]
        %v3873 = vld [vmem:[%s10 + $0x18] sm:$0xf]
        %v3874 = vld [vmem:[%s10 + $0x1c] sm:$0xf]
        %v3875 = vld [vmem:[%s609] sm:$0xff]
        %v3876 = vld [vmem:[%s609 + $0x8] sm:$0xff]
        %v3877 = vld [vmem:[%s609 + $0x10] sm:$0xff]
        %v3878 = vld [vmem:[%s609 + $0x18] sm:$0xff]
        %v3879 = vpack.c.bf16 %v3877, %v3875
        %v3880 = vpack.c.bf16 %v3878, %v3876
        %v3889 = vunpack.c.l.b16 %v3867
        %v3890 = vunpack.c.l.b16 %v3868
        %v3891 = vunpack.c.l.b16 %v3869
        %v3892 = vunpack.c.l.b16 %v3870
        %v3893 = vunpack.c.l.b16 %v3871
        %v3894 = vunpack.c.l.b16 %v3872
        %v3895 = vunpack.c.l.b16 %v3873
        %v3896 = vunpack.c.l.b16 %v3874
        %v3897 = vpack.c.b16 %v3890, %v3889
        %v3898 = vpack.c.b16 %v3892, %v3891
        %v3899 = vpack.c.b16 %v3894, %v3893
        %v3900 = vpack.c.b16 %v3896, %v3895
        %vm3901 = vcmask 130048
        %v3903 = vsel %vm3901, %v3897, 0
        %v3906 = vsel %vm3901, %v3898, 0
        %v3909 = vsel %vm3901, %v3899, 0
        %v3912 = vsel %vm3901, %v3900, 0
        %3914 = vmatprep.subr.bf16.mxu0 %v3880
        %3915 = vmatpush1.bf16.msra.mxu0 %v3879
        %3916 = vmatprep.subr.bf16.mxu0 0
        %3917 = vmatpush1.bf16.msra.mxu0 0
        %3918 = vmatprep.subr.bf16.mxu0 0
        %3919 = vmatpush1.bf16.msra.mxu0 0
        %3920 = vmatprep.subr.bf16.mxu0 0
        %3921 = vmatpush1.bf16.msra.mxu0 0
        %3922 = vmatprep.subr.bf16.mxu0 0
        %3923 = vmatpush1.bf16.msra.mxu0 0
        %3924 = vmatprep.subr.bf16.mxu0 0
        %3925 = vmatpush1.bf16.msra.mxu0 0
        %3926 = vmatprep.subr.bf16.mxu0 0
        %3927 = vmatpush1.bf16.msra.mxu0 0
        %3928 = vmatprep.subr.bf16.mxu0 0
        %3929 = vmatpush1.bf16.msra.mxu0 0
        %3930 = vmatprep.subr.bf16.mxu0 0
        %3931 = vmatpush1.bf16.msra.mxu0 0
        %3932 = vmatprep.subr.bf16.mxu0 0
        %3933 = vmatpush1.bf16.msra.mxu0 0
        %3934 = vmatprep.subr.bf16.mxu0 0
        %3935 = vmatpush1.bf16.msra.mxu0 0
        %3936 = vmatprep.subr.bf16.mxu0 0
        %3937 = vmatpush1.bf16.msra.mxu0 0
        %3938 = vmatprep.subr.bf16.mxu0 0
        %3939 = vmatpush1.bf16.msra.mxu0 0
        %3940 = vmatprep.subr.bf16.mxu0 0
        %3941 = vmatpush1.bf16.msra.mxu0 0
        %3942 = vmatprep.subr.bf16.mxu0 0
        %3943 = vmatpush1.bf16.msra.mxu0 0
        %3944 = vmatprep.subr.bf16.mxu0 0
        %3945 = vmatpush1.bf16.msra.mxu0 0
        %3946 = vmatprep.mubr.bf16.mxu0 0
        %3947 = vmatmul.mubr.bf16.gmra.mrb[0].mxu0 %v3903
        %v3948 = vpop.f32.mrb[0].mxu0
        %v3949 = vadd.f32 0.0, %v3948
        %v3950 = vpop.f32.mrb[0].mxu0
        %v3951 = vadd.f32 0.0, %v3950
        %v3952 = vpop.f32.mrb[0].mxu0
        %v3953 = vadd.f32 0.0, %v3952
        %v3954 = vpop.f32.mrb[0].mxu0
        %v3955 = vadd.f32 0.0, %v3954
        %3956 = vmatprep.mubr.bf16.mxu0 0
        %3957 = vmatmul.mubr.bf16.gmra.mrb[0].mxu0 %v3906
        %v3958 = vpop.f32.mrb[0].mxu0
        %v3959 = vadd.f32 0.0, %v3958
        %v3960 = vpop.f32.mrb[0].mxu0
        %v3961 = vadd.f32 0.0, %v3960
        %v3962 = vpop.f32.mrb[0].mxu0
        %v3963 = vadd.f32 0.0, %v3962
        %v3964 = vpop.f32.mrb[0].mxu0
        %v3965 = vadd.f32 0.0, %v3964
        %3966 = vmatprep.mubr.bf16.mxu0 0
        %3967 = vmatmul.mubr.bf16.gmra.mrb[0].mxu0 %v3909
        %v3968 = vpop.f32.mrb[0].mxu0
        %v3969 = vadd.f32 0.0, %v3968
        %v3970 = vpop.f32.mrb[0].mxu0
        %v3971 = vadd.f32 0.0, %v3970
        %v3972 = vpop.f32.mrb[0].mxu0
        %v3973 = vadd.f32 0.0, %v3972
        %v3974 = vpop.f32.mrb[0].mxu0
        %v3975 = vadd.f32 0.0, %v3974
        %3976 = vmatprep.mubr.bf16.mxu0 0
        %3977 = vmatmul.mubr.bf16.gmra.mrb[0].mxu0 %v3912
        %v3978 = vpop.f32.mrb[0].mxu0
        %v3979 = vadd.f32 0.0, %v3978
        %v3980 = vpop.f32.mrb[0].mxu0
        %v3981 = vadd.f32 0.0, %v3980
        %v3982 = vpop.f32.mrb[0].mxu0
        %v3983 = vadd.f32 0.0, %v3982
        %v3984 = vpop.f32.mrb[0].mxu0
        %v3985 = vadd.f32 0.0, %v3984
        %3986 = vdwg.mxu0
        %v3987 = vadd.f32 %v3829, %v3949
        %v3988 = vadd.f32 %v3831, %v3951
        %v3989 = vadd.f32 %v3833, %v3953
        %v3990 = vadd.f32 %v3835, %v3955
        %v3991 = vadd.f32 %v3839, %v3959
        %v3992 = vadd.f32 %v3841, %v3961
        %v3993 = vadd.f32 %v3843, %v3963
        %v3994 = vadd.f32 %v3845, %v3965
        %v3995 = vadd.f32 %v3849, %v3969
        %v3996 = vadd.f32 %v3851, %v3971
        %v3997 = vadd.f32 %v3853, %v3973
        %v3998 = vadd.f32 %v3855, %v3975
        %v3999 = vadd.f32 %v3859, %v3979
        %v4000 = vadd.f32 %v3861, %v3981
        %v4001 = vadd.f32 %v3863, %v3983
        %v4002 = vadd.f32 %v3865, %v3985
        %4003 = vst [vmem:[%s577] sm:$0xff] %v3987
        %4004 = vst [vmem:[%s577 + $0x8] sm:$0xff] %v3988
        %4005 = vst [vmem:[%s577 + $0x10] sm:$0xff] %v3989
        %4006 = vst [vmem:[%s577 + $0x18] sm:$0xff] %v3990
        %4007 = vst [vmem:[%s577 + $0x20] sm:$0xff] %v3991
        %4008 = vst [vmem:[%s577 + $0x28] sm:$0xff] %v3992
        %4009 = vst [vmem:[%s577 + $0x30] sm:$0xff] %v3993
        %4010 = vst [vmem:[%s577 + $0x38] sm:$0xff] %v3994
        %4011 = vst [vmem:[%s577 + $0x40] sm:$0xff] %v3995
        %4012 = vst [vmem:[%s577 + $0x48] sm:$0xff] %v3996
        %4013 = vst [vmem:[%s577 + $0x50] sm:$0xff] %v3997
        %4014 = vst [vmem:[%s577 + $0x58] sm:$0xff] %v3998
        %4015 = vst [vmem:[%s577 + $0x60] sm:$0xff] %v3999
        %4016 = vst [vmem:[%s577 + $0x68] sm:$0xff] %v4000
        %4017 = vst [vmem:[%s577 + $0x70] sm:$0xff] %v4001
        %4018 = vst [vmem:[%s577 + $0x78] sm:$0xff] %v4002
        %v4019 = vld [vmem:[%s594] sm:$0xff]
        %v4020 = vld [vmem:[%s594 + $0x8] sm:$0xff]
        %v4021 = vld [vmem:[%s594 + $0x10] sm:$0xff]
        %v4022 = vld [vmem:[%s594 + $0x18] sm:$0xff]
        %v4023 = vld [vmem:[%s594 + $0x20] sm:$0xff]
        %v4024 = vld [vmem:[%s594 + $0x28] sm:$0xff]
        %v4025 = vld [vmem:[%s594 + $0x30] sm:$0xff]
        %v4026 = vld [vmem:[%s594 + $0x38] sm:$0xff]
        %v4027 = vld [vmem:[%s594 + $0x40] sm:$0xff]
        %v4028 = vld [vmem:[%s594 + $0x48] sm:$0xff]
        %v4029 = vld [vmem:[%s594 + $0x50] sm:$0xff]
        %v4030 = vld [vmem:[%s594 + $0x58] sm:$0xff]
        %v4031 = vld [vmem:[%s594 + $0x60] sm:$0xff]
        %v4032 = vld [vmem:[%s594 + $0x68] sm:$0xff]
        %v4033 = vld [vmem:[%s594 + $0x70] sm:$0xff]
        %v4034 = vld [vmem:[%s594 + $0x78] sm:$0xff]
        %v4035 = vld [vmem:[%s594 + $0x80] sm:$0xff]
        %v4036 = vld [vmem:[%s594 + $0x88] sm:$0xff]
        %v4037 = vld [vmem:[%s594 + $0x90] sm:$0xff]
        %v4038 = vld [vmem:[%s594 + $0x98] sm:$0xff]
        %v4039 = vld [vmem:[%s594 + $0xa0] sm:$0xff]
        %v4040 = vld [vmem:[%s594 + $0xa8] sm:$0xff]
        %v4041 = vld [vmem:[%s594 + $0xb0] sm:$0xff]
        %v4042 = vld [vmem:[%s594 + $0xb8] sm:$0xff]
        %v4043 = vld [vmem:[%s594 + $0xc0] sm:$0xff]
        %v4044 = vld [vmem:[%s594 + $0xc8] sm:$0xff]
        %v4045 = vld [vmem:[%s594 + $0xd0] sm:$0xff]
        %v4046 = vld [vmem:[%s594 + $0xd8] sm:$0xff]
        %v4047 = vld [vmem:[%s594 + $0xe0] sm:$0xff]
        %v4048 = vld [vmem:[%s594 + $0xe8] sm:$0xff]
        %v4049 = vld [vmem:[%s594 + $0xf0] sm:$0xff]
        %v4050 = vld [vmem:[%s594 + $0xf8] sm:$0xff]
        %v4051 = vld [vmem:[%s594 + $0x100] sm:$0xff]
        %v4052 = vld [vmem:[%s594 + $0x108] sm:$0xff]
        %v4053 = vld [vmem:[%s594 + $0x110] sm:$0xff]
        %v4054 = vld [vmem:[%s594 + $0x118] sm:$0xff]
        %v4055 = vld [vmem:[%s594 + $0x120] sm:$0xff]
        %v4056 = vld [vmem:[%s594 + $0x128] sm:$0xff]
        %v4057 = vld [vmem:[%s594 + $0x130] sm:$0xff]
        %v4058 = vld [vmem:[%s594 + $0x138] sm:$0xff]
        %v4059 = vld [vmem:[%s594 + $0x140] sm:$0xff]
        %v4060 = vld [vmem:[%s594 + $0x148] sm:$0xff]
        %v4061 = vld [vmem:[%s594 + $0x150] sm:$0xff]
        %v4062 = vld [vmem:[%s594 + $0x158] sm:$0xff]
        %v4063 = vld [vmem:[%s594 + $0x160] sm:$0xff]
        %v4064 = vld [vmem:[%s594 + $0x168] sm:$0xff]
        %v4065 = vld [vmem:[%s594 + $0x170] sm:$0xff]
        %v4066 = vld [vmem:[%s594 + $0x178] sm:$0xff]
        %v4067 = vld [vmem:[%s594 + $0x180] sm:$0xff]
        %v4068 = vld [vmem:[%s594 + $0x188] sm:$0xff]
        %v4069 = vld [vmem:[%s594 + $0x190] sm:$0xff]
        %v4070 = vld [vmem:[%s594 + $0x198] sm:$0xff]
        %v4071 = vld [vmem:[%s594 + $0x1a0] sm:$0xff]
        %v4072 = vld [vmem:[%s594 + $0x1a8] sm:$0xff]
        %v4073 = vld [vmem:[%s594 + $0x1b0] sm:$0xff]
        %v4074 = vld [vmem:[%s594 + $0x1b8] sm:$0xff]
        %v4075 = vld [vmem:[%s594 + $0x1c0] sm:$0xff]
        %v4076 = vld [vmem:[%s594 + $0x1c8] sm:$0xff]
        %v4077 = vld [vmem:[%s594 + $0x1d0] sm:$0xff]
        %v4078 = vld [vmem:[%s594 + $0x1d8] sm:$0xff]
        %v4079 = vld [vmem:[%s594 + $0x1e0] sm:$0xff]
        %v4080 = vld [vmem:[%s594 + $0x1e8] sm:$0xff]
        %v4081 = vld [vmem:[%s594 + $0x1f0] sm:$0xff]
        %v4082 = vld [vmem:[%s594 + $0x1f8] sm:$0xff]
        %v4083 = vld [vmem:[%s8] sm:$0xff]
        %v4084 = vld [vmem:[%s8 + $0x8] sm:$0xff]
        %v4085 = vld [vmem:[%s8 + $0x10] sm:$0xff]
        %v4086 = vld [vmem:[%s8 + $0x18] sm:$0xff]
        %v4087 = vld [vmem:[%s8 + $0x20] sm:$0xff]
        %v4088 = vld [vmem:[%s8 + $0x28] sm:$0xff]
        %v4089 = vld [vmem:[%s8 + $0x30] sm:$0xff]
        %v4090 = vld [vmem:[%s8 + $0x38] sm:$0xff]
        %v4091 = vld [vmem:[%s8 + $0x40] sm:$0xff]
        %v4092 = vld [vmem:[%s8 + $0x48] sm:$0xff]
        %v4093 = vld [vmem:[%s8 + $0x50] sm:$0xff]
        %v4094 = vld [vmem:[%s8 + $0x58] sm:$0xff]
        %v4095 = vld [vmem:[%s8 + $0x60] sm:$0xff]
        %v4096 = vld [vmem:[%s8 + $0x68] sm:$0xff]
        %v4097 = vld [vmem:[%s8 + $0x70] sm:$0xff]
        %v4098 = vld [vmem:[%s8 + $0x78] sm:$0xff]
        %v4099 = vld [vmem:[%s8 + $0x80] sm:$0xff]
        %v4100 = vld [vmem:[%s8 + $0x88] sm:$0xff]
        %v4101 = vld [vmem:[%s8 + $0x90] sm:$0xff]
        %v4102 = vld [vmem:[%s8 + $0x98] sm:$0xff]
        %v4103 = vld [vmem:[%s8 + $0xa0] sm:$0xff]
        %v4104 = vld [vmem:[%s8 + $0xa8] sm:$0xff]
        %v4105 = vld [vmem:[%s8 + $0xb0] sm:$0xff]
        %v4106 = vld [vmem:[%s8 + $0xb8] sm:$0xff]
        %v4107 = vld [vmem:[%s8 + $0xc0] sm:$0xff]
        %v4108 = vld [vmem:[%s8 + $0xc8] sm:$0xff]
        %v4109 = vld [vmem:[%s8 + $0xd0] sm:$0xff]
        %v4110 = vld [vmem:[%s8 + $0xd8] sm:$0xff]
        %v4111 = vld [vmem:[%s8 + $0xe0] sm:$0xff]
        %v4112 = vld [vmem:[%s8 + $0xe8] sm:$0xff]
        %v4113 = vld [vmem:[%s8 + $0xf0] sm:$0xff]
        %v4114 = vld [vmem:[%s8 + $0xf8] sm:$0xff]
        %v4115 = vld [vmem:[%s8 + $0x100] sm:$0xff]
        %v4116 = vld [vmem:[%s8 + $0x108] sm:$0xff]
        %v4117 = vld [vmem:[%s8 + $0x110] sm:$0xff]
        %v4118 = vld [vmem:[%s8 + $0x118] sm:$0xff]
        %v4119 = vld [vmem:[%s8 + $0x120] sm:$0xff]
        %v4120 = vld [vmem:[%s8 + $0x128] sm:$0xff]
        %v4121 = vld [vmem:[%s8 + $0x130] sm:$0xff]
        %v4122 = vld [vmem:[%s8 + $0x138] sm:$0xff]
        %v4123 = vld [vmem:[%s8 + $0x140] sm:$0xff]
        %v4124 = vld [vmem:[%s8 + $0x148] sm:$0xff]
        %v4125 = vld [vmem:[%s8 + $0x150] sm:$0xff]
        %v4126 = vld [vmem:[%s8 + $0x158] sm:$0xff]
        %v4127 = vld [vmem:[%s8 + $0x160] sm:$0xff]
        %v4128 = vld [vmem:[%s8 + $0x168] sm:$0xff]
        %v4129 = vld [vmem:[%s8 + $0x170] sm:$0xff]
        %v4130 = vld [vmem:[%s8 + $0x178] sm:$0xff]
        %v4131 = vld [vmem:[%s8 + $0x180] sm:$0xff]
        %v4132 = vld [vmem:[%s8 + $0x188] sm:$0xff]
        %v4133 = vld [vmem:[%s8 + $0x190] sm:$0xff]
        %v4134 = vld [vmem:[%s8 + $0x198] sm:$0xff]
        %v4135 = vld [vmem:[%s8 + $0x1a0] sm:$0xff]
        %v4136 = vld [vmem:[%s8 + $0x1a8] sm:$0xff]
        %v4137 = vld [vmem:[%s8 + $0x1b0] sm:$0xff]
        %v4138 = vld [vmem:[%s8 + $0x1b8] sm:$0xff]
        %v4139 = vld [vmem:[%s8 + $0x1c0] sm:$0xff]
        %v4140 = vld [vmem:[%s8 + $0x1c8] sm:$0xff]
        %v4141 = vld [vmem:[%s8 + $0x1d0] sm:$0xff]
        %v4142 = vld [vmem:[%s8 + $0x1d8] sm:$0xff]
        %v4143 = vld [vmem:[%s8 + $0x1e0] sm:$0xff]
        %v4144 = vld [vmem:[%s8 + $0x1e8] sm:$0xff]
        %v4145 = vld [vmem:[%s8 + $0x1f0] sm:$0xff]
        %v4146 = vld [vmem:[%s8 + $0x1f8] sm:$0xff]
        %v4147 = vld [vmem:[%s9] sm:$0x3]
        %v4149 = vlaneseq
        %v4150 = vshrl.u32 %v4149, 7
        %v4151 = vsub.s32 0, %v4150
        %v4152 = vrot.slane %v4147, %v4151
        %v4153 = vlaneseq
        %v4154 = vshrl.u32 %v4153, 7
        %v4155 = vsub.s32 1, %v4154
        %v4156 = vrot.slane %v4147, %v4155
        %v4223 = vunpack.c.l.b16 %v4019
        %v4224 = vunpack.c.h.b16 %v4019
        %v4225 = vunpack.c.l.b16 %v4020
        %v4226 = vunpack.c.h.b16 %v4020
        %v4227 = vunpack.c.l.b16 %v4021
        %v4228 = vunpack.c.h.b16 %v4021
        %v4229 = vunpack.c.l.b16 %v4022
        %v4230 = vunpack.c.h.b16 %v4022
        %v4231 = vunpack.c.l.b16 %v4023
        %v4232 = vunpack.c.h.b16 %v4023
        %v4233 = vunpack.c.l.b16 %v4024
        %v4234 = vunpack.c.h.b16 %v4024
        %v4235 = vunpack.c.l.b16 %v4025
        %v4236 = vunpack.c.h.b16 %v4025
        %v4237 = vunpack.c.l.b16 %v4026
        %v4238 = vunpack.c.h.b16 %v4026
        %v4239 = vunpack.c.l.b16 %v4027
        %v4240 = vunpack.c.h.b16 %v4027
        %v4241 = vunpack.c.l.b16 %v4028
        %v4242 = vunpack.c.h.b16 %v4028
        %v4243 = vunpack.c.l.b16 %v4029
        %v4244 = vunpack.c.h.b16 %v4029
        %v4245 = vunpack.c.l.b16 %v4030
        %v4246 = vunpack.c.h.b16 %v4030
        %v4247 = vunpack.c.l.b16 %v4031
        %v4248 = vunpack.c.h.b16 %v4031
        %v4249 = vunpack.c.l.b16 %v4032
        %v4250 = vunpack.c.h.b16 %v4032
        %v4251 = vunpack.c.l.b16 %v4033
        %v4252 = vunpack.c.h.b16 %v4033
        %v4253 = vunpack.c.l.b16 %v4034
        %v4254 = vunpack.c.h.b16 %v4034
        %v4255 = vunpack.c.l.b16 %v4035
        %v4256 = vunpack.c.h.b16 %v4035
        %v4257 = vunpack.c.l.b16 %v4036
        %v4258 = vunpack.c.h.b16 %v4036
        %v4259 = vunpack.c.l.b16 %v4037
        %v4260 = vunpack.c.h.b16 %v4037
        %v4261 = vunpack.c.l.b16 %v4038
        %v4262 = vunpack.c.h.b16 %v4038
        %v4263 = vunpack.c.l.b16 %v4039
        %v4264 = vunpack.c.h.b16 %v4039
        %v4265 = vunpack.c.l.b16 %v4040
        %v4266 = vunpack.c.h.b16 %v4040
        %v4267 = vunpack.c.l.b16 %v4041
        %v4268 = vunpack.c.h.b16 %v4041
        %v4269 = vunpack.c.l.b16 %v4042
        %v4270 = vunpack.c.h.b16 %v4042
        %v4271 = vunpack.c.l.b16 %v4043
        %v4272 = vunpack.c.h.b16 %v4043
        %v4273 = vunpack.c.l.b16 %v4044
        %v4274 = vunpack.c.h.b16 %v4044
        %v4275 = vunpack.c.l.b16 %v4045
        %v4276 = vunpack.c.h.b16 %v4045
        %v4277 = vunpack.c.l.b16 %v4046
        %v4278 = vunpack.c.h.b16 %v4046
        %v4279 = vunpack.c.l.b16 %v4047
        %v4280 = vunpack.c.h.b16 %v4047
        %v4281 = vunpack.c.l.b16 %v4048
        %v4282 = vunpack.c.h.b16 %v4048
        %v4283 = vunpack.c.l.b16 %v4049
        %v4284 = vunpack.c.h.b16 %v4049
        %v4285 = vunpack.c.l.b16 %v4050
        %v4286 = vunpack.c.h.b16 %v4050
        %v4287 = vunpack.c.l.b16 %v4051
        %v4288 = vunpack.c.h.b16 %v4051
        %v4289 = vunpack.c.l.b16 %v4052
        %v4290 = vunpack.c.h.b16 %v4052
        %v4291 = vunpack.c.l.b16 %v4053
        %v4292 = vunpack.c.h.b16 %v4053
        %v4293 = vunpack.c.l.b16 %v4054
        %v4294 = vunpack.c.h.b16 %v4054
        %v4295 = vunpack.c.l.b16 %v4055
        %v4296 = vunpack.c.h.b16 %v4055
        %v4297 = vunpack.c.l.b16 %v4056
        %v4298 = vunpack.c.h.b16 %v4056
        %v4299 = vunpack.c.l.b16 %v4057
        %v4300 = vunpack.c.h.b16 %v4057
        %v4301 = vunpack.c.l.b16 %v4058
        %v4302 = vunpack.c.h.b16 %v4058
        %v4303 = vunpack.c.l.b16 %v4059
        %v4304 = vunpack.c.h.b16 %v4059
        %v4305 = vunpack.c.l.b16 %v4060
        %v4306 = vunpack.c.h.b16 %v4060
        %v4307 = vunpack.c.l.b16 %v4061
        %v4308 = vunpack.c.h.b16 %v4061
        %v4309 = vunpack.c.l.b16 %v4062
        %v4310 = vunpack.c.h.b16 %v4062
        %v4311 = vunpack.c.l.b16 %v4063
        %v4312 = vunpack.c.h.b16 %v4063
        %v4313 = vunpack.c.l.b16 %v4064
        %v4314 = vunpack.c.h.b16 %v4064
        %v4315 = vunpack.c.l.b16 %v4065
        %v4316 = vunpack.c.h.b16 %v4065
        %v4317 = vunpack.c.l.b16 %v4066
        %v4318 = vunpack.c.h.b16 %v4066
        %v4319 = vunpack.c.l.b16 %v4067
        %v4320 = vunpack.c.h.b16 %v4067
        %v4321 = vunpack.c.l.b16 %v4068
        %v4322 = vunpack.c.h.b16 %v4068
        %v4323 = vunpack.c.l.b16 %v4069
        %v4324 = vunpack.c.h.b16 %v4069
        %v4325 = vunpack.c.l.b16 %v4070
        %v4326 = vunpack.c.h.b16 %v4070
        %v4327 = vunpack.c.l.b16 %v4071
        %v4328 = vunpack.c.h.b16 %v4071
        %v4329 = vunpack.c.l.b16 %v4072
        %v4330 = vunpack.c.h.b16 %v4072
        %v4331 = vunpack.c.l.b16 %v4073
        %v4332 = vunpack.c.h.b16 %v4073
        %v4333 = vunpack.c.l.b16 %v4074
        %v4334 = vunpack.c.h.b16 %v4074
        %v4335 = vunpack.c.l.b16 %v4075
        %v4336 = vunpack.c.h.b16 %v4075
        %v4337 = vunpack.c.l.b16 %v4076
        %v4338 = vunpack.c.h.b16 %v4076
        %v4339 = vunpack.c.l.b16 %v4077
        %v4340 = vunpack.c.h.b16 %v4077
        %v4341 = vunpack.c.l.b16 %v4078
        %v4342 = vunpack.c.h.b16 %v4078
        %v4343 = vunpack.c.l.b16 %v4079
        %v4344 = vunpack.c.h.b16 %v4079
        %v4345 = vunpack.c.l.b16 %v4080
        %v4346 = vunpack.c.h.b16 %v4080
        %v4347 = vunpack.c.l.b16 %v4081
        %v4348 = vunpack.c.h.b16 %v4081
        %v4349 = vunpack.c.l.b16 %v4082
        %v4350 = vunpack.c.h.b16 %v4082
        %v4351 = vpack.c.b16 %v4227, %v4223
        %v4352 = vpack.c.b16 %v4228, %v4224
        %v4353 = vpack.c.b16 %v4229, %v4225
        %v4354 = vpack.c.b16 %v4230, %v4226
        %v4355 = vpack.c.b16 %v4235, %v4231
        %v4356 = vpack.c.b16 %v4236, %v4232
        %v4357 = vpack.c.b16 %v4237, %v4233
        %v4358 = vpack.c.b16 %v4238, %v4234
        %v4359 = vpack.c.b16 %v4243, %v4239
        %v4360 = vpack.c.b16 %v4244, %v4240
        %v4361 = vpack.c.b16 %v4245, %v4241
        %v4362 = vpack.c.b16 %v4246, %v4242
        %v4363 = vpack.c.b16 %v4251, %v4247
        %v4364 = vpack.c.b16 %v4252, %v4248
        %v4365 = vpack.c.b16 %v4253, %v4249
        %v4366 = vpack.c.b16 %v4254, %v4250
        %v4367 = vpack.c.b16 %v4259, %v4255
        %v4368 = vpack.c.b16 %v4260, %v4256
        %v4369 = vpack.c.b16 %v4261, %v4257
        %v4370 = vpack.c.b16 %v4262, %v4258
        %v4371 = vpack.c.b16 %v4267, %v4263
        %v4372 = vpack.c.b16 %v4268, %v4264
        %v4373 = vpack.c.b16 %v4269, %v4265
        %v4374 = vpack.c.b16 %v4270, %v4266
        %v4375 = vpack.c.b16 %v4275, %v4271
        %v4376 = vpack.c.b16 %v4276, %v4272
        %v4377 = vpack.c.b16 %v4277, %v4273
        %v4378 = vpack.c.b16 %v4278, %v4274
        %v4379 = vpack.c.b16 %v4283, %v4279
        %v4380 = vpack.c.b16 %v4284, %v4280
        %v4381 = vpack.c.b16 %v4285, %v4281
        %v4382 = vpack.c.b16 %v4286, %v4282
        %v4383 = vpack.c.b16 %v4291, %v4287
        %v4384 = vpack.c.b16 %v4292, %v4288
        %v4385 = vpack.c.b16 %v4293, %v4289
        %v4386 = vpack.c.b16 %v4294, %v4290
        %v4387 = vpack.c.b16 %v4299, %v4295
        %v4388 = vpack.c.b16 %v4300, %v4296
        %v4389 = vpack.c.b16 %v4301, %v4297
        %v4390 = vpack.c.b16 %v4302, %v4298
        %v4391 = vpack.c.b16 %v4307, %v4303
        %v4392 = vpack.c.b16 %v4308, %v4304
        %v4393 = vpack.c.b16 %v4309, %v4305
        %v4394 = vpack.c.b16 %v4310, %v4306
        %v4395 = vpack.c.b16 %v4315, %v4311
        %v4396 = vpack.c.b16 %v4316, %v4312
        %v4397 = vpack.c.b16 %v4317, %v4313
        %v4398 = vpack.c.b16 %v4318, %v4314
        %v4399 = vpack.c.b16 %v4323, %v4319
        %v4400 = vpack.c.b16 %v4324, %v4320
        %v4401 = vpack.c.b16 %v4325, %v4321
        %v4402 = vpack.c.b16 %v4326, %v4322
        %v4403 = vpack.c.b16 %v4331, %v4327
        %v4404 = vpack.c.b16 %v4332, %v4328
        %v4405 = vpack.c.b16 %v4333, %v4329
        %v4406 = vpack.c.b16 %v4334, %v4330
        %v4407 = vpack.c.b16 %v4339, %v4335
        %v4408 = vpack.c.b16 %v4340, %v4336
        %v4409 = vpack.c.b16 %v4341, %v4337
        %v4410 = vpack.c.b16 %v4342, %v4338
        %v4411 = vpack.c.b16 %v4347, %v4343
        %v4412 = vpack.c.b16 %v4348, %v4344
        %v4413 = vpack.c.b16 %v4349, %v4345
        %v4414 = vpack.c.b16 %v4350, %v4346
        %v4543 = vunpack.c.l.b16 %v4083
        %v4544 = vunpack.c.h.b16 %v4083
        %v4545 = vunpack.c.l.b16 %v4084
        %v4546 = vunpack.c.h.b16 %v4084
        %v4547 = vunpack.c.l.b16 %v4085
        %v4548 = vunpack.c.h.b16 %v4085
        %v4549 = vunpack.c.l.b16 %v4086
        %v4550 = vunpack.c.h.b16 %v4086
        %v4551 = vunpack.c.l.b16 %v4087
        %v4552 = vunpack.c.h.b16 %v4087
        %v4553 = vunpack.c.l.b16 %v4088
        %v4554 = vunpack.c.h.b16 %v4088
        %v4555 = vunpack.c.l.b16 %v4089
        %v4556 = vunpack.c.h.b16 %v4089
        %v4557 = vunpack.c.l.b16 %v4090
        %v4558 = vunpack.c.h.b16 %v4090
        %v4559 = vunpack.c.l.b16 %v4091
        %v4560 = vunpack.c.h.b16 %v4091
        %v4561 = vunpack.c.l.b16 %v4092
        %v4562 = vunpack.c.h.b16 %v4092
        %v4563 = vunpack.c.l.b16 %v4093
        %v4564 = vunpack.c.h.b16 %v4093
        %v4565 = vunpack.c.l.b16 %v4094
        %v4566 = vunpack.c.h.b16 %v4094
        %v4567 = vunpack.c.l.b16 %v4095
        %v4568 = vunpack.c.h.b16 %v4095
        %v4569 = vunpack.c.l.b16 %v4096
        %v4570 = vunpack.c.h.b16 %v4096
        %v4571 = vunpack.c.l.b16 %v4097
        %v4572 = vunpack.c.h.b16 %v4097
        %v4573 = vunpack.c.l.b16 %v4098
        %v4574 = vunpack.c.h.b16 %v4098
        %v4575 = vunpack.c.l.b16 %v4099
        %v4576 = vunpack.c.h.b16 %v4099
        %v4577 = vunpack.c.l.b16 %v4100
        %v4578 = vunpack.c.h.b16 %v4100
        %v4579 = vunpack.c.l.b16 %v4101
        %v4580 = vunpack.c.h.b16 %v4101
        %v4581 = vunpack.c.l.b16 %v4102
        %v4582 = vunpack.c.h.b16 %v4102
        %v4583 = vunpack.c.l.b16 %v4103
        %v4584 = vunpack.c.h.b16 %v4103
        %v4585 = vunpack.c.l.b16 %v4104
        %v4586 = vunpack.c.h.b16 %v4104
        %v4587 = vunpack.c.l.b16 %v4105
        %v4588 = vunpack.c.h.b16 %v4105
        %v4589 = vunpack.c.l.b16 %v4106
        %v4590 = vunpack.c.h.b16 %v4106
        %v4591 = vunpack.c.l.b16 %v4107
        %v4592 = vunpack.c.h.b16 %v4107
        %v4593 = vunpack.c.l.b16 %v4108
        %v4594 = vunpack.c.h.b16 %v4108
        %v4595 = vunpack.c.l.b16 %v4109
        %v4596 = vunpack.c.h.b16 %v4109
        %v4597 = vunpack.c.l.b16 %v4110
        %v4598 = vunpack.c.h.b16 %v4110
        %v4599 = vunpack.c.l.b16 %v4111
        %v4600 = vunpack.c.h.b16 %v4111
        %v4601 = vunpack.c.l.b16 %v4112
        %v4602 = vunpack.c.h.b16 %v4112
        %v4603 = vunpack.c.l.b16 %v4113
        %v4604 = vunpack.c.h.b16 %v4113
        %v4605 = vunpack.c.l.b16 %v4114
        %v4606 = vunpack.c.h.b16 %v4114
        %v4607 = vunpack.c.l.b16 %v4115
        %v4608 = vunpack.c.h.b16 %v4115
        %v4609 = vunpack.c.l.b16 %v4116
        %v4610 = vunpack.c.h.b16 %v4116
        %v4611 = vunpack.c.l.b16 %v4117
        %v4612 = vunpack.c.h.b16 %v4117
        %v4613 = vunpack.c.l.b16 %v4118
        %v4614 = vunpack.c.h.b16 %v4118
        %v4615 = vunpack.c.l.b16 %v4119
        %v4616 = vunpack.c.h.b16 %v4119
        %v4617 = vunpack.c.l.b16 %v4120
        %v4618 = vunpack.c.h.b16 %v4120
        %v4619 = vunpack.c.l.b16 %v4121
        %v4620 = vunpack.c.h.b16 %v4121
        %v4621 = vunpack.c.l.b16 %v4122
        %v4622 = vunpack.c.h.b16 %v4122
        %v4623 = vunpack.c.l.b16 %v4123
        %v4624 = vunpack.c.h.b16 %v4123
        %v4625 = vunpack.c.l.b16 %v4124
        %v4626 = vunpack.c.h.b16 %v4124
        %v4627 = vunpack.c.l.b16 %v4125
        %v4628 = vunpack.c.h.b16 %v4125
        %v4629 = vunpack.c.l.b16 %v4126
        %v4630 = vunpack.c.h.b16 %v4126
        %v4631 = vunpack.c.l.b16 %v4127
        %v4632 = vunpack.c.h.b16 %v4127
        %v4633 = vunpack.c.l.b16 %v4128
        %v4634 = vunpack.c.h.b16 %v4128
        %v4635 = vunpack.c.l.b16 %v4129
        %v4636 = vunpack.c.h.b16 %v4129
        %v4637 = vunpack.c.l.b16 %v4130
        %v4638 = vunpack.c.h.b16 %v4130
        %v4639 = vunpack.c.l.b16 %v4131
        %v4640 = vunpack.c.h.b16 %v4131
        %v4641 = vunpack.c.l.b16 %v4132
        %v4642 = vunpack.c.h.b16 %v4132
        %v4643 = vunpack.c.l.b16 %v4133
        %v4644 = vunpack.c.h.b16 %v4133
        %v4645 = vunpack.c.l.b16 %v4134
        %v4646 = vunpack.c.h.b16 %v4134
        %v4647 = vunpack.c.l.b16 %v4135
        %v4648 = vunpack.c.h.b16 %v4135
        %v4649 = vunpack.c.l.b16 %v4136
        %v4650 = vunpack.c.h.b16 %v4136
        %v4651 = vunpack.c.l.b16 %v4137
        %v4652 = vunpack.c.h.b16 %v4137
        %v4653 = vunpack.c.l.b16 %v4138
        %v4654 = vunpack.c.h.b16 %v4138
        %v4655 = vunpack.c.l.b16 %v4139
        %v4656 = vunpack.c.h.b16 %v4139
        %v4657 = vunpack.c.l.b16 %v4140
        %v4658 = vunpack.c.h.b16 %v4140
        %v4659 = vunpack.c.l.b16 %v4141
        %v4660 = vunpack.c.h.b16 %v4141
        %v4661 = vunpack.c.l.b16 %v4142
        %v4662 = vunpack.c.h.b16 %v4142
        %v4663 = vunpack.c.l.b16 %v4143
        %v4664 = vunpack.c.h.b16 %v4143
        %v4665 = vunpack.c.l.b16 %v4144
        %v4666 = vunpack.c.h.b16 %v4144
        %v4667 = vunpack.c.l.b16 %v4145
        %v4668 = vunpack.c.h.b16 %v4145
        %v4669 = vunpack.c.l.b16 %v4146
        %v4670 = vunpack.c.h.b16 %v4146
        %v4671 = vpack.c.b16 %v4545, %v4543
        %v4672 = vpack.c.b16 %v4546, %v4544
        %v4673 = vpack.c.b16 %v4549, %v4547
        %v4674 = vpack.c.b16 %v4550, %v4548
        %v4675 = vpack.c.b16 %v4553, %v4551
        %v4676 = vpack.c.b16 %v4554, %v4552
        %v4677 = vpack.c.b16 %v4557, %v4555
        %v4678 = vpack.c.b16 %v4558, %v4556
        %v4679 = vpack.c.b16 %v4561, %v4559
        %v4680 = vpack.c.b16 %v4562, %v4560
        %v4681 = vpack.c.b16 %v4565, %v4563
        %v4682 = vpack.c.b16 %v4566, %v4564
        %v4683 = vpack.c.b16 %v4569, %v4567
        %v4684 = vpack.c.b16 %v4570, %v4568
        %v4685 = vpack.c.b16 %v4573, %v4571
        %v4686 = vpack.c.b16 %v4574, %v4572
        %v4687 = vpack.c.b16 %v4577, %v4575
        %v4688 = vpack.c.b16 %v4578, %v4576
        %v4689 = vpack.c.b16 %v4581, %v4579
        %v4690 = vpack.c.b16 %v4582, %v4580
        %v4691 = vpack.c.b16 %v4585, %v4583
        %v4692 = vpack.c.b16 %v4586, %v4584
        %v4693 = vpack.c.b16 %v4589, %v4587
        %v4694 = vpack.c.b16 %v4590, %v4588
        %v4695 = vpack.c.b16 %v4593, %v4591
        %v4696 = vpack.c.b16 %v4594, %v4592
        %v4697 = vpack.c.b16 %v4597, %v4595
        %v4698 = vpack.c.b16 %v4598, %v4596
        %v4699 = vpack.c.b16 %v4601, %v4599
        %v4700 = vpack.c.b16 %v4602, %v4600
        %v4701 = vpack.c.b16 %v4605, %v4603
        %v4702 = vpack.c.b16 %v4606, %v4604
        %v4703 = vpack.c.b16 %v4609, %v4607
        %v4704 = vpack.c.b16 %v4610, %v4608
        %v4705 = vpack.c.b16 %v4613, %v4611
        %v4706 = vpack.c.b16 %v4614, %v4612
        %v4707 = vpack.c.b16 %v4617, %v4615
        %v4708 = vpack.c.b16 %v4618, %v4616
        %v4709 = vpack.c.b16 %v4621, %v4619
        %v4710 = vpack.c.b16 %v4622, %v4620
        %v4711 = vpack.c.b16 %v4625, %v4623
        %v4712 = vpack.c.b16 %v4626, %v4624
        %v4713 = vpack.c.b16 %v4629, %v4627
        %v4714 = vpack.c.b16 %v4630, %v4628
        %v4715 = vpack.c.b16 %v4633, %v4631
        %v4716 = vpack.c.b16 %v4634, %v4632
        %v4717 = vpack.c.b16 %v4637, %v4635
        %v4718 = vpack.c.b16 %v4638, %v4636
        %v4719 = vpack.c.b16 %v4641, %v4639
        %v4720 = vpack.c.b16 %v4642, %v4640
        %v4721 = vpack.c.b16 %v4645, %v4643
        %v4722 = vpack.c.b16 %v4646, %v4644
        %v4723 = vpack.c.b16 %v4649, %v4647
        %v4724 = vpack.c.b16 %v4650, %v4648
        %v4725 = vpack.c.b16 %v4653, %v4651
        %v4726 = vpack.c.b16 %v4654, %v4652
        %v4727 = vpack.c.b16 %v4657, %v4655
        %v4728 = vpack.c.b16 %v4658, %v4656
        %v4729 = vpack.c.b16 %v4661, %v4659
        %v4730 = vpack.c.b16 %v4662, %v4660
        %v4731 = vpack.c.b16 %v4665, %v4663
        %v4732 = vpack.c.b16 %v4666, %v4664
        %v4733 = vpack.c.b16 %v4669, %v4667
        %v4734 = vpack.c.b16 %v4670, %v4668
        %4799 = vmatprep.subr.bf16.mxu0 %v4672
        %4800 = vmatpush1.bf16.msra.mxu0 %v4671
        %4801 = vmatprep.subr.bf16.mxu0 %v4674
        %4802 = vmatpush1.bf16.msra.mxu0 %v4673
        %4803 = vmatprep.subr.bf16.mxu0 %v4676
        %4804 = vmatpush1.bf16.msra.mxu0 %v4675
        %4805 = vmatprep.subr.bf16.mxu0 %v4678
        %4806 = vmatpush1.bf16.msra.mxu0 %v4677
        %4807 = vmatprep.subr.bf16.mxu0 %v4680
        %4808 = vmatpush1.bf16.msra.mxu0 %v4679
        %4809 = vmatprep.subr.bf16.mxu0 %v4682
        %4810 = vmatpush1.bf16.msra.mxu0 %v4681
        %4811 = vmatprep.subr.bf16.mxu0 %v4684
        %4812 = vmatpush1.bf16.msra.mxu0 %v4683
        %4813 = vmatprep.subr.bf16.mxu0 %v4686
        %4814 = vmatpush1.bf16.msra.mxu0 %v4685
        %4815 = vmatprep.subr.bf16.mxu0 %v4688
        %4816 = vmatpush1.bf16.msra.mxu0 %v4687
        %4817 = vmatprep.subr.bf16.mxu0 %v4690
        %4818 = vmatpush1.bf16.msra.mxu0 %v4689
        %4819 = vmatprep.subr.bf16.mxu0 %v4692
        %4820 = vmatpush1.bf16.msra.mxu0 %v4691
        %4821 = vmatprep.subr.bf16.mxu0 %v4694
        %4822 = vmatpush1.bf16.msra.mxu0 %v4693
        %4823 = vmatprep.subr.bf16.mxu0 %v4696
        %4824 = vmatpush1.bf16.msra.mxu0 %v4695
        %4825 = vmatprep.subr.bf16.mxu0 %v4698
        %4826 = vmatpush1.bf16.msra.mxu0 %v4697
        %4827 = vmatprep.subr.bf16.mxu0 %v4700
        %4828 = vmatpush1.bf16.msra.mxu0 %v4699
        %4829 = vmatprep.subr.bf16.mxu0 %v4702
        %4830 = vmatpush1.bf16.msra.mxu0 %v4701
        %4831 = vmatprep.mubr.bf16.mxu0 %v4352
        %4832 = vmatmul.mubr.bf16.gmra.mrb[0].mxu0 %v4351
        %v4833 = vpop.f32.mrb[0].mxu0
        %v4834 = vadd.f32 %v4152, %v4833
        %v4835 = vpop.f32.mrb[0].mxu0
        %v4836 = vadd.f32 %v4156, %v4835
        %v4837 = vpop.f32.mrb[0].mxu0
        %v4838 = vadd.f32 %v4152, %v4837
        %v4839 = vpop.f32.mrb[0].mxu0
        %v4840 = vadd.f32 %v4156, %v4839
        %4841 = vmatprep.mubr.bf16.mxu0 %v4356
        %4842 = vmatmul.mubr.bf16.gmra.mrb[0].mxu0 %v4355
        %v4843 = vpop.f32.mrb[0].mxu0
        %v4844 = vadd.f32 %v4152, %v4843
        %v4845 = vpop.f32.mrb[0].mxu0
        %v4846 = vadd.f32 %v4156, %v4845
        %v4847 = vpop.f32.mrb[0].mxu0
        %v4848 = vadd.f32 %v4152, %v4847
        %v4849 = vpop.f32.mrb[0].mxu0
        %v4850 = vadd.f32 %v4156, %v4849
        %4851 = vmatprep.mubr.bf16.mxu0 %v4360
        %4852 = vmatmul.mubr.bf16.gmra.mrb[0].mxu0 %v4359
        %v4853 = vpop.f32.mrb[0].mxu0
        %v4854 = vadd.f32 %v4152, %v4853
        %v4855 = vpop.f32.mrb[0].mxu0
        %v4856 = vadd.f32 %v4156, %v4855
        %v4857 = vpop.f32.mrb[0].mxu0
        %v4858 = vadd.f32 %v4152, %v4857
        %v4859 = vpop.f32.mrb[0].mxu0
        %v4860 = vadd.f32 %v4156, %v4859
        %4861 = vmatprep.mubr.bf16.mxu0 %v4364
        %4862 = vmatmul.mubr.bf16.gmra.mrb[0].mxu0 %v4363
        %v4863 = vpop.f32.mrb[0].mxu0
        %v4864 = vadd.f32 %v4152, %v4863
        %v4865 = vpop.f32.mrb[0].mxu0
        %v4866 = vadd.f32 %v4156, %v4865
        %v4867 = vpop.f32.mrb[0].mxu0
        %v4868 = vadd.f32 %v4152, %v4867
        %v4869 = vpop.f32.mrb[0].mxu0
        %v4870 = vadd.f32 %v4156, %v4869
        %4871 = vmatprep.mubr.bf16.mxu0 %v4368
        %4872 = vmatmul.mubr.bf16.gmra.mrb[0].mxu0 %v4367
        %v4873 = vpop.f32.mrb[0].mxu0
        %v4874 = vadd.f32 %v4152, %v4873
        %v4875 = vpop.f32.mrb[0].mxu0
        %v4876 = vadd.f32 %v4156, %v4875
        %v4877 = vpop.f32.mrb[0].mxu0
        %v4878 = vadd.f32 %v4152, %v4877
        %v4879 = vpop.f32.mrb[0].mxu0
        %v4880 = vadd.f32 %v4156, %v4879
        %4881 = vmatprep.mubr.bf16.mxu0 %v4372
        %4882 = vmatmul.mubr.bf16.gmra.mrb[0].mxu0 %v4371
        %v4883 = vpop.f32.mrb[0].mxu0
        %v4884 = vadd.f32 %v4152, %v4883
        %v4885 = vpop.f32.mrb[0].mxu0
        %v4886 = vadd.f32 %v4156, %v4885
        %v4887 = vpop.f32.mrb[0].mxu0
        %v4888 = vadd.f32 %v4152, %v4887
        %v4889 = vpop.f32.mrb[0].mxu0
        %v4890 = vadd.f32 %v4156, %v4889
        %4891 = vmatprep.mubr.bf16.mxu0 %v4376
        %4892 = vmatmul.mubr.bf16.gmra.mrb[0].mxu0 %v4375
        %v4893 = vpop.f32.mrb[0].mxu0
        %v4894 = vadd.f32 %v4152, %v4893
        %v4895 = vpop.f32.mrb[0].mxu0
        %v4896 = vadd.f32 %v4156, %v4895
        %v4897 = vpop.f32.mrb[0].mxu0
        %v4898 = vadd.f32 %v4152, %v4897
        %v4899 = vpop.f32.mrb[0].mxu0
        %v4900 = vadd.f32 %v4156, %v4899
        %4901 = vmatprep.mubr.bf16.mxu0 %v4380
        %4902 = vmatmul.mubr.bf16.gmra.mrb[0].mxu0 %v4379
        %v4903 = vpop.f32.mrb[0].mxu0
        %v4904 = vadd.f32 %v4152, %v4903
        %v4905 = vpop.f32.mrb[0].mxu0
        %v4906 = vadd.f32 %v4156, %v4905
        %v4907 = vpop.f32.mrb[0].mxu0
        %v4908 = vadd.f32 %v4152, %v4907
        %v4909 = vpop.f32.mrb[0].mxu0
        %v4910 = vadd.f32 %v4156, %v4909
        %4911 = vmatprep.mubr.bf16.mxu0 %v4384
        %4912 = vmatmul.mubr.bf16.gmra.mrb[0].mxu0 %v4383
        %v4913 = vpop.f32.mrb[0].mxu0
        %v4914 = vadd.f32 %v4152, %v4913
        %v4915 = vpop.f32.mrb[0].mxu0
        %v4916 = vadd.f32 %v4156, %v4915
        %v4917 = vpop.f32.mrb[0].mxu0
        %v4918 = vadd.f32 %v4152, %v4917
        %v4919 = vpop.f32.mrb[0].mxu0
        %v4920 = vadd.f32 %v4156, %v4919
        %4921 = vmatprep.mubr.bf16.mxu0 %v4388
        %4922 = vmatmul.mubr.bf16.gmra.mrb[0].mxu0 %v4387
        %v4923 = vpop.f32.mrb[0].mxu0
        %v4924 = vadd.f32 %v4152, %v4923
        %v4925 = vpop.f32.mrb[0].mxu0
        %v4926 = vadd.f32 %v4156, %v4925
        %v4927 = vpop.f32.mrb[0].mxu0
        %v4928 = vadd.f32 %v4152, %v4927
        %v4929 = vpop.f32.mrb[0].mxu0
        %v4930 = vadd.f32 %v4156, %v4929
        %4931 = vmatprep.mubr.bf16.mxu0 %v4392
        %4932 = vmatmul.mubr.bf16.gmra.mrb[0].mxu0 %v4391
        %v4933 = vpop.f32.mrb[0].mxu0
        %v4934 = vadd.f32 %v4152, %v4933
        %v4935 = vpop.f32.mrb[0].mxu0
        %v4936 = vadd.f32 %v4156, %v4935
        %v4937 = vpop.f32.mrb[0].mxu0
        %v4938 = vadd.f32 %v4152, %v4937
        %v4939 = vpop.f32.mrb[0].mxu0
        %v4940 = vadd.f32 %v4156, %v4939
        %4941 = vmatprep.mubr.bf16.mxu0 %v4396
        %4942 = vmatmul.mubr.bf16.gmra.mrb[0].mxu0 %v4395
        %v4943 = vpop.f32.mrb[0].mxu0
        %v4944 = vadd.f32 %v4152, %v4943
        %v4945 = vpop.f32.mrb[0].mxu0
        %v4946 = vadd.f32 %v4156, %v4945
        %v4947 = vpop.f32.mrb[0].mxu0
        %v4948 = vadd.f32 %v4152, %v4947
        %v4949 = vpop.f32.mrb[0].mxu0
        %v4950 = vadd.f32 %v4156, %v4949
        %4951 = vmatprep.mubr.bf16.mxu0 %v4400
        %4952 = vmatmul.mubr.bf16.gmra.mrb[0].mxu0 %v4399
        %v4953 = vpop.f32.mrb[0].mxu0
        %v4954 = vadd.f32 %v4152, %v4953
        %v4955 = vpop.f32.mrb[0].mxu0
        %v4956 = vadd.f32 %v4156, %v4955
        %v4957 = vpop.f32.mrb[0].mxu0
        %v4958 = vadd.f32 %v4152, %v4957
        %v4959 = vpop.f32.mrb[0].mxu0
        %v4960 = vadd.f32 %v4156, %v4959
        %4961 = vmatprep.mubr.bf16.mxu0 %v4404
        %4962 = vmatmul.mubr.bf16.gmra.mrb[0].mxu0 %v4403
        %v4963 = vpop.f32.mrb[0].mxu0
        %v4964 = vadd.f32 %v4152, %v4963
        %v4965 = vpop.f32.mrb[0].mxu0
        %v4966 = vadd.f32 %v4156, %v4965
        %v4967 = vpop.f32.mrb[0].mxu0
        %v4968 = vadd.f32 %v4152, %v4967
        %v4969 = vpop.f32.mrb[0].mxu0
        %v4970 = vadd.f32 %v4156, %v4969
        %4971 = vmatprep.mubr.bf16.mxu0 %v4408
        %4972 = vmatmul.mubr.bf16.gmra.mrb[0].mxu0 %v4407
        %v4973 = vpop.f32.mrb[0].mxu0
        %v4974 = vadd.f32 %v4152, %v4973
        %v4975 = vpop.f32.mrb[0].mxu0
        %v4976 = vadd.f32 %v4156, %v4975
        %v4977 = vpop.f32.mrb[0].mxu0
        %v4978 = vadd.f32 %v4152, %v4977
        %v4979 = vpop.f32.mrb[0].mxu0
        %v4980 = vadd.f32 %v4156, %v4979
        %4981 = vmatprep.mubr.bf16.mxu0 %v4412
        %4982 = vmatmul.mubr.bf16.gmra.mrb[0].mxu0 %v4411
        %v4983 = vpop.f32.mrb[0].mxu0
        %v4984 = vadd.f32 %v4152, %v4983
        %v4985 = vpop.f32.mrb[0].mxu0
        %v4986 = vadd.f32 %v4156, %v4985
        %v4987 = vpop.f32.mrb[0].mxu0
        %v4988 = vadd.f32 %v4152, %v4987
        %v4989 = vpop.f32.mrb[0].mxu0
        %v4990 = vadd.f32 %v4156, %v4989
        %4991 = vdwg.mxu0
        %4992 = vmatprep.subr.bf16.mxu0 %v4704
        %4993 = vmatpush1.bf16.msra.mxu0 %v4703
        %4994 = vmatprep.subr.bf16.mxu0 %v4706
        %4995 = vmatpush1.bf16.msra.mxu0 %v4705
        %4996 = vmatprep.subr.bf16.mxu0 %v4708
        %4997 = vmatpush1.bf16.msra.mxu0 %v4707
        %4998 = vmatprep.subr.bf16.mxu0 %v4710
        %4999 = vmatpush1.bf16.msra.mxu0 %v4709
        %5000 = vmatprep.subr.bf16.mxu0 %v4712
        %5001 = vmatpush1.bf16.msra.mxu0 %v4711
        %5002 = vmatprep.subr.bf16.mxu0 %v4714
        %5003 = vmatpush1.bf16.msra.mxu0 %v4713
        %5004 = vmatprep.subr.bf16.mxu0 %v4716
        %5005 = vmatpush1.bf16.msra.mxu0 %v4715
        %5006 = vmatprep.subr.bf16.mxu0 %v4718
        %5007 = vmatpush1.bf16.msra.mxu0 %v4717
        %5008 = vmatprep.subr.bf16.mxu0 %v4720
        %5009 = vmatpush1.bf16.msra.mxu0 %v4719
        %5010 = vmatprep.subr.bf16.mxu0 %v4722
        %5011 = vmatpush1.bf16.msra.mxu0 %v4721
        %5012 = vmatprep.subr.bf16.mxu0 %v4724
        %5013 = vmatpush1.bf16.msra.mxu0 %v4723
        %5014 = vmatprep.subr.bf16.mxu0 %v4726
        %5015 = vmatpush1.bf16.msra.mxu0 %v4725
        %5016 = vmatprep.subr.bf16.mxu0 %v4728
        %5017 = vmatpush1.bf16.msra.mxu0 %v4727
        %5018 = vmatprep.subr.bf16.mxu0 %v4730
        %5019 = vmatpush1.bf16.msra.mxu0 %v4729
        %5020 = vmatprep.subr.bf16.mxu0 %v4732
        %5021 = vmatpush1.bf16.msra.mxu0 %v4731
        %5022 = vmatprep.subr.bf16.mxu0 %v4734
        %5023 = vmatpush1.bf16.msra.mxu0 %v4733
        %5024 = vmatprep.mubr.bf16.mxu0 %v4354
        %5025 = vmatmul.mubr.bf16.gmra.mrb[0].mxu0 %v4353
        %v5026 = vpop.f32.mrb[0].mxu0
        %v5027 = vadd.f32 %v4834, %v5026
        %v5028 = vpop.f32.mrb[0].mxu0
        %v5029 = vadd.f32 %v4836, %v5028
        %v5030 = vpop.f32.mrb[0].mxu0
        %v5031 = vadd.f32 %v4838, %v5030
        %v5032 = vpop.f32.mrb[0].mxu0
        %v5033 = vadd.f32 %v4840, %v5032
        %5034 = vmatprep.mubr.bf16.mxu0 %v4358
        %5035 = vmatmul.mubr.bf16.gmra.mrb[0].mxu0 %v4357
        %v5036 = vpop.f32.mrb[0].mxu0
        %v5037 = vadd.f32 %v4844, %v5036
        %v5038 = vpop.f32.mrb[0].mxu0
        %v5039 = vadd.f32 %v4846, %v5038
        %v5040 = vpop.f32.mrb[0].mxu0
        %v5041 = vadd.f32 %v4848, %v5040
        %v5042 = vpop.f32.mrb[0].mxu0
        %v5043 = vadd.f32 %v4850, %v5042
        %5044 = vmatprep.mubr.bf16.mxu0 %v4362
        %5045 = vmatmul.mubr.bf16.gmra.mrb[0].mxu0 %v4361
        %v5046 = vpop.f32.mrb[0].mxu0
        %v5047 = vadd.f32 %v4854, %v5046
        %v5048 = vpop.f32.mrb[0].mxu0
        %v5049 = vadd.f32 %v4856, %v5048
        %v5050 = vpop.f32.mrb[0].mxu0
        %v5051 = vadd.f32 %v4858, %v5050
        %v5052 = vpop.f32.mrb[0].mxu0
        %v5053 = vadd.f32 %v4860, %v5052
        %5054 = vmatprep.mubr.bf16.mxu0 %v4366
        %5055 = vmatmul.mubr.bf16.gmra.mrb[0].mxu0 %v4365
        %v5056 = vpop.f32.mrb[0].mxu0
        %v5057 = vadd.f32 %v4864, %v5056
        %v5058 = vpop.f32.mrb[0].mxu0
        %v5059 = vadd.f32 %v4866, %v5058
        %v5060 = vpop.f32.mrb[0].mxu0
        %v5061 = vadd.f32 %v4868, %v5060
        %v5062 = vpop.f32.mrb[0].mxu0
        %v5063 = vadd.f32 %v4870, %v5062
        %5064 = vmatprep.mubr.bf16.mxu0 %v4370
        %5065 = vmatmul.mubr.bf16.gmra.mrb[0].mxu0 %v4369
        %v5066 = vpop.f32.mrb[0].mxu0
        %v5067 = vadd.f32 %v4874, %v5066
        %v5068 = vpop.f32.mrb[0].mxu0
        %v5069 = vadd.f32 %v4876, %v5068
        %v5070 = vpop.f32.mrb[0].mxu0
        %v5071 = vadd.f32 %v4878, %v5070
        %v5072 = vpop.f32.mrb[0].mxu0
        %v5073 = vadd.f32 %v4880, %v5072
        %5074 = vmatprep.mubr.bf16.mxu0 %v4374
        %5075 = vmatmul.mubr.bf16.gmra.mrb[0].mxu0 %v4373
        %v5076 = vpop.f32.mrb[0].mxu0
        %v5077 = vadd.f32 %v4884, %v5076
        %v5078 = vpop.f32.mrb[0].mxu0
        %v5079 = vadd.f32 %v4886, %v5078
        %v5080 = vpop.f32.mrb[0].mxu0
        %v5081 = vadd.f32 %v4888, %v5080
        %v5082 = vpop.f32.mrb[0].mxu0
        %v5083 = vadd.f32 %v4890, %v5082
        %5084 = vmatprep.mubr.bf16.mxu0 %v4378
        %5085 = vmatmul.mubr.bf16.gmra.mrb[0].mxu0 %v4377
        %v5086 = vpop.f32.mrb[0].mxu0
        %v5087 = vadd.f32 %v4894, %v5086
        %v5088 = vpop.f32.mrb[0].mxu0
        %v5089 = vadd.f32 %v4896, %v5088
        %v5090 = vpop.f32.mrb[0].mxu0
        %v5091 = vadd.f32 %v4898, %v5090
        %v5092 = vpop.f32.mrb[0].mxu0
        %v5093 = vadd.f32 %v4900, %v5092
        %5094 = vmatprep.mubr.bf16.mxu0 %v4382
        %5095 = vmatmul.mubr.bf16.gmra.mrb[0].mxu0 %v4381
        %v5096 = vpop.f32.mrb[0].mxu0
        %v5097 = vadd.f32 %v4904, %v5096
        %v5098 = vpop.f32.mrb[0].mxu0
        %v5099 = vadd.f32 %v4906, %v5098
        %v5100 = vpop.f32.mrb[0].mxu0
        %v5101 = vadd.f32 %v4908, %v5100
        %v5102 = vpop.f32.mrb[0].mxu0
        %v5103 = vadd.f32 %v4910, %v5102
        %5104 = vmatprep.mubr.bf16.mxu0 %v4386
        %5105 = vmatmul.mubr.bf16.gmra.mrb[0].mxu0 %v4385
        %v5106 = vpop.f32.mrb[0].mxu0
        %v5107 = vadd.f32 %v4914, %v5106
        %v5108 = vpop.f32.mrb[0].mxu0
        %v5109 = vadd.f32 %v4916, %v5108
        %v5110 = vpop.f32.mrb[0].mxu0
        %v5111 = vadd.f32 %v4918, %v5110
        %v5112 = vpop.f32.mrb[0].mxu0
        %v5113 = vadd.f32 %v4920, %v5112
        %5114 = vmatprep.mubr.bf16.mxu0 %v4390
        %5115 = vmatmul.mubr.bf16.gmra.mrb[0].mxu0 %v4389
        %v5116 = vpop.f32.mrb[0].mxu0
        %v5117 = vadd.f32 %v4924, %v5116
        %v5118 = vpop.f32.mrb[0].mxu0
        %v5119 = vadd.f32 %v4926, %v5118
        %v5120 = vpop.f32.mrb[0].mxu0
        %v5121 = vadd.f32 %v4928, %v5120
        %v5122 = vpop.f32.mrb[0].mxu0
        %v5123 = vadd.f32 %v4930, %v5122
        %5124 = vmatprep.mubr.bf16.mxu0 %v4394
        %5125 = vmatmul.mubr.bf16.gmra.mrb[0].mxu0 %v4393
        %v5126 = vpop.f32.mrb[0].mxu0
        %v5127 = vadd.f32 %v4934, %v5126
        %v5128 = vpop.f32.mrb[0].mxu0
        %v5129 = vadd.f32 %v4936, %v5128
        %v5130 = vpop.f32.mrb[0].mxu0
        %v5131 = vadd.f32 %v4938, %v5130
        %v5132 = vpop.f32.mrb[0].mxu0
        %v5133 = vadd.f32 %v4940, %v5132
        %5134 = vmatprep.mubr.bf16.mxu0 %v4398
        %5135 = vmatmul.mubr.bf16.gmra.mrb[0].mxu0 %v4397
        %v5136 = vpop.f32.mrb[0].mxu0
        %v5137 = vadd.f32 %v4944, %v5136
        %v5138 = vpop.f32.mrb[0].mxu0
        %v5139 = vadd.f32 %v4946, %v5138
        %v5140 = vpop.f32.mrb[0].mxu0
        %v5141 = vadd.f32 %v4948, %v5140
        %v5142 = vpop.f32.mrb[0].mxu0
        %v5143 = vadd.f32 %v4950, %v5142
        %5144 = vmatprep.mubr.bf16.mxu0 %v4402
        %5145 = vmatmul.mubr.bf16.gmra.mrb[0].mxu0 %v4401
        %v5146 = vpop.f32.mrb[0].mxu0
        %v5147 = vadd.f32 %v4954, %v5146
        %v5148 = vpop.f32.mrb[0].mxu0
        %v5149 = vadd.f32 %v4956, %v5148
        %v5150 = vpop.f32.mrb[0].mxu0
        %v5151 = vadd.f32 %v4958, %v5150
        %v5152 = vpop.f32.mrb[0].mxu0
        %v5153 = vadd.f32 %v4960, %v5152
        %5154 = vmatprep.mubr.bf16.mxu0 %v4406
        %5155 = vmatmul.mubr.bf16.gmra.mrb[0].mxu0 %v4405
        %v5156 = vpop.f32.mrb[0].mxu0
        %v5157 = vadd.f32 %v4964, %v5156
        %v5158 = vpop.f32.mrb[0].mxu0
        %v5159 = vadd.f32 %v4966, %v5158
        %v5160 = vpop.f32.mrb[0].mxu0
        %v5161 = vadd.f32 %v4968, %v5160
        %v5162 = vpop.f32.mrb[0].mxu0
        %v5163 = vadd.f32 %v4970, %v5162
        %5164 = vmatprep.mubr.bf16.mxu0 %v4410
        %5165 = vmatmul.mubr.bf16.gmra.mrb[0].mxu0 %v4409
        %v5166 = vpop.f32.mrb[0].mxu0
        %v5167 = vadd.f32 %v4974, %v5166
        %v5168 = vpop.f32.mrb[0].mxu0
        %v5169 = vadd.f32 %v4976, %v5168
        %v5170 = vpop.f32.mrb[0].mxu0
        %v5171 = vadd.f32 %v4978, %v5170
        %v5172 = vpop.f32.mrb[0].mxu0
        %v5173 = vadd.f32 %v4980, %v5172
        %5174 = vmatprep.mubr.bf16.mxu0 %v4414
        %5175 = vmatmul.mubr.bf16.gmra.mrb[0].mxu0 %v4413
        %v5176 = vpop.f32.mrb[0].mxu0
        %v5177 = vadd.f32 %v4984, %v5176
        %v5178 = vpop.f32.mrb[0].mxu0
        %v5179 = vadd.f32 %v4986, %v5178
        %v5180 = vpop.f32.mrb[0].mxu0
        %v5181 = vadd.f32 %v4988, %v5180
        %v5182 = vpop.f32.mrb[0].mxu0
        %v5183 = vadd.f32 %v4990, %v5182
        %5184 = vdwg.mxu0
        %v5185 = vld [vmem:[%s11] sm:$0xf]
        %v5186 = vld [vmem:[%s11 + $0x4] sm:$0xf]
        %v5187 = vld [vmem:[%s11 + $0x8] sm:$0xf]
        %v5188 = vld [vmem:[%s11 + $0xc] sm:$0xf]
        %v5189 = vld [vmem:[%s11 + $0x10] sm:$0xf]
        %v5190 = vld [vmem:[%s11 + $0x14] sm:$0xf]
        %v5191 = vld [vmem:[%s11 + $0x18] sm:$0xf]
        %v5192 = vld [vmem:[%s11 + $0x1c] sm:$0xf]
        %v5193 = vld [vmem:[%s11 + $0x20] sm:$0xf]
        %v5194 = vld [vmem:[%s11 + $0x24] sm:$0xf]
        %v5195 = vld [vmem:[%s11 + $0x28] sm:$0xf]
        %v5196 = vld [vmem:[%s11 + $0x2c] sm:$0xf]
        %v5197 = vld [vmem:[%s11 + $0x30] sm:$0xf]
        %v5198 = vld [vmem:[%s11 + $0x34] sm:$0xf]
        %v5199 = vld [vmem:[%s11 + $0x38] sm:$0xf]
        %v5200 = vld [vmem:[%s11 + $0x3c] sm:$0xf]
        %v5201 = vld [vmem:[%s11 + $0x40] sm:$0xf]
        %v5202 = vld [vmem:[%s11 + $0x44] sm:$0xf]
        %v5203 = vld [vmem:[%s11 + $0x48] sm:$0xf]
        %v5204 = vld [vmem:[%s11 + $0x4c] sm:$0xf]
        %v5205 = vld [vmem:[%s11 + $0x50] sm:$0xf]
        %v5206 = vld [vmem:[%s11 + $0x54] sm:$0xf]
        %v5207 = vld [vmem:[%s11 + $0x58] sm:$0xf]
        %v5208 = vld [vmem:[%s11 + $0x5c] sm:$0xf]
        %v5209 = vld [vmem:[%s11 + $0x60] sm:$0xf]
        %v5210 = vld [vmem:[%s11 + $0x64] sm:$0xf]
        %v5211 = vld [vmem:[%s11 + $0x68] sm:$0xf]
        %v5212 = vld [vmem:[%s11 + $0x6c] sm:$0xf]
        %v5213 = vld [vmem:[%s11 + $0x70] sm:$0xf]
        %v5214 = vld [vmem:[%s11 + $0x74] sm:$0xf]
        %v5215 = vld [vmem:[%s11 + $0x78] sm:$0xf]
        %v5216 = vld [vmem:[%s11 + $0x7c] sm:$0xf]
        %v5217 = vld [vmem:[%s577] sm:$0xff]
        %v5218 = vld [vmem:[%s577 + $0x8] sm:$0xff]
        %v5219 = vld [vmem:[%s577 + $0x10] sm:$0xff]
        %v5220 = vld [vmem:[%s577 + $0x18] sm:$0xff]
        %v5221 = vld [vmem:[%s577 + $0x20] sm:$0xff]
        %v5222 = vld [vmem:[%s577 + $0x28] sm:$0xff]
        %v5223 = vld [vmem:[%s577 + $0x30] sm:$0xff]
        %v5224 = vld [vmem:[%s577 + $0x38] sm:$0xff]
        %v5225 = vld [vmem:[%s577 + $0x40] sm:$0xff]
        %v5226 = vld [vmem:[%s577 + $0x48] sm:$0xff]
        %v5227 = vld [vmem:[%s577 + $0x50] sm:$0xff]
        %v5228 = vld [vmem:[%s577 + $0x58] sm:$0xff]
        %v5229 = vld [vmem:[%s577 + $0x60] sm:$0xff]
        %v5230 = vld [vmem:[%s577 + $0x68] sm:$0xff]
        %v5231 = vld [vmem:[%s577 + $0x70] sm:$0xff]
        %v5232 = vld [vmem:[%s577 + $0x78] sm:$0xff]
        %v5233 = vpack.c.bf16 %v5219, %v5217
        %v5234 = vpack.c.bf16 %v5220, %v5218
        %v5235 = vpack.c.bf16 %v5223, %v5221
        %v5236 = vpack.c.bf16 %v5224, %v5222
        %v5237 = vpack.c.bf16 %v5227, %v5225
        %v5238 = vpack.c.bf16 %v5228, %v5226
        %v5239 = vpack.c.bf16 %v5231, %v5229
        %v5240 = vpack.c.bf16 %v5232, %v5230
        %v5273 = vunpack.c.l.b16 %v5185
        %v5274 = vunpack.c.l.b16 %v5186
        %v5275 = vunpack.c.l.b16 %v5187
        %v5276 = vunpack.c.l.b16 %v5188
        %v5277 = vunpack.c.l.b16 %v5189
        %v5278 = vunpack.c.l.b16 %v5190
        %v5279 = vunpack.c.l.b16 %v5191
        %v5280 = vunpack.c.l.b16 %v5192
        %v5281 = vunpack.c.l.b16 %v5193
        %v5282 = vunpack.c.l.b16 %v5194
        %v5283 = vunpack.c.l.b16 %v5195
        %v5284 = vunpack.c.l.b16 %v5196
        %v5285 = vunpack.c.l.b16 %v5197
        %v5286 = vunpack.c.l.b16 %v5198
        %v5287 = vunpack.c.l.b16 %v5199
        %v5288 = vunpack.c.l.b16 %v5200
        %v5289 = vunpack.c.l.b16 %v5201
        %v5290 = vunpack.c.l.b16 %v5202
        %v5291 = vunpack.c.l.b16 %v5203
        %v5292 = vunpack.c.l.b16 %v5204
        %v5293 = vunpack.c.l.b16 %v5205
        %v5294 = vunpack.c.l.b16 %v5206
        %v5295 = vunpack.c.l.b16 %v5207
        %v5296 = vunpack.c.l.b16 %v5208
        %v5297 = vunpack.c.l.b16 %v5209
        %v5298 = vunpack.c.l.b16 %v5210
        %v5299 = vunpack.c.l.b16 %v5211
        %v5300 = vunpack.c.l.b16 %v5212
        %v5301 = vunpack.c.l.b16 %v5213
        %v5302 = vunpack.c.l.b16 %v5214
        %v5303 = vunpack.c.l.b16 %v5215
        %v5304 = vunpack.c.l.b16 %v5216
        %v5305 = vpack.c.b16 %v5274, %v5273
        %v5306 = vpack.c.b16 %v5276, %v5275
        %v5307 = vpack.c.b16 %v5278, %v5277
        %v5308 = vpack.c.b16 %v5280, %v5279
        %v5309 = vpack.c.b16 %v5282, %v5281
        %v5310 = vpack.c.b16 %v5284, %v5283
        %v5311 = vpack.c.b16 %v5286, %v5285
        %v5312 = vpack.c.b16 %v5288, %v5287
        %v5313 = vpack.c.b16 %v5290, %v5289
        %v5314 = vpack.c.b16 %v5292, %v5291
        %v5315 = vpack.c.b16 %v5294, %v5293
        %v5316 = vpack.c.b16 %v5296, %v5295
        %v5317 = vpack.c.b16 %v5298, %v5297
        %v5318 = vpack.c.b16 %v5300, %v5299
        %v5319 = vpack.c.b16 %v5302, %v5301
        %v5320 = vpack.c.b16 %v5304, %v5303
        %vm5321 = vcmask 523264
        %v5323 = vsel %vm5321, %v5305, 0
        %v5326 = vsel %vm5321, %v5306, 0
        %v5329 = vsel %vm5321, %v5307, 0
        %v5332 = vsel %vm5321, %v5308, 0
        %v5335 = vsel %vm5321, %v5309, 0
        %v5338 = vsel %vm5321, %v5310, 0
        %v5341 = vsel %vm5321, %v5311, 0
        %v5344 = vsel %vm5321, %v5312, 0
        %v5347 = vsel %vm5321, %v5313, 0
        %v5350 = vsel %vm5321, %v5314, 0
        %v5353 = vsel %vm5321, %v5315, 0
        %v5356 = vsel %vm5321, %v5316, 0
        %v5359 = vsel %vm5321, %v5317, 0
        %v5362 = vsel %vm5321, %v5318, 0
        %v5365 = vsel %vm5321, %v5319, 0
        %v5368 = vsel %vm5321, %v5320, 0
        %5370 = vmatprep.subr.bf16.mxu0 %v5234
        %5371 = vmatpush1.bf16.msra.mxu0 %v5233
        %5372 = vmatprep.subr.bf16.mxu0 %v5236
        %5373 = vmatpush1.bf16.msra.mxu0 %v5235
        %5374 = vmatprep.subr.bf16.mxu0 %v5238
        %5375 = vmatpush1.bf16.msra.mxu0 %v5237
        %5376 = vmatprep.subr.bf16.mxu0 %v5240
        %5377 = vmatpush1.bf16.msra.mxu0 %v5239
        %5378 = vmatprep.subr.bf16.mxu0 0
        %5379 = vmatpush1.bf16.msra.mxu0 0
        %5380 = vmatprep.subr.bf16.mxu0 0
        %5381 = vmatpush1.bf16.msra.mxu0 0
        %5382 = vmatprep.subr.bf16.mxu0 0
        %5383 = vmatpush1.bf16.msra.mxu0 0
        %5384 = vmatprep.subr.bf16.mxu0 0
        %5385 = vmatpush1.bf16.msra.mxu0 0
        %5386 = vmatprep.subr.bf16.mxu0 0
        %5387 = vmatpush1.bf16.msra.mxu0 0
        %5388 = vmatprep.subr.bf16.mxu0 0
        %5389 = vmatpush1.bf16.msra.mxu0 0
        %5390 = vmatprep.subr.bf16.mxu0 0
        %5391 = vmatpush1.bf16.msra.mxu0 0
        %5392 = vmatprep.subr.bf16.mxu0 0
        %5393 = vmatpush1.bf16.msra.mxu0 0
        %5394 = vmatprep.subr.bf16.mxu0 0
        %5395 = vmatpush1.bf16.msra.mxu0 0
        %5396 = vmatprep.subr.bf16.mxu0 0
        %5397 = vmatpush1.bf16.msra.mxu0 0
        %5398 = vmatprep.subr.bf16.mxu0 0
        %5399 = vmatpush1.bf16.msra.mxu0 0
        %5400 = vmatprep.subr.bf16.mxu0 0
        %5401 = vmatpush1.bf16.msra.mxu0 0
        %5402 = vmatprep.mubr.bf16.mxu0 0
        %5403 = vmatmul.mubr.bf16.gmra.mrb[0].mxu0 %v5323
        %v5404 = vpop.f32.mrb[0].mxu0
        %v5405 = vadd.f32 0.0, %v5404
        %v5406 = vpop.f32.mrb[0].mxu0
        %v5407 = vadd.f32 0.0, %v5406
        %v5408 = vpop.f32.mrb[0].mxu0
        %v5409 = vadd.f32 0.0, %v5408
        %v5410 = vpop.f32.mrb[0].mxu0
        %v5411 = vadd.f32 0.0, %v5410
        %5412 = vmatprep.mubr.bf16.mxu0 0
        %5413 = vmatmul.mubr.bf16.gmra.mrb[0].mxu0 %v5326
        %v5414 = vpop.f32.mrb[0].mxu0
        %v5415 = vadd.f32 0.0, %v5414
        %v5416 = vpop.f32.mrb[0].mxu0
        %v5417 = vadd.f32 0.0, %v5416
        %v5418 = vpop.f32.mrb[0].mxu0
        %v5419 = vadd.f32 0.0, %v5418
        %v5420 = vpop.f32.mrb[0].mxu0
        %v5421 = vadd.f32 0.0, %v5420
        %5422 = vmatprep.mubr.bf16.mxu0 0
        %5423 = vmatmul.mubr.bf16.gmra.mrb[0].mxu0 %v5329
        %v5424 = vpop.f32.mrb[0].mxu0
        %v5425 = vadd.f32 0.0, %v5424
        %v5426 = vpop.f32.mrb[0].mxu0
        %v5427 = vadd.f32 0.0, %v5426
        %v5428 = vpop.f32.mrb[0].mxu0
        %v5429 = vadd.f32 0.0, %v5428
        %v5430 = vpop.f32.mrb[0].mxu0
        %v5431 = vadd.f32 0.0, %v5430
        %5432 = vmatprep.mubr.bf16.mxu0 0
        %5433 = vmatmul.mubr.bf16.gmra.mrb[0].mxu0 %v5332
        %v5434 = vpop.f32.mrb[0].mxu0
        %v5435 = vadd.f32 0.0, %v5434
        %v5436 = vpop.f32.mrb[0].mxu0
        %v5437 = vadd.f32 0.0, %v5436
        %v5438 = vpop.f32.mrb[0].mxu0
        %v5439 = vadd.f32 0.0, %v5438
        %v5440 = vpop.f32.mrb[0].mxu0
        %v5441 = vadd.f32 0.0, %v5440
        %5442 = vmatprep.mubr.bf16.mxu0 0
        %5443 = vmatmul.mubr.bf16.gmra.mrb[0].mxu0 %v5335
        %v5444 = vpop.f32.mrb[0].mxu0
        %v5445 = vadd.f32 0.0, %v5444
        %v5446 = vpop.f32.mrb[0].mxu0
        %v5447 = vadd.f32 0.0, %v5446
        %v5448 = vpop.f32.mrb[0].mxu0
        %v5449 = vadd.f32 0.0, %v5448
        %v5450 = vpop.f32.mrb[0].mxu0
        %v5451 = vadd.f32 0.0, %v5450
        %5452 = vmatprep.mubr.bf16.mxu0 0
        %5453 = vmatmul.mubr.bf16.gmra.mrb[0].mxu0 %v5338
        %v5454 = vpop.f32.mrb[0].mxu0
        %v5455 = vadd.f32 0.0, %v5454
        %v5456 = vpop.f32.mrb[0].mxu0
        %v5457 = vadd.f32 0.0, %v5456
        %v5458 = vpop.f32.mrb[0].mxu0
        %v5459 = vadd.f32 0.0, %v5458
        %v5460 = vpop.f32.mrb[0].mxu0
        %v5461 = vadd.f32 0.0, %v5460
        %5462 = vmatprep.mubr.bf16.mxu0 0
        %5463 = vmatmul.mubr.bf16.gmra.mrb[0].mxu0 %v5341
        %v5464 = vpop.f32.mrb[0].mxu0
        %v5465 = vadd.f32 0.0, %v5464
        %v5466 = vpop.f32.mrb[0].mxu0
        %v5467 = vadd.f32 0.0, %v5466
        %v5468 = vpop.f32.mrb[0].mxu0
        %v5469 = vadd.f32 0.0, %v5468
        %v5470 = vpop.f32.mrb[0].mxu0
        %v5471 = vadd.f32 0.0, %v5470
        %5472 = vmatprep.mubr.bf16.mxu0 0
        %5473 = vmatmul.mubr.bf16.gmra.mrb[0].mxu0 %v5344
        %v5474 = vpop.f32.mrb[0].mxu0
        %v5475 = vadd.f32 0.0, %v5474
        %v5476 = vpop.f32.mrb[0].mxu0
        %v5477 = vadd.f32 0.0, %v5476
        %v5478 = vpop.f32.mrb[0].mxu0
        %v5479 = vadd.f32 0.0, %v5478
        %v5480 = vpop.f32.mrb[0].mxu0
        %v5481 = vadd.f32 0.0, %v5480
        %5482 = vmatprep.mubr.bf16.mxu0 0
        %5483 = vmatmul.mubr.bf16.gmra.mrb[0].mxu0 %v5347
        %v5484 = vpop.f32.mrb[0].mxu0
        %v5485 = vadd.f32 0.0, %v5484
        %v5486 = vpop.f32.mrb[0].mxu0
        %v5487 = vadd.f32 0.0, %v5486
        %v5488 = vpop.f32.mrb[0].mxu0
        %v5489 = vadd.f32 0.0, %v5488
        %v5490 = vpop.f32.mrb[0].mxu0
        %v5491 = vadd.f32 0.0, %v5490
        %5492 = vmatprep.mubr.bf16.mxu0 0
        %5493 = vmatmul.mubr.bf16.gmra.mrb[0].mxu0 %v5350
        %v5494 = vpop.f32.mrb[0].mxu0
        %v5495 = vadd.f32 0.0, %v5494
        %v5496 = vpop.f32.mrb[0].mxu0
        %v5497 = vadd.f32 0.0, %v5496
        %v5498 = vpop.f32.mrb[0].mxu0
        %v5499 = vadd.f32 0.0, %v5498
        %v5500 = vpop.f32.mrb[0].mxu0
        %v5501 = vadd.f32 0.0, %v5500
        %5502 = vmatprep.mubr.bf16.mxu0 0
        %5503 = vmatmul.mubr.bf16.gmra.mrb[0].mxu0 %v5353
        %v5504 = vpop.f32.mrb[0].mxu0
        %v5505 = vadd.f32 0.0, %v5504
        %v5506 = vpop.f32.mrb[0].mxu0
        %v5507 = vadd.f32 0.0, %v5506
        %v5508 = vpop.f32.mrb[0].mxu0
        %v5509 = vadd.f32 0.0, %v5508
        %v5510 = vpop.f32.mrb[0].mxu0
        %v5511 = vadd.f32 0.0, %v5510
        %5512 = vmatprep.mubr.bf16.mxu0 0
        %5513 = vmatmul.mubr.bf16.gmra.mrb[0].mxu0 %v5356
        %v5514 = vpop.f32.mrb[0].mxu0
        %v5515 = vadd.f32 0.0, %v5514
        %v5516 = vpop.f32.mrb[0].mxu0
        %v5517 = vadd.f32 0.0, %v5516
        %v5518 = vpop.f32.mrb[0].mxu0
        %v5519 = vadd.f32 0.0, %v5518
        %v5520 = vpop.f32.mrb[0].mxu0
        %v5521 = vadd.f32 0.0, %v5520
        %5522 = vmatprep.mubr.bf16.mxu0 0
        %5523 = vmatmul.mubr.bf16.gmra.mrb[0].mxu0 %v5359
        %v5524 = vpop.f32.mrb[0].mxu0
        %v5525 = vadd.f32 0.0, %v5524
        %v5526 = vpop.f32.mrb[0].mxu0
        %v5527 = vadd.f32 0.0, %v5526
        %v5528 = vpop.f32.mrb[0].mxu0
        %v5529 = vadd.f32 0.0, %v5528
        %v5530 = vpop.f32.mrb[0].mxu0
        %v5531 = vadd.f32 0.0, %v5530
        %5532 = vmatprep.mubr.bf16.mxu0 0
        %5533 = vmatmul.mubr.bf16.gmra.mrb[0].mxu0 %v5362
        %v5534 = vpop.f32.mrb[0].mxu0
        %v5535 = vadd.f32 0.0, %v5534
        %v5536 = vpop.f32.mrb[0].mxu0
        %v5537 = vadd.f32 0.0, %v5536
        %v5538 = vpop.f32.mrb[0].mxu0
        %v5539 = vadd.f32 0.0, %v5538
        %v5540 = vpop.f32.mrb[0].mxu0
        %v5541 = vadd.f32 0.0, %v5540
        %5542 = vmatprep.mubr.bf16.mxu0 0
        %5543 = vmatmul.mubr.bf16.gmra.mrb[0].mxu0 %v5365
        %v5544 = vpop.f32.mrb[0].mxu0
        %v5545 = vadd.f32 0.0, %v5544
        %v5546 = vpop.f32.mrb[0].mxu0
        %v5547 = vadd.f32 0.0, %v5546
        %v5548 = vpop.f32.mrb[0].mxu0
        %v5549 = vadd.f32 0.0, %v5548
        %v5550 = vpop.f32.mrb[0].mxu0
        %v5551 = vadd.f32 0.0, %v5550
        %5552 = vmatprep.mubr.bf16.mxu0 0
        %5553 = vmatmul.mubr.bf16.gmra.mrb[0].mxu0 %v5368
        %v5554 = vpop.f32.mrb[0].mxu0
        %v5555 = vadd.f32 0.0, %v5554
        %v5556 = vpop.f32.mrb[0].mxu0
        %v5557 = vadd.f32 0.0, %v5556
        %v5558 = vpop.f32.mrb[0].mxu0
        %v5559 = vadd.f32 0.0, %v5558
        %v5560 = vpop.f32.mrb[0].mxu0
        %v5561 = vadd.f32 0.0, %v5560
        %5562 = vdwg.mxu0
        %v5563 = vadd.f32 %v5027, %v5405
        %v5564 = vadd.f32 %v5029, %v5407
        %v5565 = vadd.f32 %v5031, %v5409
        %v5566 = vadd.f32 %v5033, %v5411
        %v5567 = vadd.f32 %v5037, %v5415
        %v5568 = vadd.f32 %v5039, %v5417
        %v5569 = vadd.f32 %v5041, %v5419
        %v5570 = vadd.f32 %v5043, %v5421
        %v5571 = vadd.f32 %v5047, %v5425
        %v5572 = vadd.f32 %v5049, %v5427
        %v5573 = vadd.f32 %v5051, %v5429
        %v5574 = vadd.f32 %v5053, %v5431
        %v5575 = vadd.f32 %v5057, %v5435
        %v5576 = vadd.f32 %v5059, %v5437
        %v5577 = vadd.f32 %v5061, %v5439
        %v5578 = vadd.f32 %v5063, %v5441
        %v5579 = vadd.f32 %v5067, %v5445
        %v5580 = vadd.f32 %v5069, %v5447
        %v5581 = vadd.f32 %v5071, %v5449
        %v5582 = vadd.f32 %v5073, %v5451
        %v5583 = vadd.f32 %v5077, %v5455
        %v5584 = vadd.f32 %v5079, %v5457
        %v5585 = vadd.f32 %v5081, %v5459
        %v5586 = vadd.f32 %v5083, %v5461
        %v5587 = vadd.f32 %v5087, %v5465
        %v5588 = vadd.f32 %v5089, %v5467
        %v5589 = vadd.f32 %v5091, %v5469
        %v5590 = vadd.f32 %v5093, %v5471
        %v5591 = vadd.f32 %v5097, %v5475
        %v5592 = vadd.f32 %v5099, %v5477
        %v5593 = vadd.f32 %v5101, %v5479
        %v5594 = vadd.f32 %v5103, %v5481
        %v5595 = vadd.f32 %v5107, %v5485
        %v5596 = vadd.f32 %v5109, %v5487
        %v5597 = vadd.f32 %v5111, %v5489
        %v5598 = vadd.f32 %v5113, %v5491
        %v5599 = vadd.f32 %v5117, %v5495
        %v5600 = vadd.f32 %v5119, %v5497
        %v5601 = vadd.f32 %v5121, %v5499
        %v5602 = vadd.f32 %v5123, %v5501
        %v5603 = vadd.f32 %v5127, %v5505
        %v5604 = vadd.f32 %v5129, %v5507
        %v5605 = vadd.f32 %v5131, %v5509
        %v5606 = vadd.f32 %v5133, %v5511
        %v5607 = vadd.f32 %v5137, %v5515
        %v5608 = vadd.f32 %v5139, %v5517
        %v5609 = vadd.f32 %v5141, %v5519
        %v5610 = vadd.f32 %v5143, %v5521
        %v5611 = vadd.f32 %v5147, %v5525
        %v5612 = vadd.f32 %v5149, %v5527
        %v5613 = vadd.f32 %v5151, %v5529
        %v5614 = vadd.f32 %v5153, %v5531
        %v5615 = vadd.f32 %v5157, %v5535
        %v5616 = vadd.f32 %v5159, %v5537
        %v5617 = vadd.f32 %v5161, %v5539
        %v5618 = vadd.f32 %v5163, %v5541
        %v5619 = vadd.f32 %v5167, %v5545
        %v5620 = vadd.f32 %v5169, %v5547
        %v5621 = vadd.f32 %v5171, %v5549
        %v5622 = vadd.f32 %v5173, %v5551
        %v5623 = vadd.f32 %v5177, %v5555
        %v5624 = vadd.f32 %v5179, %v5557
        %v5625 = vadd.f32 %v5181, %v5559
        %v5626 = vadd.f32 %v5183, %v5561
        %5627 = vst [vmem:[%s570] sm:$0xff] %v5563
        %5628 = vst [vmem:[%s570 + $0x8] sm:$0xff] %v5564
        %5629 = vst [vmem:[%s570 + $0x10] sm:$0xff] %v5565
        %5630 = vst [vmem:[%s570 + $0x18] sm:$0xff] %v5566
        %5631 = vst [vmem:[%s570 + $0x20] sm:$0xff] %v5567
        %5632 = vst [vmem:[%s570 + $0x28] sm:$0xff] %v5568
        %5633 = vst [vmem:[%s570 + $0x30] sm:$0xff] %v5569
        %5634 = vst [vmem:[%s570 + $0x38] sm:$0xff] %v5570
        %5635 = vst [vmem:[%s570 + $0x40] sm:$0xff] %v5571
        %5636 = vst [vmem:[%s570 + $0x48] sm:$0xff] %v5572
        %5637 = vst [vmem:[%s570 + $0x50] sm:$0xff] %v5573
        %5638 = vst [vmem:[%s570 + $0x58] sm:$0xff] %v5574
        %5639 = vst [vmem:[%s570 + $0x60] sm:$0xff] %v5575
        %5640 = vst [vmem:[%s570 + $0x68] sm:$0xff] %v5576
        %5641 = vst [vmem:[%s570 + $0x70] sm:$0xff] %v5577
        %5642 = vst [vmem:[%s570 + $0x78] sm:$0xff] %v5578
        %5643 = vst [vmem:[%s570 + $0x80] sm:$0xff] %v5579
        %5644 = vst [vmem:[%s570 + $0x88] sm:$0xff] %v5580
        %5645 = vst [vmem:[%s570 + $0x90] sm:$0xff] %v5581
        %5646 = vst [vmem:[%s570 + $0x98] sm:$0xff] %v5582
        %5647 = vst [vmem:[%s570 + $0xa0] sm:$0xff] %v5583
        %5648 = vst [vmem:[%s570 + $0xa8] sm:$0xff] %v5584
        %5649 = vst [vmem:[%s570 + $0xb0] sm:$0xff] %v5585
        %5650 = vst [vmem:[%s570 + $0xb8] sm:$0xff] %v5586
        %5651 = vst [vmem:[%s570 + $0xc0] sm:$0xff] %v5587
        %5652 = vst [vmem:[%s570 + $0xc8] sm:$0xff] %v5588
        %5653 = vst [vmem:[%s570 + $0xd0] sm:$0xff] %v5589
        %5654 = vst [vmem:[%s570 + $0xd8] sm:$0xff] %v5590
        %5655 = vst [vmem:[%s570 + $0xe0] sm:$0xff] %v5591
        %5656 = vst [vmem:[%s570 + $0xe8] sm:$0xff] %v5592
        %5657 = vst [vmem:[%s570 + $0xf0] sm:$0xff] %v5593
        %5658 = vst [vmem:[%s570 + $0xf8] sm:$0xff] %v5594
        %5659 = vst [vmem:[%s570 + $0x100] sm:$0xff] %v5595
        %5660 = vst [vmem:[%s570 + $0x108] sm:$0xff] %v5596
        %5661 = vst [vmem:[%s570 + $0x110] sm:$0xff] %v5597
        %5662 = vst [vmem:[%s570 + $0x118] sm:$0xff] %v5598
        %5663 = vst [vmem:[%s570 + $0x120] sm:$0xff] %v5599
        %5664 = vst [vmem:[%s570 + $0x128] sm:$0xff] %v5600
        %5665 = vst [vmem:[%s570 + $0x130] sm:$0xff] %v5601
        %5666 = vst [vmem:[%s570 + $0x138] sm:$0xff] %v5602
        %5667 = vst [vmem:[%s570 + $0x140] sm:$0xff] %v5603
        %5668 = vst [vmem:[%s570 + $0x148] sm:$0xff] %v5604
        %5669 = vst [vmem:[%s570 + $0x150] sm:$0xff] %v5605
        %5670 = vst [vmem:[%s570 + $0x158] sm:$0xff] %v5606
        %5671 = vst [vmem:[%s570 + $0x160] sm:$0xff] %v5607
        %5672 = vst [vmem:[%s570 + $0x168] sm:$0xff] %v5608
        %5673 = vst [vmem:[%s570 + $0x170] sm:$0xff] %v5609
        %5674 = vst [vmem:[%s570 + $0x178] sm:$0xff] %v5610
        %5675 = vst [vmem:[%s570 + $0x180] sm:$0xff] %v5611
        %5676 = vst [vmem:[%s570 + $0x188] sm:$0xff] %v5612
        %5677 = vst [vmem:[%s570 + $0x190] sm:$0xff] %v5613
        %5678 = vst [vmem:[%s570 + $0x198] sm:$0xff] %v5614
        %5679 = vst [vmem:[%s570 + $0x1a0] sm:$0xff] %v5615
        %5680 = vst [vmem:[%s570 + $0x1a8] sm:$0xff] %v5616
        %5681 = vst [vmem:[%s570 + $0x1b0] sm:$0xff] %v5617
        %5682 = vst [vmem:[%s570 + $0x1b8] sm:$0xff] %v5618
        %5683 = vst [vmem:[%s570 + $0x1c0] sm:$0xff] %v5619
        %5684 = vst [vmem:[%s570 + $0x1c8] sm:$0xff] %v5620
        %5685 = vst [vmem:[%s570 + $0x1d0] sm:$0xff] %v5621
        %5686 = vst [vmem:[%s570 + $0x1d8] sm:$0xff] %v5622
        %5687 = vst [vmem:[%s570 + $0x1e0] sm:$0xff] %v5623
        %5688 = vst [vmem:[%s570 + $0x1e8] sm:$0xff] %v5624
        %5689 = vst [vmem:[%s570 + $0x1f0] sm:$0xff] %v5625
        %5690 = vst [vmem:[%s570 + $0x1f8] sm:$0xff] %v5626
        %v5691 = vld [vmem:[%s589] sm:$0xff]
        %v5692 = vld [vmem:[%s589 + $0x8] sm:$0xff]
        %v5693 = vld [vmem:[%s589 + $0x10] sm:$0xff]
        %v5694 = vld [vmem:[%s589 + $0x18] sm:$0xff]
        %v5695 = vld [vmem:[%s589 + $0x20] sm:$0xff]
        %v5696 = vld [vmem:[%s589 + $0x28] sm:$0xff]
        %v5697 = vld [vmem:[%s589 + $0x30] sm:$0xff]
        %v5698 = vld [vmem:[%s589 + $0x38] sm:$0xff]
        %v5699 = vld [vmem:[%s589 + $0x40] sm:$0xff]
        %v5700 = vld [vmem:[%s589 + $0x48] sm:$0xff]
        %v5701 = vld [vmem:[%s589 + $0x50] sm:$0xff]
        %v5702 = vld [vmem:[%s589 + $0x58] sm:$0xff]
        %v5703 = vld [vmem:[%s589 + $0x60] sm:$0xff]
        %v5704 = vld [vmem:[%s589 + $0x68] sm:$0xff]
        %v5705 = vld [vmem:[%s589 + $0x70] sm:$0xff]
        %v5706 = vld [vmem:[%s589 + $0x78] sm:$0xff]
        %v5707 = vld [vmem:[%s589 + $0x80] sm:$0xff]
        %v5708 = vld [vmem:[%s589 + $0x88] sm:$0xff]
        %v5709 = vld [vmem:[%s589 + $0x90] sm:$0xff]
        %v5710 = vld [vmem:[%s589 + $0x98] sm:$0xff]
        %v5711 = vld [vmem:[%s589 + $0xa0] sm:$0xff]
        %v5712 = vld [vmem:[%s589 + $0xa8] sm:$0xff]
        %v5713 = vld [vmem:[%s589 + $0xb0] sm:$0xff]
        %v5714 = vld [vmem:[%s589 + $0xb8] sm:$0xff]
        %v5715 = vld [vmem:[%s589 + $0xc0] sm:$0xff]
        %v5716 = vld [vmem:[%s589 + $0xc8] sm:$0xff]
        %v5717 = vld [vmem:[%s589 + $0xd0] sm:$0xff]
        %v5718 = vld [vmem:[%s589 + $0xd8] sm:$0xff]
        %v5719 = vld [vmem:[%s589 + $0xe0] sm:$0xff]
        %v5720 = vld [vmem:[%s589 + $0xe8] sm:$0xff]
        %v5721 = vld [vmem:[%s589 + $0xf0] sm:$0xff]
        %v5722 = vld [vmem:[%s589 + $0xf8] sm:$0xff]
        %v5723 = vld [vmem:[%s589 + $0x100] sm:$0xff]
        %v5724 = vld [vmem:[%s589 + $0x108] sm:$0xff]
        %v5725 = vld [vmem:[%s589 + $0x110] sm:$0xff]
        %v5726 = vld [vmem:[%s589 + $0x118] sm:$0xff]
        %v5727 = vld [vmem:[%s589 + $0x120] sm:$0xff]
        %v5728 = vld [vmem:[%s589 + $0x128] sm:$0xff]
        %v5729 = vld [vmem:[%s589 + $0x130] sm:$0xff]
        %v5730 = vld [vmem:[%s589 + $0x138] sm:$0xff]
        %v5731 = vld [vmem:[%s589 + $0x140] sm:$0xff]
        %v5732 = vld [vmem:[%s589 + $0x148] sm:$0xff]
        %v5733 = vld [vmem:[%s589 + $0x150] sm:$0xff]
        %v5734 = vld [vmem:[%s589 + $0x158] sm:$0xff]
        %v5735 = vld [vmem:[%s589 + $0x160] sm:$0xff]
        %v5736 = vld [vmem:[%s589 + $0x168] sm:$0xff]
        %v5737 = vld [vmem:[%s589 + $0x170] sm:$0xff]
        %v5738 = vld [vmem:[%s589 + $0x178] sm:$0xff]
        %v5739 = vld [vmem:[%s589 + $0x180] sm:$0xff]
        %v5740 = vld [vmem:[%s589 + $0x188] sm:$0xff]
        %v5741 = vld [vmem:[%s589 + $0x190] sm:$0xff]
        %v5742 = vld [vmem:[%s589 + $0x198] sm:$0xff]
        %v5743 = vld [vmem:[%s589 + $0x1a0] sm:$0xff]
        %v5744 = vld [vmem:[%s589 + $0x1a8] sm:$0xff]
        %v5745 = vld [vmem:[%s589 + $0x1b0] sm:$0xff]
        %v5746 = vld [vmem:[%s589 + $0x1b8] sm:$0xff]
        %v5747 = vld [vmem:[%s589 + $0x1c0] sm:$0xff]
        %v5748 = vld [vmem:[%s589 + $0x1c8] sm:$0xff]
        %v5749 = vld [vmem:[%s589 + $0x1d0] sm:$0xff]
        %v5750 = vld [vmem:[%s589 + $0x1d8] sm:$0xff]
        %v5751 = vld [vmem:[%s589 + $0x1e0] sm:$0xff]
        %v5752 = vld [vmem:[%s589 + $0x1e8] sm:$0xff]
        %v5753 = vld [vmem:[%s589 + $0x1f0] sm:$0xff]
        %v5754 = vld [vmem:[%s589 + $0x1f8] sm:$0xff]
        %v5755 = vld [vmem:[%s589 + $0x200] sm:$0xff]
        %v5756 = vld [vmem:[%s589 + $0x208] sm:$0xff]
        %v5757 = vld [vmem:[%s589 + $0x210] sm:$0xff]
        %v5758 = vld [vmem:[%s589 + $0x218] sm:$0xff]
        %v5759 = vld [vmem:[%s589 + $0x220] sm:$0xff]
        %v5760 = vld [vmem:[%s589 + $0x228] sm:$0xff]
        %v5761 = vld [vmem:[%s589 + $0x230] sm:$0xff]
        %v5762 = vld [vmem:[%s589 + $0x238] sm:$0xff]
        %v5763 = vld [vmem:[%s589 + $0x240] sm:$0xff]
        %v5764 = vld [vmem:[%s589 + $0x248] sm:$0xff]
        %v5765 = vld [vmem:[%s589 + $0x250] sm:$0xff]
        %v5766 = vld [vmem:[%s589 + $0x258] sm:$0xff]
        %v5767 = vld [vmem:[%s589 + $0x260] sm:$0xff]
        %v5768 = vld [vmem:[%s589 + $0x268] sm:$0xff]
        %v5769 = vld [vmem:[%s589 + $0x270] sm:$0xff]
        %v5770 = vld [vmem:[%s589 + $0x278] sm:$0xff]
        %v5771 = vld [vmem:[%s589 + $0x280] sm:$0xff]
        %v5772 = vld [vmem:[%s589 + $0x288] sm:$0xff]
        %v5773 = vld [vmem:[%s589 + $0x290] sm:$0xff]
        %v5774 = vld [vmem:[%s589 + $0x298] sm:$0xff]
        %v5775 = vld [vmem:[%s589 + $0x2a0] sm:$0xff]
        %v5776 = vld [vmem:[%s589 + $0x2a8] sm:$0xff]
        %v5777 = vld [vmem:[%s589 + $0x2b0] sm:$0xff]
        %v5778 = vld [vmem:[%s589 + $0x2b8] sm:$0xff]
        %v5779 = vld [vmem:[%s589 + $0x2c0] sm:$0xff]
        %v5780 = vld [vmem:[%s589 + $0x2c8] sm:$0xff]
        %v5781 = vld [vmem:[%s589 + $0x2d0] sm:$0xff]
        %v5782 = vld [vmem:[%s589 + $0x2d8] sm:$0xff]
        %v5783 = vld [vmem:[%s589 + $0x2e0] sm:$0xff]
        %v5784 = vld [vmem:[%s589 + $0x2e8] sm:$0xff]
        %v5785 = vld [vmem:[%s589 + $0x2f0] sm:$0xff]
        %v5786 = vld [vmem:[%s589 + $0x2f8] sm:$0xff]
        %v5787 = vld [vmem:[%s589 + $0x300] sm:$0xff]
        %v5788 = vld [vmem:[%s589 + $0x308] sm:$0xff]
        %v5789 = vld [vmem:[%s589 + $0x310] sm:$0xff]
        %v5790 = vld [vmem:[%s589 + $0x318] sm:$0xff]
        %v5791 = vld [vmem:[%s589 + $0x320] sm:$0xff]
        %v5792 = vld [vmem:[%s589 + $0x328] sm:$0xff]
        %v5793 = vld [vmem:[%s589 + $0x330] sm:$0xff]
        %v5794 = vld [vmem:[%s589 + $0x338] sm:$0xff]
        %v5795 = vld [vmem:[%s589 + $0x340] sm:$0xff]
        %v5796 = vld [vmem:[%s589 + $0x348] sm:$0xff]
        %v5797 = vld [vmem:[%s589 + $0x350] sm:$0xff]
        %v5798 = vld [vmem:[%s589 + $0x358] sm:$0xff]
        %v5799 = vld [vmem:[%s589 + $0x360] sm:$0xff]
        %v5800 = vld [vmem:[%s589 + $0x368] sm:$0xff]
        %v5801 = vld [vmem:[%s589 + $0x370] sm:$0xff]
        %v5802 = vld [vmem:[%s589 + $0x378] sm:$0xff]
        %v5803 = vld [vmem:[%s589 + $0x380] sm:$0xff]
        %v5804 = vld [vmem:[%s589 + $0x388] sm:$0xff]
        %v5805 = vld [vmem:[%s589 + $0x390] sm:$0xff]
        %v5806 = vld [vmem:[%s589 + $0x398] sm:$0xff]
        %v5807 = vld [vmem:[%s589 + $0x3a0] sm:$0xff]
        %v5808 = vld [vmem:[%s589 + $0x3a8] sm:$0xff]
        %v5809 = vld [vmem:[%s589 + $0x3b0] sm:$0xff]
        %v5810 = vld [vmem:[%s589 + $0x3b8] sm:$0xff]
        %v5811 = vld [vmem:[%s589 + $0x3c0] sm:$0xff]
        %v5812 = vld [vmem:[%s589 + $0x3c8] sm:$0xff]
        %v5813 = vld [vmem:[%s589 + $0x3d0] sm:$0xff]
        %v5814 = vld [vmem:[%s589 + $0x3d8] sm:$0xff]
        %v5815 = vld [vmem:[%s589 + $0x3e0] sm:$0xff]
        %v5816 = vld [vmem:[%s589 + $0x3e8] sm:$0xff]
        %v5817 = vld [vmem:[%s589 + $0x3f0] sm:$0xff]
        %v5818 = vld [vmem:[%s589 + $0x3f8] sm:$0xff]
        %v5819 = vld [vmem:[%s589 + $0x400] sm:$0xff]
        %v5820 = vld [vmem:[%s589 + $0x408] sm:$0xff]
        %v5821 = vld [vmem:[%s589 + $0x410] sm:$0xff]
        %v5822 = vld [vmem:[%s589 + $0x418] sm:$0xff]
        %v5823 = vld [vmem:[%s589 + $0x420] sm:$0xff]
        %v5824 = vld [vmem:[%s589 + $0x428] sm:$0xff]
        %v5825 = vld [vmem:[%s589 + $0x430] sm:$0xff]
        %v5826 = vld [vmem:[%s589 + $0x438] sm:$0xff]
        %v5827 = vld [vmem:[%s589 + $0x440] sm:$0xff]
        %v5828 = vld [vmem:[%s589 + $0x448] sm:$0xff]
        %v5829 = vld [vmem:[%s589 + $0x450] sm:$0xff]
        %v5830 = vld [vmem:[%s589 + $0x458] sm:$0xff]
        %v5831 = vld [vmem:[%s589 + $0x460] sm:$0xff]
        %v5832 = vld [vmem:[%s589 + $0x468] sm:$0xff]
        %v5833 = vld [vmem:[%s589 + $0x470] sm:$0xff]
        %v5834 = vld [vmem:[%s589 + $0x478] sm:$0xff]
        %v5835 = vld [vmem:[%s589 + $0x480] sm:$0xff]
        %v5836 = vld [vmem:[%s589 + $0x488] sm:$0xff]
        %v5837 = vld [vmem:[%s589 + $0x490] sm:$0xff]
        %v5838 = vld [vmem:[%s589 + $0x498] sm:$0xff]
        %v5839 = vld [vmem:[%s589 + $0x4a0] sm:$0xff]
        %v5840 = vld [vmem:[%s589 + $0x4a8] sm:$0xff]
        %v5841 = vld [vmem:[%s589 + $0x4b0] sm:$0xff]
        %v5842 = vld [vmem:[%s589 + $0x4b8] sm:$0xff]
        %v5843 = vld [vmem:[%s589 + $0x4c0] sm:$0xff]
        %v5844 = vld [vmem:[%s589 + $0x4c8] sm:$0xff]
        %v5845 = vld [vmem:[%s589 + $0x4d0] sm:$0xff]
        %v5846 = vld [vmem:[%s589 + $0x4d8] sm:$0xff]
        %v5847 = vld [vmem:[%s589 + $0x4e0] sm:$0xff]
        %v5848 = vld [vmem:[%s589 + $0x4e8] sm:$0xff]
        %v5849 = vld [vmem:[%s589 + $0x4f0] sm:$0xff]
        %v5850 = vld [vmem:[%s589 + $0x4f8] sm:$0xff]
        %v5851 = vld [vmem:[%s589 + $0x500] sm:$0xff]
        %v5852 = vld [vmem:[%s589 + $0x508] sm:$0xff]
        %v5853 = vld [vmem:[%s589 + $0x510] sm:$0xff]
        %v5854 = vld [vmem:[%s589 + $0x518] sm:$0xff]
        %v5855 = vld [vmem:[%s589 + $0x520] sm:$0xff]
        %v5856 = vld [vmem:[%s589 + $0x528] sm:$0xff]
        %v5857 = vld [vmem:[%s589 + $0x530] sm:$0xff]
        %v5858 = vld [vmem:[%s589 + $0x538] sm:$0xff]
        %v5859 = vld [vmem:[%s589 + $0x540] sm:$0xff]
        %v5860 = vld [vmem:[%s589 + $0x548] sm:$0xff]
        %v5861 = vld [vmem:[%s589 + $0x550] sm:$0xff]
        %v5862 = vld [vmem:[%s589 + $0x558] sm:$0xff]
        %v5863 = vld [vmem:[%s589 + $0x560] sm:$0xff]
        %v5864 = vld [vmem:[%s589 + $0x568] sm:$0xff]
        %v5865 = vld [vmem:[%s589 + $0x570] sm:$0xff]
        %v5866 = vld [vmem:[%s589 + $0x578] sm:$0xff]
        %v5867 = vld [vmem:[%s589 + $0x580] sm:$0xff]
        %v5868 = vld [vmem:[%s589 + $0x588] sm:$0xff]
        %v5869 = vld [vmem:[%s589 + $0x590] sm:$0xff]
        %v5870 = vld [vmem:[%s589 + $0x598] sm:$0xff]
        %v5871 = vld [vmem:[%s589 + $0x5a0] sm:$0xff]
        %v5872 = vld [vmem:[%s589 + $0x5a8] sm:$0xff]
        %v5873 = vld [vmem:[%s589 + $0x5b0] sm:$0xff]
        %v5874 = vld [vmem:[%s589 + $0x5b8] sm:$0xff]
        %v5875 = vld [vmem:[%s589 + $0x5c0] sm:$0xff]
        %v5876 = vld [vmem:[%s589 + $0x5c8] sm:$0xff]
        %v5877 = vld [vmem:[%s589 + $0x5d0] sm:$0xff]
        %v5878 = vld [vmem:[%s589 + $0x5d8] sm:$0xff]
        %v5879 = vld [vmem:[%s589 + $0x5e0] sm:$0xff]
        %v5880 = vld [vmem:[%s589 + $0x5e8] sm:$0xff]
        %v5881 = vld [vmem:[%s589 + $0x5f0] sm:$0xff]
        %v5882 = vld [vmem:[%s589 + $0x5f8] sm:$0xff]
        %v5883 = vld [vmem:[%s589 + $0x600] sm:$0xff]
        %v5884 = vld [vmem:[%s589 + $0x608] sm:$0xff]
        %v5885 = vld [vmem:[%s589 + $0x610] sm:$0xff]
        %v5886 = vld [vmem:[%s589 + $0x618] sm:$0xff]
        %v5887 = vld [vmem:[%s589 + $0x620] sm:$0xff]
        %v5888 = vld [vmem:[%s589 + $0x628] sm:$0xff]
        %v5889 = vld [vmem:[%s589 + $0x630] sm:$0xff]
        %v5890 = vld [vmem:[%s589 + $0x638] sm:$0xff]
        %v5891 = vld [vmem:[%s589 + $0x640] sm:$0xff]
        %v5892 = vld [vmem:[%s589 + $0x648] sm:$0xff]
        %v5893 = vld [vmem:[%s589 + $0x650] sm:$0xff]
        %v5894 = vld [vmem:[%s589 + $0x658] sm:$0xff]
        %v5895 = vld [vmem:[%s589 + $0x660] sm:$0xff]
        %v5896 = vld [vmem:[%s589 + $0x668] sm:$0xff]
        %v5897 = vld [vmem:[%s589 + $0x670] sm:$0xff]
        %v5898 = vld [vmem:[%s589 + $0x678] sm:$0xff]
        %v5899 = vld [vmem:[%s589 + $0x680] sm:$0xff]
        %v5900 = vld [vmem:[%s589 + $0x688] sm:$0xff]
        %v5901 = vld [vmem:[%s589 + $0x690] sm:$0xff]
        %v5902 = vld [vmem:[%s589 + $0x698] sm:$0xff]
        %v5903 = vld [vmem:[%s589 + $0x6a0] sm:$0xff]
        %v5904 = vld [vmem:[%s589 + $0x6a8] sm:$0xff]
        %v5905 = vld [vmem:[%s589 + $0x6b0] sm:$0xff]
        %v5906 = vld [vmem:[%s589 + $0x6b8] sm:$0xff]
        %v5907 = vld [vmem:[%s589 + $0x6c0] sm:$0xff]
        %v5908 = vld [vmem:[%s589 + $0x6c8] sm:$0xff]
        %v5909 = vld [vmem:[%s589 + $0x6d0] sm:$0xff]
        %v5910 = vld [vmem:[%s589 + $0x6d8] sm:$0xff]
        %v5911 = vld [vmem:[%s589 + $0x6e0] sm:$0xff]
        %v5912 = vld [vmem:[%s589 + $0x6e8] sm:$0xff]
        %v5913 = vld [vmem:[%s589 + $0x6f0] sm:$0xff]
        %v5914 = vld [vmem:[%s589 + $0x6f8] sm:$0xff]
        %v5915 = vld [vmem:[%s589 + $0x700] sm:$0xff]
        %v5916 = vld [vmem:[%s589 + $0x708] sm:$0xff]
        %v5917 = vld [vmem:[%s589 + $0x710] sm:$0xff]
        %v5918 = vld [vmem:[%s589 + $0x718] sm:$0xff]
        %v5919 = vld [vmem:[%s589 + $0x720] sm:$0xff]
        %v5920 = vld [vmem:[%s589 + $0x728] sm:$0xff]
        %v5921 = vld [vmem:[%s589 + $0x730] sm:$0xff]
        %v5922 = vld [vmem:[%s589 + $0x738] sm:$0xff]
        %v5923 = vld [vmem:[%s589 + $0x740] sm:$0xff]
        %v5924 = vld [vmem:[%s589 + $0x748] sm:$0xff]
        %v5925 = vld [vmem:[%s589 + $0x750] sm:$0xff]
        %v5926 = vld [vmem:[%s589 + $0x758] sm:$0xff]
        %v5927 = vld [vmem:[%s589 + $0x760] sm:$0xff]
        %v5928 = vld [vmem:[%s589 + $0x768] sm:$0xff]
        %v5929 = vld [vmem:[%s589 + $0x770] sm:$0xff]
        %v5930 = vld [vmem:[%s589 + $0x778] sm:$0xff]
        %v5931 = vld [vmem:[%s589 + $0x780] sm:$0xff]
        %v5932 = vld [vmem:[%s589 + $0x788] sm:$0xff]
        %v5933 = vld [vmem:[%s589 + $0x790] sm:$0xff]
        %v5934 = vld [vmem:[%s589 + $0x798] sm:$0xff]
        %v5935 = vld [vmem:[%s589 + $0x7a0] sm:$0xff]
        %v5936 = vld [vmem:[%s589 + $0x7a8] sm:$0xff]
        %v5937 = vld [vmem:[%s589 + $0x7b0] sm:$0xff]
        %v5938 = vld [vmem:[%s589 + $0x7b8] sm:$0xff]
        %v5939 = vld [vmem:[%s589 + $0x7c0] sm:$0xff]
        %v5940 = vld [vmem:[%s589 + $0x7c8] sm:$0xff]
        %v5941 = vld [vmem:[%s589 + $0x7d0] sm:$0xff]
        %v5942 = vld [vmem:[%s589 + $0x7d8] sm:$0xff]
        %v5943 = vld [vmem:[%s589 + $0x7e0] sm:$0xff]
        %v5944 = vld [vmem:[%s589 + $0x7e8] sm:$0xff]
        %v5945 = vld [vmem:[%s589 + $0x7f0] sm:$0xff]
        %v5946 = vld [vmem:[%s589 + $0x7f8] sm:$0xff]
        %v5947 = vld [vmem:[%s8] sm:$0xff]
        %v5948 = vld [vmem:[%s8 + $0x8] sm:$0xff]
        %v5949 = vld [vmem:[%s8 + $0x10] sm:$0xff]
        %v5950 = vld [vmem:[%s8 + $0x18] sm:$0xff]
        %v5951 = vld [vmem:[%s8 + $0x20] sm:$0xff]
        %v5952 = vld [vmem:[%s8 + $0x28] sm:$0xff]
        %v5953 = vld [vmem:[%s8 + $0x30] sm:$0xff]
        %v5954 = vld [vmem:[%s8 + $0x38] sm:$0xff]
        %v5955 = vld [vmem:[%s8 + $0x40] sm:$0xff]
        %v5956 = vld [vmem:[%s8 + $0x48] sm:$0xff]
        %v5957 = vld [vmem:[%s8 + $0x50] sm:$0xff]
        %v5958 = vld [vmem:[%s8 + $0x58] sm:$0xff]
        %v5959 = vld [vmem:[%s8 + $0x60] sm:$0xff]
        %v5960 = vld [vmem:[%s8 + $0x68] sm:$0xff]
        %v5961 = vld [vmem:[%s8 + $0x70] sm:$0xff]
        %v5962 = vld [vmem:[%s8 + $0x78] sm:$0xff]
        %v5963 = vld [vmem:[%s8 + $0x80] sm:$0xff]
        %v5964 = vld [vmem:[%s8 + $0x88] sm:$0xff]
        %v5965 = vld [vmem:[%s8 + $0x90] sm:$0xff]
        %v5966 = vld [vmem:[%s8 + $0x98] sm:$0xff]
        %v5967 = vld [vmem:[%s8 + $0xa0] sm:$0xff]
        %v5968 = vld [vmem:[%s8 + $0xa8] sm:$0xff]
        %v5969 = vld [vmem:[%s8 + $0xb0] sm:$0xff]
        %v5970 = vld [vmem:[%s8 + $0xb8] sm:$0xff]
        %v5971 = vld [vmem:[%s8 + $0xc0] sm:$0xff]
        %v5972 = vld [vmem:[%s8 + $0xc8] sm:$0xff]
        %v5973 = vld [vmem:[%s8 + $0xd0] sm:$0xff]
        %v5974 = vld [vmem:[%s8 + $0xd8] sm:$0xff]
        %v5975 = vld [vmem:[%s8 + $0xe0] sm:$0xff]
        %v5976 = vld [vmem:[%s8 + $0xe8] sm:$0xff]
        %v5977 = vld [vmem:[%s8 + $0xf0] sm:$0xff]
        %v5978 = vld [vmem:[%s8 + $0xf8] sm:$0xff]
        %v5979 = vld [vmem:[%s8 + $0x100] sm:$0xff]
        %v5980 = vld [vmem:[%s8 + $0x108] sm:$0xff]
        %v5981 = vld [vmem:[%s8 + $0x110] sm:$0xff]
        %v5982 = vld [vmem:[%s8 + $0x118] sm:$0xff]
        %v5983 = vld [vmem:[%s8 + $0x120] sm:$0xff]
        %v5984 = vld [vmem:[%s8 + $0x128] sm:$0xff]
        %v5985 = vld [vmem:[%s8 + $0x130] sm:$0xff]
        %v5986 = vld [vmem:[%s8 + $0x138] sm:$0xff]
        %v5987 = vld [vmem:[%s8 + $0x140] sm:$0xff]
        %v5988 = vld [vmem:[%s8 + $0x148] sm:$0xff]
        %v5989 = vld [vmem:[%s8 + $0x150] sm:$0xff]
        %v5990 = vld [vmem:[%s8 + $0x158] sm:$0xff]
        %v5991 = vld [vmem:[%s8 + $0x160] sm:$0xff]
        %v5992 = vld [vmem:[%s8 + $0x168] sm:$0xff]
        %v5993 = vld [vmem:[%s8 + $0x170] sm:$0xff]
        %v5994 = vld [vmem:[%s8 + $0x178] sm:$0xff]
        %v5995 = vld [vmem:[%s8 + $0x180] sm:$0xff]
        %v5996 = vld [vmem:[%s8 + $0x188] sm:$0xff]
        %v5997 = vld [vmem:[%s8 + $0x190] sm:$0xff]
        %v5998 = vld [vmem:[%s8 + $0x198] sm:$0xff]
        %v5999 = vld [vmem:[%s8 + $0x1a0] sm:$0xff]
        %v6000 = vld [vmem:[%s8 + $0x1a8] sm:$0xff]
        %v6001 = vld [vmem:[%s8 + $0x1b0] sm:$0xff]
        %v6002 = vld [vmem:[%s8 + $0x1b8] sm:$0xff]
        %v6003 = vld [vmem:[%s8 + $0x1c0] sm:$0xff]
        %v6004 = vld [vmem:[%s8 + $0x1c8] sm:$0xff]
        %v6005 = vld [vmem:[%s8 + $0x1d0] sm:$0xff]
        %v6006 = vld [vmem:[%s8 + $0x1d8] sm:$0xff]
        %v6007 = vld [vmem:[%s8 + $0x1e0] sm:$0xff]
        %v6008 = vld [vmem:[%s8 + $0x1e8] sm:$0xff]
        %v6009 = vld [vmem:[%s8 + $0x1f0] sm:$0xff]
        %v6010 = vld [vmem:[%s8 + $0x1f8] sm:$0xff]
        %v6011 = vld [vmem:[%s9] sm:$0x3]
        %v6013 = vlaneseq
        %v6014 = vshrl.u32 %v6013, 7
        %v6015 = vsub.s32 0, %v6014
        %v6016 = vrot.slane %v6011, %v6015
        %v6017 = vlaneseq
        %v6018 = vshrl.u32 %v6017, 7
        %v6019 = vsub.s32 1, %v6018
        %v6020 = vrot.slane %v6011, %v6019
        %v6279 = vunpack.c.l.b16 %v5691
        %v6280 = vunpack.c.h.b16 %v5691
        %v6281 = vunpack.c.l.b16 %v5692
        %v6282 = vunpack.c.h.b16 %v5692
        %v6283 = vunpack.c.l.b16 %v5693
        %v6284 = vunpack.c.h.b16 %v5693
        %v6285 = vunpack.c.l.b16 %v5694
        %v6286 = vunpack.c.h.b16 %v5694
        %v6287 = vunpack.c.l.b16 %v5695
        %v6288 = vunpack.c.h.b16 %v5695
        %v6289 = vunpack.c.l.b16 %v5696
        %v6290 = vunpack.c.h.b16 %v5696
        %v6291 = vunpack.c.l.b16 %v5697
        %v6292 = vunpack.c.h.b16 %v5697
        %v6293 = vunpack.c.l.b16 %v5698
        %v6294 = vunpack.c.h.b16 %v5698
        %v6295 = vunpack.c.l.b16 %v5699
        %v6296 = vunpack.c.h.b16 %v5699
        %v6297 = vunpack.c.l.b16 %v5700
        %v6298 = vunpack.c.h.b16 %v5700
        %v6299 = vunpack.c.l.b16 %v5701
        %v6300 = vunpack.c.h.b16 %v5701
        %v6301 = vunpack.c.l.b16 %v5702
        %v6302 = vunpack.c.h.b16 %v5702
        %v6303 = vunpack.c.l.b16 %v5703
        %v6304 = vunpack.c.h.b16 %v5703
        %v6305 = vunpack.c.l.b16 %v5704
        %v6306 = vunpack.c.h.b16 %v5704
        %v6307 = vunpack.c.l.b16 %v5705
        %v6308 = vunpack.c.h.b16 %v5705
        %v6309 = vunpack.c.l.b16 %v5706
        %v6310 = vunpack.c.h.b16 %v5706
        %v6311 = vunpack.c.l.b16 %v5707
        %v6312 = vunpack.c.h.b16 %v5707
        %v6313 = vunpack.c.l.b16 %v5708
        %v6314 = vunpack.c.h.b16 %v5708
        %v6315 = vunpack.c.l.b16 %v5709
        %v6316 = vunpack.c.h.b16 %v5709
        %v6317 = vunpack.c.l.b16 %v5710
        %v6318 = vunpack.c.h.b16 %v5710
        %v6319 = vunpack.c.l.b16 %v5711
        %v6320 = vunpack.c.h.b16 %v5711
        %v6321 = vunpack.c.l.b16 %v5712
        %v6322 = vunpack.c.h.b16 %v5712
        %v6323 = vunpack.c.l.b16 %v5713
        %v6324 = vunpack.c.h.b16 %v5713
        %v6325 = vunpack.c.l.b16 %v5714
        %v6326 = vunpack.c.h.b16 %v5714
        %v6327 = vunpack.c.l.b16 %v5715
        %v6328 = vunpack.c.h.b16 %v5715
        %v6329 = vunpack.c.l.b16 %v5716
        %v6330 = vunpack.c.h.b16 %v5716
        %v6331 = vunpack.c.l.b16 %v5717
        %v6332 = vunpack.c.h.b16 %v5717
        %v6333 = vunpack.c.l.b16 %v5718
        %v6334 = vunpack.c.h.b16 %v5718
        %v6335 = vunpack.c.l.b16 %v5719
        %v6336 = vunpack.c.h.b16 %v5719
        %v6337 = vunpack.c.l.b16 %v5720
        %v6338 = vunpack.c.h.b16 %v5720
        %v6339 = vunpack.c.l.b16 %v5721
        %v6340 = vunpack.c.h.b16 %v5721
        %v6341 = vunpack.c.l.b16 %v5722
        %v6342 = vunpack.c.h.b16 %v5722
        %v6343 = vunpack.c.l.b16 %v5723
        %v6344 = vunpack.c.h.b16 %v5723
        %v6345 = vunpack.c.l.b16 %v5724
        %v6346 = vunpack.c.h.b16 %v5724
        %v6347 = vunpack.c.l.b16 %v5725
        %v6348 = vunpack.c.h.b16 %v5725
        %v6349 = vunpack.c.l.b16 %v5726
        %v6350 = vunpack.c.h.b16 %v5726
        %v6351 = vunpack.c.l.b16 %v5727
        %v6352 = vunpack.c.h.b16 %v5727
        %v6353 = vunpack.c.l.b16 %v5728
        %v6354 = vunpack.c.h.b16 %v5728
        %v6355 = vunpack.c.l.b16 %v5729
        %v6356 = vunpack.c.h.b16 %v5729
        %v6357 = vunpack.c.l.b16 %v5730
        %v6358 = vunpack.c.h.b16 %v5730
        %v6359 = vunpack.c.l.b16 %v5731
        %v6360 = vunpack.c.h.b16 %v5731
        %v6361 = vunpack.c.l.b16 %v5732
        %v6362 = vunpack.c.h.b16 %v5732
        %v6363 = vunpack.c.l.b16 %v5733
        %v6364 = vunpack.c.h.b16 %v5733
        %v6365 = vunpack.c.l.b16 %v5734
        %v6366 = vunpack.c.h.b16 %v5734
        %v6367 = vunpack.c.l.b16 %v5735
        %v6368 = vunpack.c.h.b16 %v5735
        %v6369 = vunpack.c.l.b16 %v5736
        %v6370 = vunpack.c.h.b16 %v5736
        %v6371 = vunpack.c.l.b16 %v5737
        %v6372 = vunpack.c.h.b16 %v5737
        %v6373 = vunpack.c.l.b16 %v5738
        %v6374 = vunpack.c.h.b16 %v5738
        %v6375 = vunpack.c.l.b16 %v5739
        %v6376 = vunpack.c.h.b16 %v5739
        %v6377 = vunpack.c.l.b16 %v5740
        %v6378 = vunpack.c.h.b16 %v5740
        %v6379 = vunpack.c.l.b16 %v5741
        %v6380 = vunpack.c.h.b16 %v5741
        %v6381 = vunpack.c.l.b16 %v5742
        %v6382 = vunpack.c.h.b16 %v5742
        %v6383 = vunpack.c.l.b16 %v5743
        %v6384 = vunpack.c.h.b16 %v5743
        %v6385 = vunpack.c.l.b16 %v5744
        %v6386 = vunpack.c.h.b16 %v5744
        %v6387 = vunpack.c.l.b16 %v5745
        %v6388 = vunpack.c.h.b16 %v5745
        %v6389 = vunpack.c.l.b16 %v5746
        %v6390 = vunpack.c.h.b16 %v5746
        %v6391 = vunpack.c.l.b16 %v5747
        %v6392 = vunpack.c.h.b16 %v5747
        %v6393 = vunpack.c.l.b16 %v5748
        %v6394 = vunpack.c.h.b16 %v5748
        %v6395 = vunpack.c.l.b16 %v5749
        %v6396 = vunpack.c.h.b16 %v5749
        %v6397 = vunpack.c.l.b16 %v5750
        %v6398 = vunpack.c.h.b16 %v5750
        %v6399 = vunpack.c.l.b16 %v5751
        %v6400 = vunpack.c.h.b16 %v5751
        %v6401 = vunpack.c.l.b16 %v5752
        %v6402 = vunpack.c.h.b16 %v5752
        %v6403 = vunpack.c.l.b16 %v5753
        %v6404 = vunpack.c.h.b16 %v5753
        %v6405 = vunpack.c.l.b16 %v5754
        %v6406 = vunpack.c.h.b16 %v5754
        %v6407 = vunpack.c.l.b16 %v5755
        %v6408 = vunpack.c.h.b16 %v5755
        %v6409 = vunpack.c.l.b16 %v5756
        %v6410 = vunpack.c.h.b16 %v5756
        %v6411 = vunpack.c.l.b16 %v5757
        %v6412 = vunpack.c.h.b16 %v5757
        %v6413 = vunpack.c.l.b16 %v5758
        %v6414 = vunpack.c.h.b16 %v5758
        %v6415 = vunpack.c.l.b16 %v5759
        %v6416 = vunpack.c.h.b16 %v5759
        %v6417 = vunpack.c.l.b16 %v5760
        %v6418 = vunpack.c.h.b16 %v5760
        %v6419 = vunpack.c.l.b16 %v5761
        %v6420 = vunpack.c.h.b16 %v5761
        %v6421 = vunpack.c.l.b16 %v5762
        %v6422 = vunpack.c.h.b16 %v5762
        %v6423 = vunpack.c.l.b16 %v5763
        %v6424 = vunpack.c.h.b16 %v5763
        %v6425 = vunpack.c.l.b16 %v5764
        %v6426 = vunpack.c.h.b16 %v5764
        %v6427 = vunpack.c.l.b16 %v5765
        %v6428 = vunpack.c.h.b16 %v5765
        %v6429 = vunpack.c.l.b16 %v5766
        %v6430 = vunpack.c.h.b16 %v5766
        %v6431 = vunpack.c.l.b16 %v5767
        %v6432 = vunpack.c.h.b16 %v5767
        %v6433 = vunpack.c.l.b16 %v5768
        %v6434 = vunpack.c.h.b16 %v5768
        %v6435 = vunpack.c.l.b16 %v5769
        %v6436 = vunpack.c.h.b16 %v5769
        %v6437 = vunpack.c.l.b16 %v5770
        %v6438 = vunpack.c.h.b16 %v5770
        %v6439 = vunpack.c.l.b16 %v5771
        %v6440 = vunpack.c.h.b16 %v5771
        %v6441 = vunpack.c.l.b16 %v5772
        %v6442 = vunpack.c.h.b16 %v5772
        %v6443 = vunpack.c.l.b16 %v5773
        %v6444 = vunpack.c.h.b16 %v5773
        %v6445 = vunpack.c.l.b16 %v5774
        %v6446 = vunpack.c.h.b16 %v5774
        %v6447 = vunpack.c.l.b16 %v5775
        %v6448 = vunpack.c.h.b16 %v5775
        %v6449 = vunpack.c.l.b16 %v5776
        %v6450 = vunpack.c.h.b16 %v5776
        %v6451 = vunpack.c.l.b16 %v5777
        %v6452 = vunpack.c.h.b16 %v5777
        %v6453 = vunpack.c.l.b16 %v5778
        %v6454 = vunpack.c.h.b16 %v5778
        %v6455 = vunpack.c.l.b16 %v5779
        %v6456 = vunpack.c.h.b16 %v5779
        %v6457 = vunpack.c.l.b16 %v5780
        %v6458 = vunpack.c.h.b16 %v5780
        %v6459 = vunpack.c.l.b16 %v5781
        %v6460 = vunpack.c.h.b16 %v5781
        %v6461 = vunpack.c.l.b16 %v5782
        %v6462 = vunpack.c.h.b16 %v5782
        %v6463 = vunpack.c.l.b16 %v5783
        %v6464 = vunpack.c.h.b16 %v5783
        %v6465 = vunpack.c.l.b16 %v5784
        %v6466 = vunpack.c.h.b16 %v5784
        %v6467 = vunpack.c.l.b16 %v5785
        %v6468 = vunpack.c.h.b16 %v5785
        %v6469 = vunpack.c.l.b16 %v5786
        %v6470 = vunpack.c.h.b16 %v5786
        %v6471 = vunpack.c.l.b16 %v5787
        %v6472 = vunpack.c.h.b16 %v5787
        %v6473 = vunpack.c.l.b16 %v5788
        %v6474 = vunpack.c.h.b16 %v5788
        %v6475 = vunpack.c.l.b16 %v5789
        %v6476 = vunpack.c.h.b16 %v5789
        %v6477 = vunpack.c.l.b16 %v5790
        %v6478 = vunpack.c.h.b16 %v5790
        %v6479 = vunpack.c.l.b16 %v5791
        %v6480 = vunpack.c.h.b16 %v5791
        %v6481 = vunpack.c.l.b16 %v5792
        %v6482 = vunpack.c.h.b16 %v5792
        %v6483 = vunpack.c.l.b16 %v5793
        %v6484 = vunpack.c.h.b16 %v5793
        %v6485 = vunpack.c.l.b16 %v5794
        %v6486 = vunpack.c.h.b16 %v5794
        %v6487 = vunpack.c.l.b16 %v5795
        %v6488 = vunpack.c.h.b16 %v5795
        %v6489 = vunpack.c.l.b16 %v5796
        %v6490 = vunpack.c.h.b16 %v5796
        %v6491 = vunpack.c.l.b16 %v5797
        %v6492 = vunpack.c.h.b16 %v5797
        %v6493 = vunpack.c.l.b16 %v5798
        %v6494 = vunpack.c.h.b16 %v5798
        %v6495 = vunpack.c.l.b16 %v5799
        %v6496 = vunpack.c.h.b16 %v5799
        %v6497 = vunpack.c.l.b16 %v5800
        %v6498 = vunpack.c.h.b16 %v5800
        %v6499 = vunpack.c.l.b16 %v5801
        %v6500 = vunpack.c.h.b16 %v5801
        %v6501 = vunpack.c.l.b16 %v5802
        %v6502 = vunpack.c.h.b16 %v5802
        %v6503 = vunpack.c.l.b16 %v5803
        %v6504 = vunpack.c.h.b16 %v5803
        %v6505 = vunpack.c.l.b16 %v5804
        %v6506 = vunpack.c.h.b16 %v5804
        %v6507 = vunpack.c.l.b16 %v5805
        %v6508 = vunpack.c.h.b16 %v5805
        %v6509 = vunpack.c.l.b16 %v5806
        %v6510 = vunpack.c.h.b16 %v5806
        %v6511 = vunpack.c.l.b16 %v5807
        %v6512 = vunpack.c.h.b16 %v5807
        %v6513 = vunpack.c.l.b16 %v5808
        %v6514 = vunpack.c.h.b16 %v5808
        %v6515 = vunpack.c.l.b16 %v5809
        %v6516 = vunpack.c.h.b16 %v5809
        %v6517 = vunpack.c.l.b16 %v5810
        %v6518 = vunpack.c.h.b16 %v5810
        %v6519 = vunpack.c.l.b16 %v5811
        %v6520 = vunpack.c.h.b16 %v5811
        %v6521 = vunpack.c.l.b16 %v5812
        %v6522 = vunpack.c.h.b16 %v5812
        %v6523 = vunpack.c.l.b16 %v5813
        %v6524 = vunpack.c.h.b16 %v5813
        %v6525 = vunpack.c.l.b16 %v5814
        %v6526 = vunpack.c.h.b16 %v5814
        %v6527 = vunpack.c.l.b16 %v5815
        %v6528 = vunpack.c.h.b16 %v5815
        %v6529 = vunpack.c.l.b16 %v5816
        %v6530 = vunpack.c.h.b16 %v5816
        %v6531 = vunpack.c.l.b16 %v5817
        %v6532 = vunpack.c.h.b16 %v5817
        %v6533 = vunpack.c.l.b16 %v5818
        %v6534 = vunpack.c.h.b16 %v5818
        %v6535 = vunpack.c.l.b16 %v5819
        %v6536 = vunpack.c.h.b16 %v5819
        %v6537 = vunpack.c.l.b16 %v5820
        %v6538 = vunpack.c.h.b16 %v5820
        %v6539 = vunpack.c.l.b16 %v5821
        %v6540 = vunpack.c.h.b16 %v5821
        %v6541 = vunpack.c.l.b16 %v5822
        %v6542 = vunpack.c.h.b16 %v5822
        %v6543 = vunpack.c.l.b16 %v5823
        %v6544 = vunpack.c.h.b16 %v5823
        %v6545 = vunpack.c.l.b16 %v5824
        %v6546 = vunpack.c.h.b16 %v5824
        %v6547 = vunpack.c.l.b16 %v5825
        %v6548 = vunpack.c.h.b16 %v5825
        %v6549 = vunpack.c.l.b16 %v5826
        %v6550 = vunpack.c.h.b16 %v5826
        %v6551 = vunpack.c.l.b16 %v5827
        %v6552 = vunpack.c.h.b16 %v5827
        %v6553 = vunpack.c.l.b16 %v5828
        %v6554 = vunpack.c.h.b16 %v5828
        %v6555 = vunpack.c.l.b16 %v5829
        %v6556 = vunpack.c.h.b16 %v5829
        %v6557 = vunpack.c.l.b16 %v5830
        %v6558 = vunpack.c.h.b16 %v5830
        %v6559 = vunpack.c.l.b16 %v5831
        %v6560 = vunpack.c.h.b16 %v5831
        %v6561 = vunpack.c.l.b16 %v5832
        %v6562 = vunpack.c.h.b16 %v5832
        %v6563 = vunpack.c.l.b16 %v5833
        %v6564 = vunpack.c.h.b16 %v5833
        %v6565 = vunpack.c.l.b16 %v5834
        %v6566 = vunpack.c.h.b16 %v5834
        %v6567 = vunpack.c.l.b16 %v5835
        %v6568 = vunpack.c.h.b16 %v5835
        %v6569 = vunpack.c.l.b16 %v5836
        %v6570 = vunpack.c.h.b16 %v5836
        %v6571 = vunpack.c.l.b16 %v5837
        %v6572 = vunpack.c.h.b16 %v5837
        %v6573 = vunpack.c.l.b16 %v5838
        %v6574 = vunpack.c.h.b16 %v5838
        %v6575 = vunpack.c.l.b16 %v5839
        %v6576 = vunpack.c.h.b16 %v5839
        %v6577 = vunpack.c.l.b16 %v5840
        %v6578 = vunpack.c.h.b16 %v5840
        %v6579 = vunpack.c.l.b16 %v5841
        %v6580 = vunpack.c.h.b16 %v5841
        %v6581 = vunpack.c.l.b16 %v5842
        %v6582 = vunpack.c.h.b16 %v5842
        %v6583 = vunpack.c.l.b16 %v5843
        %v6584 = vunpack.c.h.b16 %v5843
        %v6585 = vunpack.c.l.b16 %v5844
        %v6586 = vunpack.c.h.b16 %v5844
        %v6587 = vunpack.c.l.b16 %v5845
        %v6588 = vunpack.c.h.b16 %v5845
        %v6589 = vunpack.c.l.b16 %v5846
        %v6590 = vunpack.c.h.b16 %v5846
        %v6591 = vunpack.c.l.b16 %v5847
        %v6592 = vunpack.c.h.b16 %v5847
        %v6593 = vunpack.c.l.b16 %v5848
        %v6594 = vunpack.c.h.b16 %v5848
        %v6595 = vunpack.c.l.b16 %v5849
        %v6596 = vunpack.c.h.b16 %v5849
        %v6597 = vunpack.c.l.b16 %v5850
        %v6598 = vunpack.c.h.b16 %v5850
        %v6599 = vunpack.c.l.b16 %v5851
        %v6600 = vunpack.c.h.b16 %v5851
        %v6601 = vunpack.c.l.b16 %v5852
        %v6602 = vunpack.c.h.b16 %v5852
        %v6603 = vunpack.c.l.b16 %v5853
        %v6604 = vunpack.c.h.b16 %v5853
        %v6605 = vunpack.c.l.b16 %v5854
        %v6606 = vunpack.c.h.b16 %v5854
        %v6607 = vunpack.c.l.b16 %v5855
        %v6608 = vunpack.c.h.b16 %v5855
        %v6609 = vunpack.c.l.b16 %v5856
        %v6610 = vunpack.c.h.b16 %v5856
        %v6611 = vunpack.c.l.b16 %v5857
        %v6612 = vunpack.c.h.b16 %v5857
        %v6613 = vunpack.c.l.b16 %v5858
        %v6614 = vunpack.c.h.b16 %v5858
        %v6615 = vunpack.c.l.b16 %v5859
        %v6616 = vunpack.c.h.b16 %v5859
        %v6617 = vunpack.c.l.b16 %v5860
        %v6618 = vunpack.c.h.b16 %v5860
        %v6619 = vunpack.c.l.b16 %v5861
        %v6620 = vunpack.c.h.b16 %v5861
        %v6621 = vunpack.c.l.b16 %v5862
        %v6622 = vunpack.c.h.b16 %v5862
        %v6623 = vunpack.c.l.b16 %v5863
        %v6624 = vunpack.c.h.b16 %v5863
        %v6625 = vunpack.c.l.b16 %v5864
        %v6626 = vunpack.c.h.b16 %v5864
        %v6627 = vunpack.c.l.b16 %v5865
        %v6628 = vunpack.c.h.b16 %v5865
        %v6629 = vunpack.c.l.b16 %v5866
        %v6630 = vunpack.c.h.b16 %v5866
        %v6631 = vunpack.c.l.b16 %v5867
        %v6632 = vunpack.c.h.b16 %v5867
        %v6633 = vunpack.c.l.b16 %v5868
        %v6634 = vunpack.c.h.b16 %v5868
        %v6635 = vunpack.c.l.b16 %v5869
        %v6636 = vunpack.c.h.b16 %v5869
        %v6637 = vunpack.c.l.b16 %v5870
        %v6638 = vunpack.c.h.b16 %v5870
        %v6639 = vunpack.c.l.b16 %v5871
        %v6640 = vunpack.c.h.b16 %v5871
        %v6641 = vunpack.c.l.b16 %v5872
        %v6642 = vunpack.c.h.b16 %v5872
        %v6643 = vunpack.c.l.b16 %v5873
        %v6644 = vunpack.c.h.b16 %v5873
        %v6645 = vunpack.c.l.b16 %v5874
        %v6646 = vunpack.c.h.b16 %v5874
        %v6647 = vunpack.c.l.b16 %v5875
        %v6648 = vunpack.c.h.b16 %v5875
        %v6649 = vunpack.c.l.b16 %v5876
        %v6650 = vunpack.c.h.b16 %v5876
        %v6651 = vunpack.c.l.b16 %v5877
        %v6652 = vunpack.c.h.b16 %v5877
        %v6653 = vunpack.c.l.b16 %v5878
        %v6654 = vunpack.c.h.b16 %v5878
        %v6655 = vunpack.c.l.b16 %v5879
        %v6656 = vunpack.c.h.b16 %v5879
        %v6657 = vunpack.c.l.b16 %v5880
        %v6658 = vunpack.c.h.b16 %v5880
        %v6659 = vunpack.c.l.b16 %v5881
        %v6660 = vunpack.c.h.b16 %v5881
        %v6661 = vunpack.c.l.b16 %v5882
        %v6662 = vunpack.c.h.b16 %v5882
        %v6663 = vunpack.c.l.b16 %v5883
        %v6664 = vunpack.c.h.b16 %v5883
        %v6665 = vunpack.c.l.b16 %v5884
        %v6666 = vunpack.c.h.b16 %v5884
        %v6667 = vunpack.c.l.b16 %v5885
        %v6668 = vunpack.c.h.b16 %v5885
        %v6669 = vunpack.c.l.b16 %v5886
        %v6670 = vunpack.c.h.b16 %v5886
        %v6671 = vunpack.c.l.b16 %v5887
        %v6672 = vunpack.c.h.b16 %v5887
        %v6673 = vunpack.c.l.b16 %v5888
        %v6674 = vunpack.c.h.b16 %v5888
        %v6675 = vunpack.c.l.b16 %v5889
        %v6676 = vunpack.c.h.b16 %v5889
        %v6677 = vunpack.c.l.b16 %v5890
        %v6678 = vunpack.c.h.b16 %v5890
        %v6679 = vunpack.c.l.b16 %v5891
        %v6680 = vunpack.c.h.b16 %v5891
        %v6681 = vunpack.c.l.b16 %v5892
        %v6682 = vunpack.c.h.b16 %v5892
        %v6683 = vunpack.c.l.b16 %v5893
        %v6684 = vunpack.c.h.b16 %v5893
        %v6685 = vunpack.c.l.b16 %v5894
        %v6686 = vunpack.c.h.b16 %v5894
        %v6687 = vunpack.c.l.b16 %v5895
        %v6688 = vunpack.c.h.b16 %v5895
        %v6689 = vunpack.c.l.b16 %v5896
        %v6690 = vunpack.c.h.b16 %v5896
        %v6691 = vunpack.c.l.b16 %v5897
        %v6692 = vunpack.c.h.b16 %v5897
        %v6693 = vunpack.c.l.b16 %v5898
        %v6694 = vunpack.c.h.b16 %v5898
        %v6695 = vunpack.c.l.b16 %v5899
        %v6696 = vunpack.c.h.b16 %v5899
        %v6697 = vunpack.c.l.b16 %v5900
        %v6698 = vunpack.c.h.b16 %v5900
        %v6699 = vunpack.c.l.b16 %v5901
        %v6700 = vunpack.c.h.b16 %v5901
        %v6701 = vunpack.c.l.b16 %v5902
        %v6702 = vunpack.c.h.b16 %v5902
        %v6703 = vunpack.c.l.b16 %v5903
        %v6704 = vunpack.c.h.b16 %v5903
        %v6705 = vunpack.c.l.b16 %v5904
        %v6706 = vunpack.c.h.b16 %v5904
        %v6707 = vunpack.c.l.b16 %v5905
        %v6708 = vunpack.c.h.b16 %v5905
        %v6709 = vunpack.c.l.b16 %v5906
        %v6710 = vunpack.c.h.b16 %v5906
        %v6711 = vunpack.c.l.b16 %v5907
        %v6712 = vunpack.c.h.b16 %v5907
        %v6713 = vunpack.c.l.b16 %v5908
        %v6714 = vunpack.c.h.b16 %v5908
        %v6715 = vunpack.c.l.b16 %v5909
        %v6716 = vunpack.c.h.b16 %v5909
        %v6717 = vunpack.c.l.b16 %v5910
        %v6718 = vunpack.c.h.b16 %v5910
        %v6719 = vunpack.c.l.b16 %v5911
        %v6720 = vunpack.c.h.b16 %v5911
        %v6721 = vunpack.c.l.b16 %v5912
        %v6722 = vunpack.c.h.b16 %v5912
        %v6723 = vunpack.c.l.b16 %v5913
        %v6724 = vunpack.c.h.b16 %v5913
        %v6725 = vunpack.c.l.b16 %v5914
        %v6726 = vunpack.c.h.b16 %v5914
        %v6727 = vunpack.c.l.b16 %v5915
        %v6728 = vunpack.c.h.b16 %v5915
        %v6729 = vunpack.c.l.b16 %v5916
        %v6730 = vunpack.c.h.b16 %v5916
        %v6731 = vunpack.c.l.b16 %v5917
        %v6732 = vunpack.c.h.b16 %v5917
        %v6733 = vunpack.c.l.b16 %v5918
        %v6734 = vunpack.c.h.b16 %v5918
        %v6735 = vunpack.c.l.b16 %v5919
        %v6736 = vunpack.c.h.b16 %v5919
        %v6737 = vunpack.c.l.b16 %v5920
        %v6738 = vunpack.c.h.b16 %v5920
        %v6739 = vunpack.c.l.b16 %v5921
        %v6740 = vunpack.c.h.b16 %v5921
        %v6741 = vunpack.c.l.b16 %v5922
        %v6742 = vunpack.c.h.b16 %v5922
        %v6743 = vunpack.c.l.b16 %v5923
        %v6744 = vunpack.c.h.b16 %v5923
        %v6745 = vunpack.c.l.b16 %v5924
        %v6746 = vunpack.c.h.b16 %v5924
        %v6747 = vunpack.c.l.b16 %v5925
        %v6748 = vunpack.c.h.b16 %v5925
        %v6749 = vunpack.c.l.b16 %v5926
        %v6750 = vunpack.c.h.b16 %v5926
        %v6751 = vunpack.c.l.b16 %v5927
        %v6752 = vunpack.c.h.b16 %v5927
        %v6753 = vunpack.c.l.b16 %v5928
        %v6754 = vunpack.c.h.b16 %v5928
        %v6755 = vunpack.c.l.b16 %v5929
        %v6756 = vunpack.c.h.b16 %v5929
        %v6757 = vunpack.c.l.b16 %v5930
        %v6758 = vunpack.c.h.b16 %v5930
        %v6759 = vunpack.c.l.b16 %v5931
        %v6760 = vunpack.c.h.b16 %v5931
        %v6761 = vunpack.c.l.b16 %v5932
        %v6762 = vunpack.c.h.b16 %v5932
        %v6763 = vunpack.c.l.b16 %v5933
        %v6764 = vunpack.c.h.b16 %v5933
        %v6765 = vunpack.c.l.b16 %v5934
        %v6766 = vunpack.c.h.b16 %v5934
        %v6767 = vunpack.c.l.b16 %v5935
        %v6768 = vunpack.c.h.b16 %v5935
        %v6769 = vunpack.c.l.b16 %v5936
        %v6770 = vunpack.c.h.b16 %v5936
        %v6771 = vunpack.c.l.b16 %v5937
        %v6772 = vunpack.c.h.b16 %v5937
        %v6773 = vunpack.c.l.b16 %v5938
        %v6774 = vunpack.c.h.b16 %v5938
        %v6775 = vunpack.c.l.b16 %v5939
        %v6776 = vunpack.c.h.b16 %v5939
        %v6777 = vunpack.c.l.b16 %v5940
        %v6778 = vunpack.c.h.b16 %v5940
        %v6779 = vunpack.c.l.b16 %v5941
        %v6780 = vunpack.c.h.b16 %v5941
        %v6781 = vunpack.c.l.b16 %v5942
        %v6782 = vunpack.c.h.b16 %v5942
        %v6783 = vunpack.c.l.b16 %v5943
        %v6784 = vunpack.c.h.b16 %v5943
        %v6785 = vunpack.c.l.b16 %v5944
        %v6786 = vunpack.c.h.b16 %v5944
        %v6787 = vunpack.c.l.b16 %v5945
        %v6788 = vunpack.c.h.b16 %v5945
        %v6789 = vunpack.c.l.b16 %v5946
        %v6790 = vunpack.c.h.b16 %v5946
        %v6791 = vpack.c.b16 %v6283, %v6279
        %v6792 = vpack.c.b16 %v6284, %v6280
        %v6793 = vpack.c.b16 %v6285, %v6281
        %v6794 = vpack.c.b16 %v6286, %v6282
        %v6795 = vpack.c.b16 %v6291, %v6287
        %v6796 = vpack.c.b16 %v6292, %v6288
        %v6797 = vpack.c.b16 %v6293, %v6289
        %v6798 = vpack.c.b16 %v6294, %v6290
        %v6799 = vpack.c.b16 %v6299, %v6295
        %v6800 = vpack.c.b16 %v6300, %v6296
        %v6801 = vpack.c.b16 %v6301, %v6297
        %v6802 = vpack.c.b16 %v6302, %v6298
        %v6803 = vpack.c.b16 %v6307, %v6303
        %v6804 = vpack.c.b16 %v6308, %v6304
        %v6805 = vpack.c.b16 %v6309, %v6305
        %v6806 = vpack.c.b16 %v6310, %v6306
        %v6807 = vpack.c.b16 %v6315, %v6311
        %v6808 = vpack.c.b16 %v6316, %v6312
        %v6809 = vpack.c.b16 %v6317, %v6313
        %v6810 = vpack.c.b16 %v6318, %v6314
        %v6811 = vpack.c.b16 %v6323, %v6319
        %v6812 = vpack.c.b16 %v6324, %v6320
        %v6813 = vpack.c.b16 %v6325, %v6321
        %v6814 = vpack.c.b16 %v6326, %v6322
        %v6815 = vpack.c.b16 %v6331, %v6327
        %v6816 = vpack.c.b16 %v6332, %v6328
        %v6817 = vpack.c.b16 %v6333, %v6329
        %v6818 = vpack.c.b16 %v6334, %v6330
        %v6819 = vpack.c.b16 %v6339, %v6335
        %v6820 = vpack.c.b16 %v6340, %v6336
        %v6821 = vpack.c.b16 %v6341, %v6337
        %v6822 = vpack.c.b16 %v6342, %v6338
        %v6823 = vpack.c.b16 %v6347, %v6343
        %v6824 = vpack.c.b16 %v6348, %v6344
        %v6825 = vpack.c.b16 %v6349, %v6345
        %v6826 = vpack.c.b16 %v6350, %v6346
        %v6827 = vpack.c.b16 %v6355, %v6351
        %v6828 = vpack.c.b16 %v6356, %v6352
        %v6829 = vpack.c.b16 %v6357, %v6353
        %v6830 = vpack.c.b16 %v6358, %v6354
        %v6831 = vpack.c.b16 %v6363, %v6359
        %v6832 = vpack.c.b16 %v6364, %v6360
        %v6833 = vpack.c.b16 %v6365, %v6361
        %v6834 = vpack.c.b16 %v6366, %v6362
        %v6835 = vpack.c.b16 %v6371, %v6367
        %v6836 = vpack.c.b16 %v6372, %v6368
        %v6837 = vpack.c.b16 %v6373, %v6369
        %v6838 = vpack.c.b16 %v6374, %v6370
        %v6839 = vpack.c.b16 %v6379, %v6375
        %v6840 = vpack.c.b16 %v6380, %v6376
        %v6841 = vpack.c.b16 %v6381, %v6377
        %v6842 = vpack.c.b16 %v6382, %v6378
        %v6843 = vpack.c.b16 %v6387, %v6383
        %v6844 = vpack.c.b16 %v6388, %v6384
        %v6845 = vpack.c.b16 %v6389, %v6385
        %v6846 = vpack.c.b16 %v6390, %v6386
        %v6847 = vpack.c.b16 %v6395, %v6391
        %v6848 = vpack.c.b16 %v6396, %v6392
        %v6849 = vpack.c.b16 %v6397, %v6393
        %v6850 = vpack.c.b16 %v6398, %v6394
        %v6851 = vpack.c.b16 %v6403, %v6399
        %v6852 = vpack.c.b16 %v6404, %v6400
        %v6853 = vpack.c.b16 %v6405, %v6401
        %v6854 = vpack.c.b16 %v6406, %v6402
        %v6855 = vpack.c.b16 %v6411, %v6407
        %v6856 = vpack.c.b16 %v6412, %v6408
        %v6857 = vpack.c.b16 %v6413, %v6409
        %v6858 = vpack.c.b16 %v6414, %v6410
        %v6859 = vpack.c.b16 %v6419, %v6415
        %v6860 = vpack.c.b16 %v6420, %v6416
        %v6861 = vpack.c.b16 %v6421, %v6417
        %v6862 = vpack.c.b16 %v6422, %v6418
        %v6863 = vpack.c.b16 %v6427, %v6423
        %v6864 = vpack.c.b16 %v6428, %v6424
        %v6865 = vpack.c.b16 %v6429, %v6425
        %v6866 = vpack.c.b16 %v6430, %v6426
        %v6867 = vpack.c.b16 %v6435, %v6431
        %v6868 = vpack.c.b16 %v6436, %v6432
        %v6869 = vpack.c.b16 %v6437, %v6433
        %v6870 = vpack.c.b16 %v6438, %v6434
        %v6871 = vpack.c.b16 %v6443, %v6439
        %v6872 = vpack.c.b16 %v6444, %v6440
        %v6873 = vpack.c.b16 %v6445, %v6441
        %v6874 = vpack.c.b16 %v6446, %v6442
        %v6875 = vpack.c.b16 %v6451, %v6447
        %v6876 = vpack.c.b16 %v6452, %v6448
        %v6877 = vpack.c.b16 %v6453, %v6449
        %v6878 = vpack.c.b16 %v6454, %v6450
        %v6879 = vpack.c.b16 %v6459, %v6455
        %v6880 = vpack.c.b16 %v6460, %v6456
        %v6881 = vpack.c.b16 %v6461, %v6457
        %v6882 = vpack.c.b16 %v6462, %v6458
        %v6883 = vpack.c.b16 %v6467, %v6463
        %v6884 = vpack.c.b16 %v6468, %v6464
        %v6885 = vpack.c.b16 %v6469, %v6465
        %v6886 = vpack.c.b16 %v6470, %v6466
        %v6887 = vpack.c.b16 %v6475, %v6471
        %v6888 = vpack.c.b16 %v6476, %v6472
        %v6889 = vpack.c.b16 %v6477, %v6473
        %v6890 = vpack.c.b16 %v6478, %v6474
        %v6891 = vpack.c.b16 %v6483, %v6479
        %v6892 = vpack.c.b16 %v6484, %v6480
        %v6893 = vpack.c.b16 %v6485, %v6481
        %v6894 = vpack.c.b16 %v6486, %v6482
        %v6895 = vpack.c.b16 %v6491, %v6487
        %v6896 = vpack.c.b16 %v6492, %v6488
        %v6897 = vpack.c.b16 %v6493, %v6489
        %v6898 = vpack.c.b16 %v6494, %v6490
        %v6899 = vpack.c.b16 %v6499, %v6495
        %v6900 = vpack.c.b16 %v6500, %v6496
        %v6901 = vpack.c.b16 %v6501, %v6497
        %v6902 = vpack.c.b16 %v6502, %v6498
        %v6903 = vpack.c.b16 %v6507, %v6503
        %v6904 = vpack.c.b16 %v6508, %v6504
        %v6905 = vpack.c.b16 %v6509, %v6505
        %v6906 = vpack.c.b16 %v6510, %v6506
        %v6907 = vpack.c.b16 %v6515, %v6511
        %v6908 = vpack.c.b16 %v6516, %v6512
        %v6909 = vpack.c.b16 %v6517, %v6513
        %v6910 = vpack.c.b16 %v6518, %v6514
        %v6911 = vpack.c.b16 %v6523, %v6519
        %v6912 = vpack.c.b16 %v6524, %v6520
        %v6913 = vpack.c.b16 %v6525, %v6521
        %v6914 = vpack.c.b16 %v6526, %v6522
        %v6915 = vpack.c.b16 %v6531, %v6527
        %v6916 = vpack.c.b16 %v6532, %v6528
        %v6917 = vpack.c.b16 %v6533, %v6529
        %v6918 = vpack.c.b16 %v6534, %v6530
        %v6919 = vpack.c.b16 %v6539, %v6535
        %v6920 = vpack.c.b16 %v6540, %v6536
        %v6921 = vpack.c.b16 %v6541, %v6537
        %v6922 = vpack.c.b16 %v6542, %v6538
        %v6923 = vpack.c.b16 %v6547, %v6543
        %v6924 = vpack.c.b16 %v6548, %v6544
        %v6925 = vpack.c.b16 %v6549, %v6545
        %v6926 = vpack.c.b16 %v6550, %v6546
        %v6927 = vpack.c.b16 %v6555, %v6551
        %v6928 = vpack.c.b16 %v6556, %v6552
        %v6929 = vpack.c.b16 %v6557, %v6553
        %v6930 = vpack.c.b16 %v6558, %v6554
        %v6931 = vpack.c.b16 %v6563, %v6559
        %v6932 = vpack.c.b16 %v6564, %v6560
        %v6933 = vpack.c.b16 %v6565, %v6561
        %v6934 = vpack.c.b16 %v6566, %v6562
        %v6935 = vpack.c.b16 %v6571, %v6567
        %v6936 = vpack.c.b16 %v6572, %v6568
        %v6937 = vpack.c.b16 %v6573, %v6569
        %v6938 = vpack.c.b16 %v6574, %v6570
        %v6939 = vpack.c.b16 %v6579, %v6575
        %v6940 = vpack.c.b16 %v6580, %v6576
        %v6941 = vpack.c.b16 %v6581, %v6577
        %v6942 = vpack.c.b16 %v6582, %v6578
        %v6943 = vpack.c.b16 %v6587, %v6583
        %v6944 = vpack.c.b16 %v6588, %v6584
        %v6945 = vpack.c.b16 %v6589, %v6585
        %v6946 = vpack.c.b16 %v6590, %v6586
        %v6947 = vpack.c.b16 %v6595, %v6591
        %v6948 = vpack.c.b16 %v6596, %v6592
        %v6949 = vpack.c.b16 %v6597, %v6593
        %v6950 = vpack.c.b16 %v6598, %v6594
        %v6951 = vpack.c.b16 %v6603, %v6599
        %v6952 = vpack.c.b16 %v6604, %v6600
        %v6953 = vpack.c.b16 %v6605, %v6601
        %v6954 = vpack.c.b16 %v6606, %v6602
        %v6955 = vpack.c.b16 %v6611, %v6607
        %v6956 = vpack.c.b16 %v6612, %v6608
        %v6957 = vpack.c.b16 %v6613, %v6609
        %v6958 = vpack.c.b16 %v6614, %v6610
        %v6959 = vpack.c.b16 %v6619, %v6615
        %v6960 = vpack.c.b16 %v6620, %v6616
        %v6961 = vpack.c.b16 %v6621, %v6617
        %v6962 = vpack.c.b16 %v6622, %v6618
        %v6963 = vpack.c.b16 %v6627, %v6623
        %v6964 = vpack.c.b16 %v6628, %v6624
        %v6965 = vpack.c.b16 %v6629, %v6625
        %v6966 = vpack.c.b16 %v6630, %v6626
        %v6967 = vpack.c.b16 %v6635, %v6631
        %v6968 = vpack.c.b16 %v6636, %v6632
        %v6969 = vpack.c.b16 %v6637, %v6633
        %v6970 = vpack.c.b16 %v6638, %v6634
        %v6971 = vpack.c.b16 %v6643, %v6639
        %v6972 = vpack.c.b16 %v6644, %v6640
        %v6973 = vpack.c.b16 %v6645, %v6641
        %v6974 = vpack.c.b16 %v6646, %v6642
        %v6975 = vpack.c.b16 %v6651, %v6647
        %v6976 = vpack.c.b16 %v6652, %v6648
        %v6977 = vpack.c.b16 %v6653, %v6649
        %v6978 = vpack.c.b16 %v6654, %v6650
        %v6979 = vpack.c.b16 %v6659, %v6655
        %v6980 = vpack.c.b16 %v6660, %v6656
        %v6981 = vpack.c.b16 %v6661, %v6657
        %v6982 = vpack.c.b16 %v6662, %v6658
        %v6983 = vpack.c.b16 %v6667, %v6663
        %v6984 = vpack.c.b16 %v6668, %v6664
        %v6985 = vpack.c.b16 %v6669, %v6665
        %v6986 = vpack.c.b16 %v6670, %v6666
        %v6987 = vpack.c.b16 %v6675, %v6671
        %v6988 = vpack.c.b16 %v6676, %v6672
        %v6989 = vpack.c.b16 %v6677, %v6673
        %v6990 = vpack.c.b16 %v6678, %v6674
        %v6991 = vpack.c.b16 %v6683, %v6679
        %v6992 = vpack.c.b16 %v6684, %v6680
        %v6993 = vpack.c.b16 %v6685, %v6681
        %v6994 = vpack.c.b16 %v6686, %v6682
        %v6995 = vpack.c.b16 %v6691, %v6687
        %v6996 = vpack.c.b16 %v6692, %v6688
        %v6997 = vpack.c.b16 %v6693, %v6689
        %v6998 = vpack.c.b16 %v6694, %v6690
        %v6999 = vpack.c.b16 %v6699, %v6695
        %v7000 = vpack.c.b16 %v6700, %v6696
        %v7001 = vpack.c.b16 %v6701, %v6697
        %v7002 = vpack.c.b16 %v6702, %v6698
        %v7003 = vpack.c.b16 %v6707, %v6703
        %v7004 = vpack.c.b16 %v6708, %v6704
        %v7005 = vpack.c.b16 %v6709, %v6705
        %v7006 = vpack.c.b16 %v6710, %v6706
        %v7007 = vpack.c.b16 %v6715, %v6711
        %v7008 = vpack.c.b16 %v6716, %v6712
        %v7009 = vpack.c.b16 %v6717, %v6713
        %v7010 = vpack.c.b16 %v6718, %v6714
        %v7011 = vpack.c.b16 %v6723, %v6719
        %v7012 = vpack.c.b16 %v6724, %v6720
        %v7013 = vpack.c.b16 %v6725, %v6721
        %v7014 = vpack.c.b16 %v6726, %v6722
        %v7015 = vpack.c.b16 %v6731, %v6727
        %v7016 = vpack.c.b16 %v6732, %v6728
        %v7017 = vpack.c.b16 %v6733, %v6729
        %v7018 = vpack.c.b16 %v6734, %v6730
        %v7019 = vpack.c.b16 %v6739, %v6735
        %v7020 = vpack.c.b16 %v6740, %v6736
        %v7021 = vpack.c.b16 %v6741, %v6737
        %v7022 = vpack.c.b16 %v6742, %v6738
        %v7023 = vpack.c.b16 %v6747, %v6743
        %v7024 = vpack.c.b16 %v6748, %v6744
        %v7025 = vpack.c.b16 %v6749, %v6745
        %v7026 = vpack.c.b16 %v6750, %v6746
        %v7027 = vpack.c.b16 %v6755, %v6751
        %v7028 = vpack.c.b16 %v6756, %v6752
        %v7029 = vpack.c.b16 %v6757, %v6753
        %v7030 = vpack.c.b16 %v6758, %v6754
        %v7031 = vpack.c.b16 %v6763, %v6759
        %v7032 = vpack.c.b16 %v6764, %v6760
        %v7033 = vpack.c.b16 %v6765, %v6761
        %v7034 = vpack.c.b16 %v6766, %v6762
        %v7035 = vpack.c.b16 %v6771, %v6767
        %v7036 = vpack.c.b16 %v6772, %v6768
        %v7037 = vpack.c.b16 %v6773, %v6769
        %v7038 = vpack.c.b16 %v6774, %v6770
        %v7039 = vpack.c.b16 %v6779, %v6775
        %v7040 = vpack.c.b16 %v6780, %v6776
        %v7041 = vpack.c.b16 %v6781, %v6777
        %v7042 = vpack.c.b16 %v6782, %v6778
        %v7043 = vpack.c.b16 %v6787, %v6783
        %v7044 = vpack.c.b16 %v6788, %v6784
        %v7045 = vpack.c.b16 %v6789, %v6785
        %v7046 = vpack.c.b16 %v6790, %v6786
        %v7367 = vunpack.c.l.b16 %v5947
        %v7368 = vunpack.c.h.b16 %v5947
        %v7369 = vunpack.c.l.b16 %v5948
        %v7370 = vunpack.c.h.b16 %v5948
        %v7371 = vunpack.c.l.b16 %v5949
        %v7372 = vunpack.c.h.b16 %v5949
        %v7373 = vunpack.c.l.b16 %v5950
        %v7374 = vunpack.c.h.b16 %v5950
        %v7375 = vunpack.c.l.b16 %v5951
        %v7376 = vunpack.c.h.b16 %v5951
        %v7377 = vunpack.c.l.b16 %v5952
        %v7378 = vunpack.c.h.b16 %v5952
        %v7379 = vunpack.c.l.b16 %v5953
        %v7380 = vunpack.c.h.b16 %v5953
        %v7381 = vunpack.c.l.b16 %v5954
        %v7382 = vunpack.c.h.b16 %v5954
        %v7383 = vunpack.c.l.b16 %v5955
        %v7384 = vunpack.c.h.b16 %v5955
        %v7385 = vunpack.c.l.b16 %v5956
        %v7386 = vunpack.c.h.b16 %v5956
        %v7387 = vunpack.c.l.b16 %v5957
        %v7388 = vunpack.c.h.b16 %v5957
        %v7389 = vunpack.c.l.b16 %v5958
        %v7390 = vunpack.c.h.b16 %v5958
        %v7391 = vunpack.c.l.b16 %v5959
        %v7392 = vunpack.c.h.b16 %v5959
        %v7393 = vunpack.c.l.b16 %v5960
        %v7394 = vunpack.c.h.b16 %v5960
        %v7395 = vunpack.c.l.b16 %v5961
        %v7396 = vunpack.c.h.b16 %v5961
        %v7397 = vunpack.c.l.b16 %v5962
        %v7398 = vunpack.c.h.b16 %v5962
        %v7399 = vunpack.c.l.b16 %v5963
        %v7400 = vunpack.c.h.b16 %v5963
        %v7401 = vunpack.c.l.b16 %v5964
        %v7402 = vunpack.c.h.b16 %v5964
        %v7403 = vunpack.c.l.b16 %v5965
        %v7404 = vunpack.c.h.b16 %v5965
        %v7405 = vunpack.c.l.b16 %v5966
        %v7406 = vunpack.c.h.b16 %v5966
        %v7407 = vunpack.c.l.b16 %v5967
        %v7408 = vunpack.c.h.b16 %v5967
        %v7409 = vunpack.c.l.b16 %v5968
        %v7410 = vunpack.c.h.b16 %v5968
        %v7411 = vunpack.c.l.b16 %v5969
        %v7412 = vunpack.c.h.b16 %v5969
        %v7413 = vunpack.c.l.b16 %v5970
        %v7414 = vunpack.c.h.b16 %v5970
        %v7415 = vunpack.c.l.b16 %v5971
        %v7416 = vunpack.c.h.b16 %v5971
        %v7417 = vunpack.c.l.b16 %v5972
        %v7418 = vunpack.c.h.b16 %v5972
        %v7419 = vunpack.c.l.b16 %v5973
        %v7420 = vunpack.c.h.b16 %v5973
        %v7421 = vunpack.c.l.b16 %v5974
        %v7422 = vunpack.c.h.b16 %v5974
        %v7423 = vunpack.c.l.b16 %v5975
        %v7424 = vunpack.c.h.b16 %v5975
        %v7425 = vunpack.c.l.b16 %v5976
        %v7426 = vunpack.c.h.b16 %v5976
        %v7427 = vunpack.c.l.b16 %v5977
        %v7428 = vunpack.c.h.b16 %v5977
        %v7429 = vunpack.c.l.b16 %v5978
        %v7430 = vunpack.c.h.b16 %v5978
        %v7431 = vunpack.c.l.b16 %v5979
        %v7432 = vunpack.c.h.b16 %v5979
        %v7433 = vunpack.c.l.b16 %v5980
        %v7434 = vunpack.c.h.b16 %v5980
        %v7435 = vunpack.c.l.b16 %v5981
        %v7436 = vunpack.c.h.b16 %v5981
        %v7437 = vunpack.c.l.b16 %v5982
        %v7438 = vunpack.c.h.b16 %v5982
        %v7439 = vunpack.c.l.b16 %v5983
        %v7440 = vunpack.c.h.b16 %v5983
        %v7441 = vunpack.c.l.b16 %v5984
        %v7442 = vunpack.c.h.b16 %v5984
        %v7443 = vunpack.c.l.b16 %v5985
        %v7444 = vunpack.c.h.b16 %v5985
        %v7445 = vunpack.c.l.b16 %v5986
        %v7446 = vunpack.c.h.b16 %v5986
        %v7447 = vunpack.c.l.b16 %v5987
        %v7448 = vunpack.c.h.b16 %v5987
        %v7449 = vunpack.c.l.b16 %v5988
        %v7450 = vunpack.c.h.b16 %v5988
        %v7451 = vunpack.c.l.b16 %v5989
        %v7452 = vunpack.c.h.b16 %v5989
        %v7453 = vunpack.c.l.b16 %v5990
        %v7454 = vunpack.c.h.b16 %v5990
        %v7455 = vunpack.c.l.b16 %v5991
        %v7456 = vunpack.c.h.b16 %v5991
        %v7457 = vunpack.c.l.b16 %v5992
        %v7458 = vunpack.c.h.b16 %v5992
        %v7459 = vunpack.c.l.b16 %v5993
        %v7460 = vunpack.c.h.b16 %v5993
        %v7461 = vunpack.c.l.b16 %v5994
        %v7462 = vunpack.c.h.b16 %v5994
        %v7463 = vunpack.c.l.b16 %v5995
        %v7464 = vunpack.c.h.b16 %v5995
        %v7465 = vunpack.c.l.b16 %v5996
        %v7466 = vunpack.c.h.b16 %v5996
        %v7467 = vunpack.c.l.b16 %v5997
        %v7468 = vunpack.c.h.b16 %v5997
        %v7469 = vunpack.c.l.b16 %v5998
        %v7470 = vunpack.c.h.b16 %v5998
        %v7471 = vunpack.c.l.b16 %v5999
        %v7472 = vunpack.c.h.b16 %v5999
        %v7473 = vunpack.c.l.b16 %v6000
        %v7474 = vunpack.c.h.b16 %v6000
        %v7475 = vunpack.c.l.b16 %v6001
        %v7476 = vunpack.c.h.b16 %v6001
        %v7477 = vunpack.c.l.b16 %v6002
        %v7478 = vunpack.c.h.b16 %v6002
        %v7479 = vunpack.c.l.b16 %v6003
        %v7480 = vunpack.c.h.b16 %v6003
        %v7481 = vunpack.c.l.b16 %v6004
        %v7482 = vunpack.c.h.b16 %v6004
        %v7483 = vunpack.c.l.b16 %v6005
        %v7484 = vunpack.c.h.b16 %v6005
        %v7485 = vunpack.c.l.b16 %v6006
        %v7486 = vunpack.c.h.b16 %v6006
        %v7487 = vunpack.c.l.b16 %v6007
        %v7488 = vunpack.c.h.b16 %v6007
        %v7489 = vunpack.c.l.b16 %v6008
        %v7490 = vunpack.c.h.b16 %v6008
        %v7491 = vunpack.c.l.b16 %v6009
        %v7492 = vunpack.c.h.b16 %v6009
        %v7493 = vunpack.c.l.b16 %v6010
        %v7494 = vunpack.c.h.b16 %v6010
        %v7495 = vpack.c.b16 %v7369, %v7367
        %v7496 = vpack.c.b16 %v7370, %v7368
        %v7497 = vpack.c.b16 %v7373, %v7371
        %v7498 = vpack.c.b16 %v7374, %v7372
        %v7499 = vpack.c.b16 %v7377, %v7375
        %v7500 = vpack.c.b16 %v7378, %v7376
        %v7501 = vpack.c.b16 %v7381, %v7379
        %v7502 = vpack.c.b16 %v7382, %v7380
        %v7503 = vpack.c.b16 %v7385, %v7383
        %v7504 = vpack.c.b16 %v7386, %v7384
        %v7505 = vpack.c.b16 %v7389, %v7387
        %v7506 = vpack.c.b16 %v7390, %v7388
        %v7507 = vpack.c.b16 %v7393, %v7391
        %v7508 = vpack.c.b16 %v7394, %v7392
        %v7509 = vpack.c.b16 %v7397, %v7395
        %v7510 = vpack.c.b16 %v7398, %v7396
        %v7511 = vpack.c.b16 %v7401, %v7399
        %v7512 = vpack.c.b16 %v7402, %v7400
        %v7513 = vpack.c.b16 %v7405, %v7403
        %v7514 = vpack.c.b16 %v7406, %v7404
        %v7515 = vpack.c.b16 %v7409, %v7407
        %v7516 = vpack.c.b16 %v7410, %v7408
        %v7517 = vpack.c.b16 %v7413, %v7411
        %v7518 = vpack.c.b16 %v7414, %v7412
        %v7519 = vpack.c.b16 %v7417, %v7415
        %v7520 = vpack.c.b16 %v7418, %v7416
        %v7521 = vpack.c.b16 %v7421, %v7419
        %v7522 = vpack.c.b16 %v7422, %v7420
        %v7523 = vpack.c.b16 %v7425, %v7423
        %v7524 = vpack.c.b16 %v7426, %v7424
        %v7525 = vpack.c.b16 %v7429, %v7427
        %v7526 = vpack.c.b16 %v7430, %v7428
        %v7527 = vpack.c.b16 %v7433, %v7431
        %v7528 = vpack.c.b16 %v7434, %v7432
        %v7529 = vpack.c.b16 %v7437, %v7435
        %v7530 = vpack.c.b16 %v7438, %v7436
        %v7531 = vpack.c.b16 %v7441, %v7439
        %v7532 = vpack.c.b16 %v7442, %v7440
        %v7533 = vpack.c.b16 %v7445, %v7443
        %v7534 = vpack.c.b16 %v7446, %v7444
        %v7535 = vpack.c.b16 %v7449, %v7447
        %v7536 = vpack.c.b16 %v7450, %v7448
        %v7537 = vpack.c.b16 %v7453, %v7451
        %v7538 = vpack.c.b16 %v7454, %v7452
        %v7539 = vpack.c.b16 %v7457, %v7455
        %v7540 = vpack.c.b16 %v7458, %v7456
        %v7541 = vpack.c.b16 %v7461, %v7459
        %v7542 = vpack.c.b16 %v7462, %v7460
        %v7543 = vpack.c.b16 %v7465, %v7463
        %v7544 = vpack.c.b16 %v7466, %v7464
        %v7545 = vpack.c.b16 %v7469, %v7467
        %v7546 = vpack.c.b16 %v7470, %v7468
        %v7547 = vpack.c.b16 %v7473, %v7471
        %v7548 = vpack.c.b16 %v7474, %v7472
        %v7549 = vpack.c.b16 %v7477, %v7475
        %v7550 = vpack.c.b16 %v7478, %v7476
        %v7551 = vpack.c.b16 %v7481, %v7479
        %v7552 = vpack.c.b16 %v7482, %v7480
        %v7553 = vpack.c.b16 %v7485, %v7483
        %v7554 = vpack.c.b16 %v7486, %v7484
        %v7555 = vpack.c.b16 %v7489, %v7487
        %v7556 = vpack.c.b16 %v7490, %v7488
        %v7557 = vpack.c.b16 %v7493, %v7491
        %v7558 = vpack.c.b16 %v7494, %v7492
        %7623 = vmatprep.subr.bf16.mxu0 %v7496
        %7624 = vmatpush1.bf16.msra.mxu0 %v7495
        %7625 = vmatprep.subr.bf16.mxu0 %v7498
        %7626 = vmatpush1.bf16.msra.mxu0 %v7497
        %7627 = vmatprep.subr.bf16.mxu0 %v7500
        %7628 = vmatpush1.bf16.msra.mxu0 %v7499
        %7629 = vmatprep.subr.bf16.mxu0 %v7502
        %7630 = vmatpush1.bf16.msra.mxu0 %v7501
        %7631 = vmatprep.subr.bf16.mxu0 %v7504
        %7632 = vmatpush1.bf16.msra.mxu0 %v7503
        %7633 = vmatprep.subr.bf16.mxu0 %v7506
        %7634 = vmatpush1.bf16.msra.mxu0 %v7505
        %7635 = vmatprep.subr.bf16.mxu0 %v7508
        %7636 = vmatpush1.bf16.msra.mxu0 %v7507
        %7637 = vmatprep.subr.bf16.mxu0 %v7510
        %7638 = vmatpush1.bf16.msra.mxu0 %v7509
        %7639 = vmatprep.subr.bf16.mxu0 %v7512
        %7640 = vmatpush1.bf16.msra.mxu0 %v7511
        %7641 = vmatprep.subr.bf16.mxu0 %v7514
        %7642 = vmatpush1.bf16.msra.mxu0 %v7513
        %7643 = vmatprep.subr.bf16.mxu0 %v7516
        %7644 = vmatpush1.bf16.msra.mxu0 %v7515
        %7645 = vmatprep.subr.bf16.mxu0 %v7518
        %7646 = vmatpush1.bf16.msra.mxu0 %v7517
        %7647 = vmatprep.subr.bf16.mxu0 %v7520
        %7648 = vmatpush1.bf16.msra.mxu0 %v7519
        %7649 = vmatprep.subr.bf16.mxu0 %v7522
        %7650 = vmatpush1.bf16.msra.mxu0 %v7521
        %7651 = vmatprep.subr.bf16.mxu0 %v7524
        %7652 = vmatpush1.bf16.msra.mxu0 %v7523
        %7653 = vmatprep.subr.bf16.mxu0 %v7526
        %7654 = vmatpush1.bf16.msra.mxu0 %v7525
        %7655 = vmatprep.mubr.bf16.mxu0 %v6792
        %7656 = vmatmul.mubr.bf16.gmra.mrb[0].mxu0 %v6791
        %v7657 = vpop.f32.mrb[0].mxu0
        %v7658 = vadd.f32 %v6016, %v7657
        %v7659 = vpop.f32.mrb[0].mxu0
        %v7660 = vadd.f32 %v6020, %v7659
        %v7661 = vpop.f32.mrb[0].mxu0
        %v7662 = vadd.f32 %v6016, %v7661
        %v7663 = vpop.f32.mrb[0].mxu0
        %v7664 = vadd.f32 %v6020, %v7663
        %7665 = vmatprep.mubr.bf16.mxu0 %v6796
        %7666 = vmatmul.mubr.bf16.gmra.mrb[0].mxu0 %v6795
        %v7667 = vpop.f32.mrb[0].mxu0
        %v7668 = vadd.f32 %v6016, %v7667
        %v7669 = vpop.f32.mrb[0].mxu0
        %v7670 = vadd.f32 %v6020, %v7669
        %v7671 = vpop.f32.mrb[0].mxu0
        %v7672 = vadd.f32 %v6016, %v7671
        %v7673 = vpop.f32.mrb[0].mxu0
        %v7674 = vadd.f32 %v6020, %v7673
        %7675 = vmatprep.mubr.bf16.mxu0 %v6800
        %7676 = vmatmul.mubr.bf16.gmra.mrb[0].mxu0 %v6799
        %v7677 = vpop.f32.mrb[0].mxu0
        %v7678 = vadd.f32 %v6016, %v7677
        %v7679 = vpop.f32.mrb[0].mxu0
        %v7680 = vadd.f32 %v6020, %v7679
        %v7681 = vpop.f32.mrb[0].mxu0
        %v7682 = vadd.f32 %v6016, %v7681
        %v7683 = vpop.f32.mrb[0].mxu0
        %v7684 = vadd.f32 %v6020, %v7683
        %7685 = vmatprep.mubr.bf16.mxu0 %v6804
        %7686 = vmatmul.mubr.bf16.gmra.mrb[0].mxu0 %v6803
        %v7687 = vpop.f32.mrb[0].mxu0
        %v7688 = vadd.f32 %v6016, %v7687
        %v7689 = vpop.f32.mrb[0].mxu0
        %v7690 = vadd.f32 %v6020, %v7689
        %v7691 = vpop.f32.mrb[0].mxu0
        %v7692 = vadd.f32 %v6016, %v7691
        %v7693 = vpop.f32.mrb[0].mxu0
        %v7694 = vadd.f32 %v6020, %v7693
        %7695 = vmatprep.mubr.bf16.mxu0 %v6808
        %7696 = vmatmul.mubr.bf16.gmra.mrb[0].mxu0 %v6807
        %v7697 = vpop.f32.mrb[0].mxu0
        %v7698 = vadd.f32 %v6016, %v7697
        %v7699 = vpop.f32.mrb[0].mxu0
        %v7700 = vadd.f32 %v6020, %v7699
        %v7701 = vpop.f32.mrb[0].mxu0
        %v7702 = vadd.f32 %v6016, %v7701
        %v7703 = vpop.f32.mrb[0].mxu0
        %v7704 = vadd.f32 %v6020, %v7703
        %7705 = vmatprep.mubr.bf16.mxu0 %v6812
        %7706 = vmatmul.mubr.bf16.gmra.mrb[0].mxu0 %v6811
        %v7707 = vpop.f32.mrb[0].mxu0
        %v7708 = vadd.f32 %v6016, %v7707
        %v7709 = vpop.f32.mrb[0].mxu0
        %v7710 = vadd.f32 %v6020, %v7709
        %v7711 = vpop.f32.mrb[0].mxu0
        %v7712 = vadd.f32 %v6016, %v7711
        %v7713 = vpop.f32.mrb[0].mxu0
        %v7714 = vadd.f32 %v6020, %v7713
        %7715 = vmatprep.mubr.bf16.mxu0 %v6816
        %7716 = vmatmul.mubr.bf16.gmra.mrb[0].mxu0 %v6815
        %v7717 = vpop.f32.mrb[0].mxu0
        %v7718 = vadd.f32 %v6016, %v7717
        %v7719 = vpop.f32.mrb[0].mxu0
        %v7720 = vadd.f32 %v6020, %v7719
        %v7721 = vpop.f32.mrb[0].mxu0
        %v7722 = vadd.f32 %v6016, %v7721
        %v7723 = vpop.f32.mrb[0].mxu0
        %v7724 = vadd.f32 %v6020, %v7723
        %7725 = vmatprep.mubr.bf16.mxu0 %v6820
        %7726 = vmatmul.mubr.bf16.gmra.mrb[0].mxu0 %v6819
        %v7727 = vpop.f32.mrb[0].mxu0
        %v7728 = vadd.f32 %v6016, %v7727
        %v7729 = vpop.f32.mrb[0].mxu0
        %v7730 = vadd.f32 %v6020, %v7729
        %v7731 = vpop.f32.mrb[0].mxu0
        %v7732 = vadd.f32 %v6016, %v7731
        %v7733 = vpop.f32.mrb[0].mxu0
        %v7734 = vadd.f32 %v6020, %v7733
        %7735 = vmatprep.mubr.bf16.mxu0 %v6824
        %7736 = vmatmul.mubr.bf16.gmra.mrb[0].mxu0 %v6823
        %v7737 = vpop.f32.mrb[0].mxu0
        %v7738 = vadd.f32 %v6016, %v7737
        %v7739 = vpop.f32.mrb[0].mxu0
        %v7740 = vadd.f32 %v6020, %v7739
        %v7741 = vpop.f32.mrb[0].mxu0
        %v7742 = vadd.f32 %v6016, %v7741
        %v7743 = vpop.f32.mrb[0].mxu0
        %v7744 = vadd.f32 %v6020, %v7743
        %7745 = vmatprep.mubr.bf16.mxu0 %v6828
        %7746 = vmatmul.mubr.bf16.gmra.mrb[0].mxu0 %v6827
        %v7747 = vpop.f32.mrb[0].mxu0
        %v7748 = vadd.f32 %v6016, %v7747
        %v7749 = vpop.f32.mrb[0].mxu0
        %v7750 = vadd.f32 %v6020, %v7749
        %v7751 = vpop.f32.mrb[0].mxu0
        %v7752 = vadd.f32 %v6016, %v7751
        %v7753 = vpop.f32.mrb[0].mxu0
        %v7754 = vadd.f32 %v6020, %v7753
        %7755 = vmatprep.mubr.bf16.mxu0 %v6832
        %7756 = vmatmul.mubr.bf16.gmra.mrb[0].mxu0 %v6831
        %v7757 = vpop.f32.mrb[0].mxu0
        %v7758 = vadd.f32 %v6016, %v7757
        %v7759 = vpop.f32.mrb[0].mxu0
        %v7760 = vadd.f32 %v6020, %v7759
        %v7761 = vpop.f32.mrb[0].mxu0
        %v7762 = vadd.f32 %v6016, %v7761
        %v7763 = vpop.f32.mrb[0].mxu0
        %v7764 = vadd.f32 %v6020, %v7763
        %7765 = vmatprep.mubr.bf16.mxu0 %v6836
        %7766 = vmatmul.mubr.bf16.gmra.mrb[0].mxu0 %v6835
        %v7767 = vpop.f32.mrb[0].mxu0
        %v7768 = vadd.f32 %v6016, %v7767
        %v7769 = vpop.f32.mrb[0].mxu0
        %v7770 = vadd.f32 %v6020, %v7769
        %v7771 = vpop.f32.mrb[0].mxu0
        %v7772 = vadd.f32 %v6016, %v7771
        %v7773 = vpop.f32.mrb[0].mxu0
        %v7774 = vadd.f32 %v6020, %v7773
        %7775 = vmatprep.mubr.bf16.mxu0 %v6840
        %7776 = vmatmul.mubr.bf16.gmra.mrb[0].mxu0 %v6839
        %v7777 = vpop.f32.mrb[0].mxu0
        %v7778 = vadd.f32 %v6016, %v7777
        %v7779 = vpop.f32.mrb[0].mxu0
        %v7780 = vadd.f32 %v6020, %v7779
        %v7781 = vpop.f32.mrb[0].mxu0
        %v7782 = vadd.f32 %v6016, %v7781
        %v7783 = vpop.f32.mrb[0].mxu0
        %v7784 = vadd.f32 %v6020, %v7783
        %7785 = vmatprep.mubr.bf16.mxu0 %v6844
        %7786 = vmatmul.mubr.bf16.gmra.mrb[0].mxu0 %v6843
        %v7787 = vpop.f32.mrb[0].mxu0
        %v7788 = vadd.f32 %v6016, %v7787
        %v7789 = vpop.f32.mrb[0].mxu0
        %v7790 = vadd.f32 %v6020, %v7789
        %v7791 = vpop.f32.mrb[0].mxu0
        %v7792 = vadd.f32 %v6016, %v7791
        %v7793 = vpop.f32.mrb[0].mxu0
        %v7794 = vadd.f32 %v6020, %v7793
        %7795 = vmatprep.mubr.bf16.mxu0 %v6848
        %7796 = vmatmul.mubr.bf16.gmra.mrb[0].mxu0 %v6847
        %v7797 = vpop.f32.mrb[0].mxu0
        %v7798 = vadd.f32 %v6016, %v7797
        %v7799 = vpop.f32.mrb[0].mxu0
        %v7800 = vadd.f32 %v6020, %v7799
        %v7801 = vpop.f32.mrb[0].mxu0
        %v7802 = vadd.f32 %v6016, %v7801
        %v7803 = vpop.f32.mrb[0].mxu0
        %v7804 = vadd.f32 %v6020, %v7803
        %7805 = vmatprep.mubr.bf16.mxu0 %v6852
        %7806 = vmatmul.mubr.bf16.gmra.mrb[0].mxu0 %v6851
        %v7807 = vpop.f32.mrb[0].mxu0
        %v7808 = vadd.f32 %v6016, %v7807
        %v7809 = vpop.f32.mrb[0].mxu0
        %v7810 = vadd.f32 %v6020, %v7809
        %v7811 = vpop.f32.mrb[0].mxu0
        %v7812 = vadd.f32 %v6016, %v7811
        %v7813 = vpop.f32.mrb[0].mxu0
        %v7814 = vadd.f32 %v6020, %v7813
        %7815 = vmatprep.mubr.bf16.mxu0 %v6856
        %7816 = vmatmul.mubr.bf16.gmra.mrb[0].mxu0 %v6855
        %v7817 = vpop.f32.mrb[0].mxu0
        %v7818 = vadd.f32 %v6016, %v7817
        %v7819 = vpop.f32.mrb[0].mxu0
        %v7820 = vadd.f32 %v6020, %v7819
        %v7821 = vpop.f32.mrb[0].mxu0
        %v7822 = vadd.f32 %v6016, %v7821
        %v7823 = vpop.f32.mrb[0].mxu0
        %v7824 = vadd.f32 %v6020, %v7823
        %7825 = vmatprep.mubr.bf16.mxu0 %v6860
        %7826 = vmatmul.mubr.bf16.gmra.mrb[0].mxu0 %v6859
        %v7827 = vpop.f32.mrb[0].mxu0
        %v7828 = vadd.f32 %v6016, %v7827
        %v7829 = vpop.f32.mrb[0].mxu0
        %v7830 = vadd.f32 %v6020, %v7829
        %v7831 = vpop.f32.mrb[0].mxu0
        %v7832 = vadd.f32 %v6016, %v7831
        %v7833 = vpop.f32.mrb[0].mxu0
        %v7834 = vadd.f32 %v6020, %v7833
        %7835 = vmatprep.mubr.bf16.mxu0 %v6864
        %7836 = vmatmul.mubr.bf16.gmra.mrb[0].mxu0 %v6863
        %v7837 = vpop.f32.mrb[0].mxu0
        %v7838 = vadd.f32 %v6016, %v7837
        %v7839 = vpop.f32.mrb[0].mxu0
        %v7840 = vadd.f32 %v6020, %v7839
        %v7841 = vpop.f32.mrb[0].mxu0
        %v7842 = vadd.f32 %v6016, %v7841
        %v7843 = vpop.f32.mrb[0].mxu0
        %v7844 = vadd.f32 %v6020, %v7843
        %7845 = vmatprep.mubr.bf16.mxu0 %v6868
        %7846 = vmatmul.mubr.bf16.gmra.mrb[0].mxu0 %v6867
        %v7847 = vpop.f32.mrb[0].mxu0
        %v7848 = vadd.f32 %v6016, %v7847
        %v7849 = vpop.f32.mrb[0].mxu0
        %v7850 = vadd.f32 %v6020, %v7849
        %v7851 = vpop.f32.mrb[0].mxu0
        %v7852 = vadd.f32 %v6016, %v7851
        %v7853 = vpop.f32.mrb[0].mxu0
        %v7854 = vadd.f32 %v6020, %v7853
        %7855 = vmatprep.mubr.bf16.mxu0 %v6872
        %7856 = vmatmul.mubr.bf16.gmra.mrb[0].mxu0 %v6871
        %v7857 = vpop.f32.mrb[0].mxu0
        %v7858 = vadd.f32 %v6016, %v7857
        %v7859 = vpop.f32.mrb[0].mxu0
        %v7860 = vadd.f32 %v6020, %v7859
        %v7861 = vpop.f32.mrb[0].mxu0
        %v7862 = vadd.f32 %v6016, %v7861
        %v7863 = vpop.f32.mrb[0].mxu0
        %v7864 = vadd.f32 %v6020, %v7863
        %7865 = vmatprep.mubr.bf16.mxu0 %v6876
        %7866 = vmatmul.mubr.bf16.gmra.mrb[0].mxu0 %v6875
        %v7867 = vpop.f32.mrb[0].mxu0
        %v7868 = vadd.f32 %v6016, %v7867
        %v7869 = vpop.f32.mrb[0].mxu0
        %v7870 = vadd.f32 %v6020, %v7869
        %v7871 = vpop.f32.mrb[0].mxu0
        %v7872 = vadd.f32 %v6016, %v7871
        %v7873 = vpop.f32.mrb[0].mxu0
        %v7874 = vadd.f32 %v6020, %v7873
        %7875 = vmatprep.mubr.bf16.mxu0 %v6880
        %7876 = vmatmul.mubr.bf16.gmra.mrb[0].mxu0 %v6879
        %v7877 = vpop.f32.mrb[0].mxu0
        %v7878 = vadd.f32 %v6016, %v7877
        %v7879 = vpop.f32.mrb[0].mxu0
        %v7880 = vadd.f32 %v6020, %v7879
        %v7881 = vpop.f32.mrb[0].mxu0
        %v7882 = vadd.f32 %v6016, %v7881
        %v7883 = vpop.f32.mrb[0].mxu0
        %v7884 = vadd.f32 %v6020, %v7883
        %7885 = vmatprep.mubr.bf16.mxu0 %v6884
        %7886 = vmatmul.mubr.bf16.gmra.mrb[0].mxu0 %v6883
        %v7887 = vpop.f32.mrb[0].mxu0
        %v7888 = vadd.f32 %v6016, %v7887
        %v7889 = vpop.f32.mrb[0].mxu0
        %v7890 = vadd.f32 %v6020, %v7889
        %v7891 = vpop.f32.mrb[0].mxu0
        %v7892 = vadd.f32 %v6016, %v7891
        %v7893 = vpop.f32.mrb[0].mxu0
        %v7894 = vadd.f32 %v6020, %v7893
        %7895 = vmatprep.mubr.bf16.mxu0 %v6888
        %7896 = vmatmul.mubr.bf16.gmra.mrb[0].mxu0 %v6887
        %v7897 = vpop.f32.mrb[0].mxu0
        %v7898 = vadd.f32 %v6016, %v7897
        %v7899 = vpop.f32.mrb[0].mxu0
        %v7900 = vadd.f32 %v6020, %v7899
        %v7901 = vpop.f32.mrb[0].mxu0
        %v7902 = vadd.f32 %v6016, %v7901
        %v7903 = vpop.f32.mrb[0].mxu0
        %v7904 = vadd.f32 %v6020, %v7903
        %7905 = vmatprep.mubr.bf16.mxu0 %v6892
        %7906 = vmatmul.mubr.bf16.gmra.mrb[0].mxu0 %v6891
        %v7907 = vpop.f32.mrb[0].mxu0
        %v7908 = vadd.f32 %v6016, %v7907
        %v7909 = vpop.f32.mrb[0].mxu0
        %v7910 = vadd.f32 %v6020, %v7909
        %v7911 = vpop.f32.mrb[0].mxu0
        %v7912 = vadd.f32 %v6016, %v7911
        %v7913 = vpop.f32.mrb[0].mxu0
        %v7914 = vadd.f32 %v6020, %v7913
        %7915 = vmatprep.mubr.bf16.mxu0 %v6896
        %7916 = vmatmul.mubr.bf16.gmra.mrb[0].mxu0 %v6895
        %v7917 = vpop.f32.mrb[0].mxu0
        %v7918 = vadd.f32 %v6016, %v7917
        %v7919 = vpop.f32.mrb[0].mxu0
        %v7920 = vadd.f32 %v6020, %v7919
        %v7921 = vpop.f32.mrb[0].mxu0
        %v7922 = vadd.f32 %v6016, %v7921
        %v7923 = vpop.f32.mrb[0].mxu0
        %v7924 = vadd.f32 %v6020, %v7923
        %7925 = vmatprep.mubr.bf16.mxu0 %v6900
        %7926 = vmatmul.mubr.bf16.gmra.mrb[0].mxu0 %v6899
        %v7927 = vpop.f32.mrb[0].mxu0
        %v7928 = vadd.f32 %v6016, %v7927
        %v7929 = vpop.f32.mrb[0].mxu0
        %v7930 = vadd.f32 %v6020, %v7929
        %v7931 = vpop.f32.mrb[0].mxu0
        %v7932 = vadd.f32 %v6016, %v7931
        %v7933 = vpop.f32.mrb[0].mxu0
        %v7934 = vadd.f32 %v6020, %v7933
        %7935 = vmatprep.mubr.bf16.mxu0 %v6904
        %7936 = vmatmul.mubr.bf16.gmra.mrb[0].mxu0 %v6903
        %v7937 = vpop.f32.mrb[0].mxu0
        %v7938 = vadd.f32 %v6016, %v7937
        %v7939 = vpop.f32.mrb[0].mxu0
        %v7940 = vadd.f32 %v6020, %v7939
        %v7941 = vpop.f32.mrb[0].mxu0
        %v7942 = vadd.f32 %v6016, %v7941
        %v7943 = vpop.f32.mrb[0].mxu0
        %v7944 = vadd.f32 %v6020, %v7943
        %7945 = vmatprep.mubr.bf16.mxu0 %v6908
        %7946 = vmatmul.mubr.bf16.gmra.mrb[0].mxu0 %v6907
        %v7947 = vpop.f32.mrb[0].mxu0
        %v7948 = vadd.f32 %v6016, %v7947
        %v7949 = vpop.f32.mrb[0].mxu0
        %v7950 = vadd.f32 %v6020, %v7949
        %v7951 = vpop.f32.mrb[0].mxu0
        %v7952 = vadd.f32 %v6016, %v7951
        %v7953 = vpop.f32.mrb[0].mxu0
        %v7954 = vadd.f32 %v6020, %v7953
        %7955 = vmatprep.mubr.bf16.mxu0 %v6912
        %7956 = vmatmul.mubr.bf16.gmra.mrb[0].mxu0 %v6911
        %v7957 = vpop.f32.mrb[0].mxu0
        %v7958 = vadd.f32 %v6016, %v7957
        %v7959 = vpop.f32.mrb[0].mxu0
        %v7960 = vadd.f32 %v6020, %v7959
        %v7961 = vpop.f32.mrb[0].mxu0
        %v7962 = vadd.f32 %v6016, %v7961
        %v7963 = vpop.f32.mrb[0].mxu0
        %v7964 = vadd.f32 %v6020, %v7963
        %7965 = vmatprep.mubr.bf16.mxu0 %v6916
        %7966 = vmatmul.mubr.bf16.gmra.mrb[0].mxu0 %v6915
        %v7967 = vpop.f32.mrb[0].mxu0
        %v7968 = vadd.f32 %v6016, %v7967
        %v7969 = vpop.f32.mrb[0].mxu0
        %v7970 = vadd.f32 %v6020, %v7969
        %v7971 = vpop.f32.mrb[0].mxu0
        %v7972 = vadd.f32 %v6016, %v7971
        %v7973 = vpop.f32.mrb[0].mxu0
        %v7974 = vadd.f32 %v6020, %v7973
        %7975 = vmatprep.mubr.bf16.mxu0 %v6920
        %7976 = vmatmul.mubr.bf16.gmra.mrb[0].mxu0 %v6919
        %v7977 = vpop.f32.mrb[0].mxu0
        %v7978 = vadd.f32 %v6016, %v7977
        %v7979 = vpop.f32.mrb[0].mxu0
        %v7980 = vadd.f32 %v6020, %v7979
        %v7981 = vpop.f32.mrb[0].mxu0
        %v7982 = vadd.f32 %v6016, %v7981
        %v7983 = vpop.f32.mrb[0].mxu0
        %v7984 = vadd.f32 %v6020, %v7983
        %7985 = vmatprep.mubr.bf16.mxu0 %v6924
        %7986 = vmatmul.mubr.bf16.gmra.mrb[0].mxu0 %v6923
        %v7987 = vpop.f32.mrb[0].mxu0
        %v7988 = vadd.f32 %v6016, %v7987
        %v7989 = vpop.f32.mrb[0].mxu0
        %v7990 = vadd.f32 %v6020, %v7989
        %v7991 = vpop.f32.mrb[0].mxu0
        %v7992 = vadd.f32 %v6016, %v7991
        %v7993 = vpop.f32.mrb[0].mxu0
        %v7994 = vadd.f32 %v6020, %v7993
        %7995 = vmatprep.mubr.bf16.mxu0 %v6928
        %7996 = vmatmul.mubr.bf16.gmra.mrb[0].mxu0 %v6927
        %v7997 = vpop.f32.mrb[0].mxu0
        %v7998 = vadd.f32 %v6016, %v7997
        %v7999 = vpop.f32.mrb[0].mxu0
        %v8000 = vadd.f32 %v6020, %v7999
        %v8001 = vpop.f32.mrb[0].mxu0
        %v8002 = vadd.f32 %v6016, %v8001
        %v8003 = vpop.f32.mrb[0].mxu0
        %v8004 = vadd.f32 %v6020, %v8003
        %8005 = vmatprep.mubr.bf16.mxu0 %v6932
        %8006 = vmatmul.mubr.bf16.gmra.mrb[0].mxu0 %v6931
        %v8007 = vpop.f32.mrb[0].mxu0
        %v8008 = vadd.f32 %v6016, %v8007
        %v8009 = vpop.f32.mrb[0].mxu0
        %v8010 = vadd.f32 %v6020, %v8009
        %v8011 = vpop.f32.mrb[0].mxu0
        %v8012 = vadd.f32 %v6016, %v8011
        %v8013 = vpop.f32.mrb[0].mxu0
        %v8014 = vadd.f32 %v6020, %v8013
        %8015 = vmatprep.mubr.bf16.mxu0 %v6936
        %8016 = vmatmul.mubr.bf16.gmra.mrb[0].mxu0 %v6935
        %v8017 = vpop.f32.mrb[0].mxu0
        %v8018 = vadd.f32 %v6016, %v8017
        %v8019 = vpop.f32.mrb[0].mxu0
        %v8020 = vadd.f32 %v6020, %v8019
        %v8021 = vpop.f32.mrb[0].mxu0
        %v8022 = vadd.f32 %v6016, %v8021
        %v8023 = vpop.f32.mrb[0].mxu0
        %v8024 = vadd.f32 %v6020, %v8023
        %8025 = vmatprep.mubr.bf16.mxu0 %v6940
        %8026 = vmatmul.mubr.bf16.gmra.mrb[0].mxu0 %v6939
        %v8027 = vpop.f32.mrb[0].mxu0
        %v8028 = vadd.f32 %v6016, %v8027
        %v8029 = vpop.f32.mrb[0].mxu0
        %v8030 = vadd.f32 %v6020, %v8029
        %v8031 = vpop.f32.mrb[0].mxu0
        %v8032 = vadd.f32 %v6016, %v8031
        %v8033 = vpop.f32.mrb[0].mxu0
        %v8034 = vadd.f32 %v6020, %v8033
        %8035 = vmatprep.mubr.bf16.mxu0 %v6944
        %8036 = vmatmul.mubr.bf16.gmra.mrb[0].mxu0 %v6943
        %v8037 = vpop.f32.mrb[0].mxu0
        %v8038 = vadd.f32 %v6016, %v8037
        %v8039 = vpop.f32.mrb[0].mxu0
        %v8040 = vadd.f32 %v6020, %v8039
        %v8041 = vpop.f32.mrb[0].mxu0
        %v8042 = vadd.f32 %v6016, %v8041
        %v8043 = vpop.f32.mrb[0].mxu0
        %v8044 = vadd.f32 %v6020, %v8043
        %8045 = vmatprep.mubr.bf16.mxu0 %v6948
        %8046 = vmatmul.mubr.bf16.gmra.mrb[0].mxu0 %v6947
        %v8047 = vpop.f32.mrb[0].mxu0
        %v8048 = vadd.f32 %v6016, %v8047
        %v8049 = vpop.f32.mrb[0].mxu0
        %v8050 = vadd.f32 %v6020, %v8049
        %v8051 = vpop.f32.mrb[0].mxu0
        %v8052 = vadd.f32 %v6016, %v8051
        %v8053 = vpop.f32.mrb[0].mxu0
        %v8054 = vadd.f32 %v6020, %v8053
        %8055 = vmatprep.mubr.bf16.mxu0 %v6952
        %8056 = vmatmul.mubr.bf16.gmra.mrb[0].mxu0 %v6951
        %v8057 = vpop.f32.mrb[0].mxu0
        %v8058 = vadd.f32 %v6016, %v8057
        %v8059 = vpop.f32.mrb[0].mxu0
        %v8060 = vadd.f32 %v6020, %v8059
        %v8061 = vpop.f32.mrb[0].mxu0
        %v8062 = vadd.f32 %v6016, %v8061
        %v8063 = vpop.f32.mrb[0].mxu0
        %v8064 = vadd.f32 %v6020, %v8063
        %8065 = vmatprep.mubr.bf16.mxu0 %v6956
        %8066 = vmatmul.mubr.bf16.gmra.mrb[0].mxu0 %v6955
        %v8067 = vpop.f32.mrb[0].mxu0
        %v8068 = vadd.f32 %v6016, %v8067
        %v8069 = vpop.f32.mrb[0].mxu0
        %v8070 = vadd.f32 %v6020, %v8069
        %v8071 = vpop.f32.mrb[0].mxu0
        %v8072 = vadd.f32 %v6016, %v8071
        %v8073 = vpop.f32.mrb[0].mxu0
        %v8074 = vadd.f32 %v6020, %v8073
        %8075 = vmatprep.mubr.bf16.mxu0 %v6960
        %8076 = vmatmul.mubr.bf16.gmra.mrb[0].mxu0 %v6959
        %v8077 = vpop.f32.mrb[0].mxu0
        %v8078 = vadd.f32 %v6016, %v8077
        %v8079 = vpop.f32.mrb[0].mxu0
        %v8080 = vadd.f32 %v6020, %v8079
        %v8081 = vpop.f32.mrb[0].mxu0
        %v8082 = vadd.f32 %v6016, %v8081
        %v8083 = vpop.f32.mrb[0].mxu0
        %v8084 = vadd.f32 %v6020, %v8083
        %8085 = vmatprep.mubr.bf16.mxu0 %v6964
        %8086 = vmatmul.mubr.bf16.gmra.mrb[0].mxu0 %v6963
        %v8087 = vpop.f32.mrb[0].mxu0
        %v8088 = vadd.f32 %v6016, %v8087
        %v8089 = vpop.f32.mrb[0].mxu0
        %v8090 = vadd.f32 %v6020, %v8089
        %v8091 = vpop.f32.mrb[0].mxu0
        %v8092 = vadd.f32 %v6016, %v8091
        %v8093 = vpop.f32.mrb[0].mxu0
        %v8094 = vadd.f32 %v6020, %v8093
        %8095 = vmatprep.mubr.bf16.mxu0 %v6968
        %8096 = vmatmul.mubr.bf16.gmra.mrb[0].mxu0 %v6967
        %v8097 = vpop.f32.mrb[0].mxu0
        %v8098 = vadd.f32 %v6016, %v8097
        %v8099 = vpop.f32.mrb[0].mxu0
        %v8100 = vadd.f32 %v6020, %v8099
        %v8101 = vpop.f32.mrb[0].mxu0
        %v8102 = vadd.f32 %v6016, %v8101
        %v8103 = vpop.f32.mrb[0].mxu0
        %v8104 = vadd.f32 %v6020, %v8103
        %8105 = vmatprep.mubr.bf16.mxu0 %v6972
        %8106 = vmatmul.mubr.bf16.gmra.mrb[0].mxu0 %v6971
        %v8107 = vpop.f32.mrb[0].mxu0
        %v8108 = vadd.f32 %v6016, %v8107
        %v8109 = vpop.f32.mrb[0].mxu0
        %v8110 = vadd.f32 %v6020, %v8109
        %v8111 = vpop.f32.mrb[0].mxu0
        %v8112 = vadd.f32 %v6016, %v8111
        %v8113 = vpop.f32.mrb[0].mxu0
        %v8114 = vadd.f32 %v6020, %v8113
        %8115 = vmatprep.mubr.bf16.mxu0 %v6976
        %8116 = vmatmul.mubr.bf16.gmra.mrb[0].mxu0 %v6975
        %v8117 = vpop.f32.mrb[0].mxu0
        %v8118 = vadd.f32 %v6016, %v8117
        %v8119 = vpop.f32.mrb[0].mxu0
        %v8120 = vadd.f32 %v6020, %v8119
        %v8121 = vpop.f32.mrb[0].mxu0
        %v8122 = vadd.f32 %v6016, %v8121
        %v8123 = vpop.f32.mrb[0].mxu0
        %v8124 = vadd.f32 %v6020, %v8123
        %8125 = vmatprep.mubr.bf16.mxu0 %v6980
        %8126 = vmatmul.mubr.bf16.gmra.mrb[0].mxu0 %v6979
        %v8127 = vpop.f32.mrb[0].mxu0
        %v8128 = vadd.f32 %v6016, %v8127
        %v8129 = vpop.f32.mrb[0].mxu0
        %v8130 = vadd.f32 %v6020, %v8129
        %v8131 = vpop.f32.mrb[0].mxu0
        %v8132 = vadd.f32 %v6016, %v8131
        %v8133 = vpop.f32.mrb[0].mxu0
        %v8134 = vadd.f32 %v6020, %v8133
        %8135 = vmatprep.mubr.bf16.mxu0 %v6984
        %8136 = vmatmul.mubr.bf16.gmra.mrb[0].mxu0 %v6983
        %v8137 = vpop.f32.mrb[0].mxu0
        %v8138 = vadd.f32 %v6016, %v8137
        %v8139 = vpop.f32.mrb[0].mxu0
        %v8140 = vadd.f32 %v6020, %v8139
        %v8141 = vpop.f32.mrb[0].mxu0
        %v8142 = vadd.f32 %v6016, %v8141
        %v8143 = vpop.f32.mrb[0].mxu0
        %v8144 = vadd.f32 %v6020, %v8143
        %8145 = vmatprep.mubr.bf16.mxu0 %v6988
        %8146 = vmatmul.mubr.bf16.gmra.mrb[0].mxu0 %v6987
        %v8147 = vpop.f32.mrb[0].mxu0
        %v8148 = vadd.f32 %v6016, %v8147
        %v8149 = vpop.f32.mrb[0].mxu0
        %v8150 = vadd.f32 %v6020, %v8149
        %v8151 = vpop.f32.mrb[0].mxu0
        %v8152 = vadd.f32 %v6016, %v8151
        %v8153 = vpop.f32.mrb[0].mxu0
        %v8154 = vadd.f32 %v6020, %v8153
        %8155 = vmatprep.mubr.bf16.mxu0 %v6992
        %8156 = vmatmul.mubr.bf16.gmra.mrb[0].mxu0 %v6991
        %v8157 = vpop.f32.mrb[0].mxu0
        %v8158 = vadd.f32 %v6016, %v8157
        %v8159 = vpop.f32.mrb[0].mxu0
        %v8160 = vadd.f32 %v6020, %v8159
        %v8161 = vpop.f32.mrb[0].mxu0
        %v8162 = vadd.f32 %v6016, %v8161
        %v8163 = vpop.f32.mrb[0].mxu0
        %v8164 = vadd.f32 %v6020, %v8163
        %8165 = vmatprep.mubr.bf16.mxu0 %v6996
        %8166 = vmatmul.mubr.bf16.gmra.mrb[0].mxu0 %v6995
        %v8167 = vpop.f32.mrb[0].mxu0
        %v8168 = vadd.f32 %v6016, %v8167
        %v8169 = vpop.f32.mrb[0].mxu0
        %v8170 = vadd.f32 %v6020, %v8169
        %v8171 = vpop.f32.mrb[0].mxu0
        %v8172 = vadd.f32 %v6016, %v8171
        %v8173 = vpop.f32.mrb[0].mxu0
        %v8174 = vadd.f32 %v6020, %v8173
        %8175 = vmatprep.mubr.bf16.mxu0 %v7000
        %8176 = vmatmul.mubr.bf16.gmra.mrb[0].mxu0 %v6999
        %v8177 = vpop.f32.mrb[0].mxu0
        %v8178 = vadd.f32 %v6016, %v8177
        %v8179 = vpop.f32.mrb[0].mxu0
        %v8180 = vadd.f32 %v6020, %v8179
        %v8181 = vpop.f32.mrb[0].mxu0
        %v8182 = vadd.f32 %v6016, %v8181
        %v8183 = vpop.f32.mrb[0].mxu0
        %v8184 = vadd.f32 %v6020, %v8183
        %8185 = vmatprep.mubr.bf16.mxu0 %v7004
        %8186 = vmatmul.mubr.bf16.gmra.mrb[0].mxu0 %v7003
        %v8187 = vpop.f32.mrb[0].mxu0
        %v8188 = vadd.f32 %v6016, %v8187
        %v8189 = vpop.f32.mrb[0].mxu0
        %v8190 = vadd.f32 %v6020, %v8189
        %v8191 = vpop.f32.mrb[0].mxu0
        %v8192 = vadd.f32 %v6016, %v8191
        %v8193 = vpop.f32.mrb[0].mxu0
        %v8194 = vadd.f32 %v6020, %v8193
        %8195 = vmatprep.mubr.bf16.mxu0 %v7008
        %8196 = vmatmul.mubr.bf16.gmra.mrb[0].mxu0 %v7007
        %v8197 = vpop.f32.mrb[0].mxu0
        %v8198 = vadd.f32 %v6016, %v8197
        %v8199 = vpop.f32.mrb[0].mxu0
        %v8200 = vadd.f32 %v6020, %v8199
        %v8201 = vpop.f32.mrb[0].mxu0
        %v8202 = vadd.f32 %v6016, %v8201
        %v8203 = vpop.f32.mrb[0].mxu0
        %v8204 = vadd.f32 %v6020, %v8203
        %8205 = vmatprep.mubr.bf16.mxu0 %v7012
        %8206 = vmatmul.mubr.bf16.gmra.mrb[0].mxu0 %v7011
        %v8207 = vpop.f32.mrb[0].mxu0
        %v8208 = vadd.f32 %v6016, %v8207
        %v8209 = vpop.f32.mrb[0].mxu0
        %v8210 = vadd.f32 %v6020, %v8209
        %v8211 = vpop.f32.mrb[0].mxu0
        %v8212 = vadd.f32 %v6016, %v8211
        %v8213 = vpop.f32.mrb[0].mxu0
        %v8214 = vadd.f32 %v6020, %v8213
        %8215 = vmatprep.mubr.bf16.mxu0 %v7016
        %8216 = vmatmul.mubr.bf16.gmra.mrb[0].mxu0 %v7015
        %v8217 = vpop.f32.mrb[0].mxu0
        %v8218 = vadd.f32 %v6016, %v8217
        %v8219 = vpop.f32.mrb[0].mxu0
        %v8220 = vadd.f32 %v6020, %v8219
        %v8221 = vpop.f32.mrb[0].mxu0
        %v8222 = vadd.f32 %v6016, %v8221
        %v8223 = vpop.f32.mrb[0].mxu0
        %v8224 = vadd.f32 %v6020, %v8223
        %8225 = vmatprep.mubr.bf16.mxu0 %v7020
        %8226 = vmatmul.mubr.bf16.gmra.mrb[0].mxu0 %v7019
        %v8227 = vpop.f32.mrb[0].mxu0
        %v8228 = vadd.f32 %v6016, %v8227
        %v8229 = vpop.f32.mrb[0].mxu0
        %v8230 = vadd.f32 %v6020, %v8229
        %v8231 = vpop.f32.mrb[0].mxu0
        %v8232 = vadd.f32 %v6016, %v8231
        %v8233 = vpop.f32.mrb[0].mxu0
        %v8234 = vadd.f32 %v6020, %v8233
        %8235 = vmatprep.mubr.bf16.mxu0 %v7024
        %8236 = vmatmul.mubr.bf16.gmra.mrb[0].mxu0 %v7023
        %v8237 = vpop.f32.mrb[0].mxu0
        %v8238 = vadd.f32 %v6016, %v8237
        %v8239 = vpop.f32.mrb[0].mxu0
        %v8240 = vadd.f32 %v6020, %v8239
        %v8241 = vpop.f32.mrb[0].mxu0
        %v8242 = vadd.f32 %v6016, %v8241
        %v8243 = vpop.f32.mrb[0].mxu0
        %v8244 = vadd.f32 %v6020, %v8243
        %8245 = vmatprep.mubr.bf16.mxu0 %v7028
        %8246 = vmatmul.mubr.bf16.gmra.mrb[0].mxu0 %v7027
        %v8247 = vpop.f32.mrb[0].mxu0
        %v8248 = vadd.f32 %v6016, %v8247
        %v8249 = vpop.f32.mrb[0].mxu0
        %v8250 = vadd.f32 %v6020, %v8249
        %v8251 = vpop.f32.mrb[0].mxu0
        %v8252 = vadd.f32 %v6016, %v8251
        %v8253 = vpop.f32.mrb[0].mxu0
        %v8254 = vadd.f32 %v6020, %v8253
        %8255 = vmatprep.mubr.bf16.mxu0 %v7032
        %8256 = vmatmul.mubr.bf16.gmra.mrb[0].mxu0 %v7031
        %v8257 = vpop.f32.mrb[0].mxu0
        %v8258 = vadd.f32 %v6016, %v8257
        %v8259 = vpop.f32.mrb[0].mxu0
        %v8260 = vadd.f32 %v6020, %v8259
        %v8261 = vpop.f32.mrb[0].mxu0
        %v8262 = vadd.f32 %v6016, %v8261
        %v8263 = vpop.f32.mrb[0].mxu0
        %v8264 = vadd.f32 %v6020, %v8263
        %8265 = vmatprep.mubr.bf16.mxu0 %v7036
        %8266 = vmatmul.mubr.bf16.gmra.mrb[0].mxu0 %v7035
        %v8267 = vpop.f32.mrb[0].mxu0
        %v8268 = vadd.f32 %v6016, %v8267
        %v8269 = vpop.f32.mrb[0].mxu0
        %v8270 = vadd.f32 %v6020, %v8269
        %v8271 = vpop.f32.mrb[0].mxu0
        %v8272 = vadd.f32 %v6016, %v8271
        %v8273 = vpop.f32.mrb[0].mxu0
        %v8274 = vadd.f32 %v6020, %v8273
        %8275 = vmatprep.mubr.bf16.mxu0 %v7040
        %8276 = vmatmul.mubr.bf16.gmra.mrb[0].mxu0 %v7039
        %v8277 = vpop.f32.mrb[0].mxu0
        %v8278 = vadd.f32 %v6016, %v8277
        %v8279 = vpop.f32.mrb[0].mxu0
        %v8280 = vadd.f32 %v6020, %v8279
        %v8281 = vpop.f32.mrb[0].mxu0
        %v8282 = vadd.f32 %v6016, %v8281
        %v8283 = vpop.f32.mrb[0].mxu0
        %v8284 = vadd.f32 %v6020, %v8283
        %8285 = vmatprep.mubr.bf16.mxu0 %v7044
        %8286 = vmatmul.mubr.bf16.gmra.mrb[0].mxu0 %v7043
        %v8287 = vpop.f32.mrb[0].mxu0
        %v8288 = vadd.f32 %v6016, %v8287
        %v8289 = vpop.f32.mrb[0].mxu0
        %v8290 = vadd.f32 %v6020, %v8289
        %v8291 = vpop.f32.mrb[0].mxu0
        %v8292 = vadd.f32 %v6016, %v8291
        %v8293 = vpop.f32.mrb[0].mxu0
        %v8294 = vadd.f32 %v6020, %v8293
        %8295 = vdwg.mxu0
        %8296 = vmatprep.subr.bf16.mxu0 %v7528
        %8297 = vmatpush1.bf16.msra.mxu0 %v7527
        %8298 = vmatprep.subr.bf16.mxu0 %v7530
        %8299 = vmatpush1.bf16.msra.mxu0 %v7529
        %8300 = vmatprep.subr.bf16.mxu0 %v7532
        %8301 = vmatpush1.bf16.msra.mxu0 %v7531
        %8302 = vmatprep.subr.bf16.mxu0 %v7534
        %8303 = vmatpush1.bf16.msra.mxu0 %v7533
        %8304 = vmatprep.subr.bf16.mxu0 %v7536
        %8305 = vmatpush1.bf16.msra.mxu0 %v7535
        %8306 = vmatprep.subr.bf16.mxu0 %v7538
        %8307 = vmatpush1.bf16.msra.mxu0 %v7537
        %8308 = vmatprep.subr.bf16.mxu0 %v7540
        %8309 = vmatpush1.bf16.msra.mxu0 %v7539
        %8310 = vmatprep.subr.bf16.mxu0 %v7542
        %8311 = vmatpush1.bf16.msra.mxu0 %v7541
        %8312 = vmatprep.subr.bf16.mxu0 %v7544
        %8313 = vmatpush1.bf16.msra.mxu0 %v7543
        %8314 = vmatprep.subr.bf16.mxu0 %v7546
        %8315 = vmatpush1.bf16.msra.mxu0 %v7545
        %8316 = vmatprep.subr.bf16.mxu0 %v7548
        %8317 = vmatpush1.bf16.msra.mxu0 %v7547
        %8318 = vmatprep.subr.bf16.mxu0 %v7550
        %8319 = vmatpush1.bf16.msra.mxu0 %v7549
        %8320 = vmatprep.subr.bf16.mxu0 %v7552
        %8321 = vmatpush1.bf16.msra.mxu0 %v7551
        %8322 = vmatprep.subr.bf16.mxu0 %v7554
        %8323 = vmatpush1.bf16.msra.mxu0 %v7553
        %8324 = vmatprep.subr.bf16.mxu0 %v7556
        %8325 = vmatpush1.bf16.msra.mxu0 %v7555
        %8326 = vmatprep.subr.bf16.mxu0 %v7558
        %8327 = vmatpush1.bf16.msra.mxu0 %v7557
        %8328 = vmatprep.mubr.bf16.mxu0 %v6794
        %8329 = vmatmul.mubr.bf16.gmra.mrb[0].mxu0 %v6793
        %v8330 = vpop.f32.mrb[0].mxu0
        %v8331 = vadd.f32 %v7658, %v8330
        %v8332 = vpop.f32.mrb[0].mxu0
        %v8333 = vadd.f32 %v7660, %v8332
        %v8334 = vpop.f32.mrb[0].mxu0
        %v8335 = vadd.f32 %v7662, %v8334
        %v8336 = vpop.f32.mrb[0].mxu0
        %v8337 = vadd.f32 %v7664, %v8336
        %8338 = vmatprep.mubr.bf16.mxu0 %v6798
        %8339 = vmatmul.mubr.bf16.gmra.mrb[0].mxu0 %v6797
        %v8340 = vpop.f32.mrb[0].mxu0
        %v8341 = vadd.f32 %v7668, %v8340
        %v8342 = vpop.f32.mrb[0].mxu0
        %v8343 = vadd.f32 %v7670, %v8342
        %v8344 = vpop.f32.mrb[0].mxu0
        %v8345 = vadd.f32 %v7672, %v8344
        %v8346 = vpop.f32.mrb[0].mxu0
        %v8347 = vadd.f32 %v7674, %v8346
        %8348 = vmatprep.mubr.bf16.mxu0 %v6802
        %8349 = vmatmul.mubr.bf16.gmra.mrb[0].mxu0 %v6801
        %v8350 = vpop.f32.mrb[0].mxu0
        %v8351 = vadd.f32 %v7678, %v8350
        %v8352 = vpop.f32.mrb[0].mxu0
        %v8353 = vadd.f32 %v7680, %v8352
        %v8354 = vpop.f32.mrb[0].mxu0
        %v8355 = vadd.f32 %v7682, %v8354
        %v8356 = vpop.f32.mrb[0].mxu0
        %v8357 = vadd.f32 %v7684, %v8356
        %8358 = vmatprep.mubr.bf16.mxu0 %v6806
        %8359 = vmatmul.mubr.bf16.gmra.mrb[0].mxu0 %v6805
        %v8360 = vpop.f32.mrb[0].mxu0
        %v8361 = vadd.f32 %v7688, %v8360
        %v8362 = vpop.f32.mrb[0].mxu0
        %v8363 = vadd.f32 %v7690, %v8362
        %v8364 = vpop.f32.mrb[0].mxu0
        %v8365 = vadd.f32 %v7692, %v8364
        %v8366 = vpop.f32.mrb[0].mxu0
        %v8367 = vadd.f32 %v7694, %v8366
        %8368 = vmatprep.mubr.bf16.mxu0 %v6810
        %8369 = vmatmul.mubr.bf16.gmra.mrb[0].mxu0 %v6809
        %v8370 = vpop.f32.mrb[0].mxu0
        %v8371 = vadd.f32 %v7698, %v8370
        %v8372 = vpop.f32.mrb[0].mxu0
        %v8373 = vadd.f32 %v7700, %v8372
        %v8374 = vpop.f32.mrb[0].mxu0
        %v8375 = vadd.f32 %v7702, %v8374
        %v8376 = vpop.f32.mrb[0].mxu0
        %v8377 = vadd.f32 %v7704, %v8376
        %8378 = vmatprep.mubr.bf16.mxu0 %v6814
        %8379 = vmatmul.mubr.bf16.gmra.mrb[0].mxu0 %v6813
        %v8380 = vpop.f32.mrb[0].mxu0
        %v8381 = vadd.f32 %v7708, %v8380
        %v8382 = vpop.f32.mrb[0].mxu0
        %v8383 = vadd.f32 %v7710, %v8382
        %v8384 = vpop.f32.mrb[0].mxu0
        %v8385 = vadd.f32 %v7712, %v8384
        %v8386 = vpop.f32.mrb[0].mxu0
        %v8387 = vadd.f32 %v7714, %v8386
        %8388 = vmatprep.mubr.bf16.mxu0 %v6818
        %8389 = vmatmul.mubr.bf16.gmra.mrb[0].mxu0 %v6817
        %v8390 = vpop.f32.mrb[0].mxu0
        %v8391 = vadd.f32 %v7718, %v8390
        %v8392 = vpop.f32.mrb[0].mxu0
        %v8393 = vadd.f32 %v7720, %v8392
        %v8394 = vpop.f32.mrb[0].mxu0
        %v8395 = vadd.f32 %v7722, %v8394
        %v8396 = vpop.f32.mrb[0].mxu0
        %v8397 = vadd.f32 %v7724, %v8396
        %8398 = vmatprep.mubr.bf16.mxu0 %v6822
        %8399 = vmatmul.mubr.bf16.gmra.mrb[0].mxu0 %v6821
        %v8400 = vpop.f32.mrb[0].mxu0
        %v8401 = vadd.f32 %v7728, %v8400
        %v8402 = vpop.f32.mrb[0].mxu0
        %v8403 = vadd.f32 %v7730, %v8402
        %v8404 = vpop.f32.mrb[0].mxu0
        %v8405 = vadd.f32 %v7732, %v8404
        %v8406 = vpop.f32.mrb[0].mxu0
        %v8407 = vadd.f32 %v7734, %v8406
        %8408 = vmatprep.mubr.bf16.mxu0 %v6826
        %8409 = vmatmul.mubr.bf16.gmra.mrb[0].mxu0 %v6825
        %v8410 = vpop.f32.mrb[0].mxu0
        %v8411 = vadd.f32 %v7738, %v8410
        %v8412 = vpop.f32.mrb[0].mxu0
        %v8413 = vadd.f32 %v7740, %v8412
        %v8414 = vpop.f32.mrb[0].mxu0
        %v8415 = vadd.f32 %v7742, %v8414
        %v8416 = vpop.f32.mrb[0].mxu0
        %v8417 = vadd.f32 %v7744, %v8416
        %8418 = vmatprep.mubr.bf16.mxu0 %v6830
        %8419 = vmatmul.mubr.bf16.gmra.mrb[0].mxu0 %v6829
        %v8420 = vpop.f32.mrb[0].mxu0
        %v8421 = vadd.f32 %v7748, %v8420
        %v8422 = vpop.f32.mrb[0].mxu0
        %v8423 = vadd.f32 %v7750, %v8422
        %v8424 = vpop.f32.mrb[0].mxu0
        %v8425 = vadd.f32 %v7752, %v8424
        %v8426 = vpop.f32.mrb[0].mxu0
        %v8427 = vadd.f32 %v7754, %v8426
        %8428 = vmatprep.mubr.bf16.mxu0 %v6834
        %8429 = vmatmul.mubr.bf16.gmra.mrb[0].mxu0 %v6833
        %v8430 = vpop.f32.mrb[0].mxu0
        %v8431 = vadd.f32 %v7758, %v8430
        %v8432 = vpop.f32.mrb[0].mxu0
        %v8433 = vadd.f32 %v7760, %v8432
        %v8434 = vpop.f32.mrb[0].mxu0
        %v8435 = vadd.f32 %v7762, %v8434
        %v8436 = vpop.f32.mrb[0].mxu0
        %v8437 = vadd.f32 %v7764, %v8436
        %8438 = vmatprep.mubr.bf16.mxu0 %v6838
        %8439 = vmatmul.mubr.bf16.gmra.mrb[0].mxu0 %v6837
        %v8440 = vpop.f32.mrb[0].mxu0
        %v8441 = vadd.f32 %v7768, %v8440
        %v8442 = vpop.f32.mrb[0].mxu0
        %v8443 = vadd.f32 %v7770, %v8442
        %v8444 = vpop.f32.mrb[0].mxu0
        %v8445 = vadd.f32 %v7772, %v8444
        %v8446 = vpop.f32.mrb[0].mxu0
        %v8447 = vadd.f32 %v7774, %v8446
        %8448 = vmatprep.mubr.bf16.mxu0 %v6842
        %8449 = vmatmul.mubr.bf16.gmra.mrb[0].mxu0 %v6841
        %v8450 = vpop.f32.mrb[0].mxu0
        %v8451 = vadd.f32 %v7778, %v8450
        %v8452 = vpop.f32.mrb[0].mxu0
        %v8453 = vadd.f32 %v7780, %v8452
        %v8454 = vpop.f32.mrb[0].mxu0
        %v8455 = vadd.f32 %v7782, %v8454
        %v8456 = vpop.f32.mrb[0].mxu0
        %v8457 = vadd.f32 %v7784, %v8456
        %8458 = vmatprep.mubr.bf16.mxu0 %v6846
        %8459 = vmatmul.mubr.bf16.gmra.mrb[0].mxu0 %v6845
        %v8460 = vpop.f32.mrb[0].mxu0
        %v8461 = vadd.f32 %v7788, %v8460
        %v8462 = vpop.f32.mrb[0].mxu0
        %v8463 = vadd.f32 %v7790, %v8462
        %v8464 = vpop.f32.mrb[0].mxu0
        %v8465 = vadd.f32 %v7792, %v8464
        %v8466 = vpop.f32.mrb[0].mxu0
        %v8467 = vadd.f32 %v7794, %v8466
        %8468 = vmatprep.mubr.bf16.mxu0 %v6850
        %8469 = vmatmul.mubr.bf16.gmra.mrb[0].mxu0 %v6849
        %v8470 = vpop.f32.mrb[0].mxu0
        %v8471 = vadd.f32 %v7798, %v8470
        %v8472 = vpop.f32.mrb[0].mxu0
        %v8473 = vadd.f32 %v7800, %v8472
        %v8474 = vpop.f32.mrb[0].mxu0
        %v8475 = vadd.f32 %v7802, %v8474
        %v8476 = vpop.f32.mrb[0].mxu0
        %v8477 = vadd.f32 %v7804, %v8476
        %8478 = vmatprep.mubr.bf16.mxu0 %v6854
        %8479 = vmatmul.mubr.bf16.gmra.mrb[0].mxu0 %v6853
        %v8480 = vpop.f32.mrb[0].mxu0
        %v8481 = vadd.f32 %v7808, %v8480
        %v8482 = vpop.f32.mrb[0].mxu0
        %v8483 = vadd.f32 %v7810, %v8482
        %v8484 = vpop.f32.mrb[0].mxu0
        %v8485 = vadd.f32 %v7812, %v8484
        %v8486 = vpop.f32.mrb[0].mxu0
        %v8487 = vadd.f32 %v7814, %v8486
        %8488 = vmatprep.mubr.bf16.mxu0 %v6858
        %8489 = vmatmul.mubr.bf16.gmra.mrb[0].mxu0 %v6857
        %v8490 = vpop.f32.mrb[0].mxu0
        %v8491 = vadd.f32 %v7818, %v8490
        %v8492 = vpop.f32.mrb[0].mxu0
        %v8493 = vadd.f32 %v7820, %v8492
        %v8494 = vpop.f32.mrb[0].mxu0
        %v8495 = vadd.f32 %v7822, %v8494
        %v8496 = vpop.f32.mrb[0].mxu0
        %v8497 = vadd.f32 %v7824, %v8496
        %8498 = vmatprep.mubr.bf16.mxu0 %v6862
        %8499 = vmatmul.mubr.bf16.gmra.mrb[0].mxu0 %v6861
        %v8500 = vpop.f32.mrb[0].mxu0
        %v8501 = vadd.f32 %v7828, %v8500
        %v8502 = vpop.f32.mrb[0].mxu0
        %v8503 = vadd.f32 %v7830, %v8502
        %v8504 = vpop.f32.mrb[0].mxu0
        %v8505 = vadd.f32 %v7832, %v8504
        %v8506 = vpop.f32.mrb[0].mxu0
        %v8507 = vadd.f32 %v7834, %v8506
        %8508 = vmatprep.mubr.bf16.mxu0 %v6866
        %8509 = vmatmul.mubr.bf16.gmra.mrb[0].mxu0 %v6865
        %v8510 = vpop.f32.mrb[0].mxu0
        %v8511 = vadd.f32 %v7838, %v8510
        %v8512 = vpop.f32.mrb[0].mxu0
        %v8513 = vadd.f32 %v7840, %v8512
        %v8514 = vpop.f32.mrb[0].mxu0
        %v8515 = vadd.f32 %v7842, %v8514
        %v8516 = vpop.f32.mrb[0].mxu0
        %v8517 = vadd.f32 %v7844, %v8516
        %8518 = vmatprep.mubr.bf16.mxu0 %v6870
        %8519 = vmatmul.mubr.bf16.gmra.mrb[0].mxu0 %v6869
        %v8520 = vpop.f32.mrb[0].mxu0
        %v8521 = vadd.f32 %v7848, %v8520
        %v8522 = vpop.f32.mrb[0].mxu0
        %v8523 = vadd.f32 %v7850, %v8522
        %v8524 = vpop.f32.mrb[0].mxu0
        %v8525 = vadd.f32 %v7852, %v8524
        %v8526 = vpop.f32.mrb[0].mxu0
        %v8527 = vadd.f32 %v7854, %v8526
        %8528 = vmatprep.mubr.bf16.mxu0 %v6874
        %8529 = vmatmul.mubr.bf16.gmra.mrb[0].mxu0 %v6873
        %v8530 = vpop.f32.mrb[0].mxu0
        %v8531 = vadd.f32 %v7858, %v8530
        %v8532 = vpop.f32.mrb[0].mxu0
        %v8533 = vadd.f32 %v7860, %v8532
        %v8534 = vpop.f32.mrb[0].mxu0
        %v8535 = vadd.f32 %v7862, %v8534
        %v8536 = vpop.f32.mrb[0].mxu0
        %v8537 = vadd.f32 %v7864, %v8536
        %8538 = vmatprep.mubr.bf16.mxu0 %v6878
        %8539 = vmatmul.mubr.bf16.gmra.mrb[0].mxu0 %v6877
        %v8540 = vpop.f32.mrb[0].mxu0
        %v8541 = vadd.f32 %v7868, %v8540
        %v8542 = vpop.f32.mrb[0].mxu0
        %v8543 = vadd.f32 %v7870, %v8542
        %v8544 = vpop.f32.mrb[0].mxu0
        %v8545 = vadd.f32 %v7872, %v8544
        %v8546 = vpop.f32.mrb[0].mxu0
        %v8547 = vadd.f32 %v7874, %v8546
        %8548 = vmatprep.mubr.bf16.mxu0 %v6882
        %8549 = vmatmul.mubr.bf16.gmra.mrb[0].mxu0 %v6881
        %v8550 = vpop.f32.mrb[0].mxu0
        %v8551 = vadd.f32 %v7878, %v8550
        %v8552 = vpop.f32.mrb[0].mxu0
        %v8553 = vadd.f32 %v7880, %v8552
        %v8554 = vpop.f32.mrb[0].mxu0
        %v8555 = vadd.f32 %v7882, %v8554
        %v8556 = vpop.f32.mrb[0].mxu0
        %v8557 = vadd.f32 %v7884, %v8556
        %8558 = vmatprep.mubr.bf16.mxu0 %v6886
        %8559 = vmatmul.mubr.bf16.gmra.mrb[0].mxu0 %v6885
        %v8560 = vpop.f32.mrb[0].mxu0
        %v8561 = vadd.f32 %v7888, %v8560
        %v8562 = vpop.f32.mrb[0].mxu0
        %v8563 = vadd.f32 %v7890, %v8562
        %v8564 = vpop.f32.mrb[0].mxu0
        %v8565 = vadd.f32 %v7892, %v8564
        %v8566 = vpop.f32.mrb[0].mxu0
        %v8567 = vadd.f32 %v7894, %v8566
        %8568 = vmatprep.mubr.bf16.mxu0 %v6890
        %8569 = vmatmul.mubr.bf16.gmra.mrb[0].mxu0 %v6889
        %v8570 = vpop.f32.mrb[0].mxu0
        %v8571 = vadd.f32 %v7898, %v8570
        %v8572 = vpop.f32.mrb[0].mxu0
        %v8573 = vadd.f32 %v7900, %v8572
        %v8574 = vpop.f32.mrb[0].mxu0
        %v8575 = vadd.f32 %v7902, %v8574
        %v8576 = vpop.f32.mrb[0].mxu0
        %v8577 = vadd.f32 %v7904, %v8576
        %8578 = vmatprep.mubr.bf16.mxu0 %v6894
        %8579 = vmatmul.mubr.bf16.gmra.mrb[0].mxu0 %v6893
        %v8580 = vpop.f32.mrb[0].mxu0
        %v8581 = vadd.f32 %v7908, %v8580
        %v8582 = vpop.f32.mrb[0].mxu0
        %v8583 = vadd.f32 %v7910, %v8582
        %v8584 = vpop.f32.mrb[0].mxu0
        %v8585 = vadd.f32 %v7912, %v8584
        %v8586 = vpop.f32.mrb[0].mxu0
        %v8587 = vadd.f32 %v7914, %v8586
        %8588 = vmatprep.mubr.bf16.mxu0 %v6898
        %8589 = vmatmul.mubr.bf16.gmra.mrb[0].mxu0 %v6897
        %v8590 = vpop.f32.mrb[0].mxu0
        %v8591 = vadd.f32 %v7918, %v8590
        %v8592 = vpop.f32.mrb[0].mxu0
        %v8593 = vadd.f32 %v7920, %v8592
        %v8594 = vpop.f32.mrb[0].mxu0
        %v8595 = vadd.f32 %v7922, %v8594
        %v8596 = vpop.f32.mrb[0].mxu0
        %v8597 = vadd.f32 %v7924, %v8596
        %8598 = vmatprep.mubr.bf16.mxu0 %v6902
        %8599 = vmatmul.mubr.bf16.gmra.mrb[0].mxu0 %v6901
        %v8600 = vpop.f32.mrb[0].mxu0
        %v8601 = vadd.f32 %v7928, %v8600
        %v8602 = vpop.f32.mrb[0].mxu0
        %v8603 = vadd.f32 %v7930, %v8602
        %v8604 = vpop.f32.mrb[0].mxu0
        %v8605 = vadd.f32 %v7932, %v8604
        %v8606 = vpop.f32.mrb[0].mxu0
        %v8607 = vadd.f32 %v7934, %v8606
        %8608 = vmatprep.mubr.bf16.mxu0 %v6906
        %8609 = vmatmul.mubr.bf16.gmra.mrb[0].mxu0 %v6905
        %v8610 = vpop.f32.mrb[0].mxu0
        %v8611 = vadd.f32 %v7938, %v8610
        %v8612 = vpop.f32.mrb[0].mxu0
        %v8613 = vadd.f32 %v7940, %v8612
        %v8614 = vpop.f32.mrb[0].mxu0
        %v8615 = vadd.f32 %v7942, %v8614
        %v8616 = vpop.f32.mrb[0].mxu0
        %v8617 = vadd.f32 %v7944, %v8616
        %8618 = vmatprep.mubr.bf16.mxu0 %v6910
        %8619 = vmatmul.mubr.bf16.gmra.mrb[0].mxu0 %v6909
        %v8620 = vpop.f32.mrb[0].mxu0
        %v8621 = vadd.f32 %v7948, %v8620
        %v8622 = vpop.f32.mrb[0].mxu0
        %v8623 = vadd.f32 %v7950, %v8622
        %v8624 = vpop.f32.mrb[0].mxu0
        %v8625 = vadd.f32 %v7952, %v8624
        %v8626 = vpop.f32.mrb[0].mxu0
        %v8627 = vadd.f32 %v7954, %v8626
        %8628 = vmatprep.mubr.bf16.mxu0 %v6914
        %8629 = vmatmul.mubr.bf16.gmra.mrb[0].mxu0 %v6913
        %v8630 = vpop.f32.mrb[0].mxu0
        %v8631 = vadd.f32 %v7958, %v8630
        %v8632 = vpop.f32.mrb[0].mxu0
        %v8633 = vadd.f32 %v7960, %v8632
        %v8634 = vpop.f32.mrb[0].mxu0
        %v8635 = vadd.f32 %v7962, %v8634
        %v8636 = vpop.f32.mrb[0].mxu0
        %v8637 = vadd.f32 %v7964, %v8636
        %8638 = vmatprep.mubr.bf16.mxu0 %v6918
        %8639 = vmatmul.mubr.bf16.gmra.mrb[0].mxu0 %v6917
        %v8640 = vpop.f32.mrb[0].mxu0
        %v8641 = vadd.f32 %v7968, %v8640
        %v8642 = vpop.f32.mrb[0].mxu0
        %v8643 = vadd.f32 %v7970, %v8642
        %v8644 = vpop.f32.mrb[0].mxu0
        %v8645 = vadd.f32 %v7972, %v8644
        %v8646 = vpop.f32.mrb[0].mxu0
        %v8647 = vadd.f32 %v7974, %v8646
        %8648 = vmatprep.mubr.bf16.mxu0 %v6922
        %8649 = vmatmul.mubr.bf16.gmra.mrb[0].mxu0 %v6921
        %v8650 = vpop.f32.mrb[0].mxu0
        %v8651 = vadd.f32 %v7978, %v8650
        %v8652 = vpop.f32.mrb[0].mxu0
        %v8653 = vadd.f32 %v7980, %v8652
        %v8654 = vpop.f32.mrb[0].mxu0
        %v8655 = vadd.f32 %v7982, %v8654
        %v8656 = vpop.f32.mrb[0].mxu0
        %v8657 = vadd.f32 %v7984, %v8656
        %8658 = vmatprep.mubr.bf16.mxu0 %v6926
        %8659 = vmatmul.mubr.bf16.gmra.mrb[0].mxu0 %v6925
        %v8660 = vpop.f32.mrb[0].mxu0
        %v8661 = vadd.f32 %v7988, %v8660
        %v8662 = vpop.f32.mrb[0].mxu0
        %v8663 = vadd.f32 %v7990, %v8662
        %v8664 = vpop.f32.mrb[0].mxu0
        %v8665 = vadd.f32 %v7992, %v8664
        %v8666 = vpop.f32.mrb[0].mxu0
        %v8667 = vadd.f32 %v7994, %v8666
        %8668 = vmatprep.mubr.bf16.mxu0 %v6930
        %8669 = vmatmul.mubr.bf16.gmra.mrb[0].mxu0 %v6929
        %v8670 = vpop.f32.mrb[0].mxu0
        %v8671 = vadd.f32 %v7998, %v8670
        %v8672 = vpop.f32.mrb[0].mxu0
        %v8673 = vadd.f32 %v8000, %v8672
        %v8674 = vpop.f32.mrb[0].mxu0
        %v8675 = vadd.f32 %v8002, %v8674
        %v8676 = vpop.f32.mrb[0].mxu0
        %v8677 = vadd.f32 %v8004, %v8676
        %8678 = vmatprep.mubr.bf16.mxu0 %v6934
        %8679 = vmatmul.mubr.bf16.gmra.mrb[0].mxu0 %v6933
        %v8680 = vpop.f32.mrb[0].mxu0
        %v8681 = vadd.f32 %v8008, %v8680
        %v8682 = vpop.f32.mrb[0].mxu0
        %v8683 = vadd.f32 %v8010, %v8682
        %v8684 = vpop.f32.mrb[0].mxu0
        %v8685 = vadd.f32 %v8012, %v8684
        %v8686 = vpop.f32.mrb[0].mxu0
        %v8687 = vadd.f32 %v8014, %v8686
        %8688 = vmatprep.mubr.bf16.mxu0 %v6938
        %8689 = vmatmul.mubr.bf16.gmra.mrb[0].mxu0 %v6937
        %v8690 = vpop.f32.mrb[0].mxu0
        %v8691 = vadd.f32 %v8018, %v8690
        %v8692 = vpop.f32.mrb[0].mxu0
        %v8693 = vadd.f32 %v8020, %v8692
        %v8694 = vpop.f32.mrb[0].mxu0
        %v8695 = vadd.f32 %v8022, %v8694
        %v8696 = vpop.f32.mrb[0].mxu0
        %v8697 = vadd.f32 %v8024, %v8696
        %8698 = vmatprep.mubr.bf16.mxu0 %v6942
        %8699 = vmatmul.mubr.bf16.gmra.mrb[0].mxu0 %v6941
        %v8700 = vpop.f32.mrb[0].mxu0
        %v8701 = vadd.f32 %v8028, %v8700
        %v8702 = vpop.f32.mrb[0].mxu0
        %v8703 = vadd.f32 %v8030, %v8702
        %v8704 = vpop.f32.mrb[0].mxu0
        %v8705 = vadd.f32 %v8032, %v8704
        %v8706 = vpop.f32.mrb[0].mxu0
        %v8707 = vadd.f32 %v8034, %v8706
        %8708 = vmatprep.mubr.bf16.mxu0 %v6946
        %8709 = vmatmul.mubr.bf16.gmra.mrb[0].mxu0 %v6945
        %v8710 = vpop.f32.mrb[0].mxu0
        %v8711 = vadd.f32 %v8038, %v8710
        %v8712 = vpop.f32.mrb[0].mxu0
        %v8713 = vadd.f32 %v8040, %v8712
        %v8714 = vpop.f32.mrb[0].mxu0
        %v8715 = vadd.f32 %v8042, %v8714
        %v8716 = vpop.f32.mrb[0].mxu0
        %v8717 = vadd.f32 %v8044, %v8716
        %8718 = vmatprep.mubr.bf16.mxu0 %v6950
        %8719 = vmatmul.mubr.bf16.gmra.mrb[0].mxu0 %v6949
        %v8720 = vpop.f32.mrb[0].mxu0
        %v8721 = vadd.f32 %v8048, %v8720
        %v8722 = vpop.f32.mrb[0].mxu0
        %v8723 = vadd.f32 %v8050, %v8722
        %v8724 = vpop.f32.mrb[0].mxu0
        %v8725 = vadd.f32 %v8052, %v8724
        %v8726 = vpop.f32.mrb[0].mxu0
        %v8727 = vadd.f32 %v8054, %v8726
        %8728 = vmatprep.mubr.bf16.mxu0 %v6954
        %8729 = vmatmul.mubr.bf16.gmra.mrb[0].mxu0 %v6953
        %v8730 = vpop.f32.mrb[0].mxu0
        %v8731 = vadd.f32 %v8058, %v8730
        %v8732 = vpop.f32.mrb[0].mxu0
        %v8733 = vadd.f32 %v8060, %v8732
        %v8734 = vpop.f32.mrb[0].mxu0
        %v8735 = vadd.f32 %v8062, %v8734
        %v8736 = vpop.f32.mrb[0].mxu0
        %v8737 = vadd.f32 %v8064, %v8736
        %8738 = vmatprep.mubr.bf16.mxu0 %v6958
        %8739 = vmatmul.mubr.bf16.gmra.mrb[0].mxu0 %v6957
        %v8740 = vpop.f32.mrb[0].mxu0
        %v8741 = vadd.f32 %v8068, %v8740
        %v8742 = vpop.f32.mrb[0].mxu0
        %v8743 = vadd.f32 %v8070, %v8742
        %v8744 = vpop.f32.mrb[0].mxu0
        %v8745 = vadd.f32 %v8072, %v8744
        %v8746 = vpop.f32.mrb[0].mxu0
        %v8747 = vadd.f32 %v8074, %v8746
        %8748 = vmatprep.mubr.bf16.mxu0 %v6962
        %8749 = vmatmul.mubr.bf16.gmra.mrb[0].mxu0 %v6961
        %v8750 = vpop.f32.mrb[0].mxu0
        %v8751 = vadd.f32 %v8078, %v8750
        %v8752 = vpop.f32.mrb[0].mxu0
        %v8753 = vadd.f32 %v8080, %v8752
        %v8754 = vpop.f32.mrb[0].mxu0
        %v8755 = vadd.f32 %v8082, %v8754
        %v8756 = vpop.f32.mrb[0].mxu0
        %v8757 = vadd.f32 %v8084, %v8756
        %8758 = vmatprep.mubr.bf16.mxu0 %v6966
        %8759 = vmatmul.mubr.bf16.gmra.mrb[0].mxu0 %v6965
        %v8760 = vpop.f32.mrb[0].mxu0
        %v8761 = vadd.f32 %v8088, %v8760
        %v8762 = vpop.f32.mrb[0].mxu0
        %v8763 = vadd.f32 %v8090, %v8762
        %v8764 = vpop.f32.mrb[0].mxu0
        %v8765 = vadd.f32 %v8092, %v8764
        %v8766 = vpop.f32.mrb[0].mxu0
        %v8767 = vadd.f32 %v8094, %v8766
        %8768 = vmatprep.mubr.bf16.mxu0 %v6970
        %8769 = vmatmul.mubr.bf16.gmra.mrb[0].mxu0 %v6969
        %v8770 = vpop.f32.mrb[0].mxu0
        %v8771 = vadd.f32 %v8098, %v8770
        %v8772 = vpop.f32.mrb[0].mxu0
        %v8773 = vadd.f32 %v8100, %v8772
        %v8774 = vpop.f32.mrb[0].mxu0
        %v8775 = vadd.f32 %v8102, %v8774
        %v8776 = vpop.f32.mrb[0].mxu0
        %v8777 = vadd.f32 %v8104, %v8776
        %8778 = vmatprep.mubr.bf16.mxu0 %v6974
        %8779 = vmatmul.mubr.bf16.gmra.mrb[0].mxu0 %v6973
        %v8780 = vpop.f32.mrb[0].mxu0
        %v8781 = vadd.f32 %v8108, %v8780
        %v8782 = vpop.f32.mrb[0].mxu0
        %v8783 = vadd.f32 %v8110, %v8782
        %v8784 = vpop.f32.mrb[0].mxu0
        %v8785 = vadd.f32 %v8112, %v8784
        %v8786 = vpop.f32.mrb[0].mxu0
        %v8787 = vadd.f32 %v8114, %v8786
        %8788 = vmatprep.mubr.bf16.mxu0 %v6978
        %8789 = vmatmul.mubr.bf16.gmra.mrb[0].mxu0 %v6977
        %v8790 = vpop.f32.mrb[0].mxu0
        %v8791 = vadd.f32 %v8118, %v8790
        %v8792 = vpop.f32.mrb[0].mxu0
        %v8793 = vadd.f32 %v8120, %v8792
        %v8794 = vpop.f32.mrb[0].mxu0
        %v8795 = vadd.f32 %v8122, %v8794
        %v8796 = vpop.f32.mrb[0].mxu0
        %v8797 = vadd.f32 %v8124, %v8796
        %8798 = vmatprep.mubr.bf16.mxu0 %v6982
        %8799 = vmatmul.mubr.bf16.gmra.mrb[0].mxu0 %v6981
        %v8800 = vpop.f32.mrb[0].mxu0
        %v8801 = vadd.f32 %v8128, %v8800
        %v8802 = vpop.f32.mrb[0].mxu0
        %v8803 = vadd.f32 %v8130, %v8802
        %v8804 = vpop.f32.mrb[0].mxu0
        %v8805 = vadd.f32 %v8132, %v8804
        %v8806 = vpop.f32.mrb[0].mxu0
        %v8807 = vadd.f32 %v8134, %v8806
        %8808 = vmatprep.mubr.bf16.mxu0 %v6986
        %8809 = vmatmul.mubr.bf16.gmra.mrb[0].mxu0 %v6985
        %v8810 = vpop.f32.mrb[0].mxu0
        %v8811 = vadd.f32 %v8138, %v8810
        %v8812 = vpop.f32.mrb[0].mxu0
        %v8813 = vadd.f32 %v8140, %v8812
        %v8814 = vpop.f32.mrb[0].mxu0
        %v8815 = vadd.f32 %v8142, %v8814
        %v8816 = vpop.f32.mrb[0].mxu0
        %v8817 = vadd.f32 %v8144, %v8816
        %8818 = vmatprep.mubr.bf16.mxu0 %v6990
        %8819 = vmatmul.mubr.bf16.gmra.mrb[0].mxu0 %v6989
        %v8820 = vpop.f32.mrb[0].mxu0
        %v8821 = vadd.f32 %v8148, %v8820
        %v8822 = vpop.f32.mrb[0].mxu0
        %v8823 = vadd.f32 %v8150, %v8822
        %v8824 = vpop.f32.mrb[0].mxu0
        %v8825 = vadd.f32 %v8152, %v8824
        %v8826 = vpop.f32.mrb[0].mxu0
        %v8827 = vadd.f32 %v8154, %v8826
        %8828 = vmatprep.mubr.bf16.mxu0 %v6994
        %8829 = vmatmul.mubr.bf16.gmra.mrb[0].mxu0 %v6993
        %v8830 = vpop.f32.mrb[0].mxu0
        %v8831 = vadd.f32 %v8158, %v8830
        %v8832 = vpop.f32.mrb[0].mxu0
        %v8833 = vadd.f32 %v8160, %v8832
        %v8834 = vpop.f32.mrb[0].mxu0
        %v8835 = vadd.f32 %v8162, %v8834
        %v8836 = vpop.f32.mrb[0].mxu0
        %v8837 = vadd.f32 %v8164, %v8836
        %8838 = vmatprep.mubr.bf16.mxu0 %v6998
        %8839 = vmatmul.mubr.bf16.gmra.mrb[0].mxu0 %v6997
        %v8840 = vpop.f32.mrb[0].mxu0
        %v8841 = vadd.f32 %v8168, %v8840
        %v8842 = vpop.f32.mrb[0].mxu0
        %v8843 = vadd.f32 %v8170, %v8842
        %v8844 = vpop.f32.mrb[0].mxu0
        %v8845 = vadd.f32 %v8172, %v8844
        %v8846 = vpop.f32.mrb[0].mxu0
        %v8847 = vadd.f32 %v8174, %v8846
        %8848 = vmatprep.mubr.bf16.mxu0 %v7002
        %8849 = vmatmul.mubr.bf16.gmra.mrb[0].mxu0 %v7001
        %v8850 = vpop.f32.mrb[0].mxu0
        %v8851 = vadd.f32 %v8178, %v8850
        %v8852 = vpop.f32.mrb[0].mxu0
        %v8853 = vadd.f32 %v8180, %v8852
        %v8854 = vpop.f32.mrb[0].mxu0
        %v8855 = vadd.f32 %v8182, %v8854
        %v8856 = vpop.f32.mrb[0].mxu0
        %v8857 = vadd.f32 %v8184, %v8856
        %8858 = vmatprep.mubr.bf16.mxu0 %v7006
        %8859 = vmatmul.mubr.bf16.gmra.mrb[0].mxu0 %v7005
        %v8860 = vpop.f32.mrb[0].mxu0
        %v8861 = vadd.f32 %v8188, %v8860
        %v8862 = vpop.f32.mrb[0].mxu0
        %v8863 = vadd.f32 %v8190, %v8862
        %v8864 = vpop.f32.mrb[0].mxu0
        %v8865 = vadd.f32 %v8192, %v8864
        %v8866 = vpop.f32.mrb[0].mxu0
        %v8867 = vadd.f32 %v8194, %v8866
        %8868 = vmatprep.mubr.bf16.mxu0 %v7010
        %8869 = vmatmul.mubr.bf16.gmra.mrb[0].mxu0 %v7009
        %v8870 = vpop.f32.mrb[0].mxu0
        %v8871 = vadd.f32 %v8198, %v8870
        %v8872 = vpop.f32.mrb[0].mxu0
        %v8873 = vadd.f32 %v8200, %v8872
        %v8874 = vpop.f32.mrb[0].mxu0
        %v8875 = vadd.f32 %v8202, %v8874
        %v8876 = vpop.f32.mrb[0].mxu0
        %v8877 = vadd.f32 %v8204, %v8876
        %8878 = vmatprep.mubr.bf16.mxu0 %v7014
        %8879 = vmatmul.mubr.bf16.gmra.mrb[0].mxu0 %v7013
        %v8880 = vpop.f32.mrb[0].mxu0
        %v8881 = vadd.f32 %v8208, %v8880
        %v8882 = vpop.f32.mrb[0].mxu0
        %v8883 = vadd.f32 %v8210, %v8882
        %v8884 = vpop.f32.mrb[0].mxu0
        %v8885 = vadd.f32 %v8212, %v8884
        %v8886 = vpop.f32.mrb[0].mxu0
        %v8887 = vadd.f32 %v8214, %v8886
        %8888 = vmatprep.mubr.bf16.mxu0 %v7018
        %8889 = vmatmul.mubr.bf16.gmra.mrb[0].mxu0 %v7017
        %v8890 = vpop.f32.mrb[0].mxu0
        %v8891 = vadd.f32 %v8218, %v8890
        %v8892 = vpop.f32.mrb[0].mxu0
        %v8893 = vadd.f32 %v8220, %v8892
        %v8894 = vpop.f32.mrb[0].mxu0
        %v8895 = vadd.f32 %v8222, %v8894
        %v8896 = vpop.f32.mrb[0].mxu0
        %v8897 = vadd.f32 %v8224, %v8896
        %8898 = vmatprep.mubr.bf16.mxu0 %v7022
        %8899 = vmatmul.mubr.bf16.gmra.mrb[0].mxu0 %v7021
        %v8900 = vpop.f32.mrb[0].mxu0
        %v8901 = vadd.f32 %v8228, %v8900
        %v8902 = vpop.f32.mrb[0].mxu0
        %v8903 = vadd.f32 %v8230, %v8902
        %v8904 = vpop.f32.mrb[0].mxu0
        %v8905 = vadd.f32 %v8232, %v8904
        %v8906 = vpop.f32.mrb[0].mxu0
        %v8907 = vadd.f32 %v8234, %v8906
        %8908 = vmatprep.mubr.bf16.mxu0 %v7026
        %8909 = vmatmul.mubr.bf16.gmra.mrb[0].mxu0 %v7025
        %v8910 = vpop.f32.mrb[0].mxu0
        %v8911 = vadd.f32 %v8238, %v8910
        %v8912 = vpop.f32.mrb[0].mxu0
        %v8913 = vadd.f32 %v8240, %v8912
        %v8914 = vpop.f32.mrb[0].mxu0
        %v8915 = vadd.f32 %v8242, %v8914
        %v8916 = vpop.f32.mrb[0].mxu0
        %v8917 = vadd.f32 %v8244, %v8916
        %8918 = vmatprep.mubr.bf16.mxu0 %v7030
        %8919 = vmatmul.mubr.bf16.gmra.mrb[0].mxu0 %v7029
        %v8920 = vpop.f32.mrb[0].mxu0
        %v8921 = vadd.f32 %v8248, %v8920
        %v8922 = vpop.f32.mrb[0].mxu0
        %v8923 = vadd.f32 %v8250, %v8922
        %v8924 = vpop.f32.mrb[0].mxu0
        %v8925 = vadd.f32 %v8252, %v8924
        %v8926 = vpop.f32.mrb[0].mxu0
        %v8927 = vadd.f32 %v8254, %v8926
        %8928 = vmatprep.mubr.bf16.mxu0 %v7034
        %8929 = vmatmul.mubr.bf16.gmra.mrb[0].mxu0 %v7033
        %v8930 = vpop.f32.mrb[0].mxu0
        %v8931 = vadd.f32 %v8258, %v8930
        %v8932 = vpop.f32.mrb[0].mxu0
        %v8933 = vadd.f32 %v8260, %v8932
        %v8934 = vpop.f32.mrb[0].mxu0
        %v8935 = vadd.f32 %v8262, %v8934
        %v8936 = vpop.f32.mrb[0].mxu0
        %v8937 = vadd.f32 %v8264, %v8936
        %8938 = vmatprep.mubr.bf16.mxu0 %v7038
        %8939 = vmatmul.mubr.bf16.gmra.mrb[0].mxu0 %v7037
        %v8940 = vpop.f32.mrb[0].mxu0
        %v8941 = vadd.f32 %v8268, %v8940
        %v8942 = vpop.f32.mrb[0].mxu0
        %v8943 = vadd.f32 %v8270, %v8942
        %v8944 = vpop.f32.mrb[0].mxu0
        %v8945 = vadd.f32 %v8272, %v8944
        %v8946 = vpop.f32.mrb[0].mxu0
        %v8947 = vadd.f32 %v8274, %v8946
        %8948 = vmatprep.mubr.bf16.mxu0 %v7042
        %8949 = vmatmul.mubr.bf16.gmra.mrb[0].mxu0 %v7041
        %v8950 = vpop.f32.mrb[0].mxu0
        %v8951 = vadd.f32 %v8278, %v8950
        %v8952 = vpop.f32.mrb[0].mxu0
        %v8953 = vadd.f32 %v8280, %v8952
        %v8954 = vpop.f32.mrb[0].mxu0
        %v8955 = vadd.f32 %v8282, %v8954
        %v8956 = vpop.f32.mrb[0].mxu0
        %v8957 = vadd.f32 %v8284, %v8956
        %8958 = vmatprep.mubr.bf16.mxu0 %v7046
        %8959 = vmatmul.mubr.bf16.gmra.mrb[0].mxu0 %v7045
        %v8960 = vpop.f32.mrb[0].mxu0
        %v8961 = vadd.f32 %v8288, %v8960
        %v8962 = vpop.f32.mrb[0].mxu0
        %v8963 = vadd.f32 %v8290, %v8962
        %v8964 = vpop.f32.mrb[0].mxu0
        %v8965 = vadd.f32 %v8292, %v8964
        %v8966 = vpop.f32.mrb[0].mxu0
        %v8967 = vadd.f32 %v8294, %v8966
        %8968 = vdwg.mxu0
        %v8969 = vld [vmem:[%s12] sm:$0xff]
        %v8970 = vld [vmem:[%s12 + $0x8] sm:$0xff]
        %v8971 = vld [vmem:[%s12 + $0x10] sm:$0xff]
        %v8972 = vld [vmem:[%s12 + $0x18] sm:$0xff]
        %v8973 = vld [vmem:[%s12 + $0x20] sm:$0xff]
        %v8974 = vld [vmem:[%s12 + $0x28] sm:$0xff]
        %v8975 = vld [vmem:[%s12 + $0x30] sm:$0xff]
        %v8976 = vld [vmem:[%s12 + $0x38] sm:$0xff]
        %v8977 = vld [vmem:[%s12 + $0x40] sm:$0xff]
        %v8978 = vld [vmem:[%s12 + $0x48] sm:$0xff]
        %v8979 = vld [vmem:[%s12 + $0x50] sm:$0xff]
        %v8980 = vld [vmem:[%s12 + $0x58] sm:$0xff]
        %v8981 = vld [vmem:[%s12 + $0x60] sm:$0xff]
        %v8982 = vld [vmem:[%s12 + $0x68] sm:$0xff]
        %v8983 = vld [vmem:[%s12 + $0x70] sm:$0xff]
        %v8984 = vld [vmem:[%s12 + $0x78] sm:$0xff]
        %v8985 = vld [vmem:[%s12 + $0x80] sm:$0xff]
        %v8986 = vld [vmem:[%s12 + $0x88] sm:$0xff]
        %v8987 = vld [vmem:[%s12 + $0x90] sm:$0xff]
        %v8988 = vld [vmem:[%s12 + $0x98] sm:$0xff]
        %v8989 = vld [vmem:[%s12 + $0xa0] sm:$0xff]
        %v8990 = vld [vmem:[%s12 + $0xa8] sm:$0xff]
        %v8991 = vld [vmem:[%s12 + $0xb0] sm:$0xff]
        %v8992 = vld [vmem:[%s12 + $0xb8] sm:$0xff]
        %v8993 = vld [vmem:[%s12 + $0xc0] sm:$0xff]
        %v8994 = vld [vmem:[%s12 + $0xc8] sm:$0xff]
        %v8995 = vld [vmem:[%s12 + $0xd0] sm:$0xff]
        %v8996 = vld [vmem:[%s12 + $0xd8] sm:$0xff]
        %v8997 = vld [vmem:[%s12 + $0xe0] sm:$0xff]
        %v8998 = vld [vmem:[%s12 + $0xe8] sm:$0xff]
        %v8999 = vld [vmem:[%s12 + $0xf0] sm:$0xff]
        %v9000 = vld [vmem:[%s12 + $0xf8] sm:$0xff]
        %v9001 = vld [vmem:[%s12 + $0x100] sm:$0xff]
        %v9002 = vld [vmem:[%s12 + $0x108] sm:$0xff]
        %v9003 = vld [vmem:[%s12 + $0x110] sm:$0xff]
        %v9004 = vld [vmem:[%s12 + $0x118] sm:$0xff]
        %v9005 = vld [vmem:[%s12 + $0x120] sm:$0xff]
        %v9006 = vld [vmem:[%s12 + $0x128] sm:$0xff]
        %v9007 = vld [vmem:[%s12 + $0x130] sm:$0xff]
        %v9008 = vld [vmem:[%s12 + $0x138] sm:$0xff]
        %v9009 = vld [vmem:[%s12 + $0x140] sm:$0xff]
        %v9010 = vld [vmem:[%s12 + $0x148] sm:$0xff]
        %v9011 = vld [vmem:[%s12 + $0x150] sm:$0xff]
        %v9012 = vld [vmem:[%s12 + $0x158] sm:$0xff]
        %v9013 = vld [vmem:[%s12 + $0x160] sm:$0xff]
        %v9014 = vld [vmem:[%s12 + $0x168] sm:$0xff]
        %v9015 = vld [vmem:[%s12 + $0x170] sm:$0xff]
        %v9016 = vld [vmem:[%s12 + $0x178] sm:$0xff]
        %v9017 = vld [vmem:[%s12 + $0x180] sm:$0xff]
        %v9018 = vld [vmem:[%s12 + $0x188] sm:$0xff]
        %v9019 = vld [vmem:[%s12 + $0x190] sm:$0xff]
        %v9020 = vld [vmem:[%s12 + $0x198] sm:$0xff]
        %v9021 = vld [vmem:[%s12 + $0x1a0] sm:$0xff]
        %v9022 = vld [vmem:[%s12 + $0x1a8] sm:$0xff]
        %v9023 = vld [vmem:[%s12 + $0x1b0] sm:$0xff]
        %v9024 = vld [vmem:[%s12 + $0x1b8] sm:$0xff]
        %v9025 = vld [vmem:[%s12 + $0x1c0] sm:$0xff]
        %v9026 = vld [vmem:[%s12 + $0x1c8] sm:$0xff]
        %v9027 = vld [vmem:[%s12 + $0x1d0] sm:$0xff]
        %v9028 = vld [vmem:[%s12 + $0x1d8] sm:$0xff]
        %v9029 = vld [vmem:[%s12 + $0x1e0] sm:$0xff]
        %v9030 = vld [vmem:[%s12 + $0x1e8] sm:$0xff]
        %v9031 = vld [vmem:[%s12 + $0x1f0] sm:$0xff]
        %v9032 = vld [vmem:[%s12 + $0x1f8] sm:$0xff]
        %v9033 = vld [vmem:[%s12 + $0x200] sm:$0xff]
        %v9034 = vld [vmem:[%s12 + $0x208] sm:$0xff]
        %v9035 = vld [vmem:[%s12 + $0x210] sm:$0xff]
        %v9036 = vld [vmem:[%s12 + $0x218] sm:$0xff]
        %v9037 = vld [vmem:[%s12 + $0x220] sm:$0xff]
        %v9038 = vld [vmem:[%s12 + $0x228] sm:$0xff]
        %v9039 = vld [vmem:[%s12 + $0x230] sm:$0xff]
        %v9040 = vld [vmem:[%s12 + $0x238] sm:$0xff]
        %v9041 = vld [vmem:[%s12 + $0x240] sm:$0xff]
        %v9042 = vld [vmem:[%s12 + $0x248] sm:$0xff]
        %v9043 = vld [vmem:[%s12 + $0x250] sm:$0xff]
        %v9044 = vld [vmem:[%s12 + $0x258] sm:$0xff]
        %v9045 = vld [vmem:[%s12 + $0x260] sm:$0xff]
        %v9046 = vld [vmem:[%s12 + $0x268] sm:$0xff]
        %v9047 = vld [vmem:[%s12 + $0x270] sm:$0xff]
        %v9048 = vld [vmem:[%s12 + $0x278] sm:$0xff]
        %v9049 = vld [vmem:[%s12 + $0x280] sm:$0xff]
        %v9050 = vld [vmem:[%s12 + $0x288] sm:$0xff]
        %v9051 = vld [vmem:[%s12 + $0x290] sm:$0xff]
        %v9052 = vld [vmem:[%s12 + $0x298] sm:$0xff]
        %v9053 = vld [vmem:[%s12 + $0x2a0] sm:$0xff]
        %v9054 = vld [vmem:[%s12 + $0x2a8] sm:$0xff]
        %v9055 = vld [vmem:[%s12 + $0x2b0] sm:$0xff]
        %v9056 = vld [vmem:[%s12 + $0x2b8] sm:$0xff]
        %v9057 = vld [vmem:[%s12 + $0x2c0] sm:$0xff]
        %v9058 = vld [vmem:[%s12 + $0x2c8] sm:$0xff]
        %v9059 = vld [vmem:[%s12 + $0x2d0] sm:$0xff]
        %v9060 = vld [vmem:[%s12 + $0x2d8] sm:$0xff]
        %v9061 = vld [vmem:[%s12 + $0x2e0] sm:$0xff]
        %v9062 = vld [vmem:[%s12 + $0x2e8] sm:$0xff]
        %v9063 = vld [vmem:[%s12 + $0x2f0] sm:$0xff]
        %v9064 = vld [vmem:[%s12 + $0x2f8] sm:$0xff]
        %v9065 = vld [vmem:[%s12 + $0x300] sm:$0xff]
        %v9066 = vld [vmem:[%s12 + $0x308] sm:$0xff]
        %v9067 = vld [vmem:[%s12 + $0x310] sm:$0xff]
        %v9068 = vld [vmem:[%s12 + $0x318] sm:$0xff]
        %v9069 = vld [vmem:[%s12 + $0x320] sm:$0xff]
        %v9070 = vld [vmem:[%s12 + $0x328] sm:$0xff]
        %v9071 = vld [vmem:[%s12 + $0x330] sm:$0xff]
        %v9072 = vld [vmem:[%s12 + $0x338] sm:$0xff]
        %v9073 = vld [vmem:[%s12 + $0x340] sm:$0xff]
        %v9074 = vld [vmem:[%s12 + $0x348] sm:$0xff]
        %v9075 = vld [vmem:[%s12 + $0x350] sm:$0xff]
        %v9076 = vld [vmem:[%s12 + $0x358] sm:$0xff]
        %v9077 = vld [vmem:[%s12 + $0x360] sm:$0xff]
        %v9078 = vld [vmem:[%s12 + $0x368] sm:$0xff]
        %v9079 = vld [vmem:[%s12 + $0x370] sm:$0xff]
        %v9080 = vld [vmem:[%s12 + $0x378] sm:$0xff]
        %v9081 = vld [vmem:[%s12 + $0x380] sm:$0xff]
        %v9082 = vld [vmem:[%s12 + $0x388] sm:$0xff]
        %v9083 = vld [vmem:[%s12 + $0x390] sm:$0xff]
        %v9084 = vld [vmem:[%s12 + $0x398] sm:$0xff]
        %v9085 = vld [vmem:[%s12 + $0x3a0] sm:$0xff]
        %v9086 = vld [vmem:[%s12 + $0x3a8] sm:$0xff]
        %v9087 = vld [vmem:[%s12 + $0x3b0] sm:$0xff]
        %v9088 = vld [vmem:[%s12 + $0x3b8] sm:$0xff]
        %v9089 = vld [vmem:[%s12 + $0x3c0] sm:$0xff]
        %v9090 = vld [vmem:[%s12 + $0x3c8] sm:$0xff]
        %v9091 = vld [vmem:[%s12 + $0x3d0] sm:$0xff]
        %v9092 = vld [vmem:[%s12 + $0x3d8] sm:$0xff]
        %v9093 = vld [vmem:[%s12 + $0x3e0] sm:$0xff]
        %v9094 = vld [vmem:[%s12 + $0x3e8] sm:$0xff]
        %v9095 = vld [vmem:[%s12 + $0x3f0] sm:$0xff]
        %v9096 = vld [vmem:[%s12 + $0x3f8] sm:$0xff]
        %v9097 = vld [vmem:[%s570] sm:$0xff]
        %v9098 = vld [vmem:[%s570 + $0x8] sm:$0xff]
        %v9099 = vld [vmem:[%s570 + $0x10] sm:$0xff]
        %v9100 = vld [vmem:[%s570 + $0x18] sm:$0xff]
        %v9101 = vld [vmem:[%s570 + $0x20] sm:$0xff]
        %v9102 = vld [vmem:[%s570 + $0x28] sm:$0xff]
        %v9103 = vld [vmem:[%s570 + $0x30] sm:$0xff]
        %v9104 = vld [vmem:[%s570 + $0x38] sm:$0xff]
        %v9105 = vld [vmem:[%s570 + $0x40] sm:$0xff]
        %v9106 = vld [vmem:[%s570 + $0x48] sm:$0xff]
        %v9107 = vld [vmem:[%s570 + $0x50] sm:$0xff]
        %v9108 = vld [vmem:[%s570 + $0x58] sm:$0xff]
        %v9109 = vld [vmem:[%s570 + $0x60] sm:$0xff]
        %v9110 = vld [vmem:[%s570 + $0x68] sm:$0xff]
        %v9111 = vld [vmem:[%s570 + $0x70] sm:$0xff]
        %v9112 = vld [vmem:[%s570 + $0x78] sm:$0xff]
        %v9113 = vld [vmem:[%s570 + $0x80] sm:$0xff]
        %v9114 = vld [vmem:[%s570 + $0x88] sm:$0xff]
        %v9115 = vld [vmem:[%s570 + $0x90] sm:$0xff]
        %v9116 = vld [vmem:[%s570 + $0x98] sm:$0xff]
        %v9117 = vld [vmem:[%s570 + $0xa0] sm:$0xff]
        %v9118 = vld [vmem:[%s570 + $0xa8] sm:$0xff]
        %v9119 = vld [vmem:[%s570 + $0xb0] sm:$0xff]
        %v9120 = vld [vmem:[%s570 + $0xb8] sm:$0xff]
        %v9121 = vld [vmem:[%s570 + $0xc0] sm:$0xff]
        %v9122 = vld [vmem:[%s570 + $0xc8] sm:$0xff]
        %v9123 = vld [vmem:[%s570 + $0xd0] sm:$0xff]
        %v9124 = vld [vmem:[%s570 + $0xd8] sm:$0xff]
        %v9125 = vld [vmem:[%s570 + $0xe0] sm:$0xff]
        %v9126 = vld [vmem:[%s570 + $0xe8] sm:$0xff]
        %v9127 = vld [vmem:[%s570 + $0xf0] sm:$0xff]
        %v9128 = vld [vmem:[%s570 + $0xf8] sm:$0xff]
        %v9129 = vld [vmem:[%s570 + $0x100] sm:$0xff]
        %v9130 = vld [vmem:[%s570 + $0x108] sm:$0xff]
        %v9131 = vld [vmem:[%s570 + $0x110] sm:$0xff]
        %v9132 = vld [vmem:[%s570 + $0x118] sm:$0xff]
        %v9133 = vld [vmem:[%s570 + $0x120] sm:$0xff]
        %v9134 = vld [vmem:[%s570 + $0x128] sm:$0xff]
        %v9135 = vld [vmem:[%s570 + $0x130] sm:$0xff]
        %v9136 = vld [vmem:[%s570 + $0x138] sm:$0xff]
        %v9137 = vld [vmem:[%s570 + $0x140] sm:$0xff]
        %v9138 = vld [vmem:[%s570 + $0x148] sm:$0xff]
        %v9139 = vld [vmem:[%s570 + $0x150] sm:$0xff]
        %v9140 = vld [vmem:[%s570 + $0x158] sm:$0xff]
        %v9141 = vld [vmem:[%s570 + $0x160] sm:$0xff]
        %v9142 = vld [vmem:[%s570 + $0x168] sm:$0xff]
        %v9143 = vld [vmem:[%s570 + $0x170] sm:$0xff]
        %v9144 = vld [vmem:[%s570 + $0x178] sm:$0xff]
        %v9145 = vld [vmem:[%s570 + $0x180] sm:$0xff]
        %v9146 = vld [vmem:[%s570 + $0x188] sm:$0xff]
        %v9147 = vld [vmem:[%s570 + $0x190] sm:$0xff]
        %v9148 = vld [vmem:[%s570 + $0x198] sm:$0xff]
        %v9149 = vld [vmem:[%s570 + $0x1a0] sm:$0xff]
        %v9150 = vld [vmem:[%s570 + $0x1a8] sm:$0xff]
        %v9151 = vld [vmem:[%s570 + $0x1b0] sm:$0xff]
        %v9152 = vld [vmem:[%s570 + $0x1b8] sm:$0xff]
        %v9153 = vld [vmem:[%s570 + $0x1c0] sm:$0xff]
        %v9154 = vld [vmem:[%s570 + $0x1c8] sm:$0xff]
        %v9155 = vld [vmem:[%s570 + $0x1d0] sm:$0xff]
        %v9156 = vld [vmem:[%s570 + $0x1d8] sm:$0xff]
        %v9157 = vld [vmem:[%s570 + $0x1e0] sm:$0xff]
        %v9158 = vld [vmem:[%s570 + $0x1e8] sm:$0xff]
        %v9159 = vld [vmem:[%s570 + $0x1f0] sm:$0xff]
        %v9160 = vld [vmem:[%s570 + $0x1f8] sm:$0xff]
        %v9161 = vpack.c.bf16 %v9099, %v9097
        %v9162 = vpack.c.bf16 %v9100, %v9098
        %v9163 = vpack.c.bf16 %v9103, %v9101
        %v9164 = vpack.c.bf16 %v9104, %v9102
        %v9165 = vpack.c.bf16 %v9107, %v9105
        %v9166 = vpack.c.bf16 %v9108, %v9106
        %v9167 = vpack.c.bf16 %v9111, %v9109
        %v9168 = vpack.c.bf16 %v9112, %v9110
        %v9169 = vpack.c.bf16 %v9115, %v9113
        %v9170 = vpack.c.bf16 %v9116, %v9114
        %v9171 = vpack.c.bf16 %v9119, %v9117
        %v9172 = vpack.c.bf16 %v9120, %v9118
        %v9173 = vpack.c.bf16 %v9123, %v9121
        %v9174 = vpack.c.bf16 %v9124, %v9122
        %v9175 = vpack.c.bf16 %v9127, %v9125
        %v9176 = vpack.c.bf16 %v9128, %v9126
        %v9177 = vpack.c.bf16 %v9131, %v9129
        %v9178 = vpack.c.bf16 %v9132, %v9130
        %v9179 = vpack.c.bf16 %v9135, %v9133
        %v9180 = vpack.c.bf16 %v9136, %v9134
        %v9181 = vpack.c.bf16 %v9139, %v9137
        %v9182 = vpack.c.bf16 %v9140, %v9138
        %v9183 = vpack.c.bf16 %v9143, %v9141
        %v9184 = vpack.c.bf16 %v9144, %v9142
        %v9185 = vpack.c.bf16 %v9147, %v9145
        %v9186 = vpack.c.bf16 %v9148, %v9146
        %v9187 = vpack.c.bf16 %v9151, %v9149
        %v9188 = vpack.c.bf16 %v9152, %v9150
        %v9189 = vpack.c.bf16 %v9155, %v9153
        %v9190 = vpack.c.bf16 %v9156, %v9154
        %v9191 = vpack.c.bf16 %v9159, %v9157
        %v9192 = vpack.c.bf16 %v9160, %v9158
        %v9321 = vunpack.c.l.b16 %v8969
        %v9322 = vunpack.c.h.b16 %v8969
        %v9323 = vunpack.c.l.b16 %v8970
        %v9324 = vunpack.c.h.b16 %v8970
        %v9325 = vunpack.c.l.b16 %v8971
        %v9326 = vunpack.c.h.b16 %v8971
        %v9327 = vunpack.c.l.b16 %v8972
        %v9328 = vunpack.c.h.b16 %v8972
        %v9329 = vunpack.c.l.b16 %v8973
        %v9330 = vunpack.c.h.b16 %v8973
        %v9331 = vunpack.c.l.b16 %v8974
        %v9332 = vunpack.c.h.b16 %v8974
        %v9333 = vunpack.c.l.b16 %v8975
        %v9334 = vunpack.c.h.b16 %v8975
        %v9335 = vunpack.c.l.b16 %v8976
        %v9336 = vunpack.c.h.b16 %v8976
        %v9337 = vunpack.c.l.b16 %v8977
        %v9338 = vunpack.c.h.b16 %v8977
        %v9339 = vunpack.c.l.b16 %v8978
        %v9340 = vunpack.c.h.b16 %v8978
        %v9341 = vunpack.c.l.b16 %v8979
        %v9342 = vunpack.c.h.b16 %v8979
        %v9343 = vunpack.c.l.b16 %v8980
        %v9344 = vunpack.c.h.b16 %v8980
        %v9345 = vunpack.c.l.b16 %v8981
        %v9346 = vunpack.c.h.b16 %v8981
        %v9347 = vunpack.c.l.b16 %v8982
        %v9348 = vunpack.c.h.b16 %v8982
        %v9349 = vunpack.c.l.b16 %v8983
        %v9350 = vunpack.c.h.b16 %v8983
        %v9351 = vunpack.c.l.b16 %v8984
        %v9352 = vunpack.c.h.b16 %v8984
        %v9353 = vunpack.c.l.b16 %v8985
        %v9354 = vunpack.c.h.b16 %v8985
        %v9355 = vunpack.c.l.b16 %v8986
        %v9356 = vunpack.c.h.b16 %v8986
        %v9357 = vunpack.c.l.b16 %v8987
        %v9358 = vunpack.c.h.b16 %v8987
        %v9359 = vunpack.c.l.b16 %v8988
        %v9360 = vunpack.c.h.b16 %v8988
        %v9361 = vunpack.c.l.b16 %v8989
        %v9362 = vunpack.c.h.b16 %v8989
        %v9363 = vunpack.c.l.b16 %v8990
        %v9364 = vunpack.c.h.b16 %v8990
        %v9365 = vunpack.c.l.b16 %v8991
        %v9366 = vunpack.c.h.b16 %v8991
        %v9367 = vunpack.c.l.b16 %v8992
        %v9368 = vunpack.c.h.b16 %v8992
        %v9369 = vunpack.c.l.b16 %v8993
        %v9370 = vunpack.c.h.b16 %v8993
        %v9371 = vunpack.c.l.b16 %v8994
        %v9372 = vunpack.c.h.b16 %v8994
        %v9373 = vunpack.c.l.b16 %v8995
        %v9374 = vunpack.c.h.b16 %v8995
        %v9375 = vunpack.c.l.b16 %v8996
        %v9376 = vunpack.c.h.b16 %v8996
        %v9377 = vunpack.c.l.b16 %v8997
        %v9378 = vunpack.c.h.b16 %v8997
        %v9379 = vunpack.c.l.b16 %v8998
        %v9380 = vunpack.c.h.b16 %v8998
        %v9381 = vunpack.c.l.b16 %v8999
        %v9382 = vunpack.c.h.b16 %v8999
        %v9383 = vunpack.c.l.b16 %v9000
        %v9384 = vunpack.c.h.b16 %v9000
        %v9385 = vunpack.c.l.b16 %v9001
        %v9386 = vunpack.c.h.b16 %v9001
        %v9387 = vunpack.c.l.b16 %v9002
        %v9388 = vunpack.c.h.b16 %v9002
        %v9389 = vunpack.c.l.b16 %v9003
        %v9390 = vunpack.c.h.b16 %v9003
        %v9391 = vunpack.c.l.b16 %v9004
        %v9392 = vunpack.c.h.b16 %v9004
        %v9393 = vunpack.c.l.b16 %v9005
        %v9394 = vunpack.c.h.b16 %v9005
        %v9395 = vunpack.c.l.b16 %v9006
        %v9396 = vunpack.c.h.b16 %v9006
        %v9397 = vunpack.c.l.b16 %v9007
        %v9398 = vunpack.c.h.b16 %v9007
        %v9399 = vunpack.c.l.b16 %v9008
        %v9400 = vunpack.c.h.b16 %v9008
        %v9401 = vunpack.c.l.b16 %v9009
        %v9402 = vunpack.c.h.b16 %v9009
        %v9403 = vunpack.c.l.b16 %v9010
        %v9404 = vunpack.c.h.b16 %v9010
        %v9405 = vunpack.c.l.b16 %v9011
        %v9406 = vunpack.c.h.b16 %v9011
        %v9407 = vunpack.c.l.b16 %v9012
        %v9408 = vunpack.c.h.b16 %v9012
        %v9409 = vunpack.c.l.b16 %v9013
        %v9410 = vunpack.c.h.b16 %v9013
        %v9411 = vunpack.c.l.b16 %v9014
        %v9412 = vunpack.c.h.b16 %v9014
        %v9413 = vunpack.c.l.b16 %v9015
        %v9414 = vunpack.c.h.b16 %v9015
        %v9415 = vunpack.c.l.b16 %v9016
        %v9416 = vunpack.c.h.b16 %v9016
        %v9417 = vunpack.c.l.b16 %v9017
        %v9418 = vunpack.c.h.b16 %v9017
        %v9419 = vunpack.c.l.b16 %v9018
        %v9420 = vunpack.c.h.b16 %v9018
        %v9421 = vunpack.c.l.b16 %v9019
        %v9422 = vunpack.c.h.b16 %v9019
        %v9423 = vunpack.c.l.b16 %v9020
        %v9424 = vunpack.c.h.b16 %v9020
        %v9425 = vunpack.c.l.b16 %v9021
        %v9426 = vunpack.c.h.b16 %v9021
        %v9427 = vunpack.c.l.b16 %v9022
        %v9428 = vunpack.c.h.b16 %v9022
        %v9429 = vunpack.c.l.b16 %v9023
        %v9430 = vunpack.c.h.b16 %v9023
        %v9431 = vunpack.c.l.b16 %v9024
        %v9432 = vunpack.c.h.b16 %v9024
        %v9433 = vunpack.c.l.b16 %v9025
        %v9434 = vunpack.c.h.b16 %v9025
        %v9435 = vunpack.c.l.b16 %v9026
        %v9436 = vunpack.c.h.b16 %v9026
        %v9437 = vunpack.c.l.b16 %v9027
        %v9438 = vunpack.c.h.b16 %v9027
        %v9439 = vunpack.c.l.b16 %v9028
        %v9440 = vunpack.c.h.b16 %v9028
        %v9441 = vunpack.c.l.b16 %v9029
        %v9442 = vunpack.c.h.b16 %v9029
        %v9443 = vunpack.c.l.b16 %v9030
        %v9444 = vunpack.c.h.b16 %v9030
        %v9445 = vunpack.c.l.b16 %v9031
        %v9446 = vunpack.c.h.b16 %v9031
        %v9447 = vunpack.c.l.b16 %v9032
        %v9448 = vunpack.c.h.b16 %v9032
        %v9449 = vunpack.c.l.b16 %v9033
        %v9450 = vunpack.c.h.b16 %v9033
        %v9451 = vunpack.c.l.b16 %v9034
        %v9452 = vunpack.c.h.b16 %v9034
        %v9453 = vunpack.c.l.b16 %v9035
        %v9454 = vunpack.c.h.b16 %v9035
        %v9455 = vunpack.c.l.b16 %v9036
        %v9456 = vunpack.c.h.b16 %v9036
        %v9457 = vunpack.c.l.b16 %v9037
        %v9458 = vunpack.c.h.b16 %v9037
        %v9459 = vunpack.c.l.b16 %v9038
        %v9460 = vunpack.c.h.b16 %v9038
        %v9461 = vunpack.c.l.b16 %v9039
        %v9462 = vunpack.c.h.b16 %v9039
        %v9463 = vunpack.c.l.b16 %v9040
        %v9464 = vunpack.c.h.b16 %v9040
        %v9465 = vunpack.c.l.b16 %v9041
        %v9466 = vunpack.c.h.b16 %v9041
        %v9467 = vunpack.c.l.b16 %v9042
        %v9468 = vunpack.c.h.b16 %v9042
        %v9469 = vunpack.c.l.b16 %v9043
        %v9470 = vunpack.c.h.b16 %v9043
        %v9471 = vunpack.c.l.b16 %v9044
        %v9472 = vunpack.c.h.b16 %v9044
        %v9473 = vunpack.c.l.b16 %v9045
        %v9474 = vunpack.c.h.b16 %v9045
        %v9475 = vunpack.c.l.b16 %v9046
        %v9476 = vunpack.c.h.b16 %v9046
        %v9477 = vunpack.c.l.b16 %v9047
        %v9478 = vunpack.c.h.b16 %v9047
        %v9479 = vunpack.c.l.b16 %v9048
        %v9480 = vunpack.c.h.b16 %v9048
        %v9481 = vunpack.c.l.b16 %v9049
        %v9482 = vunpack.c.h.b16 %v9049
        %v9483 = vunpack.c.l.b16 %v9050
        %v9484 = vunpack.c.h.b16 %v9050
        %v9485 = vunpack.c.l.b16 %v9051
        %v9486 = vunpack.c.h.b16 %v9051
        %v9487 = vunpack.c.l.b16 %v9052
        %v9488 = vunpack.c.h.b16 %v9052
        %v9489 = vunpack.c.l.b16 %v9053
        %v9490 = vunpack.c.h.b16 %v9053
        %v9491 = vunpack.c.l.b16 %v9054
        %v9492 = vunpack.c.h.b16 %v9054
        %v9493 = vunpack.c.l.b16 %v9055
        %v9494 = vunpack.c.h.b16 %v9055
        %v9495 = vunpack.c.l.b16 %v9056
        %v9496 = vunpack.c.h.b16 %v9056
        %v9497 = vunpack.c.l.b16 %v9057
        %v9498 = vunpack.c.h.b16 %v9057
        %v9499 = vunpack.c.l.b16 %v9058
        %v9500 = vunpack.c.h.b16 %v9058
        %v9501 = vunpack.c.l.b16 %v9059
        %v9502 = vunpack.c.h.b16 %v9059
        %v9503 = vunpack.c.l.b16 %v9060
        %v9504 = vunpack.c.h.b16 %v9060
        %v9505 = vunpack.c.l.b16 %v9061
        %v9506 = vunpack.c.h.b16 %v9061
        %v9507 = vunpack.c.l.b16 %v9062
        %v9508 = vunpack.c.h.b16 %v9062
        %v9509 = vunpack.c.l.b16 %v9063
        %v9510 = vunpack.c.h.b16 %v9063
        %v9511 = vunpack.c.l.b16 %v9064
        %v9512 = vunpack.c.h.b16 %v9064
        %v9513 = vunpack.c.l.b16 %v9065
        %v9514 = vunpack.c.h.b16 %v9065
        %v9515 = vunpack.c.l.b16 %v9066
        %v9516 = vunpack.c.h.b16 %v9066
        %v9517 = vunpack.c.l.b16 %v9067
        %v9518 = vunpack.c.h.b16 %v9067
        %v9519 = vunpack.c.l.b16 %v9068
        %v9520 = vunpack.c.h.b16 %v9068
        %v9521 = vunpack.c.l.b16 %v9069
        %v9522 = vunpack.c.h.b16 %v9069
        %v9523 = vunpack.c.l.b16 %v9070
        %v9524 = vunpack.c.h.b16 %v9070
        %v9525 = vunpack.c.l.b16 %v9071
        %v9526 = vunpack.c.h.b16 %v9071
        %v9527 = vunpack.c.l.b16 %v9072
        %v9528 = vunpack.c.h.b16 %v9072
        %v9529 = vunpack.c.l.b16 %v9073
        %v9530 = vunpack.c.h.b16 %v9073
        %v9531 = vunpack.c.l.b16 %v9074
        %v9532 = vunpack.c.h.b16 %v9074
        %v9533 = vunpack.c.l.b16 %v9075
        %v9534 = vunpack.c.h.b16 %v9075
        %v9535 = vunpack.c.l.b16 %v9076
        %v9536 = vunpack.c.h.b16 %v9076
        %v9537 = vunpack.c.l.b16 %v9077
        %v9538 = vunpack.c.h.b16 %v9077
        %v9539 = vunpack.c.l.b16 %v9078
        %v9540 = vunpack.c.h.b16 %v9078
        %v9541 = vunpack.c.l.b16 %v9079
        %v9542 = vunpack.c.h.b16 %v9079
        %v9543 = vunpack.c.l.b16 %v9080
        %v9544 = vunpack.c.h.b16 %v9080
        %v9545 = vunpack.c.l.b16 %v9081
        %v9546 = vunpack.c.h.b16 %v9081
        %v9547 = vunpack.c.l.b16 %v9082
        %v9548 = vunpack.c.h.b16 %v9082
        %v9549 = vunpack.c.l.b16 %v9083
        %v9550 = vunpack.c.h.b16 %v9083
        %v9551 = vunpack.c.l.b16 %v9084
        %v9552 = vunpack.c.h.b16 %v9084
        %v9553 = vunpack.c.l.b16 %v9085
        %v9554 = vunpack.c.h.b16 %v9085
        %v9555 = vunpack.c.l.b16 %v9086
        %v9556 = vunpack.c.h.b16 %v9086
        %v9557 = vunpack.c.l.b16 %v9087
        %v9558 = vunpack.c.h.b16 %v9087
        %v9559 = vunpack.c.l.b16 %v9088
        %v9560 = vunpack.c.h.b16 %v9088
        %v9561 = vunpack.c.l.b16 %v9089
        %v9562 = vunpack.c.h.b16 %v9089
        %v9563 = vunpack.c.l.b16 %v9090
        %v9564 = vunpack.c.h.b16 %v9090
        %v9565 = vunpack.c.l.b16 %v9091
        %v9566 = vunpack.c.h.b16 %v9091
        %v9567 = vunpack.c.l.b16 %v9092
        %v9568 = vunpack.c.h.b16 %v9092
        %v9569 = vunpack.c.l.b16 %v9093
        %v9570 = vunpack.c.h.b16 %v9093
        %v9571 = vunpack.c.l.b16 %v9094
        %v9572 = vunpack.c.h.b16 %v9094
        %v9573 = vunpack.c.l.b16 %v9095
        %v9574 = vunpack.c.h.b16 %v9095
        %v9575 = vunpack.c.l.b16 %v9096
        %v9576 = vunpack.c.h.b16 %v9096
        %v9577 = vpack.c.b16 %v9323, %v9321
        %v9578 = vpack.c.b16 %v9324, %v9322
        %v9579 = vpack.c.b16 %v9327, %v9325
        %v9580 = vpack.c.b16 %v9328, %v9326
        %v9581 = vpack.c.b16 %v9331, %v9329
        %v9582 = vpack.c.b16 %v9332, %v9330
        %v9583 = vpack.c.b16 %v9335, %v9333
        %v9584 = vpack.c.b16 %v9336, %v9334
        %v9585 = vpack.c.b16 %v9339, %v9337
        %v9586 = vpack.c.b16 %v9340, %v9338
        %v9587 = vpack.c.b16 %v9343, %v9341
        %v9588 = vpack.c.b16 %v9344, %v9342
        %v9589 = vpack.c.b16 %v9347, %v9345
        %v9590 = vpack.c.b16 %v9348, %v9346
        %v9591 = vpack.c.b16 %v9351, %v9349
        %v9592 = vpack.c.b16 %v9352, %v9350
        %v9593 = vpack.c.b16 %v9355, %v9353
        %v9594 = vpack.c.b16 %v9356, %v9354
        %v9595 = vpack.c.b16 %v9359, %v9357
        %v9596 = vpack.c.b16 %v9360, %v9358
        %v9597 = vpack.c.b16 %v9363, %v9361
        %v9598 = vpack.c.b16 %v9364, %v9362
        %v9599 = vpack.c.b16 %v9367, %v9365
        %v9600 = vpack.c.b16 %v9368, %v9366
        %v9601 = vpack.c.b16 %v9371, %v9369
        %v9602 = vpack.c.b16 %v9372, %v9370
        %v9603 = vpack.c.b16 %v9375, %v9373
        %v9604 = vpack.c.b16 %v9376, %v9374
        %v9605 = vpack.c.b16 %v9379, %v9377
        %v9606 = vpack.c.b16 %v9380, %v9378
        %v9607 = vpack.c.b16 %v9383, %v9381
        %v9608 = vpack.c.b16 %v9384, %v9382
        %v9609 = vpack.c.b16 %v9387, %v9385
        %v9610 = vpack.c.b16 %v9388, %v9386
        %v9611 = vpack.c.b16 %v9391, %v9389
        %v9612 = vpack.c.b16 %v9392, %v9390
        %v9613 = vpack.c.b16 %v9395, %v9393
        %v9614 = vpack.c.b16 %v9396, %v9394
        %v9615 = vpack.c.b16 %v9399, %v9397
        %v9616 = vpack.c.b16 %v9400, %v9398
        %v9617 = vpack.c.b16 %v9403, %v9401
        %v9618 = vpack.c.b16 %v9404, %v9402
        %v9619 = vpack.c.b16 %v9407, %v9405
        %v9620 = vpack.c.b16 %v9408, %v9406
        %v9621 = vpack.c.b16 %v9411, %v9409
        %v9622 = vpack.c.b16 %v9412, %v9410
        %v9623 = vpack.c.b16 %v9415, %v9413
        %v9624 = vpack.c.b16 %v9416, %v9414
        %v9625 = vpack.c.b16 %v9419, %v9417
        %v9626 = vpack.c.b16 %v9420, %v9418
        %v9627 = vpack.c.b16 %v9423, %v9421
        %v9628 = vpack.c.b16 %v9424, %v9422
        %v9629 = vpack.c.b16 %v9427, %v9425
        %v9630 = vpack.c.b16 %v9428, %v9426
        %v9631 = vpack.c.b16 %v9431, %v9429
        %v9632 = vpack.c.b16 %v9432, %v9430
        %v9633 = vpack.c.b16 %v9435, %v9433
        %v9634 = vpack.c.b16 %v9436, %v9434
        %v9635 = vpack.c.b16 %v9439, %v9437
        %v9636 = vpack.c.b16 %v9440, %v9438
        %v9637 = vpack.c.b16 %v9443, %v9441
        %v9638 = vpack.c.b16 %v9444, %v9442
        %v9639 = vpack.c.b16 %v9447, %v9445
        %v9640 = vpack.c.b16 %v9448, %v9446
        %v9641 = vpack.c.b16 %v9451, %v9449
        %v9642 = vpack.c.b16 %v9452, %v9450
        %v9643 = vpack.c.b16 %v9455, %v9453
        %v9644 = vpack.c.b16 %v9456, %v9454
        %v9645 = vpack.c.b16 %v9459, %v9457
        %v9646 = vpack.c.b16 %v9460, %v9458
        %v9647 = vpack.c.b16 %v9463, %v9461
        %v9648 = vpack.c.b16 %v9464, %v9462
        %v9649 = vpack.c.b16 %v9467, %v9465
        %v9650 = vpack.c.b16 %v9468, %v9466
        %v9651 = vpack.c.b16 %v9471, %v9469
        %v9652 = vpack.c.b16 %v9472, %v9470
        %v9653 = vpack.c.b16 %v9475, %v9473
        %v9654 = vpack.c.b16 %v9476, %v9474
        %v9655 = vpack.c.b16 %v9479, %v9477
        %v9656 = vpack.c.b16 %v9480, %v9478
        %v9657 = vpack.c.b16 %v9483, %v9481
        %v9658 = vpack.c.b16 %v9484, %v9482
        %v9659 = vpack.c.b16 %v9487, %v9485
        %v9660 = vpack.c.b16 %v9488, %v9486
        %v9661 = vpack.c.b16 %v9491, %v9489
        %v9662 = vpack.c.b16 %v9492, %v9490
        %v9663 = vpack.c.b16 %v9495, %v9493
        %v9664 = vpack.c.b16 %v9496, %v9494
        %v9665 = vpack.c.b16 %v9499, %v9497
        %v9666 = vpack.c.b16 %v9500, %v9498
        %v9667 = vpack.c.b16 %v9503, %v9501
        %v9668 = vpack.c.b16 %v9504, %v9502
        %v9669 = vpack.c.b16 %v9507, %v9505
        %v9670 = vpack.c.b16 %v9508, %v9506
        %v9671 = vpack.c.b16 %v9511, %v9509
        %v9672 = vpack.c.b16 %v9512, %v9510
        %v9673 = vpack.c.b16 %v9515, %v9513
        %v9674 = vpack.c.b16 %v9516, %v9514
        %v9675 = vpack.c.b16 %v9519, %v9517
        %v9676 = vpack.c.b16 %v9520, %v9518
        %v9677 = vpack.c.b16 %v9523, %v9521
        %v9678 = vpack.c.b16 %v9524, %v9522
        %v9679 = vpack.c.b16 %v9527, %v9525
        %v9680 = vpack.c.b16 %v9528, %v9526
        %v9681 = vpack.c.b16 %v9531, %v9529
        %v9682 = vpack.c.b16 %v9532, %v9530
        %v9683 = vpack.c.b16 %v9535, %v9533
        %v9684 = vpack.c.b16 %v9536, %v9534
        %v9685 = vpack.c.b16 %v9539, %v9537
        %v9686 = vpack.c.b16 %v9540, %v9538
        %v9687 = vpack.c.b16 %v9543, %v9541
        %v9688 = vpack.c.b16 %v9544, %v9542
        %v9689 = vpack.c.b16 %v9547, %v9545
        %v9690 = vpack.c.b16 %v9548, %v9546
        %v9691 = vpack.c.b16 %v9551, %v9549
        %v9692 = vpack.c.b16 %v9552, %v9550
        %v9693 = vpack.c.b16 %v9555, %v9553
        %v9694 = vpack.c.b16 %v9556, %v9554
        %v9695 = vpack.c.b16 %v9559, %v9557
        %v9696 = vpack.c.b16 %v9560, %v9558
        %v9697 = vpack.c.b16 %v9563, %v9561
        %v9698 = vpack.c.b16 %v9564, %v9562
        %v9699 = vpack.c.b16 %v9567, %v9565
        %v9700 = vpack.c.b16 %v9568, %v9566
        %v9701 = vpack.c.b16 %v9571, %v9569
        %v9702 = vpack.c.b16 %v9572, %v9570
        %v9703 = vpack.c.b16 %v9575, %v9573
        %v9704 = vpack.c.b16 %v9576, %v9574
        %9833 = vmatprep.subr.bf16.mxu0 %v9162
        %9834 = vmatpush1.bf16.msra.mxu0 %v9161
        %9835 = vmatprep.subr.bf16.mxu0 %v9164
        %9836 = vmatpush1.bf16.msra.mxu0 %v9163
        %9837 = vmatprep.subr.bf16.mxu0 %v9166
        %9838 = vmatpush1.bf16.msra.mxu0 %v9165
        %9839 = vmatprep.subr.bf16.mxu0 %v9168
        %9840 = vmatpush1.bf16.msra.mxu0 %v9167
        %9841 = vmatprep.subr.bf16.mxu0 %v9170
        %9842 = vmatpush1.bf16.msra.mxu0 %v9169
        %9843 = vmatprep.subr.bf16.mxu0 %v9172
        %9844 = vmatpush1.bf16.msra.mxu0 %v9171
        %9845 = vmatprep.subr.bf16.mxu0 %v9174
        %9846 = vmatpush1.bf16.msra.mxu0 %v9173
        %9847 = vmatprep.subr.bf16.mxu0 %v9176
        %9848 = vmatpush1.bf16.msra.mxu0 %v9175
        %9849 = vmatprep.subr.bf16.mxu0 %v9178
        %9850 = vmatpush1.bf16.msra.mxu0 %v9177
        %9851 = vmatprep.subr.bf16.mxu0 %v9180
        %9852 = vmatpush1.bf16.msra.mxu0 %v9179
        %9853 = vmatprep.subr.bf16.mxu0 %v9182
        %9854 = vmatpush1.bf16.msra.mxu0 %v9181
        %9855 = vmatprep.subr.bf16.mxu0 %v9184
        %9856 = vmatpush1.bf16.msra.mxu0 %v9183
        %9857 = vmatprep.subr.bf16.mxu0 %v9186
        %9858 = vmatpush1.bf16.msra.mxu0 %v9185
        %9859 = vmatprep.subr.bf16.mxu0 %v9188
        %9860 = vmatpush1.bf16.msra.mxu0 %v9187
        %9861 = vmatprep.subr.bf16.mxu0 %v9190
        %9862 = vmatpush1.bf16.msra.mxu0 %v9189
        %9863 = vmatprep.subr.bf16.mxu0 %v9192
        %9864 = vmatpush1.bf16.msra.mxu0 %v9191
        %9865 = vmatprep.mubr.bf16.mxu0 %v9578
        %9866 = vmatmul.mubr.bf16.gmra.mrb[0].mxu0 %v9577
        %v9867 = vpop.f32.mrb[0].mxu0
        %v9868 = vadd.f32 0.0, %v9867
        %v9869 = vpop.f32.mrb[0].mxu0
        %v9870 = vadd.f32 0.0, %v9869
        %v9871 = vpop.f32.mrb[0].mxu0
        %v9872 = vadd.f32 0.0, %v9871
        %v9873 = vpop.f32.mrb[0].mxu0
        %v9874 = vadd.f32 0.0, %v9873
        %9875 = vmatprep.mubr.bf16.mxu0 %v9580
        %9876 = vmatmul.mubr.bf16.gmra.mrb[0].mxu0 %v9579
        %v9877 = vpop.f32.mrb[0].mxu0
        %v9878 = vadd.f32 0.0, %v9877
        %v9879 = vpop.f32.mrb[0].mxu0
        %v9880 = vadd.f32 0.0, %v9879
        %v9881 = vpop.f32.mrb[0].mxu0
        %v9882 = vadd.f32 0.0, %v9881
        %v9883 = vpop.f32.mrb[0].mxu0
        %v9884 = vadd.f32 0.0, %v9883
        %9885 = vmatprep.mubr.bf16.mxu0 %v9582
        %9886 = vmatmul.mubr.bf16.gmra.mrb[0].mxu0 %v9581
        %v9887 = vpop.f32.mrb[0].mxu0
        %v9888 = vadd.f32 0.0, %v9887
        %v9889 = vpop.f32.mrb[0].mxu0
        %v9890 = vadd.f32 0.0, %v9889
        %v9891 = vpop.f32.mrb[0].mxu0
        %v9892 = vadd.f32 0.0, %v9891
        %v9893 = vpop.f32.mrb[0].mxu0
        %v9894 = vadd.f32 0.0, %v9893
        %9895 = vmatprep.mubr.bf16.mxu0 %v9584
        %9896 = vmatmul.mubr.bf16.gmra.mrb[0].mxu0 %v9583
        %v9897 = vpop.f32.mrb[0].mxu0
        %v9898 = vadd.f32 0.0, %v9897
        %v9899 = vpop.f32.mrb[0].mxu0
        %v9900 = vadd.f32 0.0, %v9899
        %v9901 = vpop.f32.mrb[0].mxu0
        %v9902 = vadd.f32 0.0, %v9901
        %v9903 = vpop.f32.mrb[0].mxu0
        %v9904 = vadd.f32 0.0, %v9903
        %9905 = vmatprep.mubr.bf16.mxu0 %v9586
        %9906 = vmatmul.mubr.bf16.gmra.mrb[0].mxu0 %v9585
        %v9907 = vpop.f32.mrb[0].mxu0
        %v9908 = vadd.f32 0.0, %v9907
        %v9909 = vpop.f32.mrb[0].mxu0
        %v9910 = vadd.f32 0.0, %v9909
        %v9911 = vpop.f32.mrb[0].mxu0
        %v9912 = vadd.f32 0.0, %v9911
        %v9913 = vpop.f32.mrb[0].mxu0
        %v9914 = vadd.f32 0.0, %v9913
        %9915 = vmatprep.mubr.bf16.mxu0 %v9588
        %9916 = vmatmul.mubr.bf16.gmra.mrb[0].mxu0 %v9587
        %v9917 = vpop.f32.mrb[0].mxu0
        %v9918 = vadd.f32 0.0, %v9917
        %v9919 = vpop.f32.mrb[0].mxu0
        %v9920 = vadd.f32 0.0, %v9919
        %v9921 = vpop.f32.mrb[0].mxu0
        %v9922 = vadd.f32 0.0, %v9921
        %v9923 = vpop.f32.mrb[0].mxu0
        %v9924 = vadd.f32 0.0, %v9923
        %9925 = vmatprep.mubr.bf16.mxu0 %v9590
        %9926 = vmatmul.mubr.bf16.gmra.mrb[0].mxu0 %v9589
        %v9927 = vpop.f32.mrb[0].mxu0
        %v9928 = vadd.f32 0.0, %v9927
        %v9929 = vpop.f32.mrb[0].mxu0
        %v9930 = vadd.f32 0.0, %v9929
        %v9931 = vpop.f32.mrb[0].mxu0
        %v9932 = vadd.f32 0.0, %v9931
        %v9933 = vpop.f32.mrb[0].mxu0
        %v9934 = vadd.f32 0.0, %v9933
        %9935 = vmatprep.mubr.bf16.mxu0 %v9592
        %9936 = vmatmul.mubr.bf16.gmra.mrb[0].mxu0 %v9591
        %v9937 = vpop.f32.mrb[0].mxu0
        %v9938 = vadd.f32 0.0, %v9937
        %v9939 = vpop.f32.mrb[0].mxu0
        %v9940 = vadd.f32 0.0, %v9939
        %v9941 = vpop.f32.mrb[0].mxu0
        %v9942 = vadd.f32 0.0, %v9941
        %v9943 = vpop.f32.mrb[0].mxu0
        %v9944 = vadd.f32 0.0, %v9943
        %9945 = vmatprep.mubr.bf16.mxu0 %v9594
        %9946 = vmatmul.mubr.bf16.gmra.mrb[0].mxu0 %v9593
        %v9947 = vpop.f32.mrb[0].mxu0
        %v9948 = vadd.f32 0.0, %v9947
        %v9949 = vpop.f32.mrb[0].mxu0
        %v9950 = vadd.f32 0.0, %v9949
        %v9951 = vpop.f32.mrb[0].mxu0
        %v9952 = vadd.f32 0.0, %v9951
        %v9953 = vpop.f32.mrb[0].mxu0
        %v9954 = vadd.f32 0.0, %v9953
        %9955 = vmatprep.mubr.bf16.mxu0 %v9596
        %9956 = vmatmul.mubr.bf16.gmra.mrb[0].mxu0 %v9595
        %v9957 = vpop.f32.mrb[0].mxu0
        %v9958 = vadd.f32 0.0, %v9957
        %v9959 = vpop.f32.mrb[0].mxu0
        %v9960 = vadd.f32 0.0, %v9959
        %v9961 = vpop.f32.mrb[0].mxu0
        %v9962 = vadd.f32 0.0, %v9961
        %v9963 = vpop.f32.mrb[0].mxu0
        %v9964 = vadd.f32 0.0, %v9963
        %9965 = vmatprep.mubr.bf16.mxu0 %v9598
        %9966 = vmatmul.mubr.bf16.gmra.mrb[0].mxu0 %v9597
        %v9967 = vpop.f32.mrb[0].mxu0
        %v9968 = vadd.f32 0.0, %v9967
        %v9969 = vpop.f32.mrb[0].mxu0
        %v9970 = vadd.f32 0.0, %v9969
        %v9971 = vpop.f32.mrb[0].mxu0
        %v9972 = vadd.f32 0.0, %v9971
        %v9973 = vpop.f32.mrb[0].mxu0
        %v9974 = vadd.f32 0.0, %v9973
        %9975 = vmatprep.mubr.bf16.mxu0 %v9600
        %9976 = vmatmul.mubr.bf16.gmra.mrb[0].mxu0 %v9599
        %v9977 = vpop.f32.mrb[0].mxu0
        %v9978 = vadd.f32 0.0, %v9977
        %v9979 = vpop.f32.mrb[0].mxu0
        %v9980 = vadd.f32 0.0, %v9979
        %v9981 = vpop.f32.mrb[0].mxu0
        %v9982 = vadd.f32 0.0, %v9981
        %v9983 = vpop.f32.mrb[0].mxu0
        %v9984 = vadd.f32 0.0, %v9983
        %9985 = vmatprep.mubr.bf16.mxu0 %v9602
        %9986 = vmatmul.mubr.bf16.gmra.mrb[0].mxu0 %v9601
        %v9987 = vpop.f32.mrb[0].mxu0
        %v9988 = vadd.f32 0.0, %v9987
        %v9989 = vpop.f32.mrb[0].mxu0
        %v9990 = vadd.f32 0.0, %v9989
        %v9991 = vpop.f32.mrb[0].mxu0
        %v9992 = vadd.f32 0.0, %v9991
        %v9993 = vpop.f32.mrb[0].mxu0
        %v9994 = vadd.f32 0.0, %v9993
        %9995 = vmatprep.mubr.bf16.mxu0 %v9604
        %9996 = vmatmul.mubr.bf16.gmra.mrb[0].mxu0 %v9603
        %v9997 = vpop.f32.mrb[0].mxu0
        %v9998 = vadd.f32 0.0, %v9997
        %v9999 = vpop.f32.mrb[0].mxu0
        %v10000 = vadd.f32 0.0, %v9999
        %v10001 = vpop.f32.mrb[0].mxu0
        %v10002 = vadd.f32 0.0, %v10001
        %v10003 = vpop.f32.mrb[0].mxu0
        %v10004 = vadd.f32 0.0, %v10003
        %10005 = vmatprep.mubr.bf16.mxu0 %v9606
        %10006 = vmatmul.mubr.bf16.gmra.mrb[0].mxu0 %v9605
        %v10007 = vpop.f32.mrb[0].mxu0
        %v10008 = vadd.f32 0.0, %v10007
        %v10009 = vpop.f32.mrb[0].mxu0
        %v10010 = vadd.f32 0.0, %v10009
        %v10011 = vpop.f32.mrb[0].mxu0
        %v10012 = vadd.f32 0.0, %v10011
        %v10013 = vpop.f32.mrb[0].mxu0
        %v10014 = vadd.f32 0.0, %v10013
        %10015 = vmatprep.mubr.bf16.mxu0 %v9608
        %10016 = vmatmul.mubr.bf16.gmra.mrb[0].mxu0 %v9607
        %v10017 = vpop.f32.mrb[0].mxu0
        %v10018 = vadd.f32 0.0, %v10017
        %v10019 = vpop.f32.mrb[0].mxu0
        %v10020 = vadd.f32 0.0, %v10019
        %v10021 = vpop.f32.mrb[0].mxu0
        %v10022 = vadd.f32 0.0, %v10021
        %v10023 = vpop.f32.mrb[0].mxu0
        %v10024 = vadd.f32 0.0, %v10023
        %10025 = vmatprep.mubr.bf16.mxu0 %v9610
        %10026 = vmatmul.mubr.bf16.gmra.mrb[0].mxu0 %v9609
        %v10027 = vpop.f32.mrb[0].mxu0
        %v10028 = vadd.f32 0.0, %v10027
        %v10029 = vpop.f32.mrb[0].mxu0
        %v10030 = vadd.f32 0.0, %v10029
        %v10031 = vpop.f32.mrb[0].mxu0
        %v10032 = vadd.f32 0.0, %v10031
        %v10033 = vpop.f32.mrb[0].mxu0
        %v10034 = vadd.f32 0.0, %v10033
        %10035 = vmatprep.mubr.bf16.mxu0 %v9612
        %10036 = vmatmul.mubr.bf16.gmra.mrb[0].mxu0 %v9611
        %v10037 = vpop.f32.mrb[0].mxu0
        %v10038 = vadd.f32 0.0, %v10037
        %v10039 = vpop.f32.mrb[0].mxu0
        %v10040 = vadd.f32 0.0, %v10039
        %v10041 = vpop.f32.mrb[0].mxu0
        %v10042 = vadd.f32 0.0, %v10041
        %v10043 = vpop.f32.mrb[0].mxu0
        %v10044 = vadd.f32 0.0, %v10043
        %10045 = vmatprep.mubr.bf16.mxu0 %v9614
        %10046 = vmatmul.mubr.bf16.gmra.mrb[0].mxu0 %v9613
        %v10047 = vpop.f32.mrb[0].mxu0
        %v10048 = vadd.f32 0.0, %v10047
        %v10049 = vpop.f32.mrb[0].mxu0
        %v10050 = vadd.f32 0.0, %v10049
        %v10051 = vpop.f32.mrb[0].mxu0
        %v10052 = vadd.f32 0.0, %v10051
        %v10053 = vpop.f32.mrb[0].mxu0
        %v10054 = vadd.f32 0.0, %v10053
        %10055 = vmatprep.mubr.bf16.mxu0 %v9616
        %10056 = vmatmul.mubr.bf16.gmra.mrb[0].mxu0 %v9615
        %v10057 = vpop.f32.mrb[0].mxu0
        %v10058 = vadd.f32 0.0, %v10057
        %v10059 = vpop.f32.mrb[0].mxu0
        %v10060 = vadd.f32 0.0, %v10059
        %v10061 = vpop.f32.mrb[0].mxu0
        %v10062 = vadd.f32 0.0, %v10061
        %v10063 = vpop.f32.mrb[0].mxu0
        %v10064 = vadd.f32 0.0, %v10063
        %10065 = vmatprep.mubr.bf16.mxu0 %v9618
        %10066 = vmatmul.mubr.bf16.gmra.mrb[0].mxu0 %v9617
        %v10067 = vpop.f32.mrb[0].mxu0
        %v10068 = vadd.f32 0.0, %v10067
        %v10069 = vpop.f32.mrb[0].mxu0
        %v10070 = vadd.f32 0.0, %v10069
        %v10071 = vpop.f32.mrb[0].mxu0
        %v10072 = vadd.f32 0.0, %v10071
        %v10073 = vpop.f32.mrb[0].mxu0
        %v10074 = vadd.f32 0.0, %v10073
        %10075 = vmatprep.mubr.bf16.mxu0 %v9620
        %10076 = vmatmul.mubr.bf16.gmra.mrb[0].mxu0 %v9619
        %v10077 = vpop.f32.mrb[0].mxu0
        %v10078 = vadd.f32 0.0, %v10077
        %v10079 = vpop.f32.mrb[0].mxu0
        %v10080 = vadd.f32 0.0, %v10079
        %v10081 = vpop.f32.mrb[0].mxu0
        %v10082 = vadd.f32 0.0, %v10081
        %v10083 = vpop.f32.mrb[0].mxu0
        %v10084 = vadd.f32 0.0, %v10083
        %10085 = vmatprep.mubr.bf16.mxu0 %v9622
        %10086 = vmatmul.mubr.bf16.gmra.mrb[0].mxu0 %v9621
        %v10087 = vpop.f32.mrb[0].mxu0
        %v10088 = vadd.f32 0.0, %v10087
        %v10089 = vpop.f32.mrb[0].mxu0
        %v10090 = vadd.f32 0.0, %v10089
        %v10091 = vpop.f32.mrb[0].mxu0
        %v10092 = vadd.f32 0.0, %v10091
        %v10093 = vpop.f32.mrb[0].mxu0
        %v10094 = vadd.f32 0.0, %v10093
        %10095 = vmatprep.mubr.bf16.mxu0 %v9624
        %10096 = vmatmul.mubr.bf16.gmra.mrb[0].mxu0 %v9623
        %v10097 = vpop.f32.mrb[0].mxu0
        %v10098 = vadd.f32 0.0, %v10097
        %v10099 = vpop.f32.mrb[0].mxu0
        %v10100 = vadd.f32 0.0, %v10099
        %v10101 = vpop.f32.mrb[0].mxu0
        %v10102 = vadd.f32 0.0, %v10101
        %v10103 = vpop.f32.mrb[0].mxu0
        %v10104 = vadd.f32 0.0, %v10103
        %10105 = vmatprep.mubr.bf16.mxu0 %v9626
        %10106 = vmatmul.mubr.bf16.gmra.mrb[0].mxu0 %v9625
        %v10107 = vpop.f32.mrb[0].mxu0
        %v10108 = vadd.f32 0.0, %v10107
        %v10109 = vpop.f32.mrb[0].mxu0
        %v10110 = vadd.f32 0.0, %v10109
        %v10111 = vpop.f32.mrb[0].mxu0
        %v10112 = vadd.f32 0.0, %v10111
        %v10113 = vpop.f32.mrb[0].mxu0
        %v10114 = vadd.f32 0.0, %v10113
        %10115 = vmatprep.mubr.bf16.mxu0 %v9628
        %10116 = vmatmul.mubr.bf16.gmra.mrb[0].mxu0 %v9627
        %v10117 = vpop.f32.mrb[0].mxu0
        %v10118 = vadd.f32 0.0, %v10117
        %v10119 = vpop.f32.mrb[0].mxu0
        %v10120 = vadd.f32 0.0, %v10119
        %v10121 = vpop.f32.mrb[0].mxu0
        %v10122 = vadd.f32 0.0, %v10121
        %v10123 = vpop.f32.mrb[0].mxu0
        %v10124 = vadd.f32 0.0, %v10123
        %10125 = vmatprep.mubr.bf16.mxu0 %v9630
        %10126 = vmatmul.mubr.bf16.gmra.mrb[0].mxu0 %v9629
        %v10127 = vpop.f32.mrb[0].mxu0
        %v10128 = vadd.f32 0.0, %v10127
        %v10129 = vpop.f32.mrb[0].mxu0
        %v10130 = vadd.f32 0.0, %v10129
        %v10131 = vpop.f32.mrb[0].mxu0
        %v10132 = vadd.f32 0.0, %v10131
        %v10133 = vpop.f32.mrb[0].mxu0
        %v10134 = vadd.f32 0.0, %v10133
        %10135 = vmatprep.mubr.bf16.mxu0 %v9632
        %10136 = vmatmul.mubr.bf16.gmra.mrb[0].mxu0 %v9631
        %v10137 = vpop.f32.mrb[0].mxu0
        %v10138 = vadd.f32 0.0, %v10137
        %v10139 = vpop.f32.mrb[0].mxu0
        %v10140 = vadd.f32 0.0, %v10139
        %v10141 = vpop.f32.mrb[0].mxu0
        %v10142 = vadd.f32 0.0, %v10141
        %v10143 = vpop.f32.mrb[0].mxu0
        %v10144 = vadd.f32 0.0, %v10143
        %10145 = vmatprep.mubr.bf16.mxu0 %v9634
        %10146 = vmatmul.mubr.bf16.gmra.mrb[0].mxu0 %v9633
        %v10147 = vpop.f32.mrb[0].mxu0
        %v10148 = vadd.f32 0.0, %v10147
        %v10149 = vpop.f32.mrb[0].mxu0
        %v10150 = vadd.f32 0.0, %v10149
        %v10151 = vpop.f32.mrb[0].mxu0
        %v10152 = vadd.f32 0.0, %v10151
        %v10153 = vpop.f32.mrb[0].mxu0
        %v10154 = vadd.f32 0.0, %v10153
        %10155 = vmatprep.mubr.bf16.mxu0 %v9636
        %10156 = vmatmul.mubr.bf16.gmra.mrb[0].mxu0 %v9635
        %v10157 = vpop.f32.mrb[0].mxu0
        %v10158 = vadd.f32 0.0, %v10157
        %v10159 = vpop.f32.mrb[0].mxu0
        %v10160 = vadd.f32 0.0, %v10159
        %v10161 = vpop.f32.mrb[0].mxu0
        %v10162 = vadd.f32 0.0, %v10161
        %v10163 = vpop.f32.mrb[0].mxu0
        %v10164 = vadd.f32 0.0, %v10163
        %10165 = vmatprep.mubr.bf16.mxu0 %v9638
        %10166 = vmatmul.mubr.bf16.gmra.mrb[0].mxu0 %v9637
        %v10167 = vpop.f32.mrb[0].mxu0
        %v10168 = vadd.f32 0.0, %v10167
        %v10169 = vpop.f32.mrb[0].mxu0
        %v10170 = vadd.f32 0.0, %v10169
        %v10171 = vpop.f32.mrb[0].mxu0
        %v10172 = vadd.f32 0.0, %v10171
        %v10173 = vpop.f32.mrb[0].mxu0
        %v10174 = vadd.f32 0.0, %v10173
        %10175 = vmatprep.mubr.bf16.mxu0 %v9640
        %10176 = vmatmul.mubr.bf16.gmra.mrb[0].mxu0 %v9639
        %v10177 = vpop.f32.mrb[0].mxu0
        %v10178 = vadd.f32 0.0, %v10177
        %v10179 = vpop.f32.mrb[0].mxu0
        %v10180 = vadd.f32 0.0, %v10179
        %v10181 = vpop.f32.mrb[0].mxu0
        %v10182 = vadd.f32 0.0, %v10181
        %v10183 = vpop.f32.mrb[0].mxu0
        %v10184 = vadd.f32 0.0, %v10183
        %10185 = vmatprep.mubr.bf16.mxu0 %v9642
        %10186 = vmatmul.mubr.bf16.gmra.mrb[0].mxu0 %v9641
        %v10187 = vpop.f32.mrb[0].mxu0
        %v10188 = vadd.f32 0.0, %v10187
        %v10189 = vpop.f32.mrb[0].mxu0
        %v10190 = vadd.f32 0.0, %v10189
        %v10191 = vpop.f32.mrb[0].mxu0
        %v10192 = vadd.f32 0.0, %v10191
        %v10193 = vpop.f32.mrb[0].mxu0
        %v10194 = vadd.f32 0.0, %v10193
        %10195 = vmatprep.mubr.bf16.mxu0 %v9644
        %10196 = vmatmul.mubr.bf16.gmra.mrb[0].mxu0 %v9643
        %v10197 = vpop.f32.mrb[0].mxu0
        %v10198 = vadd.f32 0.0, %v10197
        %v10199 = vpop.f32.mrb[0].mxu0
        %v10200 = vadd.f32 0.0, %v10199
        %v10201 = vpop.f32.mrb[0].mxu0
        %v10202 = vadd.f32 0.0, %v10201
        %v10203 = vpop.f32.mrb[0].mxu0
        %v10204 = vadd.f32 0.0, %v10203
        %10205 = vmatprep.mubr.bf16.mxu0 %v9646
        %10206 = vmatmul.mubr.bf16.gmra.mrb[0].mxu0 %v9645
        %v10207 = vpop.f32.mrb[0].mxu0
        %v10208 = vadd.f32 0.0, %v10207
        %v10209 = vpop.f32.mrb[0].mxu0
        %v10210 = vadd.f32 0.0, %v10209
        %v10211 = vpop.f32.mrb[0].mxu0
        %v10212 = vadd.f32 0.0, %v10211
        %v10213 = vpop.f32.mrb[0].mxu0
        %v10214 = vadd.f32 0.0, %v10213
        %10215 = vmatprep.mubr.bf16.mxu0 %v9648
        %10216 = vmatmul.mubr.bf16.gmra.mrb[0].mxu0 %v9647
        %v10217 = vpop.f32.mrb[0].mxu0
        %v10218 = vadd.f32 0.0, %v10217
        %v10219 = vpop.f32.mrb[0].mxu0
        %v10220 = vadd.f32 0.0, %v10219
        %v10221 = vpop.f32.mrb[0].mxu0
        %v10222 = vadd.f32 0.0, %v10221
        %v10223 = vpop.f32.mrb[0].mxu0
        %v10224 = vadd.f32 0.0, %v10223
        %10225 = vmatprep.mubr.bf16.mxu0 %v9650
        %10226 = vmatmul.mubr.bf16.gmra.mrb[0].mxu0 %v9649
        %v10227 = vpop.f32.mrb[0].mxu0
        %v10228 = vadd.f32 0.0, %v10227
        %v10229 = vpop.f32.mrb[0].mxu0
        %v10230 = vadd.f32 0.0, %v10229
        %v10231 = vpop.f32.mrb[0].mxu0
        %v10232 = vadd.f32 0.0, %v10231
        %v10233 = vpop.f32.mrb[0].mxu0
        %v10234 = vadd.f32 0.0, %v10233
        %10235 = vmatprep.mubr.bf16.mxu0 %v9652
        %10236 = vmatmul.mubr.bf16.gmra.mrb[0].mxu0 %v9651
        %v10237 = vpop.f32.mrb[0].mxu0
        %v10238 = vadd.f32 0.0, %v10237
        %v10239 = vpop.f32.mrb[0].mxu0
        %v10240 = vadd.f32 0.0, %v10239
        %v10241 = vpop.f32.mrb[0].mxu0
        %v10242 = vadd.f32 0.0, %v10241
        %v10243 = vpop.f32.mrb[0].mxu0
        %v10244 = vadd.f32 0.0, %v10243
        %10245 = vmatprep.mubr.bf16.mxu0 %v9654
        %10246 = vmatmul.mubr.bf16.gmra.mrb[0].mxu0 %v9653
        %v10247 = vpop.f32.mrb[0].mxu0
        %v10248 = vadd.f32 0.0, %v10247
        %v10249 = vpop.f32.mrb[0].mxu0
        %v10250 = vadd.f32 0.0, %v10249
        %v10251 = vpop.f32.mrb[0].mxu0
        %v10252 = vadd.f32 0.0, %v10251
        %v10253 = vpop.f32.mrb[0].mxu0
        %v10254 = vadd.f32 0.0, %v10253
        %10255 = vmatprep.mubr.bf16.mxu0 %v9656
        %10256 = vmatmul.mubr.bf16.gmra.mrb[0].mxu0 %v9655
        %v10257 = vpop.f32.mrb[0].mxu0
        %v10258 = vadd.f32 0.0, %v10257
        %v10259 = vpop.f32.mrb[0].mxu0
        %v10260 = vadd.f32 0.0, %v10259
        %v10261 = vpop.f32.mrb[0].mxu0
        %v10262 = vadd.f32 0.0, %v10261
        %v10263 = vpop.f32.mrb[0].mxu0
        %v10264 = vadd.f32 0.0, %v10263
        %10265 = vmatprep.mubr.bf16.mxu0 %v9658
        %10266 = vmatmul.mubr.bf16.gmra.mrb[0].mxu0 %v9657
        %v10267 = vpop.f32.mrb[0].mxu0
        %v10268 = vadd.f32 0.0, %v10267
        %v10269 = vpop.f32.mrb[0].mxu0
        %v10270 = vadd.f32 0.0, %v10269
        %v10271 = vpop.f32.mrb[0].mxu0
        %v10272 = vadd.f32 0.0, %v10271
        %v10273 = vpop.f32.mrb[0].mxu0
        %v10274 = vadd.f32 0.0, %v10273
        %10275 = vmatprep.mubr.bf16.mxu0 %v9660
        %10276 = vmatmul.mubr.bf16.gmra.mrb[0].mxu0 %v9659
        %v10277 = vpop.f32.mrb[0].mxu0
        %v10278 = vadd.f32 0.0, %v10277
        %v10279 = vpop.f32.mrb[0].mxu0
        %v10280 = vadd.f32 0.0, %v10279
        %v10281 = vpop.f32.mrb[0].mxu0
        %v10282 = vadd.f32 0.0, %v10281
        %v10283 = vpop.f32.mrb[0].mxu0
        %v10284 = vadd.f32 0.0, %v10283
        %10285 = vmatprep.mubr.bf16.mxu0 %v9662
        %10286 = vmatmul.mubr.bf16.gmra.mrb[0].mxu0 %v9661
        %v10287 = vpop.f32.mrb[0].mxu0
        %v10288 = vadd.f32 0.0, %v10287
        %v10289 = vpop.f32.mrb[0].mxu0
        %v10290 = vadd.f32 0.0, %v10289
        %v10291 = vpop.f32.mrb[0].mxu0
        %v10292 = vadd.f32 0.0, %v10291
        %v10293 = vpop.f32.mrb[0].mxu0
        %v10294 = vadd.f32 0.0, %v10293
        %10295 = vmatprep.mubr.bf16.mxu0 %v9664
        %10296 = vmatmul.mubr.bf16.gmra.mrb[0].mxu0 %v9663
        %v10297 = vpop.f32.mrb[0].mxu0
        %v10298 = vadd.f32 0.0, %v10297
        %v10299 = vpop.f32.mrb[0].mxu0
        %v10300 = vadd.f32 0.0, %v10299
        %v10301 = vpop.f32.mrb[0].mxu0
        %v10302 = vadd.f32 0.0, %v10301
        %v10303 = vpop.f32.mrb[0].mxu0
        %v10304 = vadd.f32 0.0, %v10303
        %10305 = vmatprep.mubr.bf16.mxu0 %v9666
        %10306 = vmatmul.mubr.bf16.gmra.mrb[0].mxu0 %v9665
        %v10307 = vpop.f32.mrb[0].mxu0
        %v10308 = vadd.f32 0.0, %v10307
        %v10309 = vpop.f32.mrb[0].mxu0
        %v10310 = vadd.f32 0.0, %v10309
        %v10311 = vpop.f32.mrb[0].mxu0
        %v10312 = vadd.f32 0.0, %v10311
        %v10313 = vpop.f32.mrb[0].mxu0
        %v10314 = vadd.f32 0.0, %v10313
        %10315 = vmatprep.mubr.bf16.mxu0 %v9668
        %10316 = vmatmul.mubr.bf16.gmra.mrb[0].mxu0 %v9667
        %v10317 = vpop.f32.mrb[0].mxu0
        %v10318 = vadd.f32 0.0, %v10317
        %v10319 = vpop.f32.mrb[0].mxu0
        %v10320 = vadd.f32 0.0, %v10319
        %v10321 = vpop.f32.mrb[0].mxu0
        %v10322 = vadd.f32 0.0, %v10321
        %v10323 = vpop.f32.mrb[0].mxu0
        %v10324 = vadd.f32 0.0, %v10323
        %10325 = vmatprep.mubr.bf16.mxu0 %v9670
        %10326 = vmatmul.mubr.bf16.gmra.mrb[0].mxu0 %v9669
        %v10327 = vpop.f32.mrb[0].mxu0
        %v10328 = vadd.f32 0.0, %v10327
        %v10329 = vpop.f32.mrb[0].mxu0
        %v10330 = vadd.f32 0.0, %v10329
        %v10331 = vpop.f32.mrb[0].mxu0
        %v10332 = vadd.f32 0.0, %v10331
        %v10333 = vpop.f32.mrb[0].mxu0
        %v10334 = vadd.f32 0.0, %v10333
        %10335 = vmatprep.mubr.bf16.mxu0 %v9672
        %10336 = vmatmul.mubr.bf16.gmra.mrb[0].mxu0 %v9671
        %v10337 = vpop.f32.mrb[0].mxu0
        %v10338 = vadd.f32 0.0, %v10337
        %v10339 = vpop.f32.mrb[0].mxu0
        %v10340 = vadd.f32 0.0, %v10339
        %v10341 = vpop.f32.mrb[0].mxu0
        %v10342 = vadd.f32 0.0, %v10341
        %v10343 = vpop.f32.mrb[0].mxu0
        %v10344 = vadd.f32 0.0, %v10343
        %10345 = vmatprep.mubr.bf16.mxu0 %v9674
        %10346 = vmatmul.mubr.bf16.gmra.mrb[0].mxu0 %v9673
        %v10347 = vpop.f32.mrb[0].mxu0
        %v10348 = vadd.f32 0.0, %v10347
        %v10349 = vpop.f32.mrb[0].mxu0
        %v10350 = vadd.f32 0.0, %v10349
        %v10351 = vpop.f32.mrb[0].mxu0
        %v10352 = vadd.f32 0.0, %v10351
        %v10353 = vpop.f32.mrb[0].mxu0
        %v10354 = vadd.f32 0.0, %v10353
        %10355 = vmatprep.mubr.bf16.mxu0 %v9676
        %10356 = vmatmul.mubr.bf16.gmra.mrb[0].mxu0 %v9675
        %v10357 = vpop.f32.mrb[0].mxu0
        %v10358 = vadd.f32 0.0, %v10357
        %v10359 = vpop.f32.mrb[0].mxu0
        %v10360 = vadd.f32 0.0, %v10359
        %v10361 = vpop.f32.mrb[0].mxu0
        %v10362 = vadd.f32 0.0, %v10361
        %v10363 = vpop.f32.mrb[0].mxu0
        %v10364 = vadd.f32 0.0, %v10363
        %10365 = vmatprep.mubr.bf16.mxu0 %v9678
        %10366 = vmatmul.mubr.bf16.gmra.mrb[0].mxu0 %v9677
        %v10367 = vpop.f32.mrb[0].mxu0
        %v10368 = vadd.f32 0.0, %v10367
        %v10369 = vpop.f32.mrb[0].mxu0
        %v10370 = vadd.f32 0.0, %v10369
        %v10371 = vpop.f32.mrb[0].mxu0
        %v10372 = vadd.f32 0.0, %v10371
        %v10373 = vpop.f32.mrb[0].mxu0
        %v10374 = vadd.f32 0.0, %v10373
        %10375 = vmatprep.mubr.bf16.mxu0 %v9680
        %10376 = vmatmul.mubr.bf16.gmra.mrb[0].mxu0 %v9679
        %v10377 = vpop.f32.mrb[0].mxu0
        %v10378 = vadd.f32 0.0, %v10377
        %v10379 = vpop.f32.mrb[0].mxu0
        %v10380 = vadd.f32 0.0, %v10379
        %v10381 = vpop.f32.mrb[0].mxu0
        %v10382 = vadd.f32 0.0, %v10381
        %v10383 = vpop.f32.mrb[0].mxu0
        %v10384 = vadd.f32 0.0, %v10383
        %10385 = vmatprep.mubr.bf16.mxu0 %v9682
        %10386 = vmatmul.mubr.bf16.gmra.mrb[0].mxu0 %v9681
        %v10387 = vpop.f32.mrb[0].mxu0
        %v10388 = vadd.f32 0.0, %v10387
        %v10389 = vpop.f32.mrb[0].mxu0
        %v10390 = vadd.f32 0.0, %v10389
        %v10391 = vpop.f32.mrb[0].mxu0
        %v10392 = vadd.f32 0.0, %v10391
        %v10393 = vpop.f32.mrb[0].mxu0
        %v10394 = vadd.f32 0.0, %v10393
        %10395 = vmatprep.mubr.bf16.mxu0 %v9684
        %10396 = vmatmul.mubr.bf16.gmra.mrb[0].mxu0 %v9683
        %v10397 = vpop.f32.mrb[0].mxu0
        %v10398 = vadd.f32 0.0, %v10397
        %v10399 = vpop.f32.mrb[0].mxu0
        %v10400 = vadd.f32 0.0, %v10399
        %v10401 = vpop.f32.mrb[0].mxu0
        %v10402 = vadd.f32 0.0, %v10401
        %v10403 = vpop.f32.mrb[0].mxu0
        %v10404 = vadd.f32 0.0, %v10403
        %10405 = vmatprep.mubr.bf16.mxu0 %v9686
        %10406 = vmatmul.mubr.bf16.gmra.mrb[0].mxu0 %v9685
        %v10407 = vpop.f32.mrb[0].mxu0
        %v10408 = vadd.f32 0.0, %v10407
        %v10409 = vpop.f32.mrb[0].mxu0
        %v10410 = vadd.f32 0.0, %v10409
        %v10411 = vpop.f32.mrb[0].mxu0
        %v10412 = vadd.f32 0.0, %v10411
        %v10413 = vpop.f32.mrb[0].mxu0
        %v10414 = vadd.f32 0.0, %v10413
        %10415 = vmatprep.mubr.bf16.mxu0 %v9688
        %10416 = vmatmul.mubr.bf16.gmra.mrb[0].mxu0 %v9687
        %v10417 = vpop.f32.mrb[0].mxu0
        %v10418 = vadd.f32 0.0, %v10417
        %v10419 = vpop.f32.mrb[0].mxu0
        %v10420 = vadd.f32 0.0, %v10419
        %v10421 = vpop.f32.mrb[0].mxu0
        %v10422 = vadd.f32 0.0, %v10421
        %v10423 = vpop.f32.mrb[0].mxu0
        %v10424 = vadd.f32 0.0, %v10423
        %10425 = vmatprep.mubr.bf16.mxu0 %v9690
        %10426 = vmatmul.mubr.bf16.gmra.mrb[0].mxu0 %v9689
        %v10427 = vpop.f32.mrb[0].mxu0
        %v10428 = vadd.f32 0.0, %v10427
        %v10429 = vpop.f32.mrb[0].mxu0
        %v10430 = vadd.f32 0.0, %v10429
        %v10431 = vpop.f32.mrb[0].mxu0
        %v10432 = vadd.f32 0.0, %v10431
        %v10433 = vpop.f32.mrb[0].mxu0
        %v10434 = vadd.f32 0.0, %v10433
        %10435 = vmatprep.mubr.bf16.mxu0 %v9692
        %10436 = vmatmul.mubr.bf16.gmra.mrb[0].mxu0 %v9691
        %v10437 = vpop.f32.mrb[0].mxu0
        %v10438 = vadd.f32 0.0, %v10437
        %v10439 = vpop.f32.mrb[0].mxu0
        %v10440 = vadd.f32 0.0, %v10439
        %v10441 = vpop.f32.mrb[0].mxu0
        %v10442 = vadd.f32 0.0, %v10441
        %v10443 = vpop.f32.mrb[0].mxu0
        %v10444 = vadd.f32 0.0, %v10443
        %10445 = vmatprep.mubr.bf16.mxu0 %v9694
        %10446 = vmatmul.mubr.bf16.gmra.mrb[0].mxu0 %v9693
        %v10447 = vpop.f32.mrb[0].mxu0
        %v10448 = vadd.f32 0.0, %v10447
        %v10449 = vpop.f32.mrb[0].mxu0
        %v10450 = vadd.f32 0.0, %v10449
        %v10451 = vpop.f32.mrb[0].mxu0
        %v10452 = vadd.f32 0.0, %v10451
        %v10453 = vpop.f32.mrb[0].mxu0
        %v10454 = vadd.f32 0.0, %v10453
        %10455 = vmatprep.mubr.bf16.mxu0 %v9696
        %10456 = vmatmul.mubr.bf16.gmra.mrb[0].mxu0 %v9695
        %v10457 = vpop.f32.mrb[0].mxu0
        %v10458 = vadd.f32 0.0, %v10457
        %v10459 = vpop.f32.mrb[0].mxu0
        %v10460 = vadd.f32 0.0, %v10459
        %v10461 = vpop.f32.mrb[0].mxu0
        %v10462 = vadd.f32 0.0, %v10461
        %v10463 = vpop.f32.mrb[0].mxu0
        %v10464 = vadd.f32 0.0, %v10463
        %10465 = vmatprep.mubr.bf16.mxu0 %v9698
        %10466 = vmatmul.mubr.bf16.gmra.mrb[0].mxu0 %v9697
        %v10467 = vpop.f32.mrb[0].mxu0
        %v10468 = vadd.f32 0.0, %v10467
        %v10469 = vpop.f32.mrb[0].mxu0
        %v10470 = vadd.f32 0.0, %v10469
        %v10471 = vpop.f32.mrb[0].mxu0
        %v10472 = vadd.f32 0.0, %v10471
        %v10473 = vpop.f32.mrb[0].mxu0
        %v10474 = vadd.f32 0.0, %v10473
        %10475 = vmatprep.mubr.bf16.mxu0 %v9700
        %10476 = vmatmul.mubr.bf16.gmra.mrb[0].mxu0 %v9699
        %v10477 = vpop.f32.mrb[0].mxu0
        %v10478 = vadd.f32 0.0, %v10477
        %v10479 = vpop.f32.mrb[0].mxu0
        %v10480 = vadd.f32 0.0, %v10479
        %v10481 = vpop.f32.mrb[0].mxu0
        %v10482 = vadd.f32 0.0, %v10481
        %v10483 = vpop.f32.mrb[0].mxu0
        %v10484 = vadd.f32 0.0, %v10483
        %10485 = vmatprep.mubr.bf16.mxu0 %v9702
        %10486 = vmatmul.mubr.bf16.gmra.mrb[0].mxu0 %v9701
        %v10487 = vpop.f32.mrb[0].mxu0
        %v10488 = vadd.f32 0.0, %v10487
        %v10489 = vpop.f32.mrb[0].mxu0
        %v10490 = vadd.f32 0.0, %v10489
        %v10491 = vpop.f32.mrb[0].mxu0
        %v10492 = vadd.f32 0.0, %v10491
        %v10493 = vpop.f32.mrb[0].mxu0
        %v10494 = vadd.f32 0.0, %v10493
        %10495 = vmatprep.mubr.bf16.mxu0 %v9704
        %10496 = vmatmul.mubr.bf16.gmra.mrb[0].mxu0 %v9703
        %v10497 = vpop.f32.mrb[0].mxu0
        %v10498 = vadd.f32 0.0, %v10497
        %v10499 = vpop.f32.mrb[0].mxu0
        %v10500 = vadd.f32 0.0, %v10499
        %v10501 = vpop.f32.mrb[0].mxu0
        %v10502 = vadd.f32 0.0, %v10501
        %v10503 = vpop.f32.mrb[0].mxu0
        %v10504 = vadd.f32 0.0, %v10503
        %10505 = vdwg.mxu0
        %v10506 = vadd.f32 %v8331, %v9868
        %v10507 = vadd.f32 %v8333, %v9870
        %v10508 = vadd.f32 %v8335, %v9872
        %v10509 = vadd.f32 %v8337, %v9874
        %v10510 = vadd.f32 %v8341, %v9878
        %v10511 = vadd.f32 %v8343, %v9880
        %v10512 = vadd.f32 %v8345, %v9882
        %v10513 = vadd.f32 %v8347, %v9884
        %v10514 = vadd.f32 %v8351, %v9888
        %v10515 = vadd.f32 %v8353, %v9890
        %v10516 = vadd.f32 %v8355, %v9892
        %v10517 = vadd.f32 %v8357, %v9894
        %v10518 = vadd.f32 %v8361, %v9898
        %v10519 = vadd.f32 %v8363, %v9900
        %v10520 = vadd.f32 %v8365, %v9902
        %v10521 = vadd.f32 %v8367, %v9904
        %v10522 = vadd.f32 %v8371, %v9908
        %v10523 = vadd.f32 %v8373, %v9910
        %v10524 = vadd.f32 %v8375, %v9912
        %v10525 = vadd.f32 %v8377, %v9914
        %v10526 = vadd.f32 %v8381, %v9918
        %v10527 = vadd.f32 %v8383, %v9920
        %v10528 = vadd.f32 %v8385, %v9922
        %v10529 = vadd.f32 %v8387, %v9924
        %v10530 = vadd.f32 %v8391, %v9928
        %v10531 = vadd.f32 %v8393, %v9930
        %v10532 = vadd.f32 %v8395, %v9932
        %v10533 = vadd.f32 %v8397, %v9934
        %v10534 = vadd.f32 %v8401, %v9938
        %v10535 = vadd.f32 %v8403, %v9940
        %v10536 = vadd.f32 %v8405, %v9942
        %v10537 = vadd.f32 %v8407, %v9944
        %v10538 = vadd.f32 %v8411, %v9948
        %v10539 = vadd.f32 %v8413, %v9950
        %v10540 = vadd.f32 %v8415, %v9952
        %v10541 = vadd.f32 %v8417, %v9954
        %v10542 = vadd.f32 %v8421, %v9958
        %v10543 = vadd.f32 %v8423, %v9960
        %v10544 = vadd.f32 %v8425, %v9962
        %v10545 = vadd.f32 %v8427, %v9964
        %v10546 = vadd.f32 %v8431, %v9968
        %v10547 = vadd.f32 %v8433, %v9970
        %v10548 = vadd.f32 %v8435, %v9972
        %v10549 = vadd.f32 %v8437, %v9974
        %v10550 = vadd.f32 %v8441, %v9978
        %v10551 = vadd.f32 %v8443, %v9980
        %v10552 = vadd.f32 %v8445, %v9982
        %v10553 = vadd.f32 %v8447, %v9984
        %v10554 = vadd.f32 %v8451, %v9988
        %v10555 = vadd.f32 %v8453, %v9990
        %v10556 = vadd.f32 %v8455, %v9992
        %v10557 = vadd.f32 %v8457, %v9994
        %v10558 = vadd.f32 %v8461, %v9998
        %v10559 = vadd.f32 %v8463, %v10000
        %v10560 = vadd.f32 %v8465, %v10002
        %v10561 = vadd.f32 %v8467, %v10004
        %v10562 = vadd.f32 %v8471, %v10008
        %v10563 = vadd.f32 %v8473, %v10010
        %v10564 = vadd.f32 %v8475, %v10012
        %v10565 = vadd.f32 %v8477, %v10014
        %v10566 = vadd.f32 %v8481, %v10018
        %v10567 = vadd.f32 %v8483, %v10020
        %v10568 = vadd.f32 %v8485, %v10022
        %v10569 = vadd.f32 %v8487, %v10024
        %v10570 = vadd.f32 %v8491, %v10028
        %v10571 = vadd.f32 %v8493, %v10030
        %v10572 = vadd.f32 %v8495, %v10032
        %v10573 = vadd.f32 %v8497, %v10034
        %v10574 = vadd.f32 %v8501, %v10038
        %v10575 = vadd.f32 %v8503, %v10040
        %v10576 = vadd.f32 %v8505, %v10042
        %v10577 = vadd.f32 %v8507, %v10044
        %v10578 = vadd.f32 %v8511, %v10048
        %v10579 = vadd.f32 %v8513, %v10050
        %v10580 = vadd.f32 %v8515, %v10052
        %v10581 = vadd.f32 %v8517, %v10054
        %v10582 = vadd.f32 %v8521, %v10058
        %v10583 = vadd.f32 %v8523, %v10060
        %v10584 = vadd.f32 %v8525, %v10062
        %v10585 = vadd.f32 %v8527, %v10064
        %v10586 = vadd.f32 %v8531, %v10068
        %v10587 = vadd.f32 %v8533, %v10070
        %v10588 = vadd.f32 %v8535, %v10072
        %v10589 = vadd.f32 %v8537, %v10074
        %v10590 = vadd.f32 %v8541, %v10078
        %v10591 = vadd.f32 %v8543, %v10080
        %v10592 = vadd.f32 %v8545, %v10082
        %v10593 = vadd.f32 %v8547, %v10084
        %v10594 = vadd.f32 %v8551, %v10088
        %v10595 = vadd.f32 %v8553, %v10090
        %v10596 = vadd.f32 %v8555, %v10092
        %v10597 = vadd.f32 %v8557, %v10094
        %v10598 = vadd.f32 %v8561, %v10098
        %v10599 = vadd.f32 %v8563, %v10100
        %v10600 = vadd.f32 %v8565, %v10102
        %v10601 = vadd.f32 %v8567, %v10104
        %v10602 = vadd.f32 %v8571, %v10108
        %v10603 = vadd.f32 %v8573, %v10110
        %v10604 = vadd.f32 %v8575, %v10112
        %v10605 = vadd.f32 %v8577, %v10114
        %v10606 = vadd.f32 %v8581, %v10118
        %v10607 = vadd.f32 %v8583, %v10120
        %v10608 = vadd.f32 %v8585, %v10122
        %v10609 = vadd.f32 %v8587, %v10124
        %v10610 = vadd.f32 %v8591, %v10128
        %v10611 = vadd.f32 %v8593, %v10130
        %v10612 = vadd.f32 %v8595, %v10132
        %v10613 = vadd.f32 %v8597, %v10134
        %v10614 = vadd.f32 %v8601, %v10138
        %v10615 = vadd.f32 %v8603, %v10140
        %v10616 = vadd.f32 %v8605, %v10142
        %v10617 = vadd.f32 %v8607, %v10144
        %v10618 = vadd.f32 %v8611, %v10148
        %v10619 = vadd.f32 %v8613, %v10150
        %v10620 = vadd.f32 %v8615, %v10152
        %v10621 = vadd.f32 %v8617, %v10154
        %v10622 = vadd.f32 %v8621, %v10158
        %v10623 = vadd.f32 %v8623, %v10160
        %v10624 = vadd.f32 %v8625, %v10162
        %v10625 = vadd.f32 %v8627, %v10164
        %v10626 = vadd.f32 %v8631, %v10168
        %v10627 = vadd.f32 %v8633, %v10170
        %v10628 = vadd.f32 %v8635, %v10172
        %v10629 = vadd.f32 %v8637, %v10174
        %v10630 = vadd.f32 %v8641, %v10178
        %v10631 = vadd.f32 %v8643, %v10180
        %v10632 = vadd.f32 %v8645, %v10182
        %v10633 = vadd.f32 %v8647, %v10184
        %v10634 = vadd.f32 %v8651, %v10188
        %v10635 = vadd.f32 %v8653, %v10190
        %v10636 = vadd.f32 %v8655, %v10192
        %v10637 = vadd.f32 %v8657, %v10194
        %v10638 = vadd.f32 %v8661, %v10198
        %v10639 = vadd.f32 %v8663, %v10200
        %v10640 = vadd.f32 %v8665, %v10202
        %v10641 = vadd.f32 %v8667, %v10204
        %v10642 = vadd.f32 %v8671, %v10208
        %v10643 = vadd.f32 %v8673, %v10210
        %v10644 = vadd.f32 %v8675, %v10212
        %v10645 = vadd.f32 %v8677, %v10214
        %v10646 = vadd.f32 %v8681, %v10218
        %v10647 = vadd.f32 %v8683, %v10220
        %v10648 = vadd.f32 %v8685, %v10222
        %v10649 = vadd.f32 %v8687, %v10224
        %v10650 = vadd.f32 %v8691, %v10228
        %v10651 = vadd.f32 %v8693, %v10230
        %v10652 = vadd.f32 %v8695, %v10232
        %v10653 = vadd.f32 %v8697, %v10234
        %v10654 = vadd.f32 %v8701, %v10238
        %v10655 = vadd.f32 %v8703, %v10240
        %v10656 = vadd.f32 %v8705, %v10242
        %v10657 = vadd.f32 %v8707, %v10244
        %v10658 = vadd.f32 %v8711, %v10248
        %v10659 = vadd.f32 %v8713, %v10250
        %v10660 = vadd.f32 %v8715, %v10252
        %v10661 = vadd.f32 %v8717, %v10254
        %v10662 = vadd.f32 %v8721, %v10258
        %v10663 = vadd.f32 %v8723, %v10260
        %v10664 = vadd.f32 %v8725, %v10262
        %v10665 = vadd.f32 %v8727, %v10264
        %v10666 = vadd.f32 %v8731, %v10268
        %v10667 = vadd.f32 %v8733, %v10270
        %v10668 = vadd.f32 %v8735, %v10272
        %v10669 = vadd.f32 %v8737, %v10274
        %v10670 = vadd.f32 %v8741, %v10278
        %v10671 = vadd.f32 %v8743, %v10280
        %v10672 = vadd.f32 %v8745, %v10282
        %v10673 = vadd.f32 %v8747, %v10284
        %v10674 = vadd.f32 %v8751, %v10288
        %v10675 = vadd.f32 %v8753, %v10290
        %v10676 = vadd.f32 %v8755, %v10292
        %v10677 = vadd.f32 %v8757, %v10294
        %v10678 = vadd.f32 %v8761, %v10298
        %v10679 = vadd.f32 %v8763, %v10300
        %v10680 = vadd.f32 %v8765, %v10302
        %v10681 = vadd.f32 %v8767, %v10304
        %v10682 = vadd.f32 %v8771, %v10308
        %v10683 = vadd.f32 %v8773, %v10310
        %v10684 = vadd.f32 %v8775, %v10312
        %v10685 = vadd.f32 %v8777, %v10314
        %v10686 = vadd.f32 %v8781, %v10318
        %v10687 = vadd.f32 %v8783, %v10320
        %v10688 = vadd.f32 %v8785, %v10322
        %v10689 = vadd.f32 %v8787, %v10324
        %v10690 = vadd.f32 %v8791, %v10328
        %v10691 = vadd.f32 %v8793, %v10330
        %v10692 = vadd.f32 %v8795, %v10332
        %v10693 = vadd.f32 %v8797, %v10334
        %v10694 = vadd.f32 %v8801, %v10338
        %v10695 = vadd.f32 %v8803, %v10340
        %v10696 = vadd.f32 %v8805, %v10342
        %v10697 = vadd.f32 %v8807, %v10344
        %v10698 = vadd.f32 %v8811, %v10348
        %v10699 = vadd.f32 %v8813, %v10350
        %v10700 = vadd.f32 %v8815, %v10352
        %v10701 = vadd.f32 %v8817, %v10354
        %v10702 = vadd.f32 %v8821, %v10358
        %v10703 = vadd.f32 %v8823, %v10360
        %v10704 = vadd.f32 %v8825, %v10362
        %v10705 = vadd.f32 %v8827, %v10364
        %v10706 = vadd.f32 %v8831, %v10368
        %v10707 = vadd.f32 %v8833, %v10370
        %v10708 = vadd.f32 %v8835, %v10372
        %v10709 = vadd.f32 %v8837, %v10374
        %v10710 = vadd.f32 %v8841, %v10378
        %v10711 = vadd.f32 %v8843, %v10380
        %v10712 = vadd.f32 %v8845, %v10382
        %v10713 = vadd.f32 %v8847, %v10384
        %v10714 = vadd.f32 %v8851, %v10388
        %v10715 = vadd.f32 %v8853, %v10390
        %v10716 = vadd.f32 %v8855, %v10392
        %v10717 = vadd.f32 %v8857, %v10394
        %v10718 = vadd.f32 %v8861, %v10398
        %v10719 = vadd.f32 %v8863, %v10400
        %v10720 = vadd.f32 %v8865, %v10402
        %v10721 = vadd.f32 %v8867, %v10404
        %v10722 = vadd.f32 %v8871, %v10408
        %v10723 = vadd.f32 %v8873, %v10410
        %v10724 = vadd.f32 %v8875, %v10412
        %v10725 = vadd.f32 %v8877, %v10414
        %v10726 = vadd.f32 %v8881, %v10418
        %v10727 = vadd.f32 %v8883, %v10420
        %v10728 = vadd.f32 %v8885, %v10422
        %v10729 = vadd.f32 %v8887, %v10424
        %v10730 = vadd.f32 %v8891, %v10428
        %v10731 = vadd.f32 %v8893, %v10430
        %v10732 = vadd.f32 %v8895, %v10432
        %v10733 = vadd.f32 %v8897, %v10434
        %v10734 = vadd.f32 %v8901, %v10438
        %v10735 = vadd.f32 %v8903, %v10440
        %v10736 = vadd.f32 %v8905, %v10442
        %v10737 = vadd.f32 %v8907, %v10444
        %v10738 = vadd.f32 %v8911, %v10448
        %v10739 = vadd.f32 %v8913, %v10450
        %v10740 = vadd.f32 %v8915, %v10452
        %v10741 = vadd.f32 %v8917, %v10454
        %v10742 = vadd.f32 %v8921, %v10458
        %v10743 = vadd.f32 %v8923, %v10460
        %v10744 = vadd.f32 %v8925, %v10462
        %v10745 = vadd.f32 %v8927, %v10464
        %v10746 = vadd.f32 %v8931, %v10468
        %v10747 = vadd.f32 %v8933, %v10470
        %v10748 = vadd.f32 %v8935, %v10472
        %v10749 = vadd.f32 %v8937, %v10474
        %v10750 = vadd.f32 %v8941, %v10478
        %v10751 = vadd.f32 %v8943, %v10480
        %v10752 = vadd.f32 %v8945, %v10482
        %v10753 = vadd.f32 %v8947, %v10484
        %v10754 = vadd.f32 %v8951, %v10488
        %v10755 = vadd.f32 %v8953, %v10490
        %v10756 = vadd.f32 %v8955, %v10492
        %v10757 = vadd.f32 %v8957, %v10494
        %v10758 = vadd.f32 %v8961, %v10498
        %v10759 = vadd.f32 %v8963, %v10500
        %v10760 = vadd.f32 %v8965, %v10502
        %v10761 = vadd.f32 %v8967, %v10504
        %10762 = vst [vmem:[%s563] sm:$0xff] %v10506
        %10763 = vst [vmem:[%s563 + $0x8] sm:$0xff] %v10507
        %10764 = vst [vmem:[%s563 + $0x10] sm:$0xff] %v10508
        %10765 = vst [vmem:[%s563 + $0x18] sm:$0xff] %v10509
        %10766 = vst [vmem:[%s563 + $0x20] sm:$0xff] %v10510
        %10767 = vst [vmem:[%s563 + $0x28] sm:$0xff] %v10511
        %10768 = vst [vmem:[%s563 + $0x30] sm:$0xff] %v10512
        %10769 = vst [vmem:[%s563 + $0x38] sm:$0xff] %v10513
        %10770 = vst [vmem:[%s563 + $0x40] sm:$0xff] %v10514
        %10771 = vst [vmem:[%s563 + $0x48] sm:$0xff] %v10515
        %10772 = vst [vmem:[%s563 + $0x50] sm:$0xff] %v10516
        %10773 = vst [vmem:[%s563 + $0x58] sm:$0xff] %v10517
        %10774 = vst [vmem:[%s563 + $0x60] sm:$0xff] %v10518
        %10775 = vst [vmem:[%s563 + $0x68] sm:$0xff] %v10519
        %10776 = vst [vmem:[%s563 + $0x70] sm:$0xff] %v10520
        %10777 = vst [vmem:[%s563 + $0x78] sm:$0xff] %v10521
        %10778 = vst [vmem:[%s563 + $0x80] sm:$0xff] %v10522
        %10779 = vst [vmem:[%s563 + $0x88] sm:$0xff] %v10523
        %10780 = vst [vmem:[%s563 + $0x90] sm:$0xff] %v10524
        %10781 = vst [vmem:[%s563 + $0x98] sm:$0xff] %v10525
        %10782 = vst [vmem:[%s563 + $0xa0] sm:$0xff] %v10526
        %10783 = vst [vmem:[%s563 + $0xa8] sm:$0xff] %v10527
        %10784 = vst [vmem:[%s563 + $0xb0] sm:$0xff] %v10528
        %10785 = vst [vmem:[%s563 + $0xb8] sm:$0xff] %v10529
        %10786 = vst [vmem:[%s563 + $0xc0] sm:$0xff] %v10530
        %10787 = vst [vmem:[%s563 + $0xc8] sm:$0xff] %v10531
        %10788 = vst [vmem:[%s563 + $0xd0] sm:$0xff] %v10532
        %10789 = vst [vmem:[%s563 + $0xd8] sm:$0xff] %v10533
        %10790 = vst [vmem:[%s563 + $0xe0] sm:$0xff] %v10534
        %10791 = vst [vmem:[%s563 + $0xe8] sm:$0xff] %v10535
        %10792 = vst [vmem:[%s563 + $0xf0] sm:$0xff] %v10536
        %10793 = vst [vmem:[%s563 + $0xf8] sm:$0xff] %v10537
        %10794 = vst [vmem:[%s563 + $0x100] sm:$0xff] %v10538
        %10795 = vst [vmem:[%s563 + $0x108] sm:$0xff] %v10539
        %10796 = vst [vmem:[%s563 + $0x110] sm:$0xff] %v10540
        %10797 = vst [vmem:[%s563 + $0x118] sm:$0xff] %v10541
        %10798 = vst [vmem:[%s563 + $0x120] sm:$0xff] %v10542
        %10799 = vst [vmem:[%s563 + $0x128] sm:$0xff] %v10543
        %10800 = vst [vmem:[%s563 + $0x130] sm:$0xff] %v10544
        %10801 = vst [vmem:[%s563 + $0x138] sm:$0xff] %v10545
        %10802 = vst [vmem:[%s563 + $0x140] sm:$0xff] %v10546
        %10803 = vst [vmem:[%s563 + $0x148] sm:$0xff] %v10547
        %10804 = vst [vmem:[%s563 + $0x150] sm:$0xff] %v10548
        %10805 = vst [vmem:[%s563 + $0x158] sm:$0xff] %v10549
        %10806 = vst [vmem:[%s563 + $0x160] sm:$0xff] %v10550
        %10807 = vst [vmem:[%s563 + $0x168] sm:$0xff] %v10551
        %10808 = vst [vmem:[%s563 + $0x170] sm:$0xff] %v10552
        %10809 = vst [vmem:[%s563 + $0x178] sm:$0xff] %v10553
        %10810 = vst [vmem:[%s563 + $0x180] sm:$0xff] %v10554
        %10811 = vst [vmem:[%s563 + $0x188] sm:$0xff] %v10555
        %10812 = vst [vmem:[%s563 + $0x190] sm:$0xff] %v10556
        %10813 = vst [vmem:[%s563 + $0x198] sm:$0xff] %v10557
        %10814 = vst [vmem:[%s563 + $0x1a0] sm:$0xff] %v10558
        %10815 = vst [vmem:[%s563 + $0x1a8] sm:$0xff] %v10559
        %10816 = vst [vmem:[%s563 + $0x1b0] sm:$0xff] %v10560
        %10817 = vst [vmem:[%s563 + $0x1b8] sm:$0xff] %v10561
        %10818 = vst [vmem:[%s563 + $0x1c0] sm:$0xff] %v10562
        %10819 = vst [vmem:[%s563 + $0x1c8] sm:$0xff] %v10563
        %10820 = vst [vmem:[%s563 + $0x1d0] sm:$0xff] %v10564
        %10821 = vst [vmem:[%s563 + $0x1d8] sm:$0xff] %v10565
        %10822 = vst [vmem:[%s563 + $0x1e0] sm:$0xff] %v10566
        %10823 = vst [vmem:[%s563 + $0x1e8] sm:$0xff] %v10567
        %10824 = vst [vmem:[%s563 + $0x1f0] sm:$0xff] %v10568
        %10825 = vst [vmem:[%s563 + $0x1f8] sm:$0xff] %v10569
        %10826 = vst [vmem:[%s563 + $0x200] sm:$0xff] %v10570
        %10827 = vst [vmem:[%s563 + $0x208] sm:$0xff] %v10571
        %10828 = vst [vmem:[%s563 + $0x210] sm:$0xff] %v10572
        %10829 = vst [vmem:[%s563 + $0x218] sm:$0xff] %v10573
        %10830 = vst [vmem:[%s563 + $0x220] sm:$0xff] %v10574
        %10831 = vst [vmem:[%s563 + $0x228] sm:$0xff] %v10575
        %10832 = vst [vmem:[%s563 + $0x230] sm:$0xff] %v10576
        %10833 = vst [vmem:[%s563 + $0x238] sm:$0xff] %v10577
        %10834 = vst [vmem:[%s563 + $0x240] sm:$0xff] %v10578
        %10835 = vst [vmem:[%s563 + $0x248] sm:$0xff] %v10579
        %10836 = vst [vmem:[%s563 + $0x250] sm:$0xff] %v10580
        %10837 = vst [vmem:[%s563 + $0x258] sm:$0xff] %v10581
        %10838 = vst [vmem:[%s563 + $0x260] sm:$0xff] %v10582
        %10839 = vst [vmem:[%s563 + $0x268] sm:$0xff] %v10583
        %10840 = vst [vmem:[%s563 + $0x270] sm:$0xff] %v10584
        %10841 = vst [vmem:[%s563 + $0x278] sm:$0xff] %v10585
        %10842 = vst [vmem:[%s563 + $0x280] sm:$0xff] %v10586
        %10843 = vst [vmem:[%s563 + $0x288] sm:$0xff] %v10587
        %10844 = vst [vmem:[%s563 + $0x290] sm:$0xff] %v10588
        %10845 = vst [vmem:[%s563 + $0x298] sm:$0xff] %v10589
        %10846 = vst [vmem:[%s563 + $0x2a0] sm:$0xff] %v10590
        %10847 = vst [vmem:[%s563 + $0x2a8] sm:$0xff] %v10591
        %10848 = vst [vmem:[%s563 + $0x2b0] sm:$0xff] %v10592
        %10849 = vst [vmem:[%s563 + $0x2b8] sm:$0xff] %v10593
        %10850 = vst [vmem:[%s563 + $0x2c0] sm:$0xff] %v10594
        %10851 = vst [vmem:[%s563 + $0x2c8] sm:$0xff] %v10595
        %10852 = vst [vmem:[%s563 + $0x2d0] sm:$0xff] %v10596
        %10853 = vst [vmem:[%s563 + $0x2d8] sm:$0xff] %v10597
        %10854 = vst [vmem:[%s563 + $0x2e0] sm:$0xff] %v10598
        %10855 = vst [vmem:[%s563 + $0x2e8] sm:$0xff] %v10599
        %10856 = vst [vmem:[%s563 + $0x2f0] sm:$0xff] %v10600
        %10857 = vst [vmem:[%s563 + $0x2f8] sm:$0xff] %v10601
        %10858 = vst [vmem:[%s563 + $0x300] sm:$0xff] %v10602
        %10859 = vst [vmem:[%s563 + $0x308] sm:$0xff] %v10603
        %10860 = vst [vmem:[%s563 + $0x310] sm:$0xff] %v10604
        %10861 = vst [vmem:[%s563 + $0x318] sm:$0xff] %v10605
        %10862 = vst [vmem:[%s563 + $0x320] sm:$0xff] %v10606
        %10863 = vst [vmem:[%s563 + $0x328] sm:$0xff] %v10607
        %10864 = vst [vmem:[%s563 + $0x330] sm:$0xff] %v10608
        %10865 = vst [vmem:[%s563 + $0x338] sm:$0xff] %v10609
        %10866 = vst [vmem:[%s563 + $0x340] sm:$0xff] %v10610
        %10867 = vst [vmem:[%s563 + $0x348] sm:$0xff] %v10611
        %10868 = vst [vmem:[%s563 + $0x350] sm:$0xff] %v10612
        %10869 = vst [vmem:[%s563 + $0x358] sm:$0xff] %v10613
        %10870 = vst [vmem:[%s563 + $0x360] sm:$0xff] %v10614
        %10871 = vst [vmem:[%s563 + $0x368] sm:$0xff] %v10615
        %10872 = vst [vmem:[%s563 + $0x370] sm:$0xff] %v10616
        %10873 = vst [vmem:[%s563 + $0x378] sm:$0xff] %v10617
        %10874 = vst [vmem:[%s563 + $0x380] sm:$0xff] %v10618
        %10875 = vst [vmem:[%s563 + $0x388] sm:$0xff] %v10619
        %10876 = vst [vmem:[%s563 + $0x390] sm:$0xff] %v10620
        %10877 = vst [vmem:[%s563 + $0x398] sm:$0xff] %v10621
        %10878 = vst [vmem:[%s563 + $0x3a0] sm:$0xff] %v10622
        %10879 = vst [vmem:[%s563 + $0x3a8] sm:$0xff] %v10623
        %10880 = vst [vmem:[%s563 + $0x3b0] sm:$0xff] %v10624
        %10881 = vst [vmem:[%s563 + $0x3b8] sm:$0xff] %v10625
        %10882 = vst [vmem:[%s563 + $0x3c0] sm:$0xff] %v10626
        %10883 = vst [vmem:[%s563 + $0x3c8] sm:$0xff] %v10627
        %10884 = vst [vmem:[%s563 + $0x3d0] sm:$0xff] %v10628
        %10885 = vst [vmem:[%s563 + $0x3d8] sm:$0xff] %v10629
        %10886 = vst [vmem:[%s563 + $0x3e0] sm:$0xff] %v10630
        %10887 = vst [vmem:[%s563 + $0x3e8] sm:$0xff] %v10631
        %10888 = vst [vmem:[%s563 + $0x3f0] sm:$0xff] %v10632
        %10889 = vst [vmem:[%s563 + $0x3f8] sm:$0xff] %v10633
        %10890 = vst [vmem:[%s563 + $0x400] sm:$0xff] %v10634
        %10891 = vst [vmem:[%s563 + $0x408] sm:$0xff] %v10635
        %10892 = vst [vmem:[%s563 + $0x410] sm:$0xff] %v10636
        %10893 = vst [vmem:[%s563 + $0x418] sm:$0xff] %v10637
        %10894 = vst [vmem:[%s563 + $0x420] sm:$0xff] %v10638
        %10895 = vst [vmem:[%s563 + $0x428] sm:$0xff] %v10639
        %10896 = vst [vmem:[%s563 + $0x430] sm:$0xff] %v10640
        %10897 = vst [vmem:[%s563 + $0x438] sm:$0xff] %v10641
        %10898 = vst [vmem:[%s563 + $0x440] sm:$0xff] %v10642
        %10899 = vst [vmem:[%s563 + $0x448] sm:$0xff] %v10643
        %10900 = vst [vmem:[%s563 + $0x450] sm:$0xff] %v10644
        %10901 = vst [vmem:[%s563 + $0x458] sm:$0xff] %v10645
        %10902 = vst [vmem:[%s563 + $0x460] sm:$0xff] %v10646
        %10903 = vst [vmem:[%s563 + $0x468] sm:$0xff] %v10647
        %10904 = vst [vmem:[%s563 + $0x470] sm:$0xff] %v10648
        %10905 = vst [vmem:[%s563 + $0x478] sm:$0xff] %v10649
        %10906 = vst [vmem:[%s563 + $0x480] sm:$0xff] %v10650
        %10907 = vst [vmem:[%s563 + $0x488] sm:$0xff] %v10651
        %10908 = vst [vmem:[%s563 + $0x490] sm:$0xff] %v10652
        %10909 = vst [vmem:[%s563 + $0x498] sm:$0xff] %v10653
        %10910 = vst [vmem:[%s563 + $0x4a0] sm:$0xff] %v10654
        %10911 = vst [vmem:[%s563 + $0x4a8] sm:$0xff] %v10655
        %10912 = vst [vmem:[%s563 + $0x4b0] sm:$0xff] %v10656
        %10913 = vst [vmem:[%s563 + $0x4b8] sm:$0xff] %v10657
        %10914 = vst [vmem:[%s563 + $0x4c0] sm:$0xff] %v10658
        %10915 = vst [vmem:[%s563 + $0x4c8] sm:$0xff] %v10659
        %10916 = vst [vmem:[%s563 + $0x4d0] sm:$0xff] %v10660
        %10917 = vst [vmem:[%s563 + $0x4d8] sm:$0xff] %v10661
        %10918 = vst [vmem:[%s563 + $0x4e0] sm:$0xff] %v10662
        %10919 = vst [vmem:[%s563 + $0x4e8] sm:$0xff] %v10663
        %10920 = vst [vmem:[%s563 + $0x4f0] sm:$0xff] %v10664
        %10921 = vst [vmem:[%s563 + $0x4f8] sm:$0xff] %v10665
        %10922 = vst [vmem:[%s563 + $0x500] sm:$0xff] %v10666
        %10923 = vst [vmem:[%s563 + $0x508] sm:$0xff] %v10667
        %10924 = vst [vmem:[%s563 + $0x510] sm:$0xff] %v10668
        %10925 = vst [vmem:[%s563 + $0x518] sm:$0xff] %v10669
        %10926 = vst [vmem:[%s563 + $0x520] sm:$0xff] %v10670
        %10927 = vst [vmem:[%s563 + $0x528] sm:$0xff] %v10671
        %10928 = vst [vmem:[%s563 + $0x530] sm:$0xff] %v10672
        %10929 = vst [vmem:[%s563 + $0x538] sm:$0xff] %v10673
        %10930 = vst [vmem:[%s563 + $0x540] sm:$0xff] %v10674
        %10931 = vst [vmem:[%s563 + $0x548] sm:$0xff] %v10675
        %10932 = vst [vmem:[%s563 + $0x550] sm:$0xff] %v10676
        %10933 = vst [vmem:[%s563 + $0x558] sm:$0xff] %v10677
        %10934 = vst [vmem:[%s563 + $0x560] sm:$0xff] %v10678
        %10935 = vst [vmem:[%s563 + $0x568] sm:$0xff] %v10679
        %10936 = vst [vmem:[%s563 + $0x570] sm:$0xff] %v10680
        %10937 = vst [vmem:[%s563 + $0x578] sm:$0xff] %v10681
        %10938 = vst [vmem:[%s563 + $0x580] sm:$0xff] %v10682
        %10939 = vst [vmem:[%s563 + $0x588] sm:$0xff] %v10683
        %10940 = vst [vmem:[%s563 + $0x590] sm:$0xff] %v10684
        %10941 = vst [vmem:[%s563 + $0x598] sm:$0xff] %v10685
        %10942 = vst [vmem:[%s563 + $0x5a0] sm:$0xff] %v10686
        %10943 = vst [vmem:[%s563 + $0x5a8] sm:$0xff] %v10687
        %10944 = vst [vmem:[%s563 + $0x5b0] sm:$0xff] %v10688
        %10945 = vst [vmem:[%s563 + $0x5b8] sm:$0xff] %v10689
        %10946 = vst [vmem:[%s563 + $0x5c0] sm:$0xff] %v10690
        %10947 = vst [vmem:[%s563 + $0x5c8] sm:$0xff] %v10691
        %10948 = vst [vmem:[%s563 + $0x5d0] sm:$0xff] %v10692
        %10949 = vst [vmem:[%s563 + $0x5d8] sm:$0xff] %v10693
        %10950 = vst [vmem:[%s563 + $0x5e0] sm:$0xff] %v10694
        %10951 = vst [vmem:[%s563 + $0x5e8] sm:$0xff] %v10695
        %10952 = vst [vmem:[%s563 + $0x5f0] sm:$0xff] %v10696
        %10953 = vst [vmem:[%s563 + $0x5f8] sm:$0xff] %v10697
        %10954 = vst [vmem:[%s563 + $0x600] sm:$0xff] %v10698
        %10955 = vst [vmem:[%s563 + $0x608] sm:$0xff] %v10699
        %10956 = vst [vmem:[%s563 + $0x610] sm:$0xff] %v10700
        %10957 = vst [vmem:[%s563 + $0x618] sm:$0xff] %v10701
        %10958 = vst [vmem:[%s563 + $0x620] sm:$0xff] %v10702
        %10959 = vst [vmem:[%s563 + $0x628] sm:$0xff] %v10703
        %10960 = vst [vmem:[%s563 + $0x630] sm:$0xff] %v10704
        %10961 = vst [vmem:[%s563 + $0x638] sm:$0xff] %v10705
        %10962 = vst [vmem:[%s563 + $0x640] sm:$0xff] %v10706
        %10963 = vst [vmem:[%s563 + $0x648] sm:$0xff] %v10707
        %10964 = vst [vmem:[%s563 + $0x650] sm:$0xff] %v10708
        %10965 = vst [vmem:[%s563 + $0x658] sm:$0xff] %v10709
        %10966 = vst [vmem:[%s563 + $0x660] sm:$0xff] %v10710
        %10967 = vst [vmem:[%s563 + $0x668] sm:$0xff] %v10711
        %10968 = vst [vmem:[%s563 + $0x670] sm:$0xff] %v10712
        %10969 = vst [vmem:[%s563 + $0x678] sm:$0xff] %v10713
        %10970 = vst [vmem:[%s563 + $0x680] sm:$0xff] %v10714
        %10971 = vst [vmem:[%s563 + $0x688] sm:$0xff] %v10715
        %10972 = vst [vmem:[%s563 + $0x690] sm:$0xff] %v10716
        %10973 = vst [vmem:[%s563 + $0x698] sm:$0xff] %v10717
        %10974 = vst [vmem:[%s563 + $0x6a0] sm:$0xff] %v10718
        %10975 = vst [vmem:[%s563 + $0x6a8] sm:$0xff] %v10719
        %10976 = vst [vmem:[%s563 + $0x6b0] sm:$0xff] %v10720
        %10977 = vst [vmem:[%s563 + $0x6b8] sm:$0xff] %v10721
        %10978 = vst [vmem:[%s563 + $0x6c0] sm:$0xff] %v10722
        %10979 = vst [vmem:[%s563 + $0x6c8] sm:$0xff] %v10723
        %10980 = vst [vmem:[%s563 + $0x6d0] sm:$0xff] %v10724
        %10981 = vst [vmem:[%s563 + $0x6d8] sm:$0xff] %v10725
        %10982 = vst [vmem:[%s563 + $0x6e0] sm:$0xff] %v10726
        %10983 = vst [vmem:[%s563 + $0x6e8] sm:$0xff] %v10727
        %10984 = vst [vmem:[%s563 + $0x6f0] sm:$0xff] %v10728
        %10985 = vst [vmem:[%s563 + $0x6f8] sm:$0xff] %v10729
        %10986 = vst [vmem:[%s563 + $0x700] sm:$0xff] %v10730
        %10987 = vst [vmem:[%s563 + $0x708] sm:$0xff] %v10731
        %10988 = vst [vmem:[%s563 + $0x710] sm:$0xff] %v10732
        %10989 = vst [vmem:[%s563 + $0x718] sm:$0xff] %v10733
        %10990 = vst [vmem:[%s563 + $0x720] sm:$0xff] %v10734
        %10991 = vst [vmem:[%s563 + $0x728] sm:$0xff] %v10735
        %10992 = vst [vmem:[%s563 + $0x730] sm:$0xff] %v10736
        %10993 = vst [vmem:[%s563 + $0x738] sm:$0xff] %v10737
        %10994 = vst [vmem:[%s563 + $0x740] sm:$0xff] %v10738
        %10995 = vst [vmem:[%s563 + $0x748] sm:$0xff] %v10739
        %10996 = vst [vmem:[%s563 + $0x750] sm:$0xff] %v10740
        %10997 = vst [vmem:[%s563 + $0x758] sm:$0xff] %v10741
        %10998 = vst [vmem:[%s563 + $0x760] sm:$0xff] %v10742
        %10999 = vst [vmem:[%s563 + $0x768] sm:$0xff] %v10743
        %11000 = vst [vmem:[%s563 + $0x770] sm:$0xff] %v10744
        %11001 = vst [vmem:[%s563 + $0x778] sm:$0xff] %v10745
        %11002 = vst [vmem:[%s563 + $0x780] sm:$0xff] %v10746
        %11003 = vst [vmem:[%s563 + $0x788] sm:$0xff] %v10747
        %11004 = vst [vmem:[%s563 + $0x790] sm:$0xff] %v10748
        %11005 = vst [vmem:[%s563 + $0x798] sm:$0xff] %v10749
        %11006 = vst [vmem:[%s563 + $0x7a0] sm:$0xff] %v10750
        %11007 = vst [vmem:[%s563 + $0x7a8] sm:$0xff] %v10751
        %11008 = vst [vmem:[%s563 + $0x7b0] sm:$0xff] %v10752
        %11009 = vst [vmem:[%s563 + $0x7b8] sm:$0xff] %v10753
        %11010 = vst [vmem:[%s563 + $0x7c0] sm:$0xff] %v10754
        %11011 = vst [vmem:[%s563 + $0x7c8] sm:$0xff] %v10755
        %11012 = vst [vmem:[%s563 + $0x7d0] sm:$0xff] %v10756
        %11013 = vst [vmem:[%s563 + $0x7d8] sm:$0xff] %v10757
        %11014 = vst [vmem:[%s563 + $0x7e0] sm:$0xff] %v10758
        %11015 = vst [vmem:[%s563 + $0x7e8] sm:$0xff] %v10759
        %11016 = vst [vmem:[%s563 + $0x7f0] sm:$0xff] %v10760
        %11017 = vst [vmem:[%s563 + $0x7f8] sm:$0xff] %v10761
        %s11018 = sand.u32 %s335, 1
        %s11019 = scalar_lea.sflag [#allocation3], %s11018
        %s11020 = sand.u32 %s335, 1
        %s11021 = smul.addr %s11020, 2048
        %s11022 = scalar_lea.vmem [#allocation2], %s11021
        %s11023 = sand.u32 %s34, 1
        %s11024 = scalar_lea.sflag [#allocation5], %s11023
        %s11025 = sand.u32 %s361, 1
        %s11026 = smul.addr %s11025, 512
        %s11027 = scalar_lea.vmem [#allocation4], %s11026
        %s11028 = sand.u32 %s34, 1
        %s11029 = scalar_lea.sflag [#allocation5], %s11028
        %s11030 = sand.u32 %s387, 1
        %s11031 = smul.addr %s11030, 128
        %s11032 = scalar_lea.vmem [#allocation6], %s11031
        %p11033 = scmp.lt.s32.totalorder %s34, 1
        %s11034 = scalar_select %p11033, %s34, 1
        %s11035 = smul.addr %s11034, 4
        %s11036 = smul.addr %s11035, 8
        %s11037 = scalar_lea.vmem %s16, %s11036
        // Predicated region
        $region73: #{fpn_forward.1} parent=71 // pred_check
          %p11038 = pneg %p345
        $region74: #{fpn_forward.1} parent=71 // pred_check_branch
          %11040 = sbr.rel (%p11038) target = $region76
        $region75: #{fpn_forward.1} parent=71 // pred_region
          %s11042 = ssub.s32 32768, 32768
          %11043 = vsyncadd %s11019, %s11042
          %s11044 = smul.addr %s34, 256
          %s11045 = smul.addr %s11044, 128
          %s11046 = scalar_lea.hbm %s13, %s11045
          %s11047 = sshll.u32 %s11022, 4
          %s11048 = int_to_ptr.vmem [resolvable:$true] %s11047
          %11053 = dma.vmem_to_hbm [thread:$0]  %s11048, 32768, %s11046, %s11019, 256, 256, 16
        $region76: #{fpn_forward.1} parent=71 // pred_fallthru
          _
        // Predicated region
        $region77: #{fpn_forward.1} parent=71 // pred_check
          %p11054 = pneg %p371
        $region78: #{fpn_forward.1} parent=71 // pred_check_branch
          %11056 = sbr.rel (%p11054) target = $region80
        $region79: #{fpn_forward.1} parent=71 // pred_region
          %s11058 = ssub.s32 8192, 8192
          %11059 = vsyncadd %s11024, %s11058
          %s11060 = smul.addr %s34, 64
          %s11061 = smul.addr %s11060, 128
          %s11062 = scalar_lea.hbm %s14, %s11061
          %s11063 = sshll.u32 %s11027, 4
          %s11064 = int_to_ptr.vmem [resolvable:$true] %s11063
          %11069 = dma.vmem_to_hbm [thread:$0]  %s11064, 8192, %s11062, %s11024, 256, 256, 16
        $region80: #{fpn_forward.1} parent=71 // pred_fallthru
          _
        // Predicated region
        $region81: #{fpn_forward.1} parent=71 // pred_check
          %p11070 = pneg %p397
        $region82: #{fpn_forward.1} parent=71 // pred_check_branch
          %11072 = sbr.rel (%p11070) target = $region84
        $region83: #{fpn_forward.1} parent=71 // pred_region
          %s11074 = ssub.s32 2048, 2048
          %11075 = vsyncadd %s11029, %s11074
          %s11076 = smul.addr %s34, 16
          %s11077 = smul.addr %s11076, 128
          %s11078 = scalar_lea.hbm %s15, %s11077
          %s11079 = sshll.u32 %s11032, 4
          %s11080 = int_to_ptr.vmem [resolvable:$true] %s11079
          %11085 = dma.vmem_to_hbm [thread:$0]  %s11080, 2048, %s11078, %s11029, 256, 256, 16
        $region84: #{fpn_forward.1} parent=71 // pred_fallthru
          _
        // Predicated region
        $region85: #{fpn_forward.1} parent=71 // pred_check
          %p11086 = pneg %p423
        $region86: #{fpn_forward.1} parent=71 // pred_check_branch
          %11088 = sbr.rel (%p11086) target = $region88
        $region87: #{fpn_forward.1} parent=71 // pred_region
          _
        $region88: #{fpn_forward.1} parent=71 // pred_fallthru
          _
      $region72: #{fpn_forward.1} parent=5 // pred_fallthru
        _
      %p11089 = scmp.le.s32.totalorder 2, %s29
      // Predicated region
      $region89: #{fpn_forward.1} parent=5 // pred_check
        %p11090 = pneg %p11089
      $region90: #{fpn_forward.1} parent=5 // pred_check_branch
        %11092 = sbr.rel (%p11090) target = $region92
      $region91: #{fpn_forward.1} parent=5 // pred_region
        %s11093 = ssub.s32 %s29, 2
        // Predicated region
        $region93: #{fpn_forward.1} parent=91 // pred_check
          %p11094 = pneg %p351
        $region94: #{fpn_forward.1} parent=91 // pred_check_branch
          %11096 = sbr.rel (%p11094) target = $region96
        $region95: #{fpn_forward.1} parent=91 // pred_region
          %s11097 = sand.u32 %s336, 1
          %s11098 = scalar_lea.sflag [#allocation3], %s11097
          %s11099 = sand.u32 %s336, 1
          %s11100 = smul.addr %s11099, 2048
          %s11101 = scalar_lea.vmem [#allocation2], %s11100
          %11102 = dma.done %s11098, 32768
        $region96: #{fpn_forward.1} parent=91 // pred_fallthru
          _
        // Predicated region
        $region97: #{fpn_forward.1} parent=91 // pred_check
          %p11103 = pneg %p377
        $region98: #{fpn_forward.1} parent=91 // pred_check_branch
          %11105 = sbr.rel (%p11103) target = $region100
        $region99: #{fpn_forward.1} parent=91 // pred_region
          %s11106 = sand.u32 %s35, 1
          %s11107 = scalar_lea.sflag [#allocation5], %s11106
          %s11108 = sand.u32 %s362, 1
          %s11109 = smul.addr %s11108, 512
          %s11110 = scalar_lea.vmem [#allocation4], %s11109
          %11111 = dma.done %s11107, 8192
        $region100: #{fpn_forward.1} parent=91 // pred_fallthru
          _
        // Predicated region
        $region101: #{fpn_forward.1} parent=91 // pred_check
          %p11112 = pneg %p403
        $region102: #{fpn_forward.1} parent=91 // pred_check_branch
          %11114 = sbr.rel (%p11112) target = $region104
        $region103: #{fpn_forward.1} parent=91 // pred_region
          %s11115 = sand.u32 %s35, 1
          %s11116 = scalar_lea.sflag [#allocation5], %s11115
          %s11117 = sand.u32 %s388, 1
          %s11118 = smul.addr %s11117, 128
          %s11119 = scalar_lea.vmem [#allocation6], %s11118
          %11120 = dma.done %s11116, 2048
        $region104: #{fpn_forward.1} parent=91 // pred_fallthru
          _
        // Predicated region
        $region105: #{fpn_forward.1} parent=91 // pred_check
          %p11121 = pneg %p429
        $region106: #{fpn_forward.1} parent=91 // pred_check_branch
          %11123 = sbr.rel (%p11121) target = $region108
        $region107: #{fpn_forward.1} parent=91 // pred_region
          %p11124 = scmp.lt.s32.totalorder %s35, 1
          %s11125 = scalar_select %p11124, %s35, 1
          %s11126 = smul.addr %s11125, 4
          %s11127 = smul.addr %s11126, 8
          %s11128 = scalar_lea.vmem %s16, %s11127
        $region108: #{fpn_forward.1} parent=91 // pred_fallthru
          _
      $region92: #{fpn_forward.1} parent=5 // pred_fallthru
        _
    $region6: #{fpn_forward.1} parent=1 // loop_footer
      %s33 = sadd.s32 1, %s29
    $region7: #{fpn_forward.1} parent=1 // loop_footer_branch
      %28 = sbr.rel target = $region3
    $region8: #{fpn_forward.1} parent=1 // loop_exit
      _
    %11129 = vsyncpa [#allocation3], 1
    %s11130 = scalar_lea.sflag [#allocation3], 1
    %11131 = vsyncpa %s11130, 1
    %11132 = vsyncpa [#allocation5], 1
    %s11133 = scalar_lea.sflag [#allocation5], 1
    %11134 = vsyncpa %s11133, 1

</llo_original>
